<compile_context>
chip_gen: v7x
topology: tpu7x:2x2x1
jax: 0.10.0
libtpu: 0.0.40
codegen_flags: <defaults>
</compile_context>

<pallas_src>
from functools import partial

import jax
import jax.numpy as jnp
from jax.experimental import pallas as pl
from jax.experimental.pallas import tpu as pltpu


def mha_kernel(x_ref, wqkv_ref, bqkv_ref, attn_bias_ref, wproj_ref, bproj_ref,
               o_ref, *, btile, head_nums):
    Bt = btile
    H = head_nums
    _, L, C = x_ref.shape
    D = C // H

    # ---- fused QKV projection: (Bt*L, C) @ (C, 3C) on the MXU ---------------
    x = x_ref[...].reshape(Bt * L, C).astype(jnp.bfloat16)
    qkv = jnp.dot(x, wqkv_ref[...], preferred_element_type=jnp.float32)
    qkv = (qkv + bqkv_ref[0]).reshape(Bt, L, 3 * C)          # f32

    # ---- per-head attention (H is small -> static unroll) -------------------
    # Head h of q/k/v is a static lane slice of the fused QKV columns, so no
    # (H, L, D) transposed tensors are materialized; each einsum has a single
    # leading batch dim (Bt), the known-good Mosaic batched-matmul pattern.
    head_outs = []
    for h in range(H):
        qh = qkv[:, :, 0 * C + h * D: 0 * C + (h + 1) * D].astype(jnp.bfloat16)
        kh = qkv[:, :, 1 * C + h * D: 1 * C + (h + 1) * D].astype(jnp.bfloat16)
        vh = qkv[:, :, 2 * C + h * D: 2 * C + (h + 1) * D].astype(jnp.bfloat16)

        # scores; the q-scale was folded into wqkv/bqkv at param-prep time
        s = jnp.einsum('bld,bmd->blm', qh, kh,
                       preferred_element_type=jnp.float32)    # (Bt, L, L) f32
        s = s + attn_bias_ref[h]                              # + (L, L) bias

        # TODO(synk): optional `mask` argument of the PyTorch forward is not
        # supported here (only the mask=None path is implemented).

        # numerically stable softmax in f32; the divide goes to the EUP
        s = s - jnp.max(s, axis=-1, keepdims=True)
        p = jnp.exp(s)
        p = p * pl.reciprocal(jnp.sum(p, axis=-1, keepdims=True), approx=True)

        # TODO(synk): attn_drop is identity (eval-mode dropout).
        head_outs.append(
            jnp.einsum('blm,bmd->bld', p.astype(jnp.bfloat16), vh,
                       preferred_element_type=jnp.float32))   # (Bt, L, D) f32

    out = jnp.concatenate(head_outs, axis=-1)                 # (Bt, L, C)

    # ---- output projection ---------------------------------------------------
    out = out.reshape(Bt * L, C).astype(jnp.bfloat16)
    y = jnp.dot(out, wproj_ref[...], preferred_element_type=jnp.float32)
    y = y + bproj_ref[0]
    # TODO(synk): proj_drop is identity (eval-mode dropout).

    o_ref[...] = y.reshape(Bt, L, C).astype(o_ref.dtype)


def prepare_params(params, head_nums):
    """One-time parameter transform: fold the softmax scale into the Q columns
    of the fused QKV weight/bias and cast the MXU weights to bfloat16."""
    C = params["wqkv"].shape[0]
    scale = (C // head_nums) ** (-0.5)

    wqkv = params["wqkv"].astype(jnp.float32)
    wqkv = wqkv.at[:, :C].multiply(scale)
    bqkv = params["bqkv"].astype(jnp.float32)
    bqkv = bqkv.at[:C].multiply(scale)

    return {
        "wqkv": wqkv.astype(jnp.bfloat16),                      # (C, 3C) bf16
        "bqkv": bqkv.reshape(1, 3 * C),                         # (1, 3C) f32
        "attn_bias": params["attn_bias"].astype(jnp.float32),   # (H, L, L) f32
        "wproj": params["wproj"].astype(jnp.bfloat16),          # (C, C)  bf16
        "bproj": params["bproj"].astype(jnp.float32).reshape(1, C),
    }


def multi_head_attention(x, prep, head_nums):
    B, L, C = x.shape
    H = head_nums
    D = C // H

    # Windows per grid step: big enough to fill MXU rows and amortize per-step
    # overhead, while keeping >=2 parallel grid steps when possible (v7x has
    # two TensorCores).  VMEM per step is < 2 MiB -- far under every chip's
    # scoped limit, so no vmem_limit override is needed.
    btile = 8 if (B % 8 == 0) else B
    grid = (B // btile,)

    flops = (2 * B * L * C * 3 * C          # fused QKV
             + 2 * B * H * L * L * D        # Q @ K^T
             + 2 * B * H * L * L * D        # attn @ V
             + 2 * B * L * C * C)           # output projection
    bytes_accessed = (
        int(x.size) * x.dtype.itemsize + B * L * C * x.dtype.itemsize
        + sum(int(v.size) * v.dtype.itemsize for v in prep.values()))
    cost = pl.CostEstimate(flops=flops,
                           transcendentals=B * H * L * L,
                           bytes_accessed=bytes_accessed)

    kern = partial(mha_kernel, btile=btile, head_nums=H)

    return pl.pallas_call(
        kern,
        out_shape=jax.ShapeDtypeStruct((B, L, C), x.dtype),
        grid=grid,
        in_specs=[
            pl.BlockSpec((btile, L, C), lambda b: (b, 0, 0)),   # x tile
            pl.BlockSpec((C, 3 * C), lambda b: (0, 0)),         # wqkv (resident)
            pl.BlockSpec((1, 3 * C), lambda b: (0, 0)),         # bqkv (resident)
            pl.BlockSpec((H, L, L), lambda b: (0, 0, 0)),       # rel. attn bias
            pl.BlockSpec((C, C), lambda b: (0, 0)),             # wproj (resident)
            pl.BlockSpec((1, C), lambda b: (0, 0)),             # bproj (resident)
        ],
        out_specs=pl.BlockSpec((btile, L, C), lambda b: (b, 0, 0)),
        compiler_params=pltpu.CompilerParams(
            dimension_semantics=("parallel",)),
        cost_estimate=cost,
    )(x, prep["wqkv"], prep["bqkv"], prep["attn_bias"], prep["wproj"],
      prep["bproj"])


def mha_reference(x, params, head_nums):
    """Pure-JAX f32 reference mirroring the PyTorch forward (mask=None, eval)."""
    B, L, C = x.shape
    H = head_nums
    D = C // H
    scale = D ** (-0.5)

    qkv = x @ params["wqkv"] + params["bqkv"]                  # (B, L, 3C)
    qkv = qkv.reshape(B, L, 3, H, D).transpose(2, 0, 3, 1, 4)  # (3, B, H, L, D)
    q, k, v = qkv[0], qkv[1], qkv[2]
    q = q * scale
    attn = jnp.einsum('bhld,bhmd->bhlm', q, k) + params["attn_bias"][None]
    attn = jax.nn.softmax(attn, axis=-1)
    out = jnp.einsum('bhlm,bhmd->bhld', attn, v)
    out = out.transpose(0, 2, 1, 3).reshape(B, L, C)
    return out @ params["wproj"] + params["bproj"]


if __name__ == "__main__":
    # Module-consistent small shapes:
    #   window_size = 8  -> L = 64 tokens per window
    #   channels    = 32, head_nums = 4 -> head_dim = 8
    #   B = 16 windows  -> btile = 8, grid = (2,)  (both v7x cores get work)
    B = 16
    head_nums = 4
    channels = 32
    window_size = 8
    L = window_size ** 2

    key = jax.random.PRNGKey(0)
    ks = jax.random.split(key, 6)

    # Deterministic synthetic parameters (shapes from the module's __init__);
    # linear weights stored transposed (torch W^T) so the kernel does x @ W.
    params = {
        "wqkv": jax.random.normal(ks[0], (channels, 3 * channels), jnp.float32) * 0.05,
        "bqkv": jax.random.normal(ks[1], (3 * channels,), jnp.float32) * 0.05,
        "attn_bias": jax.random.normal(ks[2], (head_nums, L, L), jnp.float32),
        "wproj": jax.random.normal(ks[3], (channels, channels), jnp.float32) * 0.05,
        "bproj": jax.random.normal(ks[4], (channels,), jnp.float32) * 0.05,
    }
    x = jax.random.normal(ks[5], (B, L, channels), jnp.float32)

    prep = prepare_params(params, head_nums)
    out = multi_head_attention(x, prep, head_nums)
    out = jax.block_until_ready(out)

    ref = mha_reference(x, params, head_nums)
    assert out.shape == (B, L, channels), out.shape
    max_err = float(jnp.max(jnp.abs(out - ref)))
    # bf16 MXU operands + approx reciprocal -> slightly looser tolerance than f32
    assert jnp.allclose(out, ref, atol=3e-2, rtol=3e-2), max_err

    print("KERNEL_OK")
</pallas_src>

<mosaic_0001>
module attributes {stable_mosaic.version = 11 : i64} {
  func.func @mha_kernel(%arg0: i32, %arg1: memref<8x64x32xf32, #tpu.memory_space<vmem>>, %arg2: memref<32x96xbf16, #tpu.memory_space<vmem>>, %arg3: memref<1x96xf32, #tpu.memory_space<vmem>>, %arg4: memref<4x64x64xf32, #tpu.memory_space<vmem>>, %arg5: memref<32x32xbf16, #tpu.memory_space<vmem>>, %arg6: memref<1x32xf32, #tpu.memory_space<vmem>>, %arg7: memref<8x64x32xf32, #tpu.memory_space<vmem>>) attributes {dimension_semantics = [#tpu.dimension_semantics<parallel>], iteration_bounds = array<i64: 2>, scalar_prefetch = 0 : i64, scratch_operands = 0 : i64, tpu.core_type = #tpu.core_type<tc>, window_params = [{transform_indices = @transform_0, window_bounds = array<i64: 8, 64, 32>}, {pipeline_mode = #tpu.pipeline_mode<synchronous>, transform_indices = @transform_1, window_bounds = array<i64: 32, 96>}, {pipeline_mode = #tpu.pipeline_mode<synchronous>, transform_indices = @transform_2, window_bounds = array<i64: 1, 96>}, {pipeline_mode = #tpu.pipeline_mode<synchronous>, transform_indices = @transform_3, window_bounds = array<i64: 4, 64, 64>}, {pipeline_mode = #tpu.pipeline_mode<synchronous>, transform_indices = @transform_4, window_bounds = array<i64: 32, 32>}, {pipeline_mode = #tpu.pipeline_mode<synchronous>, transform_indices = @transform_5, window_bounds = array<i64: 1, 32>}, {transform_indices = @transform_6, window_bounds = array<i64: 8, 64, 32>}]} {
    %c0 = arith.constant 0 : index
    %c0_0 = arith.constant 0 : index
    %c0_1 = arith.constant 0 : index
    %0 = vector.load %arg1[%c0, %c0_0, %c0_1] : memref<8x64x32xf32, #tpu.memory_space<vmem>>, vector<8x64x32xf32>
    %1 = vector.shape_cast %0 : vector<8x64x32xf32> to vector<512x32xf32>
    %2 = arith.truncf %1 : vector<512x32xf32> to vector<512x32xbf16>
    %c0_2 = arith.constant 0 : index
    %c0_3 = arith.constant 0 : index
    %3 = vector.load %arg2[%c0_2, %c0_3] : memref<32x96xbf16, #tpu.memory_space<vmem>>, vector<32x96xbf16>
    %cst = arith.constant dense<0.000000e+00> : vector<512x96xf32>
    %4 = tpu.matmul %2, %3, %cst {dimension_numbers = #tpu.dot_dimension_numbers<[1], [0], [0], [1], [0, 0, 1, 1], [], []>} : vector<512x32xbf16>, vector<32x96xbf16>, vector<512x96xf32> -> vector<512x96xf32>
    %c0_4 = arith.constant 0 : index
    %c0_5 = arith.constant 0 : index
    %5 = vector.load %arg3[%c0_4, %c0_5] : memref<1x96xf32, #tpu.memory_space<vmem>>, vector<1x96xf32>
    %6 = vector.shape_cast %5 : vector<1x96xf32> to vector<96xf32>
    %7 = vector.shape_cast %6 : vector<96xf32> to vector<1x96xf32>
    %8 = vector.broadcast %7 : vector<1x96xf32> to vector<512x96xf32>
    %9 = arith.addf %4, %8 : vector<512x96xf32>
    %10 = vector.shape_cast %9 : vector<512x96xf32> to vector<8x64x96xf32>
    %11 = vector.extract_strided_slice %10 {offsets = [0, 0, 0], sizes = [8, 64, 8], strides = [1, 1, 1]} : vector<8x64x96xf32> to vector<8x64x8xf32>
    %12 = arith.truncf %11 : vector<8x64x8xf32> to vector<8x64x8xbf16>
    %13 = vector.extract_strided_slice %10 {offsets = [0, 0, 32], sizes = [8, 64, 8], strides = [1, 1, 1]} : vector<8x64x96xf32> to vector<8x64x8xf32>
    %14 = arith.truncf %13 : vector<8x64x8xf32> to vector<8x64x8xbf16>
    %15 = vector.extract_strided_slice %10 {offsets = [0, 0, 64], sizes = [8, 64, 8], strides = [1, 1, 1]} : vector<8x64x96xf32> to vector<8x64x8xf32>
    %16 = arith.truncf %15 : vector<8x64x8xf32> to vector<8x64x8xbf16>
    "tpu.trace_start"() <{level = 10 : i32, message = "bld,bmd->blm"}> : () -> ()
    %cst_6 = arith.constant dense<0.000000e+00> : vector<8x64x64xf32>
    %17 = tpu.matmul %12, %14, %cst_6 {dimension_numbers = #tpu.dot_dimension_numbers<[2], [2], [1], [1], [0, 0, 0, 1, 1, 1], [0], [0]>} : vector<8x64x8xbf16>, vector<8x64x8xbf16>, vector<8x64x64xf32> -> vector<8x64x64xf32>
    "tpu.trace_stop"() : () -> ()
    %c0_7 = arith.constant 0 : index
    %c0_8 = arith.constant 0 : index
    %c0_9 = arith.constant 0 : index
    %18 = vector.load %arg4[%c0_7, %c0_8, %c0_9] : memref<4x64x64xf32, #tpu.memory_space<vmem>>, vector<1x64x64xf32>
    %19 = vector.shape_cast %18 : vector<1x64x64xf32> to vector<64x64xf32>
    %20 = vector.shape_cast %19 : vector<64x64xf32> to vector<1x64x64xf32>
    %21 = vector.broadcast %20 : vector<1x64x64xf32> to vector<8x64x64xf32>
    %22 = arith.addf %17, %21 : vector<8x64x64xf32>
    %cst_10 = arith.constant dense<0xFF800000> : vector<8x64xf32>
    %23 = vector.multi_reduction <maximumf>, %22, %cst_10 [2] : vector<8x64x64xf32> to vector<8x64xf32>
    %24 = vector.shape_cast %23 : vector<8x64xf32> to vector<8x64x1xf32>
    %25 = vector.broadcast %24 : vector<8x64x1xf32> to vector<8x64x64xf32>
    %26 = arith.subf %22, %25 : vector<8x64x64xf32>
    %27 = math.exp %26 : vector<8x64x64xf32>
    %cst_11 = arith.constant dense<0.000000e+00> : vector<8x64xf32>
    %28 = vector.multi_reduction <add>, %27, %cst_11 [2] : vector<8x64x64xf32> to vector<8x64xf32>
    %29 = vector.shape_cast %28 : vector<8x64xf32> to vector<8x64x1xf32>
    %30 = tpu.reciprocal %29 {approx = true} : vector<8x64x1xf32> -> vector<8x64x1xf32>
    %31 = vector.broadcast %30 : vector<8x64x1xf32> to vector<8x64x64xf32>
    %32 = arith.mulf %27, %31 : vector<8x64x64xf32>
    %33 = arith.truncf %32 : vector<8x64x64xf32> to vector<8x64x64xbf16>
    "tpu.trace_start"() <{level = 10 : i32, message = "blm,bmd->bld"}> : () -> ()
    %cst_12 = arith.constant dense<0.000000e+00> : vector<8x64x8xf32>
    %34 = tpu.matmul %33, %16, %cst_12 {dimension_numbers = #tpu.dot_dimension_numbers<[2], [1], [1], [2], [0, 0, 0, 1, 1, 2], [0], [0]>} : vector<8x64x64xbf16>, vector<8x64x8xbf16>, vector<8x64x8xf32> -> vector<8x64x8xf32>
    "tpu.trace_stop"() : () -> ()
    %35 = vector.extract_strided_slice %10 {offsets = [0, 0, 8], sizes = [8, 64, 8], strides = [1, 1, 1]} : vector<8x64x96xf32> to vector<8x64x8xf32>
    %36 = arith.truncf %35 : vector<8x64x8xf32> to vector<8x64x8xbf16>
    %37 = vector.extract_strided_slice %10 {offsets = [0, 0, 40], sizes = [8, 64, 8], strides = [1, 1, 1]} : vector<8x64x96xf32> to vector<8x64x8xf32>
    %38 = arith.truncf %37 : vector<8x64x8xf32> to vector<8x64x8xbf16>
    %39 = vector.extract_strided_slice %10 {offsets = [0, 0, 72], sizes = [8, 64, 8], strides = [1, 1, 1]} : vector<8x64x96xf32> to vector<8x64x8xf32>
    %40 = arith.truncf %39 : vector<8x64x8xf32> to vector<8x64x8xbf16>
    "tpu.trace_start"() <{level = 10 : i32, message = "bld,bmd->blm"}> : () -> ()
    %cst_13 = arith.constant dense<0.000000e+00> : vector<8x64x64xf32>
    %41 = tpu.matmul %36, %38, %cst_13 {dimension_numbers = #tpu.dot_dimension_numbers<[2], [2], [1], [1], [0, 0, 0, 1, 1, 1], [0], [0]>} : vector<8x64x8xbf16>, vector<8x64x8xbf16>, vector<8x64x64xf32> -> vector<8x64x64xf32>
    "tpu.trace_stop"() : () -> ()
    %c1 = arith.constant 1 : index
    %c0_14 = arith.constant 0 : index
    %c0_15 = arith.constant 0 : index
    %42 = vector.load %arg4[%c1, %c0_14, %c0_15] : memref<4x64x64xf32, #tpu.memory_space<vmem>>, vector<1x64x64xf32>
    %43 = vector.shape_cast %42 : vector<1x64x64xf32> to vector<64x64xf32>
    %44 = vector.shape_cast %43 : vector<64x64xf32> to vector<1x64x64xf32>
    %45 = vector.broadcast %44 : vector<1x64x64xf32> to vector<8x64x64xf32>
    %46 = arith.addf %41, %45 : vector<8x64x64xf32>
    %cst_16 = arith.constant dense<0xFF800000> : vector<8x64xf32>
    %47 = vector.multi_reduction <maximumf>, %46, %cst_16 [2] : vector<8x64x64xf32> to vector<8x64xf32>
    %48 = vector.shape_cast %47 : vector<8x64xf32> to vector<8x64x1xf32>
    %49 = vector.broadcast %48 : vector<8x64x1xf32> to vector<8x64x64xf32>
    %50 = arith.subf %46, %49 : vector<8x64x64xf32>
    %51 = math.exp %50 : vector<8x64x64xf32>
    %cst_17 = arith.constant dense<0.000000e+00> : vector<8x64xf32>
    %52 = vector.multi_reduction <add>, %51, %cst_17 [2] : vector<8x64x64xf32> to vector<8x64xf32>
    %53 = vector.shape_cast %52 : vector<8x64xf32> to vector<8x64x1xf32>
    %54 = tpu.reciprocal %53 {approx = true} : vector<8x64x1xf32> -> vector<8x64x1xf32>
    %55 = vector.broadcast %54 : vector<8x64x1xf32> to vector<8x64x64xf32>
    %56 = arith.mulf %51, %55 : vector<8x64x64xf32>
    %57 = arith.truncf %56 : vector<8x64x64xf32> to vector<8x64x64xbf16>
    "tpu.trace_start"() <{level = 10 : i32, message = "blm,bmd->bld"}> : () -> ()
    %cst_18 = arith.constant dense<0.000000e+00> : vector<8x64x8xf32>
    %58 = tpu.matmul %57, %40, %cst_18 {dimension_numbers = #tpu.dot_dimension_numbers<[2], [1], [1], [2], [0, 0, 0, 1, 1, 2], [0], [0]>} : vector<8x64x64xbf16>, vector<8x64x8xbf16>, vector<8x64x8xf32> -> vector<8x64x8xf32>
    "tpu.trace_stop"() : () -> ()
    %59 = vector.extract_strided_slice %10 {offsets = [0, 0, 16], sizes = [8, 64, 8], strides = [1, 1, 1]} : vector<8x64x96xf32> to vector<8x64x8xf32>
    %60 = arith.truncf %59 : vector<8x64x8xf32> to vector<8x64x8xbf16>
    %61 = vector.extract_strided_slice %10 {offsets = [0, 0, 48], sizes = [8, 64, 8], strides = [1, 1, 1]} : vector<8x64x96xf32> to vector<8x64x8xf32>
    %62 = arith.truncf %61 : vector<8x64x8xf32> to vector<8x64x8xbf16>
    %63 = vector.extract_strided_slice %10 {offsets = [0, 0, 80], sizes = [8, 64, 8], strides = [1, 1, 1]} : vector<8x64x96xf32> to vector<8x64x8xf32>
    %64 = arith.truncf %63 : vector<8x64x8xf32> to vector<8x64x8xbf16>
    "tpu.trace_start"() <{level = 10 : i32, message = "bld,bmd->blm"}> : () -> ()
    %cst_19 = arith.constant dense<0.000000e+00> : vector<8x64x64xf32>
    %65 = tpu.matmul %60, %62, %cst_19 {dimension_numbers = #tpu.dot_dimension_numbers<[2], [2], [1], [1], [0, 0, 0, 1, 1, 1], [0], [0]>} : vector<8x64x8xbf16>, vector<8x64x8xbf16>, vector<8x64x64xf32> -> vector<8x64x64xf32>
    "tpu.trace_stop"() : () -> ()
    %c2 = arith.constant 2 : index
    %c0_20 = arith.constant 0 : index
    %c0_21 = arith.constant 0 : index
    %66 = vector.load %arg4[%c2, %c0_20, %c0_21] : memref<4x64x64xf32, #tpu.memory_space<vmem>>, vector<1x64x64xf32>
    %67 = vector.shape_cast %66 : vector<1x64x64xf32> to vector<64x64xf32>
    %68 = vector.shape_cast %67 : vector<64x64xf32> to vector<1x64x64xf32>
    %69 = vector.broadcast %68 : vector<1x64x64xf32> to vector<8x64x64xf32>
    %70 = arith.addf %65, %69 : vector<8x64x64xf32>
    %cst_22 = arith.constant dense<0xFF800000> : vector<8x64xf32>
    %71 = vector.multi_reduction <maximumf>, %70, %cst_22 [2] : vector<8x64x64xf32> to vector<8x64xf32>
    %72 = vector.shape_cast %71 : vector<8x64xf32> to vector<8x64x1xf32>
    %73 = vector.broadcast %72 : vector<8x64x1xf32> to vector<8x64x64xf32>
    %74 = arith.subf %70, %73 : vector<8x64x64xf32>
    %75 = math.exp %74 : vector<8x64x64xf32>
    %cst_23 = arith.constant dense<0.000000e+00> : vector<8x64xf32>
    %76 = vector.multi_reduction <add>, %75, %cst_23 [2] : vector<8x64x64xf32> to vector<8x64xf32>
    %77 = vector.shape_cast %76 : vector<8x64xf32> to vector<8x64x1xf32>
    %78 = tpu.reciprocal %77 {approx = true} : vector<8x64x1xf32> -> vector<8x64x1xf32>
    %79 = vector.broadcast %78 : vector<8x64x1xf32> to vector<8x64x64xf32>
    %80 = arith.mulf %75, %79 : vector<8x64x64xf32>
    %81 = arith.truncf %80 : vector<8x64x64xf32> to vector<8x64x64xbf16>
    "tpu.trace_start"() <{level = 10 : i32, message = "blm,bmd->bld"}> : () -> ()
    %cst_24 = arith.constant dense<0.000000e+00> : vector<8x64x8xf32>
    %82 = tpu.matmul %81, %64, %cst_24 {dimension_numbers = #tpu.dot_dimension_numbers<[2], [1], [1], [2], [0, 0, 0, 1, 1, 2], [0], [0]>} : vector<8x64x64xbf16>, vector<8x64x8xbf16>, vector<8x64x8xf32> -> vector<8x64x8xf32>
    "tpu.trace_stop"() : () -> ()
    %83 = vector.extract_strided_slice %10 {offsets = [0, 0, 24], sizes = [8, 64, 8], strides = [1, 1, 1]} : vector<8x64x96xf32> to vector<8x64x8xf32>
    %84 = arith.truncf %83 : vector<8x64x8xf32> to vector<8x64x8xbf16>
    %85 = vector.extract_strided_slice %10 {offsets = [0, 0, 56], sizes = [8, 64, 8], strides = [1, 1, 1]} : vector<8x64x96xf32> to vector<8x64x8xf32>
    %86 = arith.truncf %85 : vector<8x64x8xf32> to vector<8x64x8xbf16>
    %87 = vector.extract_strided_slice %10 {offsets = [0, 0, 88], sizes = [8, 64, 8], strides = [1, 1, 1]} : vector<8x64x96xf32> to vector<8x64x8xf32>
    %88 = arith.truncf %87 : vector<8x64x8xf32> to vector<8x64x8xbf16>
    "tpu.trace_start"() <{level = 10 : i32, message = "bld,bmd->blm"}> : () -> ()
    %cst_25 = arith.constant dense<0.000000e+00> : vector<8x64x64xf32>
    %89 = tpu.matmul %84, %86, %cst_25 {dimension_numbers = #tpu.dot_dimension_numbers<[2], [2], [1], [1], [0, 0, 0, 1, 1, 1], [0], [0]>} : vector<8x64x8xbf16>, vector<8x64x8xbf16>, vector<8x64x64xf32> -> vector<8x64x64xf32>
    "tpu.trace_stop"() : () -> ()
    %c3 = arith.constant 3 : index
    %c0_26 = arith.constant 0 : index
    %c0_27 = arith.constant 0 : index
    %90 = vector.load %arg4[%c3, %c0_26, %c0_27] : memref<4x64x64xf32, #tpu.memory_space<vmem>>, vector<1x64x64xf32>
    %91 = vector.shape_cast %90 : vector<1x64x64xf32> to vector<64x64xf32>
    %92 = vector.shape_cast %91 : vector<64x64xf32> to vector<1x64x64xf32>
    %93 = vector.broadcast %92 : vector<1x64x64xf32> to vector<8x64x64xf32>
    %94 = arith.addf %89, %93 : vector<8x64x64xf32>
    %cst_28 = arith.constant dense<0xFF800000> : vector<8x64xf32>
    %95 = vector.multi_reduction <maximumf>, %94, %cst_28 [2] : vector<8x64x64xf32> to vector<8x64xf32>
    %96 = vector.shape_cast %95 : vector<8x64xf32> to vector<8x64x1xf32>
    %97 = vector.broadcast %96 : vector<8x64x1xf32> to vector<8x64x64xf32>
    %98 = arith.subf %94, %97 : vector<8x64x64xf32>
    %99 = math.exp %98 : vector<8x64x64xf32>
    %cst_29 = arith.constant dense<0.000000e+00> : vector<8x64xf32>
    %100 = vector.multi_reduction <add>, %99, %cst_29 [2] : vector<8x64x64xf32> to vector<8x64xf32>
    %101 = vector.shape_cast %100 : vector<8x64xf32> to vector<8x64x1xf32>
    %102 = tpu.reciprocal %101 {approx = true} : vector<8x64x1xf32> -> vector<8x64x1xf32>
    %103 = vector.broadcast %102 : vector<8x64x1xf32> to vector<8x64x64xf32>
    %104 = arith.mulf %99, %103 : vector<8x64x64xf32>
    %105 = arith.truncf %104 : vector<8x64x64xf32> to vector<8x64x64xbf16>
    "tpu.trace_start"() <{level = 10 : i32, message = "blm,bmd->bld"}> : () -> ()
    %cst_30 = arith.constant dense<0.000000e+00> : vector<8x64x8xf32>
    %106 = tpu.matmul %105, %88, %cst_30 {dimension_numbers = #tpu.dot_dimension_numbers<[2], [1], [1], [2], [0, 0, 0, 1, 1, 2], [0], [0]>} : vector<8x64x64xbf16>, vector<8x64x8xbf16>, vector<8x64x8xf32> -> vector<8x64x8xf32>
    "tpu.trace_stop"() : () -> ()
    %107 = tpu.concatenate %34, %58, %82, %106 in 2 : vector<8x64x8xf32>, vector<8x64x8xf32>, vector<8x64x8xf32>, vector<8x64x8xf32> -> vector<8x64x32xf32>
    %108 = vector.shape_cast %107 : vector<8x64x32xf32> to vector<512x32xf32>
    %109 = arith.truncf %108 : vector<512x32xf32> to vector<512x32xbf16>
    %c0_31 = arith.constant 0 : index
    %c0_32 = arith.constant 0 : index
    %110 = vector.load %arg5[%c0_31, %c0_32] : memref<32x32xbf16, #tpu.memory_space<vmem>>, vector<32x32xbf16>
    %cst_33 = arith.constant dense<0.000000e+00> : vector<512x32xf32>
    %111 = tpu.matmul %109, %110, %cst_33 {dimension_numbers = #tpu.dot_dimension_numbers<[1], [0], [0], [1], [0, 0, 1, 1], [], []>} : vector<512x32xbf16>, vector<32x32xbf16>, vector<512x32xf32> -> vector<512x32xf32>
    %c0_34 = arith.constant 0 : index
    %c0_35 = arith.constant 0 : index
    %112 = vector.load %arg6[%c0_34, %c0_35] : memref<1x32xf32, #tpu.memory_space<vmem>>, vector<1x32xf32>
    %113 = vector.shape_cast %112 : vector<1x32xf32> to vector<32xf32>
    %114 = vector.shape_cast %113 : vector<32xf32> to vector<1x32xf32>
    %115 = vector.broadcast %114 : vector<1x32xf32> to vector<512x32xf32>
    %116 = arith.addf %111, %115 : vector<512x32xf32>
    %117 = vector.shape_cast %116 : vector<512x32xf32> to vector<8x64x32xf32>
    %c0_36 = arith.constant 0 : index
    %c0_37 = arith.constant 0 : index
    %c0_38 = arith.constant 0 : index
    %118 = vector.load %arg7[%c0_36, %c0_37, %c0_38] : memref<8x64x32xf32, #tpu.memory_space<vmem>>, vector<8x64x32xf32>
    tpu.vector_store %arg7[%c0_36, %c0_37, %c0_38], %117 {strides = array<i32>} : memref<8x64x32xf32, #tpu.memory_space<vmem>>, vector<8x64x32xf32>,
    return
  }
  func.func @transform_0(%arg0: i32) -> (i32, i32, i32) {
    %c0_i32 = arith.constant 0 : i32
    %c0_i32_0 = arith.constant 0 : i32
    %c0_i32_1 = arith.constant 0 : i32
    return %arg0, %c0_i32, %c0_i32_0 : i32, i32, i32
  }
  func.func @transform_1(%arg0: i32) -> (i32, i32) {
    %c0_i32 = arith.constant 0 : i32
    %c0_i32_0 = arith.constant 0 : i32
    %c0_i32_1 = arith.constant 0 : i32
    return %c0_i32, %c0_i32_0 : i32, i32
  }
  func.func @transform_2(%arg0: i32) -> (i32, i32) {
    %c0_i32 = arith.constant 0 : i32
    %c0_i32_0 = arith.constant 0 : i32
    %c0_i32_1 = arith.constant 0 : i32
    return %c0_i32, %c0_i32_0 : i32, i32
  }
  func.func @transform_3(%arg0: i32) -> (i32, i32, i32) {
    %c0_i32 = arith.constant 0 : i32
    %c0_i32_0 = arith.constant 0 : i32
    %c0_i32_1 = arith.constant 0 : i32
    %c0_i32_2 = arith.constant 0 : i32
    return %c0_i32, %c0_i32_0, %c0_i32_1 : i32, i32, i32
  }
  func.func @transform_4(%arg0: i32) -> (i32, i32) {
    %c0_i32 = arith.constant 0 : i32
    %c0_i32_0 = arith.constant 0 : i32
    %c0_i32_1 = arith.constant 0 : i32
    return %c0_i32, %c0_i32_0 : i32, i32
  }
  func.func @transform_5(%arg0: i32) -> (i32, i32) {
    %c0_i32 = arith.constant 0 : i32
    %c0_i32_0 = arith.constant 0 : i32
    %c0_i32_1 = arith.constant 0 : i32
    return %c0_i32, %c0_i32_0 : i32, i32
  }
  func.func @transform_6(%arg0: i32) -> (i32, i32, i32) {
    %c0_i32 = arith.constant 0 : i32
    %c0_i32_0 = arith.constant 0 : i32
    %c0_i32_1 = arith.constant 0 : i32
    return %arg0, %c0_i32, %c0_i32_0 : i32, i32, i32
  }
}

</mosaic_0001>

<llo_original>
// kernel: tpu_custom_call.1
$region0: #{tpu_custom_call.1}
  #allocation0 [shape = 'u32[]', space=smem, size = 0x4, offset = 0x4, fixed_abs, tag = 'smem constant byte address 0x4 - core index']
  #allocation1 [shape = 'u32[144,128]{1,0:T(1,128)}', space=vmem, size = 0x12000, scoped, tag = 'internal scratch']
  %s0 = inlined_call_operand.vmem [shape: f32[16,64,32], index: 0, kind: input, shape index: {}]
  %s1 = inlined_call_operand.vmem [shape: bf16[32,96], index: 1, kind: input, shape index: {}]
  %s2 = inlined_call_operand.vmem [shape: f32[1,96], index: 2, kind: input, shape index: {}]
  %s3 = inlined_call_operand.vmem [shape: f32[4,64,64], index: 3, kind: input, shape index: {}]
  %s4 = inlined_call_operand.vmem [shape: bf16[32,32], index: 4, kind: input, shape index: {}]
  %s5 = inlined_call_operand.vmem [shape: f32[1,32], index: 5, kind: input, shape index: {}]
  %s6 = inlined_call_operand.vmem [shape: f32[16,64,32], index: 6, kind: output, shape index: {}]
  %s7 = sld [smem:[#allocation0]]
  $region57: #{tpu_custom_call.1} parent=0
    _
  %s9 = ssub.s32 1, %s7
  %s10 = scalar_select 0, %s9, %s7
  loop: start=0, step=1, limit=4
  $region2: #{tpu_custom_call.1} parent=0 // loop_pre_header
    _
  $region3: #{tpu_custom_call.1} parent=0 // loop_header
    %s12 = sphi 0, %s16
    %p13 = scmp.ge.s32.totalorder %s12, 4
    %s22 = sphi 0, %s24
    %s25 = sphi 0, %s22
    %s26 = sphi 0, %s25
    %s42 = sphi 0, %s26
    %s46 = sphi 0, %s46
    %s48 = sphi 0, %s46
    %s49 = sphi 0, %s48
    %s63 = sphi 0, %s49
    %s67 = sphi 0, %s67
    %s69 = sphi 0, %s67
    %s70 = sphi 0, %s69
    %s84 = sphi 0, %s70
    %s88 = sphi 0, %s88
    %s90 = sphi 0, %s88
    %s91 = sphi 0, %s90
    %s105 = sphi 0, %s91
    %s109 = sphi 0, %s109
    %s111 = sphi 0, %s109
    %s112 = sphi 0, %s111
    %s126 = sphi 0, %s112
    %s130 = sphi 0, %s130
    %s132 = sphi 0, %s130
    %s133 = sphi 0, %s132
    %s147 = sphi 0, %s133
    %s153 = sphi 0, %s155
    %s156 = sphi 0, %s153
    %s157 = sphi 0, %s156
    %s173 = sphi 0, %s157
  $region4: #{tpu_custom_call.1} parent=0 // loop_header_branch
    %15 = sbr.rel (%p13) target = $region8
  $region5: #{tpu_custom_call.1} parent=0 // loop_body
    %s17 = ssub.s32 %s12, 1
    %s18 = ssub.s32 %s12, 2
    %s19 = sadd.s32 %s12, 1
    %s20 = ssub.s32 %s12, %s19
    %p21 = scmp.eq.s32.totalorder %s20, 0
    %s23 = sadd.s32 %s22, 1
    %s24 = scalar_select %p21, %s22, %s23
    %p27 = pneg %p21
    %p28 = scmp.eq.s32.totalorder %s12, 1
    %p29 = por %p27, %p28
    %p30 = scmp.ne.s32.totalorder %s22, %s25
    %p31 = scmp.eq.s32.totalorder %s12, 0
    %p32 = por %p30, %p31
    %p33 = scmp.ne.s32.totalorder %s22, %s25
    %p34 = scmp.eq.s32.totalorder %s17, 1
    %p35 = por %p33, %p34
    %p36 = scmp.ne.s32.totalorder %s25, %s26
    %p37 = scmp.eq.s32.totalorder %s17, 0
    %p38 = por %p36, %p37
    %p39 = scmp.ne.s32.totalorder %s25, %s26
    %p40 = scmp.eq.s32.totalorder %s18, 1
    %p41 = por %p39, %p40
    %p43 = scmp.ne.s32.totalorder %s26, %s42
    %p44 = scmp.eq.s32.totalorder %s18, 0
    %p45 = por %p43, %p44
    %s47 = sadd.s32 %s46, 1
    %p50 = scmp.eq.s32.totalorder %s12, 1
    %p51 = scmp.ne.s32.totalorder %s46, %s48
    %p52 = scmp.eq.s32.totalorder %s12, 0
    %p53 = por %p51, %p52
    %p54 = scmp.ne.s32.totalorder %s46, %s48
    %p55 = scmp.eq.s32.totalorder %s17, 1
    %p56 = por %p54, %p55
    %p57 = scmp.ne.s32.totalorder %s48, %s49
    %p58 = scmp.eq.s32.totalorder %s17, 0
    %p59 = por %p57, %p58
    %p60 = scmp.ne.s32.totalorder %s48, %s49
    %p61 = scmp.eq.s32.totalorder %s18, 1
    %p62 = por %p60, %p61
    %p64 = scmp.ne.s32.totalorder %s49, %s63
    %p65 = scmp.eq.s32.totalorder %s18, 0
    %p66 = por %p64, %p65
    %s68 = sadd.s32 %s67, 1
    %p71 = scmp.eq.s32.totalorder %s12, 1
    %p72 = scmp.ne.s32.totalorder %s67, %s69
    %p73 = scmp.eq.s32.totalorder %s12, 0
    %p74 = por %p72, %p73
    %p75 = scmp.ne.s32.totalorder %s67, %s69
    %p76 = scmp.eq.s32.totalorder %s17, 1
    %p77 = por %p75, %p76
    %p78 = scmp.ne.s32.totalorder %s69, %s70
    %p79 = scmp.eq.s32.totalorder %s17, 0
    %p80 = por %p78, %p79
    %p81 = scmp.ne.s32.totalorder %s69, %s70
    %p82 = scmp.eq.s32.totalorder %s18, 1
    %p83 = por %p81, %p82
    %p85 = scmp.ne.s32.totalorder %s70, %s84
    %p86 = scmp.eq.s32.totalorder %s18, 0
    %p87 = por %p85, %p86
    %s89 = sadd.s32 %s88, 1
    %p92 = scmp.eq.s32.totalorder %s12, 1
    %p93 = scmp.ne.s32.totalorder %s88, %s90
    %p94 = scmp.eq.s32.totalorder %s12, 0
    %p95 = por %p93, %p94
    %p96 = scmp.ne.s32.totalorder %s88, %s90
    %p97 = scmp.eq.s32.totalorder %s17, 1
    %p98 = por %p96, %p97
    %p99 = scmp.ne.s32.totalorder %s90, %s91
    %p100 = scmp.eq.s32.totalorder %s17, 0
    %p101 = por %p99, %p100
    %p102 = scmp.ne.s32.totalorder %s90, %s91
    %p103 = scmp.eq.s32.totalorder %s18, 1
    %p104 = por %p102, %p103
    %p106 = scmp.ne.s32.totalorder %s91, %s105
    %p107 = scmp.eq.s32.totalorder %s18, 0
    %p108 = por %p106, %p107
    %s110 = sadd.s32 %s109, 1
    %p113 = scmp.eq.s32.totalorder %s12, 1
    %p114 = scmp.ne.s32.totalorder %s109, %s111
    %p115 = scmp.eq.s32.totalorder %s12, 0
    %p116 = por %p114, %p115
    %p117 = scmp.ne.s32.totalorder %s109, %s111
    %p118 = scmp.eq.s32.totalorder %s17, 1
    %p119 = por %p117, %p118
    %p120 = scmp.ne.s32.totalorder %s111, %s112
    %p121 = scmp.eq.s32.totalorder %s17, 0
    %p122 = por %p120, %p121
    %p123 = scmp.ne.s32.totalorder %s111, %s112
    %p124 = scmp.eq.s32.totalorder %s18, 1
    %p125 = por %p123, %p124
    %p127 = scmp.ne.s32.totalorder %s112, %s126
    %p128 = scmp.eq.s32.totalorder %s18, 0
    %p129 = por %p127, %p128
    %s131 = sadd.s32 %s130, 1
    %p134 = scmp.eq.s32.totalorder %s12, 1
    %p135 = scmp.ne.s32.totalorder %s130, %s132
    %p136 = scmp.eq.s32.totalorder %s12, 0
    %p137 = por %p135, %p136
    %p138 = scmp.ne.s32.totalorder %s130, %s132
    %p139 = scmp.eq.s32.totalorder %s17, 1
    %p140 = por %p138, %p139
    %p141 = scmp.ne.s32.totalorder %s132, %s133
    %p142 = scmp.eq.s32.totalorder %s17, 0
    %p143 = por %p141, %p142
    %p144 = scmp.ne.s32.totalorder %s132, %s133
    %p145 = scmp.eq.s32.totalorder %s18, 1
    %p146 = por %p144, %p145
    %p148 = scmp.ne.s32.totalorder %s133, %s147
    %p149 = scmp.eq.s32.totalorder %s18, 0
    %p150 = por %p148, %p149
    %s151 = ssub.s32 %s12, %s19
    %p152 = scmp.eq.s32.totalorder %s151, 0
    %s154 = sadd.s32 %s153, 1
    %s155 = scalar_select %p152, %s153, %s154
    %p158 = pneg %p152
    %p159 = scmp.eq.s32.totalorder %s12, 1
    %p160 = por %p158, %p159
    %p161 = scmp.ne.s32.totalorder %s153, %s156
    %p162 = scmp.eq.s32.totalorder %s12, 0
    %p163 = por %p161, %p162
    %p164 = scmp.ne.s32.totalorder %s153, %s156
    %p165 = scmp.eq.s32.totalorder %s17, 1
    %p166 = por %p164, %p165
    %p167 = scmp.ne.s32.totalorder %s156, %s157
    %p168 = scmp.eq.s32.totalorder %s17, 0
    %p169 = por %p167, %p168
    %p170 = scmp.ne.s32.totalorder %s156, %s157
    %p171 = scmp.eq.s32.totalorder %s18, 1
    %p172 = por %p170, %p171
    %p174 = scmp.ne.s32.totalorder %s157, %s173
    %p175 = scmp.eq.s32.totalorder %s18, 0
    %p176 = por %p174, %p175
    %p177 = scmp.le.s32.totalorder 1, %s12
    %p178 = scmp.lt.s32.totalorder %s12, 3
    %p179 = pnand %p177, %p178
    %p180 = pneg %p179
    // Predicated region
    $region9: #{tpu_custom_call.1} parent=5 // pred_check
      _
    $region10: #{tpu_custom_call.1} parent=5 // pred_check_branch
      %182 = sbr.rel (%p179) target = $region12
    $region11: #{tpu_custom_call.1} parent=5 // pred_region
      %s183 = ssub.s32 %s12, 1
      // Predicated region
      $region13: #{tpu_custom_call.1} parent=11 // pred_check
        %p184 = pneg %p59
      $region14: #{tpu_custom_call.1} parent=11 // pred_check_branch
        %186 = sbr.rel (%p184) target = $region16
      $region15: #{tpu_custom_call.1} parent=11 // pred_region
        _
      $region16: #{tpu_custom_call.1} parent=11 // pred_fallthru
        _
      // Predicated region
      $region17: #{tpu_custom_call.1} parent=11 // pred_check
        %p187 = pneg %p80
      $region18: #{tpu_custom_call.1} parent=11 // pred_check_branch
        %189 = sbr.rel (%p187) target = $region20
      $region19: #{tpu_custom_call.1} parent=11 // pred_region
        _
      $region20: #{tpu_custom_call.1} parent=11 // pred_fallthru
        _
      // Predicated region
      $region21: #{tpu_custom_call.1} parent=11 // pred_check
        %p190 = pneg %p101
      $region22: #{tpu_custom_call.1} parent=11 // pred_check_branch
        %192 = sbr.rel (%p190) target = $region24
      $region23: #{tpu_custom_call.1} parent=11 // pred_region
        _
      $region24: #{tpu_custom_call.1} parent=11 // pred_fallthru
        _
      // Predicated region
      $region25: #{tpu_custom_call.1} parent=11 // pred_check
        %p193 = pneg %p122
      $region26: #{tpu_custom_call.1} parent=11 // pred_check_branch
        %195 = sbr.rel (%p193) target = $region28
      $region27: #{tpu_custom_call.1} parent=11 // pred_region
        _
      $region28: #{tpu_custom_call.1} parent=11 // pred_fallthru
        _
      // Predicated region
      $region29: #{tpu_custom_call.1} parent=11 // pred_check
        %p196 = pneg %p143
      $region30: #{tpu_custom_call.1} parent=11 // pred_check_branch
        %198 = sbr.rel (%p196) target = $region32
      $region31: #{tpu_custom_call.1} parent=11 // pred_region
        _
      $region32: #{tpu_custom_call.1} parent=11 // pred_fallthru
        _
    $region12: #{tpu_custom_call.1} parent=5 // pred_fallthru
      _
    %p199 = scmp.lt.s32.totalorder %s12, 2
    // Predicated region
    $region33: #{tpu_custom_call.1} parent=5 // pred_check
      %p200 = pneg %p199
    $region34: #{tpu_custom_call.1} parent=5 // pred_check_branch
      %202 = sbr.rel (%p200) target = $region36
    $region35: #{tpu_custom_call.1} parent=5 // pred_region
      // Predicated region
      $region37: #{tpu_custom_call.1} parent=35 // pred_check
        %p203 = pneg %p32
      $region38: #{tpu_custom_call.1} parent=35 // pred_check_branch
        %205 = sbr.rel (%p203) target = $region40
      $region39: #{tpu_custom_call.1} parent=35 // pred_region
        %s206 = smul.u32 8, %s12
        %p207 = scmp.lt.s32.totalorder %s206, 15
        %s208 = scalar_select %p207, %s206, 15
        %s209 = smul.addr %s208, 8
        %s210 = smul.addr %s209, 8
        %s211 = scalar_lea.vmem %s0, %s210
        %s212 = smul.u32 8, %s12
      $region40: #{tpu_custom_call.1} parent=35 // pred_fallthru
        _
    $region36: #{tpu_custom_call.1} parent=5 // pred_fallthru
      _
    %p213 = scmp.le.s32.totalorder 1, %s12
    %p214 = scmp.lt.s32.totalorder %s12, 3
    %p215 = pnand %p213, %p214
    %p216 = pneg %p215
    // Predicated region
    $region41: #{tpu_custom_call.1} parent=5 // pred_check
      _
    $region42: #{tpu_custom_call.1} parent=5 // pred_check_branch
      %218 = sbr.rel (%p215) target = $region44
    $region43: #{tpu_custom_call.1} parent=5 // pred_region
      %s219 = ssub.s32 %s12, 1
      %s220 = smul.u32 8, %s17
      %p221 = scmp.lt.s32.totalorder %s220, 15
      %s222 = scalar_select %p221, %s220, 15
      %s223 = smul.addr %s222, 8
      %s224 = smul.addr %s223, 8
      %s225 = scalar_lea.vmem %s0, %s224
      %p226 = pneg %p38
      %p227 = pneg %p35
      %p228 = pneg %p59
      %p229 = pneg %p56
      %p230 = pneg %p80
      %p231 = pneg %p77
      %p232 = pneg %p101
      %p233 = pneg %p98
      %p234 = pneg %p122
      %p235 = pneg %p119
      %p236 = pneg %p143
      %p237 = pneg %p140
      %p238 = pneg %p169
      %p239 = pneg %p166
      %s240 = smul.u32 8, %s17
      %p241 = scmp.lt.s32.totalorder %s240, 15
      %s242 = scalar_select %p241, %s240, 15
      %s243 = smul.addr %s242, 8
      %s244 = smul.addr %s243, 8
      %s245 = scalar_lea.vmem %s6, %s244
      %s246 = smul.u32 8, %s17
      %p247 = scmp.lt.s32.totalorder %s246, 15
      %s248 = scalar_select %p247, %s246, 15
      %s249 = smul.addr %s248, 8
      %s250 = smul.addr %s249, 8
      %s251 = scalar_lea.vmem %s0, %s250
      %s252 = smul.u32 8, %s17
      %s253 = smul.u32 8, %s17
      %p254 = scmp.lt.s32.totalorder %s253, 15
      %s255 = scalar_select %p254, %s253, 15
      %s256 = smul.addr %s255, 8
      %s257 = smul.addr %s256, 8
      %s258 = scalar_lea.vmem %s6, %s257
      %s259 = smul.u32 8, %s17
      %v261 = vld [vmem:[%s251] sm:$0xff]
      %v262 = vld [vmem:[%s251 + $0x8] sm:$0xff]
      %v263 = vld [vmem:[%s251 + $0x10] sm:$0xff]
      %v264 = vld [vmem:[%s251 + $0x18] sm:$0xff]
      %v265 = vld [vmem:[%s251 + $0x20] sm:$0xff]
      %v266 = vld [vmem:[%s251 + $0x28] sm:$0xff]
      %v267 = vld [vmem:[%s251 + $0x30] sm:$0xff]
      %v268 = vld [vmem:[%s251 + $0x38] sm:$0xff]
      %v269 = vld [vmem:[%s251 + $0x40] sm:$0xff]
      %v270 = vld [vmem:[%s251 + $0x48] sm:$0xff]
      %v271 = vld [vmem:[%s251 + $0x50] sm:$0xff]
      %v272 = vld [vmem:[%s251 + $0x58] sm:$0xff]
      %v273 = vld [vmem:[%s251 + $0x60] sm:$0xff]
      %v274 = vld [vmem:[%s251 + $0x68] sm:$0xff]
      %v275 = vld [vmem:[%s251 + $0x70] sm:$0xff]
      %v276 = vld [vmem:[%s251 + $0x78] sm:$0xff]
      %v277 = vld [vmem:[%s251 + $0x80] sm:$0xff]
      %v278 = vld [vmem:[%s251 + $0x88] sm:$0xff]
      %v279 = vld [vmem:[%s251 + $0x90] sm:$0xff]
      %v280 = vld [vmem:[%s251 + $0x98] sm:$0xff]
      %v281 = vld [vmem:[%s251 + $0xa0] sm:$0xff]
      %v282 = vld [vmem:[%s251 + $0xa8] sm:$0xff]
      %v283 = vld [vmem:[%s251 + $0xb0] sm:$0xff]
      %v284 = vld [vmem:[%s251 + $0xb8] sm:$0xff]
      %v285 = vld [vmem:[%s251 + $0xc0] sm:$0xff]
      %v286 = vld [vmem:[%s251 + $0xc8] sm:$0xff]
      %v287 = vld [vmem:[%s251 + $0xd0] sm:$0xff]
      %v288 = vld [vmem:[%s251 + $0xd8] sm:$0xff]
      %v289 = vld [vmem:[%s251 + $0xe0] sm:$0xff]
      %v290 = vld [vmem:[%s251 + $0xe8] sm:$0xff]
      %v291 = vld [vmem:[%s251 + $0xf0] sm:$0xff]
      %v292 = vld [vmem:[%s251 + $0xf8] sm:$0xff]
      %v293 = vld [vmem:[%s251 + $0x100] sm:$0xff]
      %v294 = vld [vmem:[%s251 + $0x108] sm:$0xff]
      %v295 = vld [vmem:[%s251 + $0x110] sm:$0xff]
      %v296 = vld [vmem:[%s251 + $0x118] sm:$0xff]
      %v297 = vld [vmem:[%s251 + $0x120] sm:$0xff]
      %v298 = vld [vmem:[%s251 + $0x128] sm:$0xff]
      %v299 = vld [vmem:[%s251 + $0x130] sm:$0xff]
      %v300 = vld [vmem:[%s251 + $0x138] sm:$0xff]
      %v301 = vld [vmem:[%s251 + $0x140] sm:$0xff]
      %v302 = vld [vmem:[%s251 + $0x148] sm:$0xff]
      %v303 = vld [vmem:[%s251 + $0x150] sm:$0xff]
      %v304 = vld [vmem:[%s251 + $0x158] sm:$0xff]
      %v305 = vld [vmem:[%s251 + $0x160] sm:$0xff]
      %v306 = vld [vmem:[%s251 + $0x168] sm:$0xff]
      %v307 = vld [vmem:[%s251 + $0x170] sm:$0xff]
      %v308 = vld [vmem:[%s251 + $0x178] sm:$0xff]
      %v309 = vld [vmem:[%s251 + $0x180] sm:$0xff]
      %v310 = vld [vmem:[%s251 + $0x188] sm:$0xff]
      %v311 = vld [vmem:[%s251 + $0x190] sm:$0xff]
      %v312 = vld [vmem:[%s251 + $0x198] sm:$0xff]
      %v313 = vld [vmem:[%s251 + $0x1a0] sm:$0xff]
      %v314 = vld [vmem:[%s251 + $0x1a8] sm:$0xff]
      %v315 = vld [vmem:[%s251 + $0x1b0] sm:$0xff]
      %v316 = vld [vmem:[%s251 + $0x1b8] sm:$0xff]
      %v317 = vld [vmem:[%s251 + $0x1c0] sm:$0xff]
      %v318 = vld [vmem:[%s251 + $0x1c8] sm:$0xff]
      %v319 = vld [vmem:[%s251 + $0x1d0] sm:$0xff]
      %v320 = vld [vmem:[%s251 + $0x1d8] sm:$0xff]
      %v321 = vld [vmem:[%s251 + $0x1e0] sm:$0xff]
      %v322 = vld [vmem:[%s251 + $0x1e8] sm:$0xff]
      %v323 = vld [vmem:[%s251 + $0x1f0] sm:$0xff]
      %v324 = vld [vmem:[%s251 + $0x1f8] sm:$0xff]
      %v325 = vpack.c.bf16 %v262, %v261
      %v326 = vpack.c.bf16 %v264, %v263
      %v327 = vpack.c.bf16 %v266, %v265
      %v328 = vpack.c.bf16 %v268, %v267
      %v329 = vpack.c.bf16 %v270, %v269
      %v330 = vpack.c.bf16 %v272, %v271
      %v331 = vpack.c.bf16 %v274, %v273
      %v332 = vpack.c.bf16 %v276, %v275
      %v333 = vpack.c.bf16 %v278, %v277
      %v334 = vpack.c.bf16 %v280, %v279
      %v335 = vpack.c.bf16 %v282, %v281
      %v336 = vpack.c.bf16 %v284, %v283
      %v337 = vpack.c.bf16 %v286, %v285
      %v338 = vpack.c.bf16 %v288, %v287
      %v339 = vpack.c.bf16 %v290, %v289
      %v340 = vpack.c.bf16 %v292, %v291
      %v341 = vpack.c.bf16 %v294, %v293
      %v342 = vpack.c.bf16 %v296, %v295
      %v343 = vpack.c.bf16 %v298, %v297
      %v344 = vpack.c.bf16 %v300, %v299
      %v345 = vpack.c.bf16 %v302, %v301
      %v346 = vpack.c.bf16 %v304, %v303
      %v347 = vpack.c.bf16 %v306, %v305
      %v348 = vpack.c.bf16 %v308, %v307
      %v349 = vpack.c.bf16 %v310, %v309
      %v350 = vpack.c.bf16 %v312, %v311
      %v351 = vpack.c.bf16 %v314, %v313
      %v352 = vpack.c.bf16 %v316, %v315
      %v353 = vpack.c.bf16 %v318, %v317
      %v354 = vpack.c.bf16 %v320, %v319
      %v355 = vpack.c.bf16 %v322, %v321
      %v356 = vpack.c.bf16 %v324, %v323
      %v357 = vld [vmem:[%s1] sm:$0xf]
      %v358 = vld [vmem:[%s1 + $0x4] sm:$0xf]
      %v359 = vld [vmem:[%s1 + $0x8] sm:$0xf]
      %v360 = vld [vmem:[%s1 + $0xc] sm:$0xf]
      %v361 = vld [vmem:[%s2] sm:$0x1]
      %v363 = vlaneseq
      %v364 = vshrl.u32 %v363, 7
      %v365 = vsub.s32 0, %v364
      %v366 = vrot.slane %v361, %v365
      %v372 = vunpack.c.l.b16 %v357
      %v373 = vunpack.c.l.b16 %v358
      %v374 = vunpack.c.l.b16 %v359
      %v375 = vunpack.c.l.b16 %v360
      %v376 = vpack.c.b16 %v373, %v372
      %v377 = vpack.c.b16 %v375, %v374
      %vm380 = vcmask 261120
      %v382 = vsel %vm380, %v325, 0
      %v385 = vsel %vm380, %v326, 0
      %v388 = vsel %vm380, %v327, 0
      %v391 = vsel %vm380, %v328, 0
      %v394 = vsel %vm380, %v329, 0
      %v397 = vsel %vm380, %v330, 0
      %v400 = vsel %vm380, %v331, 0
      %v403 = vsel %vm380, %v332, 0
      %v406 = vsel %vm380, %v333, 0
      %v409 = vsel %vm380, %v334, 0
      %v412 = vsel %vm380, %v335, 0
      %v415 = vsel %vm380, %v336, 0
      %v418 = vsel %vm380, %v337, 0
      %v421 = vsel %vm380, %v338, 0
      %v424 = vsel %vm380, %v339, 0
      %v427 = vsel %vm380, %v340, 0
      %v430 = vsel %vm380, %v341, 0
      %v433 = vsel %vm380, %v342, 0
      %v436 = vsel %vm380, %v343, 0
      %v439 = vsel %vm380, %v344, 0
      %v442 = vsel %vm380, %v345, 0
      %v445 = vsel %vm380, %v346, 0
      %v448 = vsel %vm380, %v347, 0
      %v451 = vsel %vm380, %v348, 0
      %v454 = vsel %vm380, %v349, 0
      %v457 = vsel %vm380, %v350, 0
      %v460 = vsel %vm380, %v351, 0
      %v463 = vsel %vm380, %v352, 0
      %v466 = vsel %vm380, %v353, 0
      %v469 = vsel %vm380, %v354, 0
      %v472 = vsel %vm380, %v355, 0
      %v475 = vsel %vm380, %v356, 0
      %477 = vmatprep.subr.bf16.mxu0 0
      %478 = vmatpush1.bf16.msra.mxu0 %v376
      %479 = vmatprep.subr.bf16.mxu0 0
      %480 = vmatpush1.bf16.msra.mxu0 %v377
      %481 = vmatprep.subr.bf16.mxu0 0
      %482 = vmatpush1.bf16.msra.mxu0 0
      %483 = vmatprep.subr.bf16.mxu0 0
      %484 = vmatpush1.bf16.msra.mxu0 0
      %485 = vmatprep.subr.bf16.mxu0 0
      %486 = vmatpush1.bf16.msra.mxu0 0
      %487 = vmatprep.subr.bf16.mxu0 0
      %488 = vmatpush1.bf16.msra.mxu0 0
      %489 = vmatprep.subr.bf16.mxu0 0
      %490 = vmatpush1.bf16.msra.mxu0 0
      %491 = vmatprep.subr.bf16.mxu0 0
      %492 = vmatpush1.bf16.msra.mxu0 0
      %493 = vmatprep.subr.bf16.mxu0 0
      %494 = vmatpush1.bf16.msra.mxu0 0
      %495 = vmatprep.subr.bf16.mxu0 0
      %496 = vmatpush1.bf16.msra.mxu0 0
      %497 = vmatprep.subr.bf16.mxu0 0
      %498 = vmatpush1.bf16.msra.mxu0 0
      %499 = vmatprep.subr.bf16.mxu0 0
      %500 = vmatpush1.bf16.msra.mxu0 0
      %501 = vmatprep.subr.bf16.mxu0 0
      %502 = vmatpush1.bf16.msra.mxu0 0
      %503 = vmatprep.subr.bf16.mxu0 0
      %504 = vmatpush1.bf16.msra.mxu0 0
      %505 = vmatprep.subr.bf16.mxu0 0
      %506 = vmatpush1.bf16.msra.mxu0 0
      %507 = vmatprep.subr.bf16.mxu0 0
      %508 = vmatpush1.bf16.msra.mxu0 0
      %509 = vmatprep.mubr.bf16.mxu0 0
      %510 = vmatmul.mubr.bf16.gmra.mrb[0].mxu0 %v382
      %v511 = vpop.f32.mrb[0].mxu0
      %v512 = vadd.f32 %v366, %v511
      %v513 = vpop.f32.mrb[0].mxu0
      %v514 = vpop.f32.mrb[0].mxu0
      %v515 = vadd.f32 %v366, %v514
      %v516 = vpop.f32.mrb[0].mxu0
      %517 = vmatprep.mubr.bf16.mxu0 0
      %518 = vmatmul.mubr.bf16.gmra.mrb[0].mxu0 %v385
      %v519 = vpop.f32.mrb[0].mxu0
      %v520 = vadd.f32 %v366, %v519
      %v521 = vpop.f32.mrb[0].mxu0
      %v522 = vpop.f32.mrb[0].mxu0
      %v523 = vadd.f32 %v366, %v522
      %v524 = vpop.f32.mrb[0].mxu0
      %525 = vmatprep.mubr.bf16.mxu0 0
      %526 = vmatmul.mubr.bf16.gmra.mrb[0].mxu0 %v388
      %v527 = vpop.f32.mrb[0].mxu0
      %v528 = vadd.f32 %v366, %v527
      %v529 = vpop.f32.mrb[0].mxu0
      %v530 = vpop.f32.mrb[0].mxu0
      %v531 = vadd.f32 %v366, %v530
      %v532 = vpop.f32.mrb[0].mxu0
      %533 = vmatprep.mubr.bf16.mxu0 0
      %534 = vmatmul.mubr.bf16.gmra.mrb[0].mxu0 %v391
      %v535 = vpop.f32.mrb[0].mxu0
      %v536 = vadd.f32 %v366, %v535
      %v537 = vpop.f32.mrb[0].mxu0
      %v538 = vpop.f32.mrb[0].mxu0
      %v539 = vadd.f32 %v366, %v538
      %v540 = vpop.f32.mrb[0].mxu0
      %541 = vmatprep.mubr.bf16.mxu0 0
      %542 = vmatmul.mubr.bf16.gmra.mrb[0].mxu0 %v394
      %v543 = vpop.f32.mrb[0].mxu0
      %v544 = vadd.f32 %v366, %v543
      %v545 = vpop.f32.mrb[0].mxu0
      %v546 = vpop.f32.mrb[0].mxu0
      %v547 = vadd.f32 %v366, %v546
      %v548 = vpop.f32.mrb[0].mxu0
      %549 = vmatprep.mubr.bf16.mxu0 0
      %550 = vmatmul.mubr.bf16.gmra.mrb[0].mxu0 %v397
      %v551 = vpop.f32.mrb[0].mxu0
      %v552 = vadd.f32 %v366, %v551
      %v553 = vpop.f32.mrb[0].mxu0
      %v554 = vpop.f32.mrb[0].mxu0
      %v555 = vadd.f32 %v366, %v554
      %v556 = vpop.f32.mrb[0].mxu0
      %557 = vmatprep.mubr.bf16.mxu0 0
      %558 = vmatmul.mubr.bf16.gmra.mrb[0].mxu0 %v400
      %v559 = vpop.f32.mrb[0].mxu0
      %v560 = vadd.f32 %v366, %v559
      %v561 = vpop.f32.mrb[0].mxu0
      %v562 = vpop.f32.mrb[0].mxu0
      %v563 = vadd.f32 %v366, %v562
      %v564 = vpop.f32.mrb[0].mxu0
      %565 = vmatprep.mubr.bf16.mxu0 0
      %566 = vmatmul.mubr.bf16.gmra.mrb[0].mxu0 %v403
      %v567 = vpop.f32.mrb[0].mxu0
      %v568 = vadd.f32 %v366, %v567
      %v569 = vpop.f32.mrb[0].mxu0
      %v570 = vpop.f32.mrb[0].mxu0
      %v571 = vadd.f32 %v366, %v570
      %v572 = vpop.f32.mrb[0].mxu0
      %573 = vmatprep.mubr.bf16.mxu0 0
      %574 = vmatmul.mubr.bf16.gmra.mrb[0].mxu0 %v406
      %v575 = vpop.f32.mrb[0].mxu0
      %v576 = vadd.f32 %v366, %v575
      %v577 = vpop.f32.mrb[0].mxu0
      %v578 = vpop.f32.mrb[0].mxu0
      %v579 = vadd.f32 %v366, %v578
      %v580 = vpop.f32.mrb[0].mxu0
      %581 = vmatprep.mubr.bf16.mxu0 0
      %582 = vmatmul.mubr.bf16.gmra.mrb[0].mxu0 %v409
      %v583 = vpop.f32.mrb[0].mxu0
      %v584 = vadd.f32 %v366, %v583
      %v585 = vpop.f32.mrb[0].mxu0
      %v586 = vpop.f32.mrb[0].mxu0
      %v587 = vadd.f32 %v366, %v586
      %v588 = vpop.f32.mrb[0].mxu0
      %589 = vmatprep.mubr.bf16.mxu0 0
      %590 = vmatmul.mubr.bf16.gmra.mrb[0].mxu0 %v412
      %v591 = vpop.f32.mrb[0].mxu0
      %v592 = vadd.f32 %v366, %v591
      %v593 = vpop.f32.mrb[0].mxu0
      %v594 = vpop.f32.mrb[0].mxu0
      %v595 = vadd.f32 %v366, %v594
      %v596 = vpop.f32.mrb[0].mxu0
      %597 = vmatprep.mubr.bf16.mxu0 0
      %598 = vmatmul.mubr.bf16.gmra.mrb[0].mxu0 %v415
      %v599 = vpop.f32.mrb[0].mxu0
      %v600 = vadd.f32 %v366, %v599
      %v601 = vpop.f32.mrb[0].mxu0
      %v602 = vpop.f32.mrb[0].mxu0
      %v603 = vadd.f32 %v366, %v602
      %v604 = vpop.f32.mrb[0].mxu0
      %605 = vmatprep.mubr.bf16.mxu0 0
      %606 = vmatmul.mubr.bf16.gmra.mrb[0].mxu0 %v418
      %v607 = vpop.f32.mrb[0].mxu0
      %v608 = vadd.f32 %v366, %v607
      %v609 = vpop.f32.mrb[0].mxu0
      %v610 = vpop.f32.mrb[0].mxu0
      %v611 = vadd.f32 %v366, %v610
      %v612 = vpop.f32.mrb[0].mxu0
      %613 = vmatprep.mubr.bf16.mxu0 0
      %614 = vmatmul.mubr.bf16.gmra.mrb[0].mxu0 %v421
      %v615 = vpop.f32.mrb[0].mxu0
      %v616 = vadd.f32 %v366, %v615
      %v617 = vpop.f32.mrb[0].mxu0
      %v618 = vpop.f32.mrb[0].mxu0
      %v619 = vadd.f32 %v366, %v618
      %v620 = vpop.f32.mrb[0].mxu0
      %621 = vmatprep.mubr.bf16.mxu0 0
      %622 = vmatmul.mubr.bf16.gmra.mrb[0].mxu0 %v424
      %v623 = vpop.f32.mrb[0].mxu0
      %v624 = vadd.f32 %v366, %v623
      %v625 = vpop.f32.mrb[0].mxu0
      %v626 = vpop.f32.mrb[0].mxu0
      %v627 = vadd.f32 %v366, %v626
      %v628 = vpop.f32.mrb[0].mxu0
      %629 = vmatprep.mubr.bf16.mxu0 0
      %630 = vmatmul.mubr.bf16.gmra.mrb[0].mxu0 %v427
      %v631 = vpop.f32.mrb[0].mxu0
      %v632 = vadd.f32 %v366, %v631
      %v633 = vpop.f32.mrb[0].mxu0
      %v634 = vpop.f32.mrb[0].mxu0
      %v635 = vadd.f32 %v366, %v634
      %v636 = vpop.f32.mrb[0].mxu0
      %637 = vmatprep.mubr.bf16.mxu0 0
      %638 = vmatmul.mubr.bf16.gmra.mrb[0].mxu0 %v430
      %v639 = vpop.f32.mrb[0].mxu0
      %v640 = vadd.f32 %v366, %v639
      %v641 = vpop.f32.mrb[0].mxu0
      %v642 = vpop.f32.mrb[0].mxu0
      %v643 = vadd.f32 %v366, %v642
      %v644 = vpop.f32.mrb[0].mxu0
      %645 = vmatprep.mubr.bf16.mxu0 0
      %646 = vmatmul.mubr.bf16.gmra.mrb[0].mxu0 %v433
      %v647 = vpop.f32.mrb[0].mxu0
      %v648 = vadd.f32 %v366, %v647
      %v649 = vpop.f32.mrb[0].mxu0
      %v650 = vpop.f32.mrb[0].mxu0
      %v651 = vadd.f32 %v366, %v650
      %v652 = vpop.f32.mrb[0].mxu0
      %653 = vmatprep.mubr.bf16.mxu0 0
      %654 = vmatmul.mubr.bf16.gmra.mrb[0].mxu0 %v436
      %v655 = vpop.f32.mrb[0].mxu0
      %v656 = vadd.f32 %v366, %v655
      %v657 = vpop.f32.mrb[0].mxu0
      %v658 = vpop.f32.mrb[0].mxu0
      %v659 = vadd.f32 %v366, %v658
      %v660 = vpop.f32.mrb[0].mxu0
      %661 = vmatprep.mubr.bf16.mxu0 0
      %662 = vmatmul.mubr.bf16.gmra.mrb[0].mxu0 %v439
      %v663 = vpop.f32.mrb[0].mxu0
      %v664 = vadd.f32 %v366, %v663
      %v665 = vpop.f32.mrb[0].mxu0
      %v666 = vpop.f32.mrb[0].mxu0
      %v667 = vadd.f32 %v366, %v666
      %v668 = vpop.f32.mrb[0].mxu0
      %669 = vmatprep.mubr.bf16.mxu0 0
      %670 = vmatmul.mubr.bf16.gmra.mrb[0].mxu0 %v442
      %v671 = vpop.f32.mrb[0].mxu0
      %v672 = vadd.f32 %v366, %v671
      %v673 = vpop.f32.mrb[0].mxu0
      %v674 = vpop.f32.mrb[0].mxu0
      %v675 = vadd.f32 %v366, %v674
      %v676 = vpop.f32.mrb[0].mxu0
      %677 = vmatprep.mubr.bf16.mxu0 0
      %678 = vmatmul.mubr.bf16.gmra.mrb[0].mxu0 %v445
      %v679 = vpop.f32.mrb[0].mxu0
      %v680 = vadd.f32 %v366, %v679
      %v681 = vpop.f32.mrb[0].mxu0
      %v682 = vpop.f32.mrb[0].mxu0
      %v683 = vadd.f32 %v366, %v682
      %v684 = vpop.f32.mrb[0].mxu0
      %685 = vmatprep.mubr.bf16.mxu0 0
      %686 = vmatmul.mubr.bf16.gmra.mrb[0].mxu0 %v448
      %v687 = vpop.f32.mrb[0].mxu0
      %v688 = vadd.f32 %v366, %v687
      %v689 = vpop.f32.mrb[0].mxu0
      %v690 = vpop.f32.mrb[0].mxu0
      %v691 = vadd.f32 %v366, %v690
      %v692 = vpop.f32.mrb[0].mxu0
      %693 = vmatprep.mubr.bf16.mxu0 0
      %694 = vmatmul.mubr.bf16.gmra.mrb[0].mxu0 %v451
      %v695 = vpop.f32.mrb[0].mxu0
      %v696 = vadd.f32 %v366, %v695
      %v697 = vpop.f32.mrb[0].mxu0
      %v698 = vpop.f32.mrb[0].mxu0
      %v699 = vadd.f32 %v366, %v698
      %v700 = vpop.f32.mrb[0].mxu0
      %701 = vmatprep.mubr.bf16.mxu0 0
      %702 = vmatmul.mubr.bf16.gmra.mrb[0].mxu0 %v454
      %v703 = vpop.f32.mrb[0].mxu0
      %v704 = vadd.f32 %v366, %v703
      %v705 = vpop.f32.mrb[0].mxu0
      %v706 = vpop.f32.mrb[0].mxu0
      %v707 = vadd.f32 %v366, %v706
      %v708 = vpop.f32.mrb[0].mxu0
      %709 = vmatprep.mubr.bf16.mxu0 0
      %710 = vmatmul.mubr.bf16.gmra.mrb[0].mxu0 %v457
      %v711 = vpop.f32.mrb[0].mxu0
      %v712 = vadd.f32 %v366, %v711
      %v713 = vpop.f32.mrb[0].mxu0
      %v714 = vpop.f32.mrb[0].mxu0
      %v715 = vadd.f32 %v366, %v714
      %v716 = vpop.f32.mrb[0].mxu0
      %717 = vmatprep.mubr.bf16.mxu0 0
      %718 = vmatmul.mubr.bf16.gmra.mrb[0].mxu0 %v460
      %v719 = vpop.f32.mrb[0].mxu0
      %v720 = vadd.f32 %v366, %v719
      %v721 = vpop.f32.mrb[0].mxu0
      %v722 = vpop.f32.mrb[0].mxu0
      %v723 = vadd.f32 %v366, %v722
      %v724 = vpop.f32.mrb[0].mxu0
      %725 = vmatprep.mubr.bf16.mxu0 0
      %726 = vmatmul.mubr.bf16.gmra.mrb[0].mxu0 %v463
      %v727 = vpop.f32.mrb[0].mxu0
      %v728 = vadd.f32 %v366, %v727
      %v729 = vpop.f32.mrb[0].mxu0
      %v730 = vpop.f32.mrb[0].mxu0
      %v731 = vadd.f32 %v366, %v730
      %v732 = vpop.f32.mrb[0].mxu0
      %733 = vmatprep.mubr.bf16.mxu0 0
      %734 = vmatmul.mubr.bf16.gmra.mrb[0].mxu0 %v466
      %v735 = vpop.f32.mrb[0].mxu0
      %v736 = vadd.f32 %v366, %v735
      %v737 = vpop.f32.mrb[0].mxu0
      %v738 = vpop.f32.mrb[0].mxu0
      %v739 = vadd.f32 %v366, %v738
      %v740 = vpop.f32.mrb[0].mxu0
      %741 = vmatprep.mubr.bf16.mxu0 0
      %742 = vmatmul.mubr.bf16.gmra.mrb[0].mxu0 %v469
      %v743 = vpop.f32.mrb[0].mxu0
      %v744 = vadd.f32 %v366, %v743
      %v745 = vpop.f32.mrb[0].mxu0
      %v746 = vpop.f32.mrb[0].mxu0
      %v747 = vadd.f32 %v366, %v746
      %v748 = vpop.f32.mrb[0].mxu0
      %749 = vmatprep.mubr.bf16.mxu0 0
      %750 = vmatmul.mubr.bf16.gmra.mrb[0].mxu0 %v472
      %v751 = vpop.f32.mrb[0].mxu0
      %v752 = vadd.f32 %v366, %v751
      %v753 = vpop.f32.mrb[0].mxu0
      %v754 = vpop.f32.mrb[0].mxu0
      %v755 = vadd.f32 %v366, %v754
      %v756 = vpop.f32.mrb[0].mxu0
      %757 = vmatprep.mubr.bf16.mxu0 0
      %758 = vmatmul.mubr.bf16.gmra.mrb[0].mxu0 %v475
      %v759 = vpop.f32.mrb[0].mxu0
      %v760 = vadd.f32 %v366, %v759
      %v761 = vpop.f32.mrb[0].mxu0
      %v762 = vpop.f32.mrb[0].mxu0
      %v763 = vadd.f32 %v366, %v762
      %v764 = vpop.f32.mrb[0].mxu0
      %765 = vdwg.mxu0
      %v766 = vpack.c.bf16 %v515, %v512
      %v767 = vpack.c.bf16 %v523, %v520
      %v768 = vpack.c.bf16 %v531, %v528
      %v769 = vpack.c.bf16 %v539, %v536
      %v770 = vpack.c.bf16 %v547, %v544
      %v771 = vpack.c.bf16 %v555, %v552
      %v772 = vpack.c.bf16 %v563, %v560
      %v773 = vpack.c.bf16 %v571, %v568
      %v774 = vpack.c.bf16 %v579, %v576
      %v775 = vpack.c.bf16 %v587, %v584
      %v776 = vpack.c.bf16 %v595, %v592
      %v777 = vpack.c.bf16 %v603, %v600
      %v778 = vpack.c.bf16 %v611, %v608
      %v779 = vpack.c.bf16 %v619, %v616
      %v780 = vpack.c.bf16 %v627, %v624
      %v781 = vpack.c.bf16 %v635, %v632
      %v782 = vpack.c.bf16 %v643, %v640
      %v783 = vpack.c.bf16 %v651, %v648
      %v784 = vpack.c.bf16 %v659, %v656
      %v785 = vpack.c.bf16 %v667, %v664
      %v786 = vpack.c.bf16 %v675, %v672
      %v787 = vpack.c.bf16 %v683, %v680
      %v788 = vpack.c.bf16 %v691, %v688
      %v789 = vpack.c.bf16 %v699, %v696
      %v790 = vpack.c.bf16 %v707, %v704
      %v791 = vpack.c.bf16 %v715, %v712
      %v792 = vpack.c.bf16 %v723, %v720
      %v793 = vpack.c.bf16 %v731, %v728
      %v794 = vpack.c.bf16 %v739, %v736
      %v795 = vpack.c.bf16 %v747, %v744
      %v796 = vpack.c.bf16 %v755, %v752
      %v797 = vpack.c.bf16 %v763, %v760
      %v798 = vld [vmem:[%s3] sm:$0xff]
      %v799 = vld [vmem:[%s3 + $0x8] sm:$0xff]
      %v800 = vld [vmem:[%s3 + $0x10] sm:$0xff]
      %v801 = vld [vmem:[%s3 + $0x18] sm:$0xff]
      %v802 = vld [vmem:[%s3 + $0x20] sm:$0xff]
      %v803 = vld [vmem:[%s3 + $0x28] sm:$0xff]
      %v804 = vld [vmem:[%s3 + $0x30] sm:$0xff]
      %v805 = vld [vmem:[%s3 + $0x38] sm:$0xff]
      %810 = vrot.lane.b32.xlu0 %v766, 96
      %v811 = vpop.permute.xlu0 %810
      %812 = vrot.lane.b32.xlu0 %v767, 96
      %v813 = vpop.permute.xlu0 %812
      %814 = vrot.lane.b32.xlu0 %v768, 96
      %v815 = vpop.permute.xlu0 %814
      %816 = vrot.lane.b32.xlu0 %v769, 96
      %v817 = vpop.permute.xlu0 %816
      %vm818 = vcmask 64512
      %v820 = vsel %vm818, %v766, 0
      %v823 = vsel %vm818, %v767, 0
      %v826 = vsel %vm818, %v768, 0
      %v829 = vsel %vm818, %v769, 0
      %v832 = vsel %vm818, %v811, 0
      %v835 = vsel %vm818, %v813, 0
      %v838 = vsel %vm818, %v815, 0
      %v841 = vsel %vm818, %v817, 0
      %843 = vmatprep.subr.bf16.mxu0 0
      %844 = vmatpush1.bf16.xpose.msra.mxu0 %v832
      %845 = vmatprep.subr.bf16.mxu0 0
      %846 = vmatpush1.bf16.xpose.msra.mxu0 %v835
      %847 = vmatprep.subr.bf16.mxu0 0
      %848 = vmatpush1.bf16.xpose.msra.mxu0 %v838
      %849 = vmatprep.subr.bf16.mxu0 0
      %850 = vmatpush1.bf16.xpose.msra.mxu0 %v841
      %851 = vmatprep.subr.bf16.mxu0 0
      %852 = vmatpush1.bf16.xpose.msra.mxu0 0
      %853 = vmatprep.subr.bf16.mxu0 0
      %854 = vmatpush1.bf16.xpose.msra.mxu0 0
      %855 = vmatprep.subr.bf16.mxu0 0
      %856 = vmatpush1.bf16.xpose.msra.mxu0 0
      %857 = vmatprep.subr.bf16.mxu0 0
      %858 = vmatpush1.bf16.xpose.msra.mxu0 0
      %859 = vmatprep.subr.bf16.mxu0 0
      %860 = vmatpush1.bf16.xpose.msra.mxu0 0
      %861 = vmatprep.subr.bf16.mxu0 0
      %862 = vmatpush1.bf16.xpose.msra.mxu0 0
      %863 = vmatprep.subr.bf16.mxu0 0
      %864 = vmatpush1.bf16.xpose.msra.mxu0 0
      %865 = vmatprep.subr.bf16.mxu0 0
      %866 = vmatpush1.bf16.xpose.msra.mxu0 0
      %867 = vmatprep.subr.bf16.mxu0 0
      %868 = vmatpush1.bf16.xpose.msra.mxu0 0
      %869 = vmatprep.subr.bf16.mxu0 0
      %870 = vmatpush1.bf16.xpose.msra.mxu0 0
      %871 = vmatprep.subr.bf16.mxu0 0
      %872 = vmatpush1.bf16.xpose.msra.mxu0 0
      %873 = vmatprep.subr.bf16.mxu0 0
      %874 = vmatpush1.bf16.xpose.msra.mxu0 0
      %875 = vmatprep.mubr.bf16.mxu0 0
      %876 = vmatmul.mubr.bf16.gmra.mrb[0].mxu0 %v820
      %v877 = vpop.f32.mrb[0].mxu0
      %v878 = vadd.f32 %v798, %v877
      %v879 = vpop.f32.mrb[0].mxu0
      %v880 = vpop.f32.mrb[0].mxu0
      %v881 = vadd.f32 %v799, %v880
      %v882 = vpop.f32.mrb[0].mxu0
      %883 = vmatprep.mubr.bf16.mxu0 0
      %884 = vmatmul.mubr.bf16.gmra.mrb[0].mxu0 %v823
      %v885 = vpop.f32.mrb[0].mxu0
      %v886 = vadd.f32 %v800, %v885
      %v887 = vpop.f32.mrb[0].mxu0
      %v888 = vpop.f32.mrb[0].mxu0
      %v889 = vadd.f32 %v801, %v888
      %v890 = vpop.f32.mrb[0].mxu0
      %891 = vmatprep.mubr.bf16.mxu0 0
      %892 = vmatmul.mubr.bf16.gmra.mrb[0].mxu0 %v826
      %v893 = vpop.f32.mrb[0].mxu0
      %v894 = vadd.f32 %v802, %v893
      %v895 = vpop.f32.mrb[0].mxu0
      %v896 = vpop.f32.mrb[0].mxu0
      %v897 = vadd.f32 %v803, %v896
      %v898 = vpop.f32.mrb[0].mxu0
      %899 = vmatprep.mubr.bf16.mxu0 0
      %900 = vmatmul.mubr.bf16.gmra.mrb[0].mxu0 %v829
      %v901 = vpop.f32.mrb[0].mxu0
      %v902 = vadd.f32 %v804, %v901
      %v903 = vpop.f32.mrb[0].mxu0
      %v904 = vpop.f32.mrb[0].mxu0
      %v905 = vadd.f32 %v805, %v904
      %v906 = vpop.f32.mrb[0].mxu0
      %907 = vdwg.mxu0
      %912 = vrot.lane.b32.xlu0 %v770, 96
      %v913 = vpop.permute.xlu0 %912
      %914 = vrot.lane.b32.xlu0 %v771, 96
      %v915 = vpop.permute.xlu0 %914
      %916 = vrot.lane.b32.xlu0 %v772, 96
      %v917 = vpop.permute.xlu0 %916
      %918 = vrot.lane.b32.xlu0 %v773, 96
      %v919 = vpop.permute.xlu0 %918
      %v921 = vsel %vm818, %v770, 0
      %v924 = vsel %vm818, %v771, 0
      %v927 = vsel %vm818, %v772, 0
      %v930 = vsel %vm818, %v773, 0
      %v933 = vsel %vm818, %v913, 0
      %v936 = vsel %vm818, %v915, 0
      %v939 = vsel %vm818, %v917, 0
      %v942 = vsel %vm818, %v919, 0
      %944 = vmatprep.subr.bf16.mxu0 0
      %945 = vmatpush1.bf16.xpose.msra.mxu0 %v933
      %946 = vmatprep.subr.bf16.mxu0 0
      %947 = vmatpush1.bf16.xpose.msra.mxu0 %v936
      %948 = vmatprep.subr.bf16.mxu0 0
      %949 = vmatpush1.bf16.xpose.msra.mxu0 %v939
      %950 = vmatprep.subr.bf16.mxu0 0
      %951 = vmatpush1.bf16.xpose.msra.mxu0 %v942
      %952 = vmatprep.subr.bf16.mxu0 0
      %953 = vmatpush1.bf16.xpose.msra.mxu0 0
      %954 = vmatprep.subr.bf16.mxu0 0
      %955 = vmatpush1.bf16.xpose.msra.mxu0 0
      %956 = vmatprep.subr.bf16.mxu0 0
      %957 = vmatpush1.bf16.xpose.msra.mxu0 0
      %958 = vmatprep.subr.bf16.mxu0 0
      %959 = vmatpush1.bf16.xpose.msra.mxu0 0
      %960 = vmatprep.subr.bf16.mxu0 0
      %961 = vmatpush1.bf16.xpose.msra.mxu0 0
      %962 = vmatprep.subr.bf16.mxu0 0
      %963 = vmatpush1.bf16.xpose.msra.mxu0 0
      %964 = vmatprep.subr.bf16.mxu0 0
      %965 = vmatpush1.bf16.xpose.msra.mxu0 0
      %966 = vmatprep.subr.bf16.mxu0 0
      %967 = vmatpush1.bf16.xpose.msra.mxu0 0
      %968 = vmatprep.subr.bf16.mxu0 0
      %969 = vmatpush1.bf16.xpose.msra.mxu0 0
      %970 = vmatprep.subr.bf16.mxu0 0
      %971 = vmatpush1.bf16.xpose.msra.mxu0 0
      %972 = vmatprep.subr.bf16.mxu0 0
      %973 = vmatpush1.bf16.xpose.msra.mxu0 0
      %974 = vmatprep.subr.bf16.mxu0 0
      %975 = vmatpush1.bf16.xpose.msra.mxu0 0
      %976 = vmatprep.mubr.bf16.mxu0 0
      %977 = vmatmul.mubr.bf16.gmra.mrb[0].mxu0 %v921
      %v978 = vpop.f32.mrb[0].mxu0
      %v979 = vadd.f32 %v798, %v978
      %v980 = vpop.f32.mrb[0].mxu0
      %v981 = vpop.f32.mrb[0].mxu0
      %v982 = vadd.f32 %v799, %v981
      %v983 = vpop.f32.mrb[0].mxu0
      %984 = vmatprep.mubr.bf16.mxu0 0
      %985 = vmatmul.mubr.bf16.gmra.mrb[0].mxu0 %v924
      %v986 = vpop.f32.mrb[0].mxu0
      %v987 = vadd.f32 %v800, %v986
      %v988 = vpop.f32.mrb[0].mxu0
      %v989 = vpop.f32.mrb[0].mxu0
      %v990 = vadd.f32 %v801, %v989
      %v991 = vpop.f32.mrb[0].mxu0
      %992 = vmatprep.mubr.bf16.mxu0 0
      %993 = vmatmul.mubr.bf16.gmra.mrb[0].mxu0 %v927
      %v994 = vpop.f32.mrb[0].mxu0
      %v995 = vadd.f32 %v802, %v994
      %v996 = vpop.f32.mrb[0].mxu0
      %v997 = vpop.f32.mrb[0].mxu0
      %v998 = vadd.f32 %v803, %v997
      %v999 = vpop.f32.mrb[0].mxu0
      %1000 = vmatprep.mubr.bf16.mxu0 0
      %1001 = vmatmul.mubr.bf16.gmra.mrb[0].mxu0 %v930
      %v1002 = vpop.f32.mrb[0].mxu0
      %v1003 = vadd.f32 %v804, %v1002
      %v1004 = vpop.f32.mrb[0].mxu0
      %v1005 = vpop.f32.mrb[0].mxu0
      %v1006 = vadd.f32 %v805, %v1005
      %v1007 = vpop.f32.mrb[0].mxu0
      %1008 = vdwg.mxu0
      %1013 = vrot.lane.b32.xlu0 %v774, 96
      %v1014 = vpop.permute.xlu0 %1013
      %1015 = vrot.lane.b32.xlu0 %v775, 96
      %v1016 = vpop.permute.xlu0 %1015
      %1017 = vrot.lane.b32.xlu0 %v776, 96
      %v1018 = vpop.permute.xlu0 %1017
      %1019 = vrot.lane.b32.xlu0 %v777, 96
      %v1020 = vpop.permute.xlu0 %1019
      %v1022 = vsel %vm818, %v774, 0
      %v1025 = vsel %vm818, %v775, 0
      %v1028 = vsel %vm818, %v776, 0
      %v1031 = vsel %vm818, %v777, 0
      %v1034 = vsel %vm818, %v1014, 0
      %v1037 = vsel %vm818, %v1016, 0
      %v1040 = vsel %vm818, %v1018, 0
      %v1043 = vsel %vm818, %v1020, 0
      %1045 = vmatprep.subr.bf16.mxu0 0
      %1046 = vmatpush1.bf16.xpose.msra.mxu0 %v1034
      %1047 = vmatprep.subr.bf16.mxu0 0
      %1048 = vmatpush1.bf16.xpose.msra.mxu0 %v1037
      %1049 = vmatprep.subr.bf16.mxu0 0
      %1050 = vmatpush1.bf16.xpose.msra.mxu0 %v1040
      %1051 = vmatprep.subr.bf16.mxu0 0
      %1052 = vmatpush1.bf16.xpose.msra.mxu0 %v1043
      %1053 = vmatprep.subr.bf16.mxu0 0
      %1054 = vmatpush1.bf16.xpose.msra.mxu0 0
      %1055 = vmatprep.subr.bf16.mxu0 0
      %1056 = vmatpush1.bf16.xpose.msra.mxu0 0
      %1057 = vmatprep.subr.bf16.mxu0 0
      %1058 = vmatpush1.bf16.xpose.msra.mxu0 0
      %1059 = vmatprep.subr.bf16.mxu0 0
      %1060 = vmatpush1.bf16.xpose.msra.mxu0 0
      %1061 = vmatprep.subr.bf16.mxu0 0
      %1062 = vmatpush1.bf16.xpose.msra.mxu0 0
      %1063 = vmatprep.subr.bf16.mxu0 0
      %1064 = vmatpush1.bf16.xpose.msra.mxu0 0
      %1065 = vmatprep.subr.bf16.mxu0 0
      %1066 = vmatpush1.bf16.xpose.msra.mxu0 0
      %1067 = vmatprep.subr.bf16.mxu0 0
      %1068 = vmatpush1.bf16.xpose.msra.mxu0 0
      %1069 = vmatprep.subr.bf16.mxu0 0
      %1070 = vmatpush1.bf16.xpose.msra.mxu0 0
      %1071 = vmatprep.subr.bf16.mxu0 0
      %1072 = vmatpush1.bf16.xpose.msra.mxu0 0
      %1073 = vmatprep.subr.bf16.mxu0 0
      %1074 = vmatpush1.bf16.xpose.msra.mxu0 0
      %1075 = vmatprep.subr.bf16.mxu0 0
      %1076 = vmatpush1.bf16.xpose.msra.mxu0 0
      %1077 = vmatprep.mubr.bf16.mxu0 0
      %1078 = vmatmul.mubr.bf16.gmra.mrb[0].mxu0 %v1022
      %v1079 = vpop.f32.mrb[0].mxu0
      %v1080 = vadd.f32 %v798, %v1079
      %v1081 = vpop.f32.mrb[0].mxu0
      %v1082 = vpop.f32.mrb[0].mxu0
      %v1083 = vadd.f32 %v799, %v1082
      %v1084 = vpop.f32.mrb[0].mxu0
      %1085 = vmatprep.mubr.bf16.mxu0 0
      %1086 = vmatmul.mubr.bf16.gmra.mrb[0].mxu0 %v1025
      %v1087 = vpop.f32.mrb[0].mxu0
      %v1088 = vadd.f32 %v800, %v1087
      %v1089 = vpop.f32.mrb[0].mxu0
      %v1090 = vpop.f32.mrb[0].mxu0
      %v1091 = vadd.f32 %v801, %v1090
      %v1092 = vpop.f32.mrb[0].mxu0
      %1093 = vmatprep.mubr.bf16.mxu0 0
      %1094 = vmatmul.mubr.bf16.gmra.mrb[0].mxu0 %v1028
      %v1095 = vpop.f32.mrb[0].mxu0
      %v1096 = vadd.f32 %v802, %v1095
      %v1097 = vpop.f32.mrb[0].mxu0
      %v1098 = vpop.f32.mrb[0].mxu0
      %v1099 = vadd.f32 %v803, %v1098
      %v1100 = vpop.f32.mrb[0].mxu0
      %1101 = vmatprep.mubr.bf16.mxu0 0
      %1102 = vmatmul.mubr.bf16.gmra.mrb[0].mxu0 %v1031
      %v1103 = vpop.f32.mrb[0].mxu0
      %v1104 = vadd.f32 %v804, %v1103
      %v1105 = vpop.f32.mrb[0].mxu0
      %v1106 = vpop.f32.mrb[0].mxu0
      %v1107 = vadd.f32 %v805, %v1106
      %v1108 = vpop.f32.mrb[0].mxu0
      %1109 = vdwg.mxu0
      %1114 = vrot.lane.b32.xlu0 %v778, 96
      %v1115 = vpop.permute.xlu0 %1114
      %1116 = vrot.lane.b32.xlu0 %v779, 96
      %v1117 = vpop.permute.xlu0 %1116
      %1118 = vrot.lane.b32.xlu0 %v780, 96
      %v1119 = vpop.permute.xlu0 %1118
      %1120 = vrot.lane.b32.xlu0 %v781, 96
      %v1121 = vpop.permute.xlu0 %1120
      %v1123 = vsel %vm818, %v778, 0
      %v1126 = vsel %vm818, %v779, 0
      %v1129 = vsel %vm818, %v780, 0
      %v1132 = vsel %vm818, %v781, 0
      %v1135 = vsel %vm818, %v1115, 0
      %v1138 = vsel %vm818, %v1117, 0
      %v1141 = vsel %vm818, %v1119, 0
      %v1144 = vsel %vm818, %v1121, 0
      %1146 = vmatprep.subr.bf16.mxu0 0
      %1147 = vmatpush1.bf16.xpose.msra.mxu0 %v1135
      %1148 = vmatprep.subr.bf16.mxu0 0
      %1149 = vmatpush1.bf16.xpose.msra.mxu0 %v1138
      %1150 = vmatprep.subr.bf16.mxu0 0
      %1151 = vmatpush1.bf16.xpose.msra.mxu0 %v1141
      %1152 = vmatprep.subr.bf16.mxu0 0
      %1153 = vmatpush1.bf16.xpose.msra.mxu0 %v1144
      %1154 = vmatprep.subr.bf16.mxu0 0
      %1155 = vmatpush1.bf16.xpose.msra.mxu0 0
      %1156 = vmatprep.subr.bf16.mxu0 0
      %1157 = vmatpush1.bf16.xpose.msra.mxu0 0
      %1158 = vmatprep.subr.bf16.mxu0 0
      %1159 = vmatpush1.bf16.xpose.msra.mxu0 0
      %1160 = vmatprep.subr.bf16.mxu0 0
      %1161 = vmatpush1.bf16.xpose.msra.mxu0 0
      %1162 = vmatprep.subr.bf16.mxu0 0
      %1163 = vmatpush1.bf16.xpose.msra.mxu0 0
      %1164 = vmatprep.subr.bf16.mxu0 0
      %1165 = vmatpush1.bf16.xpose.msra.mxu0 0
      %1166 = vmatprep.subr.bf16.mxu0 0
      %1167 = vmatpush1.bf16.xpose.msra.mxu0 0
      %1168 = vmatprep.subr.bf16.mxu0 0
      %1169 = vmatpush1.bf16.xpose.msra.mxu0 0
      %1170 = vmatprep.subr.bf16.mxu0 0
      %1171 = vmatpush1.bf16.xpose.msra.mxu0 0
      %1172 = vmatprep.subr.bf16.mxu0 0
      %1173 = vmatpush1.bf16.xpose.msra.mxu0 0
      %1174 = vmatprep.subr.bf16.mxu0 0
      %1175 = vmatpush1.bf16.xpose.msra.mxu0 0
      %1176 = vmatprep.subr.bf16.mxu0 0
      %1177 = vmatpush1.bf16.xpose.msra.mxu0 0
      %1178 = vmatprep.mubr.bf16.mxu0 0
      %1179 = vmatmul.mubr.bf16.gmra.mrb[0].mxu0 %v1123
      %v1180 = vpop.f32.mrb[0].mxu0
      %v1181 = vadd.f32 %v798, %v1180
      %v1182 = vpop.f32.mrb[0].mxu0
      %v1183 = vpop.f32.mrb[0].mxu0
      %v1184 = vadd.f32 %v799, %v1183
      %v1185 = vpop.f32.mrb[0].mxu0
      %1186 = vmatprep.mubr.bf16.mxu0 0
      %1187 = vmatmul.mubr.bf16.gmra.mrb[0].mxu0 %v1126
      %v1188 = vpop.f32.mrb[0].mxu0
      %v1189 = vadd.f32 %v800, %v1188
      %v1190 = vpop.f32.mrb[0].mxu0
      %v1191 = vpop.f32.mrb[0].mxu0
      %v1192 = vadd.f32 %v801, %v1191
      %v1193 = vpop.f32.mrb[0].mxu0
      %1194 = vmatprep.mubr.bf16.mxu0 0
      %1195 = vmatmul.mubr.bf16.gmra.mrb[0].mxu0 %v1129
      %v1196 = vpop.f32.mrb[0].mxu0
      %v1197 = vadd.f32 %v802, %v1196
      %v1198 = vpop.f32.mrb[0].mxu0
      %v1199 = vpop.f32.mrb[0].mxu0
      %v1200 = vadd.f32 %v803, %v1199
      %v1201 = vpop.f32.mrb[0].mxu0
      %1202 = vmatprep.mubr.bf16.mxu0 0
      %1203 = vmatmul.mubr.bf16.gmra.mrb[0].mxu0 %v1132
      %v1204 = vpop.f32.mrb[0].mxu0
      %v1205 = vadd.f32 %v804, %v1204
      %v1206 = vpop.f32.mrb[0].mxu0
      %v1207 = vpop.f32.mrb[0].mxu0
      %v1208 = vadd.f32 %v805, %v1207
      %v1209 = vpop.f32.mrb[0].mxu0
      %1210 = vdwg.mxu0
      %1215 = vrot.lane.b32.xlu0 %v782, 96
      %v1216 = vpop.permute.xlu0 %1215
      %1217 = vrot.lane.b32.xlu0 %v783, 96
      %v1218 = vpop.permute.xlu0 %1217
      %1219 = vrot.lane.b32.xlu0 %v784, 96
      %v1220 = vpop.permute.xlu0 %1219
      %1221 = vrot.lane.b32.xlu0 %v785, 96
      %v1222 = vpop.permute.xlu0 %1221
      %v1224 = vsel %vm818, %v782, 0
      %v1227 = vsel %vm818, %v783, 0
      %v1230 = vsel %vm818, %v784, 0
      %v1233 = vsel %vm818, %v785, 0
      %v1236 = vsel %vm818, %v1216, 0
      %v1239 = vsel %vm818, %v1218, 0
      %v1242 = vsel %vm818, %v1220, 0
      %v1245 = vsel %vm818, %v1222, 0
      %1247 = vmatprep.subr.bf16.mxu0 0
      %1248 = vmatpush1.bf16.xpose.msra.mxu0 %v1236
      %1249 = vmatprep.subr.bf16.mxu0 0
      %1250 = vmatpush1.bf16.xpose.msra.mxu0 %v1239
      %1251 = vmatprep.subr.bf16.mxu0 0
      %1252 = vmatpush1.bf16.xpose.msra.mxu0 %v1242
      %1253 = vmatprep.subr.bf16.mxu0 0
      %1254 = vmatpush1.bf16.xpose.msra.mxu0 %v1245
      %1255 = vmatprep.subr.bf16.mxu0 0
      %1256 = vmatpush1.bf16.xpose.msra.mxu0 0
      %1257 = vmatprep.subr.bf16.mxu0 0
      %1258 = vmatpush1.bf16.xpose.msra.mxu0 0
      %1259 = vmatprep.subr.bf16.mxu0 0
      %1260 = vmatpush1.bf16.xpose.msra.mxu0 0
      %1261 = vmatprep.subr.bf16.mxu0 0
      %1262 = vmatpush1.bf16.xpose.msra.mxu0 0
      %1263 = vmatprep.subr.bf16.mxu0 0
      %1264 = vmatpush1.bf16.xpose.msra.mxu0 0
      %1265 = vmatprep.subr.bf16.mxu0 0
      %1266 = vmatpush1.bf16.xpose.msra.mxu0 0
      %1267 = vmatprep.subr.bf16.mxu0 0
      %1268 = vmatpush1.bf16.xpose.msra.mxu0 0
      %1269 = vmatprep.subr.bf16.mxu0 0
      %1270 = vmatpush1.bf16.xpose.msra.mxu0 0
      %1271 = vmatprep.subr.bf16.mxu0 0
      %1272 = vmatpush1.bf16.xpose.msra.mxu0 0
      %1273 = vmatprep.subr.bf16.mxu0 0
      %1274 = vmatpush1.bf16.xpose.msra.mxu0 0
      %1275 = vmatprep.subr.bf16.mxu0 0
      %1276 = vmatpush1.bf16.xpose.msra.mxu0 0
      %1277 = vmatprep.subr.bf16.mxu0 0
      %1278 = vmatpush1.bf16.xpose.msra.mxu0 0
      %1279 = vmatprep.mubr.bf16.mxu0 0
      %1280 = vmatmul.mubr.bf16.gmra.mrb[0].mxu0 %v1224
      %v1281 = vpop.f32.mrb[0].mxu0
      %v1282 = vadd.f32 %v798, %v1281
      %v1283 = vpop.f32.mrb[0].mxu0
      %v1284 = vpop.f32.mrb[0].mxu0
      %v1285 = vadd.f32 %v799, %v1284
      %v1286 = vpop.f32.mrb[0].mxu0
      %1287 = vmatprep.mubr.bf16.mxu0 0
      %1288 = vmatmul.mubr.bf16.gmra.mrb[0].mxu0 %v1227
      %v1289 = vpop.f32.mrb[0].mxu0
      %v1290 = vadd.f32 %v800, %v1289
      %v1291 = vpop.f32.mrb[0].mxu0
      %v1292 = vpop.f32.mrb[0].mxu0
      %v1293 = vadd.f32 %v801, %v1292
      %v1294 = vpop.f32.mrb[0].mxu0
      %1295 = vmatprep.mubr.bf16.mxu0 0
      %1296 = vmatmul.mubr.bf16.gmra.mrb[0].mxu0 %v1230
      %v1297 = vpop.f32.mrb[0].mxu0
      %v1298 = vadd.f32 %v802, %v1297
      %v1299 = vpop.f32.mrb[0].mxu0
      %v1300 = vpop.f32.mrb[0].mxu0
      %v1301 = vadd.f32 %v803, %v1300
      %v1302 = vpop.f32.mrb[0].mxu0
      %1303 = vmatprep.mubr.bf16.mxu0 0
      %1304 = vmatmul.mubr.bf16.gmra.mrb[0].mxu0 %v1233
      %v1305 = vpop.f32.mrb[0].mxu0
      %v1306 = vadd.f32 %v804, %v1305
      %v1307 = vpop.f32.mrb[0].mxu0
      %v1308 = vpop.f32.mrb[0].mxu0
      %v1309 = vadd.f32 %v805, %v1308
      %v1310 = vpop.f32.mrb[0].mxu0
      %1311 = vdwg.mxu0
      %1316 = vrot.lane.b32.xlu0 %v786, 96
      %v1317 = vpop.permute.xlu0 %1316
      %1318 = vrot.lane.b32.xlu0 %v787, 96
      %v1319 = vpop.permute.xlu0 %1318
      %1320 = vrot.lane.b32.xlu0 %v788, 96
      %v1321 = vpop.permute.xlu0 %1320
      %1322 = vrot.lane.b32.xlu0 %v789, 96
      %v1323 = vpop.permute.xlu0 %1322
      %v1325 = vsel %vm818, %v786, 0
      %v1328 = vsel %vm818, %v787, 0
      %v1331 = vsel %vm818, %v788, 0
      %v1334 = vsel %vm818, %v789, 0
      %v1337 = vsel %vm818, %v1317, 0
      %v1340 = vsel %vm818, %v1319, 0
      %v1343 = vsel %vm818, %v1321, 0
      %v1346 = vsel %vm818, %v1323, 0
      %1348 = vmatprep.subr.bf16.mxu0 0
      %1349 = vmatpush1.bf16.xpose.msra.mxu0 %v1337
      %1350 = vmatprep.subr.bf16.mxu0 0
      %1351 = vmatpush1.bf16.xpose.msra.mxu0 %v1340
      %1352 = vmatprep.subr.bf16.mxu0 0
      %1353 = vmatpush1.bf16.xpose.msra.mxu0 %v1343
      %1354 = vmatprep.subr.bf16.mxu0 0
      %1355 = vmatpush1.bf16.xpose.msra.mxu0 %v1346
      %1356 = vmatprep.subr.bf16.mxu0 0
      %1357 = vmatpush1.bf16.xpose.msra.mxu0 0
      %1358 = vmatprep.subr.bf16.mxu0 0
      %1359 = vmatpush1.bf16.xpose.msra.mxu0 0
      %1360 = vmatprep.subr.bf16.mxu0 0
      %1361 = vmatpush1.bf16.xpose.msra.mxu0 0
      %1362 = vmatprep.subr.bf16.mxu0 0
      %1363 = vmatpush1.bf16.xpose.msra.mxu0 0
      %1364 = vmatprep.subr.bf16.mxu0 0
      %1365 = vmatpush1.bf16.xpose.msra.mxu0 0
      %1366 = vmatprep.subr.bf16.mxu0 0
      %1367 = vmatpush1.bf16.xpose.msra.mxu0 0
      %1368 = vmatprep.subr.bf16.mxu0 0
      %1369 = vmatpush1.bf16.xpose.msra.mxu0 0
      %1370 = vmatprep.subr.bf16.mxu0 0
      %1371 = vmatpush1.bf16.xpose.msra.mxu0 0
      %1372 = vmatprep.subr.bf16.mxu0 0
      %1373 = vmatpush1.bf16.xpose.msra.mxu0 0
      %1374 = vmatprep.subr.bf16.mxu0 0
      %1375 = vmatpush1.bf16.xpose.msra.mxu0 0
      %1376 = vmatprep.subr.bf16.mxu0 0
      %1377 = vmatpush1.bf16.xpose.msra.mxu0 0
      %1378 = vmatprep.subr.bf16.mxu0 0
      %1379 = vmatpush1.bf16.xpose.msra.mxu0 0
      %1380 = vmatprep.mubr.bf16.mxu0 0
      %1381 = vmatmul.mubr.bf16.gmra.mrb[0].mxu0 %v1325
      %v1382 = vpop.f32.mrb[0].mxu0
      %v1383 = vadd.f32 %v798, %v1382
      %v1384 = vpop.f32.mrb[0].mxu0
      %v1385 = vpop.f32.mrb[0].mxu0
      %v1386 = vadd.f32 %v799, %v1385
      %v1387 = vpop.f32.mrb[0].mxu0
      %1388 = vmatprep.mubr.bf16.mxu0 0
      %1389 = vmatmul.mubr.bf16.gmra.mrb[0].mxu0 %v1328
      %v1390 = vpop.f32.mrb[0].mxu0
      %v1391 = vadd.f32 %v800, %v1390
      %v1392 = vpop.f32.mrb[0].mxu0
      %v1393 = vpop.f32.mrb[0].mxu0
      %v1394 = vadd.f32 %v801, %v1393
      %v1395 = vpop.f32.mrb[0].mxu0
      %1396 = vmatprep.mubr.bf16.mxu0 0
      %1397 = vmatmul.mubr.bf16.gmra.mrb[0].mxu0 %v1331
      %v1398 = vpop.f32.mrb[0].mxu0
      %v1399 = vadd.f32 %v802, %v1398
      %v1400 = vpop.f32.mrb[0].mxu0
      %v1401 = vpop.f32.mrb[0].mxu0
      %v1402 = vadd.f32 %v803, %v1401
      %v1403 = vpop.f32.mrb[0].mxu0
      %1404 = vmatprep.mubr.bf16.mxu0 0
      %1405 = vmatmul.mubr.bf16.gmra.mrb[0].mxu0 %v1334
      %v1406 = vpop.f32.mrb[0].mxu0
      %v1407 = vadd.f32 %v804, %v1406
      %v1408 = vpop.f32.mrb[0].mxu0
      %v1409 = vpop.f32.mrb[0].mxu0
      %v1410 = vadd.f32 %v805, %v1409
      %v1411 = vpop.f32.mrb[0].mxu0
      %1412 = vdwg.mxu0
      %1417 = vrot.lane.b32.xlu0 %v790, 96
      %v1418 = vpop.permute.xlu0 %1417
      %1419 = vrot.lane.b32.xlu0 %v791, 96
      %v1420 = vpop.permute.xlu0 %1419
      %1421 = vrot.lane.b32.xlu0 %v792, 96
      %v1422 = vpop.permute.xlu0 %1421
      %1423 = vrot.lane.b32.xlu0 %v793, 96
      %v1424 = vpop.permute.xlu0 %1423
      %v1426 = vsel %vm818, %v790, 0
      %v1429 = vsel %vm818, %v791, 0
      %v1432 = vsel %vm818, %v792, 0
      %v1435 = vsel %vm818, %v793, 0
      %v1438 = vsel %vm818, %v1418, 0
      %v1441 = vsel %vm818, %v1420, 0
      %v1444 = vsel %vm818, %v1422, 0
      %v1447 = vsel %vm818, %v1424, 0
      %1449 = vmatprep.subr.bf16.mxu0 0
      %1450 = vmatpush1.bf16.xpose.msra.mxu0 %v1438
      %1451 = vmatprep.subr.bf16.mxu0 0
      %1452 = vmatpush1.bf16.xpose.msra.mxu0 %v1441
      %1453 = vmatprep.subr.bf16.mxu0 0
      %1454 = vmatpush1.bf16.xpose.msra.mxu0 %v1444
      %1455 = vmatprep.subr.bf16.mxu0 0
      %1456 = vmatpush1.bf16.xpose.msra.mxu0 %v1447
      %1457 = vmatprep.subr.bf16.mxu0 0
      %1458 = vmatpush1.bf16.xpose.msra.mxu0 0
      %1459 = vmatprep.subr.bf16.mxu0 0
      %1460 = vmatpush1.bf16.xpose.msra.mxu0 0
      %1461 = vmatprep.subr.bf16.mxu0 0
      %1462 = vmatpush1.bf16.xpose.msra.mxu0 0
      %1463 = vmatprep.subr.bf16.mxu0 0
      %1464 = vmatpush1.bf16.xpose.msra.mxu0 0
      %1465 = vmatprep.subr.bf16.mxu0 0
      %1466 = vmatpush1.bf16.xpose.msra.mxu0 0
      %1467 = vmatprep.subr.bf16.mxu0 0
      %1468 = vmatpush1.bf16.xpose.msra.mxu0 0
      %1469 = vmatprep.subr.bf16.mxu0 0
      %1470 = vmatpush1.bf16.xpose.msra.mxu0 0
      %1471 = vmatprep.subr.bf16.mxu0 0
      %1472 = vmatpush1.bf16.xpose.msra.mxu0 0
      %1473 = vmatprep.subr.bf16.mxu0 0
      %1474 = vmatpush1.bf16.xpose.msra.mxu0 0
      %1475 = vmatprep.subr.bf16.mxu0 0
      %1476 = vmatpush1.bf16.xpose.msra.mxu0 0
      %1477 = vmatprep.subr.bf16.mxu0 0
      %1478 = vmatpush1.bf16.xpose.msra.mxu0 0
      %1479 = vmatprep.subr.bf16.mxu0 0
      %1480 = vmatpush1.bf16.xpose.msra.mxu0 0
      %1481 = vmatprep.mubr.bf16.mxu0 0
      %1482 = vmatmul.mubr.bf16.gmra.mrb[0].mxu0 %v1426
      %v1483 = vpop.f32.mrb[0].mxu0
      %v1484 = vadd.f32 %v798, %v1483
      %v1485 = vpop.f32.mrb[0].mxu0
      %v1486 = vpop.f32.mrb[0].mxu0
      %v1487 = vadd.f32 %v799, %v1486
      %v1488 = vpop.f32.mrb[0].mxu0
      %1489 = vmatprep.mubr.bf16.mxu0 0
      %1490 = vmatmul.mubr.bf16.gmra.mrb[0].mxu0 %v1429
      %v1491 = vpop.f32.mrb[0].mxu0
      %v1492 = vadd.f32 %v800, %v1491
      %v1493 = vpop.f32.mrb[0].mxu0
      %v1494 = vpop.f32.mrb[0].mxu0
      %v1495 = vadd.f32 %v801, %v1494
      %v1496 = vpop.f32.mrb[0].mxu0
      %1497 = vmatprep.mubr.bf16.mxu0 0
      %1498 = vmatmul.mubr.bf16.gmra.mrb[0].mxu0 %v1432
      %v1499 = vpop.f32.mrb[0].mxu0
      %v1500 = vadd.f32 %v802, %v1499
      %v1501 = vpop.f32.mrb[0].mxu0
      %v1502 = vpop.f32.mrb[0].mxu0
      %v1503 = vadd.f32 %v803, %v1502
      %v1504 = vpop.f32.mrb[0].mxu0
      %1505 = vmatprep.mubr.bf16.mxu0 0
      %1506 = vmatmul.mubr.bf16.gmra.mrb[0].mxu0 %v1435
      %v1507 = vpop.f32.mrb[0].mxu0
      %v1508 = vadd.f32 %v804, %v1507
      %v1509 = vpop.f32.mrb[0].mxu0
      %v1510 = vpop.f32.mrb[0].mxu0
      %v1511 = vadd.f32 %v805, %v1510
      %v1512 = vpop.f32.mrb[0].mxu0
      %1513 = vdwg.mxu0
      %1518 = vrot.lane.b32.xlu0 %v794, 96
      %v1519 = vpop.permute.xlu0 %1518
      %1520 = vrot.lane.b32.xlu0 %v795, 96
      %v1521 = vpop.permute.xlu0 %1520
      %1522 = vrot.lane.b32.xlu0 %v796, 96
      %v1523 = vpop.permute.xlu0 %1522
      %1524 = vrot.lane.b32.xlu0 %v797, 96
      %v1525 = vpop.permute.xlu0 %1524
      %v1527 = vsel %vm818, %v794, 0
      %v1530 = vsel %vm818, %v795, 0
      %v1533 = vsel %vm818, %v796, 0
      %v1536 = vsel %vm818, %v797, 0
      %v1539 = vsel %vm818, %v1519, 0
      %v1542 = vsel %vm818, %v1521, 0
      %v1545 = vsel %vm818, %v1523, 0
      %v1548 = vsel %vm818, %v1525, 0
      %1550 = vmatprep.subr.bf16.mxu0 0
      %1551 = vmatpush1.bf16.xpose.msra.mxu0 %v1539
      %1552 = vmatprep.subr.bf16.mxu0 0
      %1553 = vmatpush1.bf16.xpose.msra.mxu0 %v1542
      %1554 = vmatprep.subr.bf16.mxu0 0
      %1555 = vmatpush1.bf16.xpose.msra.mxu0 %v1545
      %1556 = vmatprep.subr.bf16.mxu0 0
      %1557 = vmatpush1.bf16.xpose.msra.mxu0 %v1548
      %1558 = vmatprep.subr.bf16.mxu0 0
      %1559 = vmatpush1.bf16.xpose.msra.mxu0 0
      %1560 = vmatprep.subr.bf16.mxu0 0
      %1561 = vmatpush1.bf16.xpose.msra.mxu0 0
      %1562 = vmatprep.subr.bf16.mxu0 0
      %1563 = vmatpush1.bf16.xpose.msra.mxu0 0
      %1564 = vmatprep.subr.bf16.mxu0 0
      %1565 = vmatpush1.bf16.xpose.msra.mxu0 0
      %1566 = vmatprep.subr.bf16.mxu0 0
      %1567 = vmatpush1.bf16.xpose.msra.mxu0 0
      %1568 = vmatprep.subr.bf16.mxu0 0
      %1569 = vmatpush1.bf16.xpose.msra.mxu0 0
      %1570 = vmatprep.subr.bf16.mxu0 0
      %1571 = vmatpush1.bf16.xpose.msra.mxu0 0
      %1572 = vmatprep.subr.bf16.mxu0 0
      %1573 = vmatpush1.bf16.xpose.msra.mxu0 0
      %1574 = vmatprep.subr.bf16.mxu0 0
      %1575 = vmatpush1.bf16.xpose.msra.mxu0 0
      %1576 = vmatprep.subr.bf16.mxu0 0
      %1577 = vmatpush1.bf16.xpose.msra.mxu0 0
      %1578 = vmatprep.subr.bf16.mxu0 0
      %1579 = vmatpush1.bf16.xpose.msra.mxu0 0
      %1580 = vmatprep.subr.bf16.mxu0 0
      %1581 = vmatpush1.bf16.xpose.msra.mxu0 0
      %1582 = vmatprep.mubr.bf16.mxu0 0
      %1583 = vmatmul.mubr.bf16.gmra.mrb[0].mxu0 %v1527
      %v1584 = vpop.f32.mrb[0].mxu0
      %v1585 = vadd.f32 %v798, %v1584
      %v1586 = vpop.f32.mrb[0].mxu0
      %v1587 = vpop.f32.mrb[0].mxu0
      %v1588 = vadd.f32 %v799, %v1587
      %v1589 = vpop.f32.mrb[0].mxu0
      %1590 = vmatprep.mubr.bf16.mxu0 0
      %1591 = vmatmul.mubr.bf16.gmra.mrb[0].mxu0 %v1530
      %v1592 = vpop.f32.mrb[0].mxu0
      %v1593 = vadd.f32 %v800, %v1592
      %v1594 = vpop.f32.mrb[0].mxu0
      %v1595 = vpop.f32.mrb[0].mxu0
      %v1596 = vadd.f32 %v801, %v1595
      %v1597 = vpop.f32.mrb[0].mxu0
      %1598 = vmatprep.mubr.bf16.mxu0 0
      %1599 = vmatmul.mubr.bf16.gmra.mrb[0].mxu0 %v1533
      %v1600 = vpop.f32.mrb[0].mxu0
      %v1601 = vadd.f32 %v802, %v1600
      %v1602 = vpop.f32.mrb[0].mxu0
      %v1603 = vpop.f32.mrb[0].mxu0
      %v1604 = vadd.f32 %v803, %v1603
      %v1605 = vpop.f32.mrb[0].mxu0
      %1606 = vmatprep.mubr.bf16.mxu0 0
      %1607 = vmatmul.mubr.bf16.gmra.mrb[0].mxu0 %v1536
      %v1608 = vpop.f32.mrb[0].mxu0
      %v1609 = vadd.f32 %v804, %v1608
      %v1610 = vpop.f32.mrb[0].mxu0
      %v1611 = vpop.f32.mrb[0].mxu0
      %v1612 = vadd.f32 %v805, %v1611
      %v1613 = vpop.f32.mrb[0].mxu0
      %1614 = vdwg.mxu0
      %vm1615 = vcmask 523264
      %v1616 = vsel %vm1615, %v878, -inf
      %1617 = vmax.xlane.f32.xlu0 %v1616
      %v1618 = vpop.xlane.xlu0 %1617
      %v1619 = vsel %vm1615, %v881, -inf
      %1620 = vmax.xlane.f32.xlu0 %v1619
      %v1621 = vpop.xlane.xlu0 %1620
      %v1622 = vsel %vm1615, %v886, -inf
      %1623 = vmax.xlane.f32.xlu0 %v1622
      %v1624 = vpop.xlane.xlu0 %1623
      %v1625 = vsel %vm1615, %v889, -inf
      %1626 = vmax.xlane.f32.xlu0 %v1625
      %v1627 = vpop.xlane.xlu0 %1626
      %v1628 = vsel %vm1615, %v894, -inf
      %1629 = vmax.xlane.f32.xlu0 %v1628
      %v1630 = vpop.xlane.xlu0 %1629
      %v1631 = vsel %vm1615, %v897, -inf
      %1632 = vmax.xlane.f32.xlu0 %v1631
      %v1633 = vpop.xlane.xlu0 %1632
      %v1634 = vsel %vm1615, %v902, -inf
      %1635 = vmax.xlane.f32.xlu0 %v1634
      %v1636 = vpop.xlane.xlu0 %1635
      %v1637 = vsel %vm1615, %v905, -inf
      %1638 = vmax.xlane.f32.xlu0 %v1637
      %v1639 = vpop.xlane.xlu0 %1638
      %v1640 = vsel %vm1615, %v979, -inf
      %1641 = vmax.xlane.f32.xlu0 %v1640
      %v1642 = vpop.xlane.xlu0 %1641
      %v1643 = vsel %vm1615, %v982, -inf
      %1644 = vmax.xlane.f32.xlu0 %v1643
      %v1645 = vpop.xlane.xlu0 %1644
      %v1646 = vsel %vm1615, %v987, -inf
      %1647 = vmax.xlane.f32.xlu0 %v1646
      %v1648 = vpop.xlane.xlu0 %1647
      %v1649 = vsel %vm1615, %v990, -inf
      %1650 = vmax.xlane.f32.xlu0 %v1649
      %v1651 = vpop.xlane.xlu0 %1650
      %v1652 = vsel %vm1615, %v995, -inf
      %1653 = vmax.xlane.f32.xlu0 %v1652
      %v1654 = vpop.xlane.xlu0 %1653
      %v1655 = vsel %vm1615, %v998, -inf
      %1656 = vmax.xlane.f32.xlu0 %v1655
      %v1657 = vpop.xlane.xlu0 %1656
      %v1658 = vsel %vm1615, %v1003, -inf
      %1659 = vmax.xlane.f32.xlu0 %v1658
      %v1660 = vpop.xlane.xlu0 %1659
      %v1661 = vsel %vm1615, %v1006, -inf
      %1662 = vmax.xlane.f32.xlu0 %v1661
      %v1663 = vpop.xlane.xlu0 %1662
      %v1664 = vsel %vm1615, %v1080, -inf
      %1665 = vmax.xlane.f32.xlu0 %v1664
      %v1666 = vpop.xlane.xlu0 %1665
      %v1667 = vsel %vm1615, %v1083, -inf
      %1668 = vmax.xlane.f32.xlu0 %v1667
      %v1669 = vpop.xlane.xlu0 %1668
      %v1670 = vsel %vm1615, %v1088, -inf
      %1671 = vmax.xlane.f32.xlu0 %v1670
      %v1672 = vpop.xlane.xlu0 %1671
      %v1673 = vsel %vm1615, %v1091, -inf
      %1674 = vmax.xlane.f32.xlu0 %v1673
      %v1675 = vpop.xlane.xlu0 %1674
      %v1676 = vsel %vm1615, %v1096, -inf
      %1677 = vmax.xlane.f32.xlu0 %v1676
      %v1678 = vpop.xlane.xlu0 %1677
      %v1679 = vsel %vm1615, %v1099, -inf
      %1680 = vmax.xlane.f32.xlu0 %v1679
      %v1681 = vpop.xlane.xlu0 %1680
      %v1682 = vsel %vm1615, %v1104, -inf
      %1683 = vmax.xlane.f32.xlu0 %v1682
      %v1684 = vpop.xlane.xlu0 %1683
      %v1685 = vsel %vm1615, %v1107, -inf
      %1686 = vmax.xlane.f32.xlu0 %v1685
      %v1687 = vpop.xlane.xlu0 %1686
      %v1688 = vsel %vm1615, %v1181, -inf
      %1689 = vmax.xlane.f32.xlu0 %v1688
      %v1690 = vpop.xlane.xlu0 %1689
      %v1691 = vsel %vm1615, %v1184, -inf
      %1692 = vmax.xlane.f32.xlu0 %v1691
      %v1693 = vpop.xlane.xlu0 %1692
      %v1694 = vsel %vm1615, %v1189, -inf
      %1695 = vmax.xlane.f32.xlu0 %v1694
      %v1696 = vpop.xlane.xlu0 %1695
      %v1697 = vsel %vm1615, %v1192, -inf
      %1698 = vmax.xlane.f32.xlu0 %v1697
      %v1699 = vpop.xlane.xlu0 %1698
      %v1700 = vsel %vm1615, %v1197, -inf
      %1701 = vmax.xlane.f32.xlu0 %v1700
      %v1702 = vpop.xlane.xlu0 %1701
      %v1703 = vsel %vm1615, %v1200, -inf
      %1704 = vmax.xlane.f32.xlu0 %v1703
      %v1705 = vpop.xlane.xlu0 %1704
      %v1706 = vsel %vm1615, %v1205, -inf
      %1707 = vmax.xlane.f32.xlu0 %v1706
      %v1708 = vpop.xlane.xlu0 %1707
      %v1709 = vsel %vm1615, %v1208, -inf
      %1710 = vmax.xlane.f32.xlu0 %v1709
      %v1711 = vpop.xlane.xlu0 %1710
      %v1712 = vsel %vm1615, %v1282, -inf
      %1713 = vmax.xlane.f32.xlu0 %v1712
      %v1714 = vpop.xlane.xlu0 %1713
      %v1715 = vsel %vm1615, %v1285, -inf
      %1716 = vmax.xlane.f32.xlu0 %v1715
      %v1717 = vpop.xlane.xlu0 %1716
      %v1718 = vsel %vm1615, %v1290, -inf
      %1719 = vmax.xlane.f32.xlu0 %v1718
      %v1720 = vpop.xlane.xlu0 %1719
      %v1721 = vsel %vm1615, %v1293, -inf
      %1722 = vmax.xlane.f32.xlu0 %v1721
      %v1723 = vpop.xlane.xlu0 %1722
      %v1724 = vsel %vm1615, %v1298, -inf
      %1725 = vmax.xlane.f32.xlu0 %v1724
      %v1726 = vpop.xlane.xlu0 %1725
      %v1727 = vsel %vm1615, %v1301, -inf
      %1728 = vmax.xlane.f32.xlu0 %v1727
      %v1729 = vpop.xlane.xlu0 %1728
      %v1730 = vsel %vm1615, %v1306, -inf
      %1731 = vmax.xlane.f32.xlu0 %v1730
      %v1732 = vpop.xlane.xlu0 %1731
      %v1733 = vsel %vm1615, %v1309, -inf
      %1734 = vmax.xlane.f32.xlu0 %v1733
      %v1735 = vpop.xlane.xlu0 %1734
      %v1736 = vsel %vm1615, %v1383, -inf
      %1737 = vmax.xlane.f32.xlu0 %v1736
      %v1738 = vpop.xlane.xlu0 %1737
      %v1739 = vsel %vm1615, %v1386, -inf
      %1740 = vmax.xlane.f32.xlu0 %v1739
      %v1741 = vpop.xlane.xlu0 %1740
      %v1742 = vsel %vm1615, %v1391, -inf
      %1743 = vmax.xlane.f32.xlu0 %v1742
      %v1744 = vpop.xlane.xlu0 %1743
      %v1745 = vsel %vm1615, %v1394, -inf
      %1746 = vmax.xlane.f32.xlu0 %v1745
      %v1747 = vpop.xlane.xlu0 %1746
      %v1748 = vsel %vm1615, %v1399, -inf
      %1749 = vmax.xlane.f32.xlu0 %v1748
      %v1750 = vpop.xlane.xlu0 %1749
      %v1751 = vsel %vm1615, %v1402, -inf
      %1752 = vmax.xlane.f32.xlu0 %v1751
      %v1753 = vpop.xlane.xlu0 %1752
      %v1754 = vsel %vm1615, %v1407, -inf
      %1755 = vmax.xlane.f32.xlu0 %v1754
      %v1756 = vpop.xlane.xlu0 %1755
      %v1757 = vsel %vm1615, %v1410, -inf
      %1758 = vmax.xlane.f32.xlu0 %v1757
      %v1759 = vpop.xlane.xlu0 %1758
      %v1760 = vsel %vm1615, %v1484, -inf
      %1761 = vmax.xlane.f32.xlu0 %v1760
      %v1762 = vpop.xlane.xlu0 %1761
      %v1763 = vsel %vm1615, %v1487, -inf
      %1764 = vmax.xlane.f32.xlu0 %v1763
      %v1765 = vpop.xlane.xlu0 %1764
      %v1766 = vsel %vm1615, %v1492, -inf
      %1767 = vmax.xlane.f32.xlu0 %v1766
      %v1768 = vpop.xlane.xlu0 %1767
      %v1769 = vsel %vm1615, %v1495, -inf
      %1770 = vmax.xlane.f32.xlu0 %v1769
      %v1771 = vpop.xlane.xlu0 %1770
      %v1772 = vsel %vm1615, %v1500, -inf
      %1773 = vmax.xlane.f32.xlu0 %v1772
      %v1774 = vpop.xlane.xlu0 %1773
      %v1775 = vsel %vm1615, %v1503, -inf
      %1776 = vmax.xlane.f32.xlu0 %v1775
      %v1777 = vpop.xlane.xlu0 %1776
      %v1778 = vsel %vm1615, %v1508, -inf
      %1779 = vmax.xlane.f32.xlu0 %v1778
      %v1780 = vpop.xlane.xlu0 %1779
      %v1781 = vsel %vm1615, %v1511, -inf
      %1782 = vmax.xlane.f32.xlu0 %v1781
      %v1783 = vpop.xlane.xlu0 %1782
      %v1784 = vsel %vm1615, %v1585, -inf
      %1785 = vmax.xlane.f32.xlu0 %v1784
      %v1786 = vpop.xlane.xlu0 %1785
      %v1787 = vsel %vm1615, %v1588, -inf
      %1788 = vmax.xlane.f32.xlu0 %v1787
      %v1789 = vpop.xlane.xlu0 %1788
      %v1790 = vsel %vm1615, %v1593, -inf
      %1791 = vmax.xlane.f32.xlu0 %v1790
      %v1792 = vpop.xlane.xlu0 %1791
      %v1793 = vsel %vm1615, %v1596, -inf
      %1794 = vmax.xlane.f32.xlu0 %v1793
      %v1795 = vpop.xlane.xlu0 %1794
      %v1796 = vsel %vm1615, %v1601, -inf
      %1797 = vmax.xlane.f32.xlu0 %v1796
      %v1798 = vpop.xlane.xlu0 %1797
      %v1799 = vsel %vm1615, %v1604, -inf
      %1800 = vmax.xlane.f32.xlu0 %v1799
      %v1801 = vpop.xlane.xlu0 %1800
      %v1802 = vsel %vm1615, %v1609, -inf
      %1803 = vmax.xlane.f32.xlu0 %v1802
      %v1804 = vpop.xlane.xlu0 %1803
      %v1805 = vsel %vm1615, %v1612, -inf
      %1806 = vmax.xlane.f32.xlu0 %v1805
      %v1807 = vpop.xlane.xlu0 %1806
      %v1808 = vsub.f32 %v878, %v1618
      %v1809 = vsub.f32 %v881, %v1621
      %v1810 = vsub.f32 %v886, %v1624
      %v1811 = vsub.f32 %v889, %v1627
      %v1812 = vsub.f32 %v894, %v1630
      %v1813 = vsub.f32 %v897, %v1633
      %v1814 = vsub.f32 %v902, %v1636
      %v1815 = vsub.f32 %v905, %v1639
      %v1816 = vsub.f32 %v979, %v1642
      %v1817 = vsub.f32 %v982, %v1645
      %v1818 = vsub.f32 %v987, %v1648
      %v1819 = vsub.f32 %v990, %v1651
      %v1820 = vsub.f32 %v995, %v1654
      %v1821 = vsub.f32 %v998, %v1657
      %v1822 = vsub.f32 %v1003, %v1660
      %v1823 = vsub.f32 %v1006, %v1663
      %v1824 = vsub.f32 %v1080, %v1666
      %v1825 = vsub.f32 %v1083, %v1669
      %v1826 = vsub.f32 %v1088, %v1672
      %v1827 = vsub.f32 %v1091, %v1675
      %v1828 = vsub.f32 %v1096, %v1678
      %v1829 = vsub.f32 %v1099, %v1681
      %v1830 = vsub.f32 %v1104, %v1684
      %v1831 = vsub.f32 %v1107, %v1687
      %v1832 = vsub.f32 %v1181, %v1690
      %v1833 = vsub.f32 %v1184, %v1693
      %v1834 = vsub.f32 %v1189, %v1696
      %v1835 = vsub.f32 %v1192, %v1699
      %v1836 = vsub.f32 %v1197, %v1702
      %v1837 = vsub.f32 %v1200, %v1705
      %v1838 = vsub.f32 %v1205, %v1708
      %v1839 = vsub.f32 %v1208, %v1711
      %v1840 = vsub.f32 %v1282, %v1714
      %v1841 = vsub.f32 %v1285, %v1717
      %v1842 = vsub.f32 %v1290, %v1720
      %v1843 = vsub.f32 %v1293, %v1723
      %v1844 = vsub.f32 %v1298, %v1726
      %v1845 = vsub.f32 %v1301, %v1729
      %v1846 = vsub.f32 %v1306, %v1732
      %v1847 = vsub.f32 %v1309, %v1735
      %v1848 = vsub.f32 %v1383, %v1738
      %v1849 = vsub.f32 %v1386, %v1741
      %v1850 = vsub.f32 %v1391, %v1744
      %v1851 = vsub.f32 %v1394, %v1747
      %v1852 = vsub.f32 %v1399, %v1750
      %v1853 = vsub.f32 %v1402, %v1753
      %v1854 = vsub.f32 %v1407, %v1756
      %v1855 = vsub.f32 %v1410, %v1759
      %v1856 = vsub.f32 %v1484, %v1762
      %v1857 = vsub.f32 %v1487, %v1765
      %v1858 = vsub.f32 %v1492, %v1768
      %v1859 = vsub.f32 %v1495, %v1771
      %v1860 = vsub.f32 %v1500, %v1774
      %v1861 = vsub.f32 %v1503, %v1777
      %v1862 = vsub.f32 %v1508, %v1780
      %v1863 = vsub.f32 %v1511, %v1783
      %v1864 = vsub.f32 %v1585, %v1786
      %v1865 = vsub.f32 %v1588, %v1789
      %v1866 = vsub.f32 %v1593, %v1792
      %v1867 = vsub.f32 %v1596, %v1795
      %v1868 = vsub.f32 %v1601, %v1798
      %v1869 = vsub.f32 %v1604, %v1801
      %v1870 = vsub.f32 %v1609, %v1804
      %v1871 = vsub.f32 %v1612, %v1807
      %v1872 = vmul.f32 %v1808, 1.442695
      %v1873 = vpow.pop %v1872
      %v1874 = vmul.f32 %v1809, 1.442695
      %v1875 = vpow.pop %v1874
      %v1876 = vmul.f32 %v1810, 1.442695
      %v1877 = vpow.pop %v1876
      %v1878 = vmul.f32 %v1811, 1.442695
      %v1879 = vpow.pop %v1878
      %v1880 = vmul.f32 %v1812, 1.442695
      %v1881 = vpow.pop %v1880
      %v1882 = vmul.f32 %v1813, 1.442695
      %v1883 = vpow.pop %v1882
      %v1884 = vmul.f32 %v1814, 1.442695
      %v1885 = vpow.pop %v1884
      %v1886 = vmul.f32 %v1815, 1.442695
      %v1887 = vpow.pop %v1886
      %v1888 = vmul.f32 %v1816, 1.442695
      %v1889 = vpow.pop %v1888
      %v1890 = vmul.f32 %v1817, 1.442695
      %v1891 = vpow.pop %v1890
      %v1892 = vmul.f32 %v1818, 1.442695
      %v1893 = vpow.pop %v1892
      %v1894 = vmul.f32 %v1819, 1.442695
      %v1895 = vpow.pop %v1894
      %v1896 = vmul.f32 %v1820, 1.442695
      %v1897 = vpow.pop %v1896
      %v1898 = vmul.f32 %v1821, 1.442695
      %v1899 = vpow.pop %v1898
      %v1900 = vmul.f32 %v1822, 1.442695
      %v1901 = vpow.pop %v1900
      %v1902 = vmul.f32 %v1823, 1.442695
      %v1903 = vpow.pop %v1902
      %v1904 = vmul.f32 %v1824, 1.442695
      %v1905 = vpow.pop %v1904
      %v1906 = vmul.f32 %v1825, 1.442695
      %v1907 = vpow.pop %v1906
      %v1908 = vmul.f32 %v1826, 1.442695
      %v1909 = vpow.pop %v1908
      %v1910 = vmul.f32 %v1827, 1.442695
      %v1911 = vpow.pop %v1910
      %v1912 = vmul.f32 %v1828, 1.442695
      %v1913 = vpow.pop %v1912
      %v1914 = vmul.f32 %v1829, 1.442695
      %v1915 = vpow.pop %v1914
      %v1916 = vmul.f32 %v1830, 1.442695
      %v1917 = vpow.pop %v1916
      %v1918 = vmul.f32 %v1831, 1.442695
      %v1919 = vpow.pop %v1918
      %v1920 = vmul.f32 %v1832, 1.442695
      %v1921 = vpow.pop %v1920
      %v1922 = vmul.f32 %v1833, 1.442695
      %v1923 = vpow.pop %v1922
      %v1924 = vmul.f32 %v1834, 1.442695
      %v1925 = vpow.pop %v1924
      %v1926 = vmul.f32 %v1835, 1.442695
      %v1927 = vpow.pop %v1926
      %v1928 = vmul.f32 %v1836, 1.442695
      %v1929 = vpow.pop %v1928
      %v1930 = vmul.f32 %v1837, 1.442695
      %v1931 = vpow.pop %v1930
      %v1932 = vmul.f32 %v1838, 1.442695
      %v1933 = vpow.pop %v1932
      %v1934 = vmul.f32 %v1839, 1.442695
      %v1935 = vpow.pop %v1934
      %v1936 = vmul.f32 %v1840, 1.442695
      %v1937 = vpow.pop %v1936
      %v1938 = vmul.f32 %v1841, 1.442695
      %v1939 = vpow.pop %v1938
      %v1940 = vmul.f32 %v1842, 1.442695
      %v1941 = vpow.pop %v1940
      %v1942 = vmul.f32 %v1843, 1.442695
      %v1943 = vpow.pop %v1942
      %v1944 = vmul.f32 %v1844, 1.442695
      %v1945 = vpow.pop %v1944
      %v1946 = vmul.f32 %v1845, 1.442695
      %v1947 = vpow.pop %v1946
      %v1948 = vmul.f32 %v1846, 1.442695
      %v1949 = vpow.pop %v1948
      %v1950 = vmul.f32 %v1847, 1.442695
      %v1951 = vpow.pop %v1950
      %v1952 = vmul.f32 %v1848, 1.442695
      %v1953 = vpow.pop %v1952
      %v1954 = vmul.f32 %v1849, 1.442695
      %v1955 = vpow.pop %v1954
      %v1956 = vmul.f32 %v1850, 1.442695
      %v1957 = vpow.pop %v1956
      %v1958 = vmul.f32 %v1851, 1.442695
      %v1959 = vpow.pop %v1958
      %v1960 = vmul.f32 %v1852, 1.442695
      %v1961 = vpow.pop %v1960
      %v1962 = vmul.f32 %v1853, 1.442695
      %v1963 = vpow.pop %v1962
      %v1964 = vmul.f32 %v1854, 1.442695
      %v1965 = vpow.pop %v1964
      %v1966 = vmul.f32 %v1855, 1.442695
      %v1967 = vpow.pop %v1966
      %v1968 = vmul.f32 %v1856, 1.442695
      %v1969 = vpow.pop %v1968
      %v1970 = vmul.f32 %v1857, 1.442695
      %v1971 = vpow.pop %v1970
      %v1972 = vmul.f32 %v1858, 1.442695
      %v1973 = vpow.pop %v1972
      %v1974 = vmul.f32 %v1859, 1.442695
      %v1975 = vpow.pop %v1974
      %v1976 = vmul.f32 %v1860, 1.442695
      %v1977 = vpow.pop %v1976
      %v1978 = vmul.f32 %v1861, 1.442695
      %v1979 = vpow.pop %v1978
      %v1980 = vmul.f32 %v1862, 1.442695
      %v1981 = vpow.pop %v1980
      %v1982 = vmul.f32 %v1863, 1.442695
      %v1983 = vpow.pop %v1982
      %v1984 = vmul.f32 %v1864, 1.442695
      %v1985 = vpow.pop %v1984
      %v1986 = vmul.f32 %v1865, 1.442695
      %v1987 = vpow.pop %v1986
      %v1988 = vmul.f32 %v1866, 1.442695
      %v1989 = vpow.pop %v1988
      %v1990 = vmul.f32 %v1867, 1.442695
      %v1991 = vpow.pop %v1990
      %v1992 = vmul.f32 %v1868, 1.442695
      %v1993 = vpow.pop %v1992
      %v1994 = vmul.f32 %v1869, 1.442695
      %v1995 = vpow.pop %v1994
      %v1996 = vmul.f32 %v1870, 1.442695
      %v1997 = vpow.pop %v1996
      %v1998 = vmul.f32 %v1871, 1.442695
      %v1999 = vpow.pop %v1998
      %v2000 = vsel %vm1615, %v1873, 0.0
      %2001 = vadd.xlane.f32.xlu0 %v2000
      %v2002 = vpop.xlane.xlu0 %2001
      %v2003 = vsel %vm1615, %v1875, 0.0
      %2004 = vadd.xlane.f32.xlu0 %v2003
      %v2005 = vpop.xlane.xlu0 %2004
      %v2006 = vsel %vm1615, %v1877, 0.0
      %2007 = vadd.xlane.f32.xlu0 %v2006
      %v2008 = vpop.xlane.xlu0 %2007
      %v2009 = vsel %vm1615, %v1879, 0.0
      %2010 = vadd.xlane.f32.xlu0 %v2009
      %v2011 = vpop.xlane.xlu0 %2010
      %v2012 = vsel %vm1615, %v1881, 0.0
      %2013 = vadd.xlane.f32.xlu0 %v2012
      %v2014 = vpop.xlane.xlu0 %2013
      %v2015 = vsel %vm1615, %v1883, 0.0
      %2016 = vadd.xlane.f32.xlu0 %v2015
      %v2017 = vpop.xlane.xlu0 %2016
      %v2018 = vsel %vm1615, %v1885, 0.0
      %2019 = vadd.xlane.f32.xlu0 %v2018
      %v2020 = vpop.xlane.xlu0 %2019
      %v2021 = vsel %vm1615, %v1887, 0.0
      %2022 = vadd.xlane.f32.xlu0 %v2021
      %v2023 = vpop.xlane.xlu0 %2022
      %v2024 = vsel %vm1615, %v1889, 0.0
      %2025 = vadd.xlane.f32.xlu0 %v2024
      %v2026 = vpop.xlane.xlu0 %2025
      %v2027 = vsel %vm1615, %v1891, 0.0
      %2028 = vadd.xlane.f32.xlu0 %v2027
      %v2029 = vpop.xlane.xlu0 %2028
      %v2030 = vsel %vm1615, %v1893, 0.0
      %2031 = vadd.xlane.f32.xlu0 %v2030
      %v2032 = vpop.xlane.xlu0 %2031
      %v2033 = vsel %vm1615, %v1895, 0.0
      %2034 = vadd.xlane.f32.xlu0 %v2033
      %v2035 = vpop.xlane.xlu0 %2034
      %v2036 = vsel %vm1615, %v1897, 0.0
      %2037 = vadd.xlane.f32.xlu0 %v2036
      %v2038 = vpop.xlane.xlu0 %2037
      %v2039 = vsel %vm1615, %v1899, 0.0
      %2040 = vadd.xlane.f32.xlu0 %v2039
      %v2041 = vpop.xlane.xlu0 %2040
      %v2042 = vsel %vm1615, %v1901, 0.0
      %2043 = vadd.xlane.f32.xlu0 %v2042
      %v2044 = vpop.xlane.xlu0 %2043
      %v2045 = vsel %vm1615, %v1903, 0.0
      %2046 = vadd.xlane.f32.xlu0 %v2045
      %v2047 = vpop.xlane.xlu0 %2046
      %v2048 = vsel %vm1615, %v1905, 0.0
      %2049 = vadd.xlane.f32.xlu0 %v2048
      %v2050 = vpop.xlane.xlu0 %2049
      %v2051 = vsel %vm1615, %v1907, 0.0
      %2052 = vadd.xlane.f32.xlu0 %v2051
      %v2053 = vpop.xlane.xlu0 %2052
      %v2054 = vsel %vm1615, %v1909, 0.0
      %2055 = vadd.xlane.f32.xlu0 %v2054
      %v2056 = vpop.xlane.xlu0 %2055
      %v2057 = vsel %vm1615, %v1911, 0.0
      %2058 = vadd.xlane.f32.xlu0 %v2057
      %v2059 = vpop.xlane.xlu0 %2058
      %v2060 = vsel %vm1615, %v1913, 0.0
      %2061 = vadd.xlane.f32.xlu0 %v2060
      %v2062 = vpop.xlane.xlu0 %2061
      %v2063 = vsel %vm1615, %v1915, 0.0
      %2064 = vadd.xlane.f32.xlu0 %v2063
      %v2065 = vpop.xlane.xlu0 %2064
      %v2066 = vsel %vm1615, %v1917, 0.0
      %2067 = vadd.xlane.f32.xlu0 %v2066
      %v2068 = vpop.xlane.xlu0 %2067
      %v2069 = vsel %vm1615, %v1919, 0.0
      %2070 = vadd.xlane.f32.xlu0 %v2069
      %v2071 = vpop.xlane.xlu0 %2070
      %v2072 = vsel %vm1615, %v1921, 0.0
      %2073 = vadd.xlane.f32.xlu0 %v2072
      %v2074 = vpop.xlane.xlu0 %2073
      %v2075 = vsel %vm1615, %v1923, 0.0
      %2076 = vadd.xlane.f32.xlu0 %v2075
      %v2077 = vpop.xlane.xlu0 %2076
      %v2078 = vsel %vm1615, %v1925, 0.0
      %2079 = vadd.xlane.f32.xlu0 %v2078
      %v2080 = vpop.xlane.xlu0 %2079
      %v2081 = vsel %vm1615, %v1927, 0.0
      %2082 = vadd.xlane.f32.xlu0 %v2081
      %v2083 = vpop.xlane.xlu0 %2082
      %v2084 = vsel %vm1615, %v1929, 0.0
      %2085 = vadd.xlane.f32.xlu0 %v2084
      %v2086 = vpop.xlane.xlu0 %2085
      %v2087 = vsel %vm1615, %v1931, 0.0
      %2088 = vadd.xlane.f32.xlu0 %v2087
      %v2089 = vpop.xlane.xlu0 %2088
      %v2090 = vsel %vm1615, %v1933, 0.0
      %2091 = vadd.xlane.f32.xlu0 %v2090
      %v2092 = vpop.xlane.xlu0 %2091
      %v2093 = vsel %vm1615, %v1935, 0.0
      %2094 = vadd.xlane.f32.xlu0 %v2093
      %v2095 = vpop.xlane.xlu0 %2094
      %v2096 = vsel %vm1615, %v1937, 0.0
      %2097 = vadd.xlane.f32.xlu0 %v2096
      %v2098 = vpop.xlane.xlu0 %2097
      %v2099 = vsel %vm1615, %v1939, 0.0
      %2100 = vadd.xlane.f32.xlu0 %v2099
      %v2101 = vpop.xlane.xlu0 %2100
      %v2102 = vsel %vm1615, %v1941, 0.0
      %2103 = vadd.xlane.f32.xlu0 %v2102
      %v2104 = vpop.xlane.xlu0 %2103
      %v2105 = vsel %vm1615, %v1943, 0.0
      %2106 = vadd.xlane.f32.xlu0 %v2105
      %v2107 = vpop.xlane.xlu0 %2106
      %v2108 = vsel %vm1615, %v1945, 0.0
      %2109 = vadd.xlane.f32.xlu0 %v2108
      %v2110 = vpop.xlane.xlu0 %2109
      %v2111 = vsel %vm1615, %v1947, 0.0
      %2112 = vadd.xlane.f32.xlu0 %v2111
      %v2113 = vpop.xlane.xlu0 %2112
      %v2114 = vsel %vm1615, %v1949, 0.0
      %2115 = vadd.xlane.f32.xlu0 %v2114
      %v2116 = vpop.xlane.xlu0 %2115
      %v2117 = vsel %vm1615, %v1951, 0.0
      %2118 = vadd.xlane.f32.xlu0 %v2117
      %v2119 = vpop.xlane.xlu0 %2118
      %v2120 = vsel %vm1615, %v1953, 0.0
      %2121 = vadd.xlane.f32.xlu0 %v2120
      %v2122 = vpop.xlane.xlu0 %2121
      %v2123 = vsel %vm1615, %v1955, 0.0
      %2124 = vadd.xlane.f32.xlu0 %v2123
      %v2125 = vpop.xlane.xlu0 %2124
      %v2126 = vsel %vm1615, %v1957, 0.0
      %2127 = vadd.xlane.f32.xlu0 %v2126
      %v2128 = vpop.xlane.xlu0 %2127
      %v2129 = vsel %vm1615, %v1959, 0.0
      %2130 = vadd.xlane.f32.xlu0 %v2129
      %v2131 = vpop.xlane.xlu0 %2130
      %v2132 = vsel %vm1615, %v1961, 0.0
      %2133 = vadd.xlane.f32.xlu0 %v2132
      %v2134 = vpop.xlane.xlu0 %2133
      %v2135 = vsel %vm1615, %v1963, 0.0
      %2136 = vadd.xlane.f32.xlu0 %v2135
      %v2137 = vpop.xlane.xlu0 %2136
      %v2138 = vsel %vm1615, %v1965, 0.0
      %2139 = vadd.xlane.f32.xlu0 %v2138
      %v2140 = vpop.xlane.xlu0 %2139
      %v2141 = vsel %vm1615, %v1967, 0.0
      %2142 = vadd.xlane.f32.xlu0 %v2141
      %v2143 = vpop.xlane.xlu0 %2142
      %v2144 = vsel %vm1615, %v1969, 0.0
      %2145 = vadd.xlane.f32.xlu0 %v2144
      %v2146 = vpop.xlane.xlu0 %2145
      %v2147 = vsel %vm1615, %v1971, 0.0
      %2148 = vadd.xlane.f32.xlu0 %v2147
      %v2149 = vpop.xlane.xlu0 %2148
      %v2150 = vsel %vm1615, %v1973, 0.0
      %2151 = vadd.xlane.f32.xlu0 %v2150
      %v2152 = vpop.xlane.xlu0 %2151
      %v2153 = vsel %vm1615, %v1975, 0.0
      %2154 = vadd.xlane.f32.xlu0 %v2153
      %v2155 = vpop.xlane.xlu0 %2154
      %v2156 = vsel %vm1615, %v1977, 0.0
      %2157 = vadd.xlane.f32.xlu0 %v2156
      %v2158 = vpop.xlane.xlu0 %2157
      %v2159 = vsel %vm1615, %v1979, 0.0
      %2160 = vadd.xlane.f32.xlu0 %v2159
      %v2161 = vpop.xlane.xlu0 %2160
      %v2162 = vsel %vm1615, %v1981, 0.0
      %2163 = vadd.xlane.f32.xlu0 %v2162
      %v2164 = vpop.xlane.xlu0 %2163
      %v2165 = vsel %vm1615, %v1983, 0.0
      %2166 = vadd.xlane.f32.xlu0 %v2165
      %v2167 = vpop.xlane.xlu0 %2166
      %v2168 = vsel %vm1615, %v1985, 0.0
      %2169 = vadd.xlane.f32.xlu0 %v2168
      %v2170 = vpop.xlane.xlu0 %2169
      %v2171 = vsel %vm1615, %v1987, 0.0
      %2172 = vadd.xlane.f32.xlu0 %v2171
      %v2173 = vpop.xlane.xlu0 %2172
      %v2174 = vsel %vm1615, %v1989, 0.0
      %2175 = vadd.xlane.f32.xlu0 %v2174
      %v2176 = vpop.xlane.xlu0 %2175
      %v2177 = vsel %vm1615, %v1991, 0.0
      %2178 = vadd.xlane.f32.xlu0 %v2177
      %v2179 = vpop.xlane.xlu0 %2178
      %v2180 = vsel %vm1615, %v1993, 0.0
      %2181 = vadd.xlane.f32.xlu0 %v2180
      %v2182 = vpop.xlane.xlu0 %2181
      %v2183 = vsel %vm1615, %v1995, 0.0
      %2184 = vadd.xlane.f32.xlu0 %v2183
      %v2185 = vpop.xlane.xlu0 %2184
      %v2186 = vsel %vm1615, %v1997, 0.0
      %2187 = vadd.xlane.f32.xlu0 %v2186
      %v2188 = vpop.xlane.xlu0 %2187
      %v2189 = vsel %vm1615, %v1999, 0.0
      %2190 = vadd.xlane.f32.xlu0 %v2189
      %v2191 = vpop.xlane.xlu0 %2190
      %v2192 = vrcp.pop %v2002
      %v2193 = vrcp.pop %v2005
      %v2194 = vrcp.pop %v2008
      %v2195 = vrcp.pop %v2011
      %v2196 = vrcp.pop %v2014
      %v2197 = vrcp.pop %v2017
      %v2198 = vrcp.pop %v2020
      %v2199 = vrcp.pop %v2023
      %v2200 = vrcp.pop %v2026
      %v2201 = vrcp.pop %v2029
      %v2202 = vrcp.pop %v2032
      %v2203 = vrcp.pop %v2035
      %v2204 = vrcp.pop %v2038
      %v2205 = vrcp.pop %v2041
      %v2206 = vrcp.pop %v2044
      %v2207 = vrcp.pop %v2047
      %v2208 = vrcp.pop %v2050
      %v2209 = vrcp.pop %v2053
      %v2210 = vrcp.pop %v2056
      %v2211 = vrcp.pop %v2059
      %v2212 = vrcp.pop %v2062
      %v2213 = vrcp.pop %v2065
      %v2214 = vrcp.pop %v2068
      %v2215 = vrcp.pop %v2071
      %v2216 = vrcp.pop %v2074
      %v2217 = vrcp.pop %v2077
      %v2218 = vrcp.pop %v2080
      %v2219 = vrcp.pop %v2083
      %v2220 = vrcp.pop %v2086
      %v2221 = vrcp.pop %v2089
      %v2222 = vrcp.pop %v2092
      %v2223 = vrcp.pop %v2095
      %v2224 = vrcp.pop %v2098
      %v2225 = vrcp.pop %v2101
      %v2226 = vrcp.pop %v2104
      %v2227 = vrcp.pop %v2107
      %v2228 = vrcp.pop %v2110
      %v2229 = vrcp.pop %v2113
      %v2230 = vrcp.pop %v2116
      %v2231 = vrcp.pop %v2119
      %v2232 = vrcp.pop %v2122
      %v2233 = vrcp.pop %v2125
      %v2234 = vrcp.pop %v2128
      %v2235 = vrcp.pop %v2131
      %v2236 = vrcp.pop %v2134
      %v2237 = vrcp.pop %v2137
      %v2238 = vrcp.pop %v2140
      %v2239 = vrcp.pop %v2143
      %v2240 = vrcp.pop %v2146
      %v2241 = vrcp.pop %v2149
      %v2242 = vrcp.pop %v2152
      %v2243 = vrcp.pop %v2155
      %v2244 = vrcp.pop %v2158
      %v2245 = vrcp.pop %v2161
      %v2246 = vrcp.pop %v2164
      %v2247 = vrcp.pop %v2167
      %v2248 = vrcp.pop %v2170
      %v2249 = vrcp.pop %v2173
      %v2250 = vrcp.pop %v2176
      %v2251 = vrcp.pop %v2179
      %v2252 = vrcp.pop %v2182
      %v2253 = vrcp.pop %v2185
      %v2254 = vrcp.pop %v2188
      %v2255 = vrcp.pop %v2191
      %v2256 = vmul.f32 %v1873, %v2192
      %v2257 = vmul.f32 %v1875, %v2193
      %v2258 = vmul.f32 %v1877, %v2194
      %v2259 = vmul.f32 %v1879, %v2195
      %v2260 = vmul.f32 %v1881, %v2196
      %v2261 = vmul.f32 %v1883, %v2197
      %v2262 = vmul.f32 %v1885, %v2198
      %v2263 = vmul.f32 %v1887, %v2199
      %v2264 = vmul.f32 %v1889, %v2200
      %v2265 = vmul.f32 %v1891, %v2201
      %v2266 = vmul.f32 %v1893, %v2202
      %v2267 = vmul.f32 %v1895, %v2203
      %v2268 = vmul.f32 %v1897, %v2204
      %v2269 = vmul.f32 %v1899, %v2205
      %v2270 = vmul.f32 %v1901, %v2206
      %v2271 = vmul.f32 %v1903, %v2207
      %v2272 = vmul.f32 %v1905, %v2208
      %v2273 = vmul.f32 %v1907, %v2209
      %v2274 = vmul.f32 %v1909, %v2210
      %v2275 = vmul.f32 %v1911, %v2211
      %v2276 = vmul.f32 %v1913, %v2212
      %v2277 = vmul.f32 %v1915, %v2213
      %v2278 = vmul.f32 %v1917, %v2214
      %v2279 = vmul.f32 %v1919, %v2215
      %v2280 = vmul.f32 %v1921, %v2216
      %v2281 = vmul.f32 %v1923, %v2217
      %v2282 = vmul.f32 %v1925, %v2218
      %v2283 = vmul.f32 %v1927, %v2219
      %v2284 = vmul.f32 %v1929, %v2220
      %v2285 = vmul.f32 %v1931, %v2221
      %v2286 = vmul.f32 %v1933, %v2222
      %v2287 = vmul.f32 %v1935, %v2223
      %v2288 = vmul.f32 %v1937, %v2224
      %v2289 = vmul.f32 %v1939, %v2225
      %v2290 = vmul.f32 %v1941, %v2226
      %v2291 = vmul.f32 %v1943, %v2227
      %v2292 = vmul.f32 %v1945, %v2228
      %v2293 = vmul.f32 %v1947, %v2229
      %v2294 = vmul.f32 %v1949, %v2230
      %v2295 = vmul.f32 %v1951, %v2231
      %v2296 = vmul.f32 %v1953, %v2232
      %v2297 = vmul.f32 %v1955, %v2233
      %v2298 = vmul.f32 %v1957, %v2234
      %v2299 = vmul.f32 %v1959, %v2235
      %v2300 = vmul.f32 %v1961, %v2236
      %v2301 = vmul.f32 %v1963, %v2237
      %v2302 = vmul.f32 %v1965, %v2238
      %v2303 = vmul.f32 %v1967, %v2239
      %v2304 = vmul.f32 %v1969, %v2240
      %v2305 = vmul.f32 %v1971, %v2241
      %v2306 = vmul.f32 %v1973, %v2242
      %v2307 = vmul.f32 %v1975, %v2243
      %v2308 = vmul.f32 %v1977, %v2244
      %v2309 = vmul.f32 %v1979, %v2245
      %v2310 = vmul.f32 %v1981, %v2246
      %v2311 = vmul.f32 %v1983, %v2247
      %v2312 = vmul.f32 %v1985, %v2248
      %v2313 = vmul.f32 %v1987, %v2249
      %v2314 = vmul.f32 %v1989, %v2250
      %v2315 = vmul.f32 %v1991, %v2251
      %v2316 = vmul.f32 %v1993, %v2252
      %v2317 = vmul.f32 %v1995, %v2253
      %v2318 = vmul.f32 %v1997, %v2254
      %v2319 = vmul.f32 %v1999, %v2255
      %v2320 = vpack.c.bf16 %v2257, %v2256
      %v2321 = vpack.c.bf16 %v2259, %v2258
      %v2322 = vpack.c.bf16 %v2261, %v2260
      %v2323 = vpack.c.bf16 %v2263, %v2262
      %v2324 = vpack.c.bf16 %v2265, %v2264
      %v2325 = vpack.c.bf16 %v2267, %v2266
      %v2326 = vpack.c.bf16 %v2269, %v2268
      %v2327 = vpack.c.bf16 %v2271, %v2270
      %v2328 = vpack.c.bf16 %v2273, %v2272
      %v2329 = vpack.c.bf16 %v2275, %v2274
      %v2330 = vpack.c.bf16 %v2277, %v2276
      %v2331 = vpack.c.bf16 %v2279, %v2278
      %v2332 = vpack.c.bf16 %v2281, %v2280
      %v2333 = vpack.c.bf16 %v2283, %v2282
      %v2334 = vpack.c.bf16 %v2285, %v2284
      %v2335 = vpack.c.bf16 %v2287, %v2286
      %v2336 = vpack.c.bf16 %v2289, %v2288
      %v2337 = vpack.c.bf16 %v2291, %v2290
      %v2338 = vpack.c.bf16 %v2293, %v2292
      %v2339 = vpack.c.bf16 %v2295, %v2294
      %v2340 = vpack.c.bf16 %v2297, %v2296
      %v2341 = vpack.c.bf16 %v2299, %v2298
      %v2342 = vpack.c.bf16 %v2301, %v2300
      %v2343 = vpack.c.bf16 %v2303, %v2302
      %v2344 = vpack.c.bf16 %v2305, %v2304
      %v2345 = vpack.c.bf16 %v2307, %v2306
      %v2346 = vpack.c.bf16 %v2309, %v2308
      %v2347 = vpack.c.bf16 %v2311, %v2310
      %v2348 = vpack.c.bf16 %v2313, %v2312
      %v2349 = vpack.c.bf16 %v2315, %v2314
      %v2350 = vpack.c.bf16 %v2317, %v2316
      %v2351 = vpack.c.bf16 %v2319, %v2318
      %2352 = vrot.lane.b32.xlu0 %v766, 64
      %v2353 = vpop.permute.xlu0 %2352
      %2354 = vrot.lane.b32.xlu0 %v767, 64
      %v2355 = vpop.permute.xlu0 %2354
      %2356 = vrot.lane.b32.xlu0 %v768, 64
      %v2357 = vpop.permute.xlu0 %2356
      %2358 = vrot.lane.b32.xlu0 %v769, 64
      %v2359 = vpop.permute.xlu0 %2358
      %v2365 = vsel %vm1615, %v2320, 0
      %v2368 = vsel %vm1615, %v2321, 0
      %v2371 = vsel %vm1615, %v2322, 0
      %v2374 = vsel %vm1615, %v2323, 0
      %2376 = vmatprep.subr.bf16.mxu0 0
      %2377 = vmatpush1.bf16.msra.mxu0 %v2353
      %2378 = vmatprep.subr.bf16.mxu0 0
      %2379 = vmatpush1.bf16.msra.mxu0 %v2355
      %2380 = vmatprep.subr.bf16.mxu0 0
      %2381 = vmatpush1.bf16.msra.mxu0 %v2357
      %2382 = vmatprep.subr.bf16.mxu0 0
      %2383 = vmatpush1.bf16.msra.mxu0 %v2359
      %2384 = vmatprep.subr.bf16.mxu0 0
      %2385 = vmatpush1.bf16.msra.mxu0 0
      %2386 = vmatprep.subr.bf16.mxu0 0
      %2387 = vmatpush1.bf16.msra.mxu0 0
      %2388 = vmatprep.subr.bf16.mxu0 0
      %2389 = vmatpush1.bf16.msra.mxu0 0
      %2390 = vmatprep.subr.bf16.mxu0 0
      %2391 = vmatpush1.bf16.msra.mxu0 0
      %2392 = vmatprep.subr.bf16.mxu0 0
      %2393 = vmatpush1.bf16.msra.mxu0 0
      %2394 = vmatprep.subr.bf16.mxu0 0
      %2395 = vmatpush1.bf16.msra.mxu0 0
      %2396 = vmatprep.subr.bf16.mxu0 0
      %2397 = vmatpush1.bf16.msra.mxu0 0
      %2398 = vmatprep.subr.bf16.mxu0 0
      %2399 = vmatpush1.bf16.msra.mxu0 0
      %2400 = vmatprep.subr.bf16.mxu0 0
      %2401 = vmatpush1.bf16.msra.mxu0 0
      %2402 = vmatprep.subr.bf16.mxu0 0
      %2403 = vmatpush1.bf16.msra.mxu0 0
      %2404 = vmatprep.subr.bf16.mxu0 0
      %2405 = vmatpush1.bf16.msra.mxu0 0
      %2406 = vmatprep.subr.bf16.mxu0 0
      %2407 = vmatpush1.bf16.msra.mxu0 0
      %2408 = vmatprep.mubr.bf16.mxu0 0
      %2409 = vmatmul.mubr.bf16.gmra.mrb[0].mxu0 %v2365
      %v2410 = vpop.f32.mrb[0].mxu0
      %v2411 = vadd.f32 0.0, %v2410
      %v2412 = vpop.f32.mrb[0].mxu0
      %v2413 = vpop.f32.mrb[0].mxu0
      %v2414 = vadd.f32 0.0, %v2413
      %v2415 = vpop.f32.mrb[0].mxu0
      %2416 = vmatprep.mubr.bf16.mxu0 0
      %2417 = vmatmul.mubr.bf16.gmra.mrb[0].mxu0 %v2368
      %v2418 = vpop.f32.mrb[0].mxu0
      %v2419 = vadd.f32 0.0, %v2418
      %v2420 = vpop.f32.mrb[0].mxu0
      %v2421 = vpop.f32.mrb[0].mxu0
      %v2422 = vadd.f32 0.0, %v2421
      %v2423 = vpop.f32.mrb[0].mxu0
      %2424 = vmatprep.mubr.bf16.mxu0 0
      %2425 = vmatmul.mubr.bf16.gmra.mrb[0].mxu0 %v2371
      %v2426 = vpop.f32.mrb[0].mxu0
      %v2427 = vadd.f32 0.0, %v2426
      %v2428 = vpop.f32.mrb[0].mxu0
      %v2429 = vpop.f32.mrb[0].mxu0
      %v2430 = vadd.f32 0.0, %v2429
      %v2431 = vpop.f32.mrb[0].mxu0
      %2432 = vmatprep.mubr.bf16.mxu0 0
      %2433 = vmatmul.mubr.bf16.gmra.mrb[0].mxu0 %v2374
      %v2434 = vpop.f32.mrb[0].mxu0
      %v2435 = vadd.f32 0.0, %v2434
      %v2436 = vpop.f32.mrb[0].mxu0
      %v2437 = vpop.f32.mrb[0].mxu0
      %v2438 = vadd.f32 0.0, %v2437
      %v2439 = vpop.f32.mrb[0].mxu0
      %2440 = vdwg.mxu0
      %2441 = vrot.lane.b32.xlu0 %v770, 64
      %v2442 = vpop.permute.xlu0 %2441
      %2443 = vrot.lane.b32.xlu0 %v771, 64
      %v2444 = vpop.permute.xlu0 %2443
      %2445 = vrot.lane.b32.xlu0 %v772, 64
      %v2446 = vpop.permute.xlu0 %2445
      %2447 = vrot.lane.b32.xlu0 %v773, 64
      %v2448 = vpop.permute.xlu0 %2447
      %v2454 = vsel %vm1615, %v2324, 0
      %v2457 = vsel %vm1615, %v2325, 0
      %v2460 = vsel %vm1615, %v2326, 0
      %v2463 = vsel %vm1615, %v2327, 0
      %2465 = vmatprep.subr.bf16.mxu0 0
      %2466 = vmatpush1.bf16.msra.mxu0 %v2442
      %2467 = vmatprep.subr.bf16.mxu0 0
      %2468 = vmatpush1.bf16.msra.mxu0 %v2444
      %2469 = vmatprep.subr.bf16.mxu0 0
      %2470 = vmatpush1.bf16.msra.mxu0 %v2446
      %2471 = vmatprep.subr.bf16.mxu0 0
      %2472 = vmatpush1.bf16.msra.mxu0 %v2448
      %2473 = vmatprep.subr.bf16.mxu0 0
      %2474 = vmatpush1.bf16.msra.mxu0 0
      %2475 = vmatprep.subr.bf16.mxu0 0
      %2476 = vmatpush1.bf16.msra.mxu0 0
      %2477 = vmatprep.subr.bf16.mxu0 0
      %2478 = vmatpush1.bf16.msra.mxu0 0
      %2479 = vmatprep.subr.bf16.mxu0 0
      %2480 = vmatpush1.bf16.msra.mxu0 0
      %2481 = vmatprep.subr.bf16.mxu0 0
      %2482 = vmatpush1.bf16.msra.mxu0 0
      %2483 = vmatprep.subr.bf16.mxu0 0
      %2484 = vmatpush1.bf16.msra.mxu0 0
      %2485 = vmatprep.subr.bf16.mxu0 0
      %2486 = vmatpush1.bf16.msra.mxu0 0
      %2487 = vmatprep.subr.bf16.mxu0 0
      %2488 = vmatpush1.bf16.msra.mxu0 0
      %2489 = vmatprep.subr.bf16.mxu0 0
      %2490 = vmatpush1.bf16.msra.mxu0 0
      %2491 = vmatprep.subr.bf16.mxu0 0
      %2492 = vmatpush1.bf16.msra.mxu0 0
      %2493 = vmatprep.subr.bf16.mxu0 0
      %2494 = vmatpush1.bf16.msra.mxu0 0
      %2495 = vmatprep.subr.bf16.mxu0 0
      %2496 = vmatpush1.bf16.msra.mxu0 0
      %2497 = vmatprep.mubr.bf16.mxu0 0
      %2498 = vmatmul.mubr.bf16.gmra.mrb[0].mxu0 %v2454
      %v2499 = vpop.f32.mrb[0].mxu0
      %v2500 = vadd.f32 0.0, %v2499
      %v2501 = vpop.f32.mrb[0].mxu0
      %v2502 = vpop.f32.mrb[0].mxu0
      %v2503 = vadd.f32 0.0, %v2502
      %v2504 = vpop.f32.mrb[0].mxu0
      %2505 = vmatprep.mubr.bf16.mxu0 0
      %2506 = vmatmul.mubr.bf16.gmra.mrb[0].mxu0 %v2457
      %v2507 = vpop.f32.mrb[0].mxu0
      %v2508 = vadd.f32 0.0, %v2507
      %v2509 = vpop.f32.mrb[0].mxu0
      %v2510 = vpop.f32.mrb[0].mxu0
      %v2511 = vadd.f32 0.0, %v2510
      %v2512 = vpop.f32.mrb[0].mxu0
      %2513 = vmatprep.mubr.bf16.mxu0 0
      %2514 = vmatmul.mubr.bf16.gmra.mrb[0].mxu0 %v2460
      %v2515 = vpop.f32.mrb[0].mxu0
      %v2516 = vadd.f32 0.0, %v2515
      %v2517 = vpop.f32.mrb[0].mxu0
      %v2518 = vpop.f32.mrb[0].mxu0
      %v2519 = vadd.f32 0.0, %v2518
      %v2520 = vpop.f32.mrb[0].mxu0
      %2521 = vmatprep.mubr.bf16.mxu0 0
      %2522 = vmatmul.mubr.bf16.gmra.mrb[0].mxu0 %v2463
      %v2523 = vpop.f32.mrb[0].mxu0
      %v2524 = vadd.f32 0.0, %v2523
      %v2525 = vpop.f32.mrb[0].mxu0
      %v2526 = vpop.f32.mrb[0].mxu0
      %v2527 = vadd.f32 0.0, %v2526
      %v2528 = vpop.f32.mrb[0].mxu0
      %2529 = vdwg.mxu0
      %2530 = vrot.lane.b32.xlu0 %v774, 64
      %v2531 = vpop.permute.xlu0 %2530
      %2532 = vrot.lane.b32.xlu0 %v775, 64
      %v2533 = vpop.permute.xlu0 %2532
      %2534 = vrot.lane.b32.xlu0 %v776, 64
      %v2535 = vpop.permute.xlu0 %2534
      %2536 = vrot.lane.b32.xlu0 %v777, 64
      %v2537 = vpop.permute.xlu0 %2536
      %v2543 = vsel %vm1615, %v2328, 0
      %v2546 = vsel %vm1615, %v2329, 0
      %v2549 = vsel %vm1615, %v2330, 0
      %v2552 = vsel %vm1615, %v2331, 0
      %2554 = vmatprep.subr.bf16.mxu0 0
      %2555 = vmatpush1.bf16.msra.mxu0 %v2531
      %2556 = vmatprep.subr.bf16.mxu0 0
      %2557 = vmatpush1.bf16.msra.mxu0 %v2533
      %2558 = vmatprep.subr.bf16.mxu0 0
      %2559 = vmatpush1.bf16.msra.mxu0 %v2535
      %2560 = vmatprep.subr.bf16.mxu0 0
      %2561 = vmatpush1.bf16.msra.mxu0 %v2537
      %2562 = vmatprep.subr.bf16.mxu0 0
      %2563 = vmatpush1.bf16.msra.mxu0 0
      %2564 = vmatprep.subr.bf16.mxu0 0
      %2565 = vmatpush1.bf16.msra.mxu0 0
      %2566 = vmatprep.subr.bf16.mxu0 0
      %2567 = vmatpush1.bf16.msra.mxu0 0
      %2568 = vmatprep.subr.bf16.mxu0 0
      %2569 = vmatpush1.bf16.msra.mxu0 0
      %2570 = vmatprep.subr.bf16.mxu0 0
      %2571 = vmatpush1.bf16.msra.mxu0 0
      %2572 = vmatprep.subr.bf16.mxu0 0
      %2573 = vmatpush1.bf16.msra.mxu0 0
      %2574 = vmatprep.subr.bf16.mxu0 0
      %2575 = vmatpush1.bf16.msra.mxu0 0
      %2576 = vmatprep.subr.bf16.mxu0 0
      %2577 = vmatpush1.bf16.msra.mxu0 0
      %2578 = vmatprep.subr.bf16.mxu0 0
      %2579 = vmatpush1.bf16.msra.mxu0 0
      %2580 = vmatprep.subr.bf16.mxu0 0
      %2581 = vmatpush1.bf16.msra.mxu0 0
      %2582 = vmatprep.subr.bf16.mxu0 0
      %2583 = vmatpush1.bf16.msra.mxu0 0
      %2584 = vmatprep.subr.bf16.mxu0 0
      %2585 = vmatpush1.bf16.msra.mxu0 0
      %2586 = vmatprep.mubr.bf16.mxu0 0
      %2587 = vmatmul.mubr.bf16.gmra.mrb[0].mxu0 %v2543
      %v2588 = vpop.f32.mrb[0].mxu0
      %v2589 = vadd.f32 0.0, %v2588
      %v2590 = vpop.f32.mrb[0].mxu0
      %v2591 = vpop.f32.mrb[0].mxu0
      %v2592 = vadd.f32 0.0, %v2591
      %v2593 = vpop.f32.mrb[0].mxu0
      %2594 = vmatprep.mubr.bf16.mxu0 0
      %2595 = vmatmul.mubr.bf16.gmra.mrb[0].mxu0 %v2546
      %v2596 = vpop.f32.mrb[0].mxu0
      %v2597 = vadd.f32 0.0, %v2596
      %v2598 = vpop.f32.mrb[0].mxu0
      %v2599 = vpop.f32.mrb[0].mxu0
      %v2600 = vadd.f32 0.0, %v2599
      %v2601 = vpop.f32.mrb[0].mxu0
      %2602 = vmatprep.mubr.bf16.mxu0 0
      %2603 = vmatmul.mubr.bf16.gmra.mrb[0].mxu0 %v2549
      %v2604 = vpop.f32.mrb[0].mxu0
      %v2605 = vadd.f32 0.0, %v2604
      %v2606 = vpop.f32.mrb[0].mxu0
      %v2607 = vpop.f32.mrb[0].mxu0
      %v2608 = vadd.f32 0.0, %v2607
      %v2609 = vpop.f32.mrb[0].mxu0
      %2610 = vmatprep.mubr.bf16.mxu0 0
      %2611 = vmatmul.mubr.bf16.gmra.mrb[0].mxu0 %v2552
      %v2612 = vpop.f32.mrb[0].mxu0
      %v2613 = vadd.f32 0.0, %v2612
      %v2614 = vpop.f32.mrb[0].mxu0
      %v2615 = vpop.f32.mrb[0].mxu0
      %v2616 = vadd.f32 0.0, %v2615
      %v2617 = vpop.f32.mrb[0].mxu0
      %2618 = vdwg.mxu0
      %2619 = vrot.lane.b32.xlu0 %v778, 64
      %v2620 = vpop.permute.xlu0 %2619
      %2621 = vrot.lane.b32.xlu0 %v779, 64
      %v2622 = vpop.permute.xlu0 %2621
      %2623 = vrot.lane.b32.xlu0 %v780, 64
      %v2624 = vpop.permute.xlu0 %2623
      %2625 = vrot.lane.b32.xlu0 %v781, 64
      %v2626 = vpop.permute.xlu0 %2625
      %v2632 = vsel %vm1615, %v2332, 0
      %v2635 = vsel %vm1615, %v2333, 0
      %v2638 = vsel %vm1615, %v2334, 0
      %v2641 = vsel %vm1615, %v2335, 0
      %2643 = vmatprep.subr.bf16.mxu0 0
      %2644 = vmatpush1.bf16.msra.mxu0 %v2620
      %2645 = vmatprep.subr.bf16.mxu0 0
      %2646 = vmatpush1.bf16.msra.mxu0 %v2622
      %2647 = vmatprep.subr.bf16.mxu0 0
      %2648 = vmatpush1.bf16.msra.mxu0 %v2624
      %2649 = vmatprep.subr.bf16.mxu0 0
      %2650 = vmatpush1.bf16.msra.mxu0 %v2626
      %2651 = vmatprep.subr.bf16.mxu0 0
      %2652 = vmatpush1.bf16.msra.mxu0 0
      %2653 = vmatprep.subr.bf16.mxu0 0
      %2654 = vmatpush1.bf16.msra.mxu0 0
      %2655 = vmatprep.subr.bf16.mxu0 0
      %2656 = vmatpush1.bf16.msra.mxu0 0
      %2657 = vmatprep.subr.bf16.mxu0 0
      %2658 = vmatpush1.bf16.msra.mxu0 0
      %2659 = vmatprep.subr.bf16.mxu0 0
      %2660 = vmatpush1.bf16.msra.mxu0 0
      %2661 = vmatprep.subr.bf16.mxu0 0
      %2662 = vmatpush1.bf16.msra.mxu0 0
      %2663 = vmatprep.subr.bf16.mxu0 0
      %2664 = vmatpush1.bf16.msra.mxu0 0
      %2665 = vmatprep.subr.bf16.mxu0 0
      %2666 = vmatpush1.bf16.msra.mxu0 0
      %2667 = vmatprep.subr.bf16.mxu0 0
      %2668 = vmatpush1.bf16.msra.mxu0 0
      %2669 = vmatprep.subr.bf16.mxu0 0
      %2670 = vmatpush1.bf16.msra.mxu0 0
      %2671 = vmatprep.subr.bf16.mxu0 0
      %2672 = vmatpush1.bf16.msra.mxu0 0
      %2673 = vmatprep.subr.bf16.mxu0 0
      %2674 = vmatpush1.bf16.msra.mxu0 0
      %2675 = vmatprep.mubr.bf16.mxu0 0
      %2676 = vmatmul.mubr.bf16.gmra.mrb[0].mxu0 %v2632
      %v2677 = vpop.f32.mrb[0].mxu0
      %v2678 = vadd.f32 0.0, %v2677
      %v2679 = vpop.f32.mrb[0].mxu0
      %v2680 = vpop.f32.mrb[0].mxu0
      %v2681 = vadd.f32 0.0, %v2680
      %v2682 = vpop.f32.mrb[0].mxu0
      %2683 = vmatprep.mubr.bf16.mxu0 0
      %2684 = vmatmul.mubr.bf16.gmra.mrb[0].mxu0 %v2635
      %v2685 = vpop.f32.mrb[0].mxu0
      %v2686 = vadd.f32 0.0, %v2685
      %v2687 = vpop.f32.mrb[0].mxu0
      %v2688 = vpop.f32.mrb[0].mxu0
      %v2689 = vadd.f32 0.0, %v2688
      %v2690 = vpop.f32.mrb[0].mxu0
      %2691 = vmatprep.mubr.bf16.mxu0 0
      %2692 = vmatmul.mubr.bf16.gmra.mrb[0].mxu0 %v2638
      %v2693 = vpop.f32.mrb[0].mxu0
      %v2694 = vadd.f32 0.0, %v2693
      %v2695 = vpop.f32.mrb[0].mxu0
      %v2696 = vpop.f32.mrb[0].mxu0
      %v2697 = vadd.f32 0.0, %v2696
      %v2698 = vpop.f32.mrb[0].mxu0
      %2699 = vmatprep.mubr.bf16.mxu0 0
      %2700 = vmatmul.mubr.bf16.gmra.mrb[0].mxu0 %v2641
      %v2701 = vpop.f32.mrb[0].mxu0
      %v2702 = vadd.f32 0.0, %v2701
      %v2703 = vpop.f32.mrb[0].mxu0
      %v2704 = vpop.f32.mrb[0].mxu0
      %v2705 = vadd.f32 0.0, %v2704
      %v2706 = vpop.f32.mrb[0].mxu0
      %2707 = vdwg.mxu0
      %2708 = vrot.lane.b32.xlu0 %v782, 64
      %v2709 = vpop.permute.xlu0 %2708
      %2710 = vrot.lane.b32.xlu0 %v783, 64
      %v2711 = vpop.permute.xlu0 %2710
      %2712 = vrot.lane.b32.xlu0 %v784, 64
      %v2713 = vpop.permute.xlu0 %2712
      %2714 = vrot.lane.b32.xlu0 %v785, 64
      %v2715 = vpop.permute.xlu0 %2714
      %v2721 = vsel %vm1615, %v2336, 0
      %v2724 = vsel %vm1615, %v2337, 0
      %v2727 = vsel %vm1615, %v2338, 0
      %v2730 = vsel %vm1615, %v2339, 0
      %2732 = vmatprep.subr.bf16.mxu0 0
      %2733 = vmatpush1.bf16.msra.mxu0 %v2709
      %2734 = vmatprep.subr.bf16.mxu0 0
      %2735 = vmatpush1.bf16.msra.mxu0 %v2711
      %2736 = vmatprep.subr.bf16.mxu0 0
      %2737 = vmatpush1.bf16.msra.mxu0 %v2713
      %2738 = vmatprep.subr.bf16.mxu0 0
      %2739 = vmatpush1.bf16.msra.mxu0 %v2715
      %2740 = vmatprep.subr.bf16.mxu0 0
      %2741 = vmatpush1.bf16.msra.mxu0 0
      %2742 = vmatprep.subr.bf16.mxu0 0
      %2743 = vmatpush1.bf16.msra.mxu0 0
      %2744 = vmatprep.subr.bf16.mxu0 0
      %2745 = vmatpush1.bf16.msra.mxu0 0
      %2746 = vmatprep.subr.bf16.mxu0 0
      %2747 = vmatpush1.bf16.msra.mxu0 0
      %2748 = vmatprep.subr.bf16.mxu0 0
      %2749 = vmatpush1.bf16.msra.mxu0 0
      %2750 = vmatprep.subr.bf16.mxu0 0
      %2751 = vmatpush1.bf16.msra.mxu0 0
      %2752 = vmatprep.subr.bf16.mxu0 0
      %2753 = vmatpush1.bf16.msra.mxu0 0
      %2754 = vmatprep.subr.bf16.mxu0 0
      %2755 = vmatpush1.bf16.msra.mxu0 0
      %2756 = vmatprep.subr.bf16.mxu0 0
      %2757 = vmatpush1.bf16.msra.mxu0 0
      %2758 = vmatprep.subr.bf16.mxu0 0
      %2759 = vmatpush1.bf16.msra.mxu0 0
      %2760 = vmatprep.subr.bf16.mxu0 0
      %2761 = vmatpush1.bf16.msra.mxu0 0
      %2762 = vmatprep.subr.bf16.mxu0 0
      %2763 = vmatpush1.bf16.msra.mxu0 0
      %2764 = vmatprep.mubr.bf16.mxu0 0
      %2765 = vmatmul.mubr.bf16.gmra.mrb[0].mxu0 %v2721
      %v2766 = vpop.f32.mrb[0].mxu0
      %v2767 = vadd.f32 0.0, %v2766
      %v2768 = vpop.f32.mrb[0].mxu0
      %v2769 = vpop.f32.mrb[0].mxu0
      %v2770 = vadd.f32 0.0, %v2769
      %v2771 = vpop.f32.mrb[0].mxu0
      %2772 = vmatprep.mubr.bf16.mxu0 0
      %2773 = vmatmul.mubr.bf16.gmra.mrb[0].mxu0 %v2724
      %v2774 = vpop.f32.mrb[0].mxu0
      %v2775 = vadd.f32 0.0, %v2774
      %v2776 = vpop.f32.mrb[0].mxu0
      %v2777 = vpop.f32.mrb[0].mxu0
      %v2778 = vadd.f32 0.0, %v2777
      %v2779 = vpop.f32.mrb[0].mxu0
      %2780 = vmatprep.mubr.bf16.mxu0 0
      %2781 = vmatmul.mubr.bf16.gmra.mrb[0].mxu0 %v2727
      %v2782 = vpop.f32.mrb[0].mxu0
      %v2783 = vadd.f32 0.0, %v2782
      %v2784 = vpop.f32.mrb[0].mxu0
      %v2785 = vpop.f32.mrb[0].mxu0
      %v2786 = vadd.f32 0.0, %v2785
      %v2787 = vpop.f32.mrb[0].mxu0
      %2788 = vmatprep.mubr.bf16.mxu0 0
      %2789 = vmatmul.mubr.bf16.gmra.mrb[0].mxu0 %v2730
      %v2790 = vpop.f32.mrb[0].mxu0
      %v2791 = vadd.f32 0.0, %v2790
      %v2792 = vpop.f32.mrb[0].mxu0
      %v2793 = vpop.f32.mrb[0].mxu0
      %v2794 = vadd.f32 0.0, %v2793
      %v2795 = vpop.f32.mrb[0].mxu0
      %2796 = vdwg.mxu0
      %2797 = vrot.lane.b32.xlu0 %v786, 64
      %v2798 = vpop.permute.xlu0 %2797
      %2799 = vrot.lane.b32.xlu0 %v787, 64
      %v2800 = vpop.permute.xlu0 %2799
      %2801 = vrot.lane.b32.xlu0 %v788, 64
      %v2802 = vpop.permute.xlu0 %2801
      %2803 = vrot.lane.b32.xlu0 %v789, 64
      %v2804 = vpop.permute.xlu0 %2803
      %v2810 = vsel %vm1615, %v2340, 0
      %v2813 = vsel %vm1615, %v2341, 0
      %v2816 = vsel %vm1615, %v2342, 0
      %v2819 = vsel %vm1615, %v2343, 0
      %2821 = vmatprep.subr.bf16.mxu0 0
      %2822 = vmatpush1.bf16.msra.mxu0 %v2798
      %2823 = vmatprep.subr.bf16.mxu0 0
      %2824 = vmatpush1.bf16.msra.mxu0 %v2800
      %2825 = vmatprep.subr.bf16.mxu0 0
      %2826 = vmatpush1.bf16.msra.mxu0 %v2802
      %2827 = vmatprep.subr.bf16.mxu0 0
      %2828 = vmatpush1.bf16.msra.mxu0 %v2804
      %2829 = vmatprep.subr.bf16.mxu0 0
      %2830 = vmatpush1.bf16.msra.mxu0 0
      %2831 = vmatprep.subr.bf16.mxu0 0
      %2832 = vmatpush1.bf16.msra.mxu0 0
      %2833 = vmatprep.subr.bf16.mxu0 0
      %2834 = vmatpush1.bf16.msra.mxu0 0
      %2835 = vmatprep.subr.bf16.mxu0 0
      %2836 = vmatpush1.bf16.msra.mxu0 0
      %2837 = vmatprep.subr.bf16.mxu0 0
      %2838 = vmatpush1.bf16.msra.mxu0 0
      %2839 = vmatprep.subr.bf16.mxu0 0
      %2840 = vmatpush1.bf16.msra.mxu0 0
      %2841 = vmatprep.subr.bf16.mxu0 0
      %2842 = vmatpush1.bf16.msra.mxu0 0
      %2843 = vmatprep.subr.bf16.mxu0 0
      %2844 = vmatpush1.bf16.msra.mxu0 0
      %2845 = vmatprep.subr.bf16.mxu0 0
      %2846 = vmatpush1.bf16.msra.mxu0 0
      %2847 = vmatprep.subr.bf16.mxu0 0
      %2848 = vmatpush1.bf16.msra.mxu0 0
      %2849 = vmatprep.subr.bf16.mxu0 0
      %2850 = vmatpush1.bf16.msra.mxu0 0
      %2851 = vmatprep.subr.bf16.mxu0 0
      %2852 = vmatpush1.bf16.msra.mxu0 0
      %2853 = vmatprep.mubr.bf16.mxu0 0
      %2854 = vmatmul.mubr.bf16.gmra.mrb[0].mxu0 %v2810
      %v2855 = vpop.f32.mrb[0].mxu0
      %v2856 = vadd.f32 0.0, %v2855
      %v2857 = vpop.f32.mrb[0].mxu0
      %v2858 = vpop.f32.mrb[0].mxu0
      %v2859 = vadd.f32 0.0, %v2858
      %v2860 = vpop.f32.mrb[0].mxu0
      %2861 = vmatprep.mubr.bf16.mxu0 0
      %2862 = vmatmul.mubr.bf16.gmra.mrb[0].mxu0 %v2813
      %v2863 = vpop.f32.mrb[0].mxu0
      %v2864 = vadd.f32 0.0, %v2863
      %v2865 = vpop.f32.mrb[0].mxu0
      %v2866 = vpop.f32.mrb[0].mxu0
      %v2867 = vadd.f32 0.0, %v2866
      %v2868 = vpop.f32.mrb[0].mxu0
      %2869 = vmatprep.mubr.bf16.mxu0 0
      %2870 = vmatmul.mubr.bf16.gmra.mrb[0].mxu0 %v2816
      %v2871 = vpop.f32.mrb[0].mxu0
      %v2872 = vadd.f32 0.0, %v2871
      %v2873 = vpop.f32.mrb[0].mxu0
      %v2874 = vpop.f32.mrb[0].mxu0
      %v2875 = vadd.f32 0.0, %v2874
      %v2876 = vpop.f32.mrb[0].mxu0
      %2877 = vmatprep.mubr.bf16.mxu0 0
      %2878 = vmatmul.mubr.bf16.gmra.mrb[0].mxu0 %v2819
      %v2879 = vpop.f32.mrb[0].mxu0
      %v2880 = vadd.f32 0.0, %v2879
      %v2881 = vpop.f32.mrb[0].mxu0
      %v2882 = vpop.f32.mrb[0].mxu0
      %v2883 = vadd.f32 0.0, %v2882
      %v2884 = vpop.f32.mrb[0].mxu0
      %2885 = vdwg.mxu0
      %2886 = vrot.lane.b32.xlu0 %v790, 64
      %v2887 = vpop.permute.xlu0 %2886
      %2888 = vrot.lane.b32.xlu0 %v791, 64
      %v2889 = vpop.permute.xlu0 %2888
      %2890 = vrot.lane.b32.xlu0 %v792, 64
      %v2891 = vpop.permute.xlu0 %2890
      %2892 = vrot.lane.b32.xlu0 %v793, 64
      %v2893 = vpop.permute.xlu0 %2892
      %v2899 = vsel %vm1615, %v2344, 0
      %v2902 = vsel %vm1615, %v2345, 0
      %v2905 = vsel %vm1615, %v2346, 0
      %v2908 = vsel %vm1615, %v2347, 0
      %2910 = vmatprep.subr.bf16.mxu0 0
      %2911 = vmatpush1.bf16.msra.mxu0 %v2887
      %2912 = vmatprep.subr.bf16.mxu0 0
      %2913 = vmatpush1.bf16.msra.mxu0 %v2889
      %2914 = vmatprep.subr.bf16.mxu0 0
      %2915 = vmatpush1.bf16.msra.mxu0 %v2891
      %2916 = vmatprep.subr.bf16.mxu0 0
      %2917 = vmatpush1.bf16.msra.mxu0 %v2893
      %2918 = vmatprep.subr.bf16.mxu0 0
      %2919 = vmatpush1.bf16.msra.mxu0 0
      %2920 = vmatprep.subr.bf16.mxu0 0
      %2921 = vmatpush1.bf16.msra.mxu0 0
      %2922 = vmatprep.subr.bf16.mxu0 0
      %2923 = vmatpush1.bf16.msra.mxu0 0
      %2924 = vmatprep.subr.bf16.mxu0 0
      %2925 = vmatpush1.bf16.msra.mxu0 0
      %2926 = vmatprep.subr.bf16.mxu0 0
      %2927 = vmatpush1.bf16.msra.mxu0 0
      %2928 = vmatprep.subr.bf16.mxu0 0
      %2929 = vmatpush1.bf16.msra.mxu0 0
      %2930 = vmatprep.subr.bf16.mxu0 0
      %2931 = vmatpush1.bf16.msra.mxu0 0
      %2932 = vmatprep.subr.bf16.mxu0 0
      %2933 = vmatpush1.bf16.msra.mxu0 0
      %2934 = vmatprep.subr.bf16.mxu0 0
      %2935 = vmatpush1.bf16.msra.mxu0 0
      %2936 = vmatprep.subr.bf16.mxu0 0
      %2937 = vmatpush1.bf16.msra.mxu0 0
      %2938 = vmatprep.subr.bf16.mxu0 0
      %2939 = vmatpush1.bf16.msra.mxu0 0
      %2940 = vmatprep.subr.bf16.mxu0 0
      %2941 = vmatpush1.bf16.msra.mxu0 0
      %2942 = vmatprep.mubr.bf16.mxu0 0
      %2943 = vmatmul.mubr.bf16.gmra.mrb[0].mxu0 %v2899
      %v2944 = vpop.f32.mrb[0].mxu0
      %v2945 = vadd.f32 0.0, %v2944
      %v2946 = vpop.f32.mrb[0].mxu0
      %v2947 = vpop.f32.mrb[0].mxu0
      %v2948 = vadd.f32 0.0, %v2947
      %v2949 = vpop.f32.mrb[0].mxu0
      %2950 = vmatprep.mubr.bf16.mxu0 0
      %2951 = vmatmul.mubr.bf16.gmra.mrb[0].mxu0 %v2902
      %v2952 = vpop.f32.mrb[0].mxu0
      %v2953 = vadd.f32 0.0, %v2952
      %v2954 = vpop.f32.mrb[0].mxu0
      %v2955 = vpop.f32.mrb[0].mxu0
      %v2956 = vadd.f32 0.0, %v2955
      %v2957 = vpop.f32.mrb[0].mxu0
      %2958 = vmatprep.mubr.bf16.mxu0 0
      %2959 = vmatmul.mubr.bf16.gmra.mrb[0].mxu0 %v2905
      %v2960 = vpop.f32.mrb[0].mxu0
      %v2961 = vadd.f32 0.0, %v2960
      %v2962 = vpop.f32.mrb[0].mxu0
      %v2963 = vpop.f32.mrb[0].mxu0
      %v2964 = vadd.f32 0.0, %v2963
      %v2965 = vpop.f32.mrb[0].mxu0
      %2966 = vmatprep.mubr.bf16.mxu0 0
      %2967 = vmatmul.mubr.bf16.gmra.mrb[0].mxu0 %v2908
      %v2968 = vpop.f32.mrb[0].mxu0
      %v2969 = vadd.f32 0.0, %v2968
      %v2970 = vpop.f32.mrb[0].mxu0
      %v2971 = vpop.f32.mrb[0].mxu0
      %v2972 = vadd.f32 0.0, %v2971
      %v2973 = vpop.f32.mrb[0].mxu0
      %2974 = vdwg.mxu0
      %2975 = vrot.lane.b32.xlu0 %v794, 64
      %v2976 = vpop.permute.xlu0 %2975
      %2977 = vrot.lane.b32.xlu0 %v795, 64
      %v2978 = vpop.permute.xlu0 %2977
      %2979 = vrot.lane.b32.xlu0 %v796, 64
      %v2980 = vpop.permute.xlu0 %2979
      %2981 = vrot.lane.b32.xlu0 %v797, 64
      %v2982 = vpop.permute.xlu0 %2981
      %v2988 = vsel %vm1615, %v2348, 0
      %v2991 = vsel %vm1615, %v2349, 0
      %v2994 = vsel %vm1615, %v2350, 0
      %v2997 = vsel %vm1615, %v2351, 0
      %2999 = vmatprep.subr.bf16.mxu0 0
      %3000 = vmatpush1.bf16.msra.mxu0 %v2976
      %3001 = vmatprep.subr.bf16.mxu0 0
      %3002 = vmatpush1.bf16.msra.mxu0 %v2978
      %3003 = vmatprep.subr.bf16.mxu0 0
      %3004 = vmatpush1.bf16.msra.mxu0 %v2980
      %3005 = vmatprep.subr.bf16.mxu0 0
      %3006 = vmatpush1.bf16.msra.mxu0 %v2982
      %3007 = vmatprep.subr.bf16.mxu0 0
      %3008 = vmatpush1.bf16.msra.mxu0 0
      %3009 = vmatprep.subr.bf16.mxu0 0
      %3010 = vmatpush1.bf16.msra.mxu0 0
      %3011 = vmatprep.subr.bf16.mxu0 0
      %3012 = vmatpush1.bf16.msra.mxu0 0
      %3013 = vmatprep.subr.bf16.mxu0 0
      %3014 = vmatpush1.bf16.msra.mxu0 0
      %3015 = vmatprep.subr.bf16.mxu0 0
      %3016 = vmatpush1.bf16.msra.mxu0 0
      %3017 = vmatprep.subr.bf16.mxu0 0
      %3018 = vmatpush1.bf16.msra.mxu0 0
      %3019 = vmatprep.subr.bf16.mxu0 0
      %3020 = vmatpush1.bf16.msra.mxu0 0
      %3021 = vmatprep.subr.bf16.mxu0 0
      %3022 = vmatpush1.bf16.msra.mxu0 0
      %3023 = vmatprep.subr.bf16.mxu0 0
      %3024 = vmatpush1.bf16.msra.mxu0 0
      %3025 = vmatprep.subr.bf16.mxu0 0
      %3026 = vmatpush1.bf16.msra.mxu0 0
      %3027 = vmatprep.subr.bf16.mxu0 0
      %3028 = vmatpush1.bf16.msra.mxu0 0
      %3029 = vmatprep.subr.bf16.mxu0 0
      %3030 = vmatpush1.bf16.msra.mxu0 0
      %3031 = vmatprep.mubr.bf16.mxu0 0
      %3032 = vmatmul.mubr.bf16.gmra.mrb[0].mxu0 %v2988
      %v3033 = vpop.f32.mrb[0].mxu0
      %v3034 = vadd.f32 0.0, %v3033
      %v3035 = vpop.f32.mrb[0].mxu0
      %v3036 = vpop.f32.mrb[0].mxu0
      %v3037 = vadd.f32 0.0, %v3036
      %v3038 = vpop.f32.mrb[0].mxu0
      %3039 = vmatprep.mubr.bf16.mxu0 0
      %3040 = vmatmul.mubr.bf16.gmra.mrb[0].mxu0 %v2991
      %v3041 = vpop.f32.mrb[0].mxu0
      %v3042 = vadd.f32 0.0, %v3041
      %v3043 = vpop.f32.mrb[0].mxu0
      %v3044 = vpop.f32.mrb[0].mxu0
      %v3045 = vadd.f32 0.0, %v3044
      %v3046 = vpop.f32.mrb[0].mxu0
      %3047 = vmatprep.mubr.bf16.mxu0 0
      %3048 = vmatmul.mubr.bf16.gmra.mrb[0].mxu0 %v2994
      %v3049 = vpop.f32.mrb[0].mxu0
      %v3050 = vadd.f32 0.0, %v3049
      %v3051 = vpop.f32.mrb[0].mxu0
      %v3052 = vpop.f32.mrb[0].mxu0
      %v3053 = vadd.f32 0.0, %v3052
      %v3054 = vpop.f32.mrb[0].mxu0
      %3055 = vmatprep.mubr.bf16.mxu0 0
      %3056 = vmatmul.mubr.bf16.gmra.mrb[0].mxu0 %v2997
      %v3057 = vpop.f32.mrb[0].mxu0
      %v3058 = vadd.f32 0.0, %v3057
      %v3059 = vpop.f32.mrb[0].mxu0
      %v3060 = vpop.f32.mrb[0].mxu0
      %v3061 = vadd.f32 0.0, %v3060
      %v3062 = vpop.f32.mrb[0].mxu0
      %3063 = vdwg.mxu0
      %s3064 = scalar_lea.vmem %s3, 64
      %v3065 = vld [vmem:[%s3064] sm:$0xff]
      %v3066 = vld [vmem:[%s3064 + $0x8] sm:$0xff]
      %v3067 = vld [vmem:[%s3064 + $0x10] sm:$0xff]
      %v3068 = vld [vmem:[%s3064 + $0x18] sm:$0xff]
      %v3069 = vld [vmem:[%s3064 + $0x20] sm:$0xff]
      %v3070 = vld [vmem:[%s3064 + $0x28] sm:$0xff]
      %v3071 = vld [vmem:[%s3064 + $0x30] sm:$0xff]
      %v3072 = vld [vmem:[%s3064 + $0x38] sm:$0xff]
      %3073 = vrot.lane.b32.xlu0 %v766, 120
      %v3074 = vpop.permute.xlu0 %3073
      %3075 = vrot.lane.b32.xlu0 %v767, 120
      %v3076 = vpop.permute.xlu0 %3075
      %3077 = vrot.lane.b32.xlu0 %v768, 120
      %v3078 = vpop.permute.xlu0 %3077
      %3079 = vrot.lane.b32.xlu0 %v769, 120
      %v3080 = vpop.permute.xlu0 %3079
      %3081 = vrot.lane.b32.xlu0 %v766, 88
      %v3082 = vpop.permute.xlu0 %3081
      %3083 = vrot.lane.b32.xlu0 %v767, 88
      %v3084 = vpop.permute.xlu0 %3083
      %3085 = vrot.lane.b32.xlu0 %v768, 88
      %v3086 = vpop.permute.xlu0 %3085
      %3087 = vrot.lane.b32.xlu0 %v769, 88
      %v3088 = vpop.permute.xlu0 %3087
      %v3090 = vsel %vm818, %v3074, 0
      %v3093 = vsel %vm818, %v3076, 0
      %v3096 = vsel %vm818, %v3078, 0
      %v3099 = vsel %vm818, %v3080, 0
      %v3102 = vsel %vm818, %v3082, 0
      %v3105 = vsel %vm818, %v3084, 0
      %v3108 = vsel %vm818, %v3086, 0
      %v3111 = vsel %vm818, %v3088, 0
      %3113 = vmatprep.subr.bf16.mxu0 0
      %3114 = vmatpush1.bf16.xpose.msra.mxu0 %v3102
      %3115 = vmatprep.subr.bf16.mxu0 0
      %3116 = vmatpush1.bf16.xpose.msra.mxu0 %v3105
      %3117 = vmatprep.subr.bf16.mxu0 0
      %3118 = vmatpush1.bf16.xpose.msra.mxu0 %v3108
      %3119 = vmatprep.subr.bf16.mxu0 0
      %3120 = vmatpush1.bf16.xpose.msra.mxu0 %v3111
      %3121 = vmatprep.subr.bf16.mxu0 0
      %3122 = vmatpush1.bf16.xpose.msra.mxu0 0
      %3123 = vmatprep.subr.bf16.mxu0 0
      %3124 = vmatpush1.bf16.xpose.msra.mxu0 0
      %3125 = vmatprep.subr.bf16.mxu0 0
      %3126 = vmatpush1.bf16.xpose.msra.mxu0 0
      %3127 = vmatprep.subr.bf16.mxu0 0
      %3128 = vmatpush1.bf16.xpose.msra.mxu0 0
      %3129 = vmatprep.subr.bf16.mxu0 0
      %3130 = vmatpush1.bf16.xpose.msra.mxu0 0
      %3131 = vmatprep.subr.bf16.mxu0 0
      %3132 = vmatpush1.bf16.xpose.msra.mxu0 0
      %3133 = vmatprep.subr.bf16.mxu0 0
      %3134 = vmatpush1.bf16.xpose.msra.mxu0 0
      %3135 = vmatprep.subr.bf16.mxu0 0
      %3136 = vmatpush1.bf16.xpose.msra.mxu0 0
      %3137 = vmatprep.subr.bf16.mxu0 0
      %3138 = vmatpush1.bf16.xpose.msra.mxu0 0
      %3139 = vmatprep.subr.bf16.mxu0 0
      %3140 = vmatpush1.bf16.xpose.msra.mxu0 0
      %3141 = vmatprep.subr.bf16.mxu0 0
      %3142 = vmatpush1.bf16.xpose.msra.mxu0 0
      %3143 = vmatprep.subr.bf16.mxu0 0
      %3144 = vmatpush1.bf16.xpose.msra.mxu0 0
      %3145 = vmatprep.mubr.bf16.mxu0 0
      %3146 = vmatmul.mubr.bf16.gmra.mrb[0].mxu0 %v3090
      %v3147 = vpop.f32.mrb[0].mxu0
      %v3148 = vadd.f32 %v3065, %v3147
      %v3149 = vpop.f32.mrb[0].mxu0
      %v3150 = vpop.f32.mrb[0].mxu0
      %v3151 = vadd.f32 %v3066, %v3150
      %v3152 = vpop.f32.mrb[0].mxu0
      %3153 = vmatprep.mubr.bf16.mxu0 0
      %3154 = vmatmul.mubr.bf16.gmra.mrb[0].mxu0 %v3093
      %v3155 = vpop.f32.mrb[0].mxu0
      %v3156 = vadd.f32 %v3067, %v3155
      %v3157 = vpop.f32.mrb[0].mxu0
      %v3158 = vpop.f32.mrb[0].mxu0
      %v3159 = vadd.f32 %v3068, %v3158
      %v3160 = vpop.f32.mrb[0].mxu0
      %3161 = vmatprep.mubr.bf16.mxu0 0
      %3162 = vmatmul.mubr.bf16.gmra.mrb[0].mxu0 %v3096
      %v3163 = vpop.f32.mrb[0].mxu0
      %v3164 = vadd.f32 %v3069, %v3163
      %v3165 = vpop.f32.mrb[0].mxu0
      %v3166 = vpop.f32.mrb[0].mxu0
      %v3167 = vadd.f32 %v3070, %v3166
      %v3168 = vpop.f32.mrb[0].mxu0
      %3169 = vmatprep.mubr.bf16.mxu0 0
      %3170 = vmatmul.mubr.bf16.gmra.mrb[0].mxu0 %v3099
      %v3171 = vpop.f32.mrb[0].mxu0
      %v3172 = vadd.f32 %v3071, %v3171
      %v3173 = vpop.f32.mrb[0].mxu0
      %v3174 = vpop.f32.mrb[0].mxu0
      %v3175 = vadd.f32 %v3072, %v3174
      %v3176 = vpop.f32.mrb[0].mxu0
      %3177 = vdwg.mxu0
      %3178 = vrot.lane.b32.xlu0 %v770, 120
      %v3179 = vpop.permute.xlu0 %3178
      %3180 = vrot.lane.b32.xlu0 %v771, 120
      %v3181 = vpop.permute.xlu0 %3180
      %3182 = vrot.lane.b32.xlu0 %v772, 120
      %v3183 = vpop.permute.xlu0 %3182
      %3184 = vrot.lane.b32.xlu0 %v773, 120
      %v3185 = vpop.permute.xlu0 %3184
      %3186 = vrot.lane.b32.xlu0 %v770, 88
      %v3187 = vpop.permute.xlu0 %3186
      %3188 = vrot.lane.b32.xlu0 %v771, 88
      %v3189 = vpop.permute.xlu0 %3188
      %3190 = vrot.lane.b32.xlu0 %v772, 88
      %v3191 = vpop.permute.xlu0 %3190
      %3192 = vrot.lane.b32.xlu0 %v773, 88
      %v3193 = vpop.permute.xlu0 %3192
      %v3195 = vsel %vm818, %v3179, 0
      %v3198 = vsel %vm818, %v3181, 0
      %v3201 = vsel %vm818, %v3183, 0
      %v3204 = vsel %vm818, %v3185, 0
      %v3207 = vsel %vm818, %v3187, 0
      %v3210 = vsel %vm818, %v3189, 0
      %v3213 = vsel %vm818, %v3191, 0
      %v3216 = vsel %vm818, %v3193, 0
      %3218 = vmatprep.subr.bf16.mxu0 0
      %3219 = vmatpush1.bf16.xpose.msra.mxu0 %v3207
      %3220 = vmatprep.subr.bf16.mxu0 0
      %3221 = vmatpush1.bf16.xpose.msra.mxu0 %v3210
      %3222 = vmatprep.subr.bf16.mxu0 0
      %3223 = vmatpush1.bf16.xpose.msra.mxu0 %v3213
      %3224 = vmatprep.subr.bf16.mxu0 0
      %3225 = vmatpush1.bf16.xpose.msra.mxu0 %v3216
      %3226 = vmatprep.subr.bf16.mxu0 0
      %3227 = vmatpush1.bf16.xpose.msra.mxu0 0
      %3228 = vmatprep.subr.bf16.mxu0 0
      %3229 = vmatpush1.bf16.xpose.msra.mxu0 0
      %3230 = vmatprep.subr.bf16.mxu0 0
      %3231 = vmatpush1.bf16.xpose.msra.mxu0 0
      %3232 = vmatprep.subr.bf16.mxu0 0
      %3233 = vmatpush1.bf16.xpose.msra.mxu0 0
      %3234 = vmatprep.subr.bf16.mxu0 0
      %3235 = vmatpush1.bf16.xpose.msra.mxu0 0
      %3236 = vmatprep.subr.bf16.mxu0 0
      %3237 = vmatpush1.bf16.xpose.msra.mxu0 0
      %3238 = vmatprep.subr.bf16.mxu0 0
      %3239 = vmatpush1.bf16.xpose.msra.mxu0 0
      %3240 = vmatprep.subr.bf16.mxu0 0
      %3241 = vmatpush1.bf16.xpose.msra.mxu0 0
      %3242 = vmatprep.subr.bf16.mxu0 0
      %3243 = vmatpush1.bf16.xpose.msra.mxu0 0
      %3244 = vmatprep.subr.bf16.mxu0 0
      %3245 = vmatpush1.bf16.xpose.msra.mxu0 0
      %3246 = vmatprep.subr.bf16.mxu0 0
      %3247 = vmatpush1.bf16.xpose.msra.mxu0 0
      %3248 = vmatprep.subr.bf16.mxu0 0
      %3249 = vmatpush1.bf16.xpose.msra.mxu0 0
      %3250 = vmatprep.mubr.bf16.mxu0 0
      %3251 = vmatmul.mubr.bf16.gmra.mrb[0].mxu0 %v3195
      %v3252 = vpop.f32.mrb[0].mxu0
      %v3253 = vadd.f32 %v3065, %v3252
      %v3254 = vpop.f32.mrb[0].mxu0
      %v3255 = vpop.f32.mrb[0].mxu0
      %v3256 = vadd.f32 %v3066, %v3255
      %v3257 = vpop.f32.mrb[0].mxu0
      %3258 = vmatprep.mubr.bf16.mxu0 0
      %3259 = vmatmul.mubr.bf16.gmra.mrb[0].mxu0 %v3198
      %v3260 = vpop.f32.mrb[0].mxu0
      %v3261 = vadd.f32 %v3067, %v3260
      %v3262 = vpop.f32.mrb[0].mxu0
      %v3263 = vpop.f32.mrb[0].mxu0
      %v3264 = vadd.f32 %v3068, %v3263
      %v3265 = vpop.f32.mrb[0].mxu0
      %3266 = vmatprep.mubr.bf16.mxu0 0
      %3267 = vmatmul.mubr.bf16.gmra.mrb[0].mxu0 %v3201
      %v3268 = vpop.f32.mrb[0].mxu0
      %v3269 = vadd.f32 %v3069, %v3268
      %v3270 = vpop.f32.mrb[0].mxu0
      %v3271 = vpop.f32.mrb[0].mxu0
      %v3272 = vadd.f32 %v3070, %v3271
      %v3273 = vpop.f32.mrb[0].mxu0
      %3274 = vmatprep.mubr.bf16.mxu0 0
      %3275 = vmatmul.mubr.bf16.gmra.mrb[0].mxu0 %v3204
      %v3276 = vpop.f32.mrb[0].mxu0
      %v3277 = vadd.f32 %v3071, %v3276
      %v3278 = vpop.f32.mrb[0].mxu0
      %v3279 = vpop.f32.mrb[0].mxu0
      %v3280 = vadd.f32 %v3072, %v3279
      %v3281 = vpop.f32.mrb[0].mxu0
      %3282 = vdwg.mxu0
      %3283 = vrot.lane.b32.xlu0 %v774, 120
      %v3284 = vpop.permute.xlu0 %3283
      %3285 = vrot.lane.b32.xlu0 %v775, 120
      %v3286 = vpop.permute.xlu0 %3285
      %3287 = vrot.lane.b32.xlu0 %v776, 120
      %v3288 = vpop.permute.xlu0 %3287
      %3289 = vrot.lane.b32.xlu0 %v777, 120
      %v3290 = vpop.permute.xlu0 %3289
      %3291 = vrot.lane.b32.xlu0 %v774, 88
      %v3292 = vpop.permute.xlu0 %3291
      %3293 = vrot.lane.b32.xlu0 %v775, 88
      %v3294 = vpop.permute.xlu0 %3293
      %3295 = vrot.lane.b32.xlu0 %v776, 88
      %v3296 = vpop.permute.xlu0 %3295
      %3297 = vrot.lane.b32.xlu0 %v777, 88
      %v3298 = vpop.permute.xlu0 %3297
      %v3300 = vsel %vm818, %v3284, 0
      %v3303 = vsel %vm818, %v3286, 0
      %v3306 = vsel %vm818, %v3288, 0
      %v3309 = vsel %vm818, %v3290, 0
      %v3312 = vsel %vm818, %v3292, 0
      %v3315 = vsel %vm818, %v3294, 0
      %v3318 = vsel %vm818, %v3296, 0
      %v3321 = vsel %vm818, %v3298, 0
      %3323 = vmatprep.subr.bf16.mxu0 0
      %3324 = vmatpush1.bf16.xpose.msra.mxu0 %v3312
      %3325 = vmatprep.subr.bf16.mxu0 0
      %3326 = vmatpush1.bf16.xpose.msra.mxu0 %v3315
      %3327 = vmatprep.subr.bf16.mxu0 0
      %3328 = vmatpush1.bf16.xpose.msra.mxu0 %v3318
      %3329 = vmatprep.subr.bf16.mxu0 0
      %3330 = vmatpush1.bf16.xpose.msra.mxu0 %v3321
      %3331 = vmatprep.subr.bf16.mxu0 0
      %3332 = vmatpush1.bf16.xpose.msra.mxu0 0
      %3333 = vmatprep.subr.bf16.mxu0 0
      %3334 = vmatpush1.bf16.xpose.msra.mxu0 0
      %3335 = vmatprep.subr.bf16.mxu0 0
      %3336 = vmatpush1.bf16.xpose.msra.mxu0 0
      %3337 = vmatprep.subr.bf16.mxu0 0
      %3338 = vmatpush1.bf16.xpose.msra.mxu0 0
      %3339 = vmatprep.subr.bf16.mxu0 0
      %3340 = vmatpush1.bf16.xpose.msra.mxu0 0
      %3341 = vmatprep.subr.bf16.mxu0 0
      %3342 = vmatpush1.bf16.xpose.msra.mxu0 0
      %3343 = vmatprep.subr.bf16.mxu0 0
      %3344 = vmatpush1.bf16.xpose.msra.mxu0 0
      %3345 = vmatprep.subr.bf16.mxu0 0
      %3346 = vmatpush1.bf16.xpose.msra.mxu0 0
      %3347 = vmatprep.subr.bf16.mxu0 0
      %3348 = vmatpush1.bf16.xpose.msra.mxu0 0
      %3349 = vmatprep.subr.bf16.mxu0 0
      %3350 = vmatpush1.bf16.xpose.msra.mxu0 0
      %3351 = vmatprep.subr.bf16.mxu0 0
      %3352 = vmatpush1.bf16.xpose.msra.mxu0 0
      %3353 = vmatprep.subr.bf16.mxu0 0
      %3354 = vmatpush1.bf16.xpose.msra.mxu0 0
      %3355 = vmatprep.mubr.bf16.mxu0 0
      %3356 = vmatmul.mubr.bf16.gmra.mrb[0].mxu0 %v3300
      %v3357 = vpop.f32.mrb[0].mxu0
      %v3358 = vadd.f32 %v3065, %v3357
      %v3359 = vpop.f32.mrb[0].mxu0
      %v3360 = vpop.f32.mrb[0].mxu0
      %v3361 = vadd.f32 %v3066, %v3360
      %v3362 = vpop.f32.mrb[0].mxu0
      %3363 = vmatprep.mubr.bf16.mxu0 0
      %3364 = vmatmul.mubr.bf16.gmra.mrb[0].mxu0 %v3303
      %v3365 = vpop.f32.mrb[0].mxu0
      %v3366 = vadd.f32 %v3067, %v3365
      %v3367 = vpop.f32.mrb[0].mxu0
      %v3368 = vpop.f32.mrb[0].mxu0
      %v3369 = vadd.f32 %v3068, %v3368
      %v3370 = vpop.f32.mrb[0].mxu0
      %3371 = vmatprep.mubr.bf16.mxu0 0
      %3372 = vmatmul.mubr.bf16.gmra.mrb[0].mxu0 %v3306
      %v3373 = vpop.f32.mrb[0].mxu0
      %v3374 = vadd.f32 %v3069, %v3373
      %v3375 = vpop.f32.mrb[0].mxu0
      %v3376 = vpop.f32.mrb[0].mxu0
      %v3377 = vadd.f32 %v3070, %v3376
      %v3378 = vpop.f32.mrb[0].mxu0
      %3379 = vmatprep.mubr.bf16.mxu0 0
      %3380 = vmatmul.mubr.bf16.gmra.mrb[0].mxu0 %v3309
      %v3381 = vpop.f32.mrb[0].mxu0
      %v3382 = vadd.f32 %v3071, %v3381
      %v3383 = vpop.f32.mrb[0].mxu0
      %v3384 = vpop.f32.mrb[0].mxu0
      %v3385 = vadd.f32 %v3072, %v3384
      %v3386 = vpop.f32.mrb[0].mxu0
      %3387 = vdwg.mxu0
      %3388 = vrot.lane.b32.xlu0 %v778, 120
      %v3389 = vpop.permute.xlu0 %3388
      %3390 = vrot.lane.b32.xlu0 %v779, 120
      %v3391 = vpop.permute.xlu0 %3390
      %3392 = vrot.lane.b32.xlu0 %v780, 120
      %v3393 = vpop.permute.xlu0 %3392
      %3394 = vrot.lane.b32.xlu0 %v781, 120
      %v3395 = vpop.permute.xlu0 %3394
      %3396 = vrot.lane.b32.xlu0 %v778, 88
      %v3397 = vpop.permute.xlu0 %3396
      %3398 = vrot.lane.b32.xlu0 %v779, 88
      %v3399 = vpop.permute.xlu0 %3398
      %3400 = vrot.lane.b32.xlu0 %v780, 88
      %v3401 = vpop.permute.xlu0 %3400
      %3402 = vrot.lane.b32.xlu0 %v781, 88
      %v3403 = vpop.permute.xlu0 %3402
      %v3405 = vsel %vm818, %v3389, 0
      %v3408 = vsel %vm818, %v3391, 0
      %v3411 = vsel %vm818, %v3393, 0
      %v3414 = vsel %vm818, %v3395, 0
      %v3417 = vsel %vm818, %v3397, 0
      %v3420 = vsel %vm818, %v3399, 0
      %v3423 = vsel %vm818, %v3401, 0
      %v3426 = vsel %vm818, %v3403, 0
      %3428 = vmatprep.subr.bf16.mxu0 0
      %3429 = vmatpush1.bf16.xpose.msra.mxu0 %v3417
      %3430 = vmatprep.subr.bf16.mxu0 0
      %3431 = vmatpush1.bf16.xpose.msra.mxu0 %v3420
      %3432 = vmatprep.subr.bf16.mxu0 0
      %3433 = vmatpush1.bf16.xpose.msra.mxu0 %v3423
      %3434 = vmatprep.subr.bf16.mxu0 0
      %3435 = vmatpush1.bf16.xpose.msra.mxu0 %v3426
      %3436 = vmatprep.subr.bf16.mxu0 0
      %3437 = vmatpush1.bf16.xpose.msra.mxu0 0
      %3438 = vmatprep.subr.bf16.mxu0 0
      %3439 = vmatpush1.bf16.xpose.msra.mxu0 0
      %3440 = vmatprep.subr.bf16.mxu0 0
      %3441 = vmatpush1.bf16.xpose.msra.mxu0 0
      %3442 = vmatprep.subr.bf16.mxu0 0
      %3443 = vmatpush1.bf16.xpose.msra.mxu0 0
      %3444 = vmatprep.subr.bf16.mxu0 0
      %3445 = vmatpush1.bf16.xpose.msra.mxu0 0
      %3446 = vmatprep.subr.bf16.mxu0 0
      %3447 = vmatpush1.bf16.xpose.msra.mxu0 0
      %3448 = vmatprep.subr.bf16.mxu0 0
      %3449 = vmatpush1.bf16.xpose.msra.mxu0 0
      %3450 = vmatprep.subr.bf16.mxu0 0
      %3451 = vmatpush1.bf16.xpose.msra.mxu0 0
      %3452 = vmatprep.subr.bf16.mxu0 0
      %3453 = vmatpush1.bf16.xpose.msra.mxu0 0
      %3454 = vmatprep.subr.bf16.mxu0 0
      %3455 = vmatpush1.bf16.xpose.msra.mxu0 0
      %3456 = vmatprep.subr.bf16.mxu0 0
      %3457 = vmatpush1.bf16.xpose.msra.mxu0 0
      %3458 = vmatprep.subr.bf16.mxu0 0
      %3459 = vmatpush1.bf16.xpose.msra.mxu0 0
      %3460 = vmatprep.mubr.bf16.mxu0 0
      %3461 = vmatmul.mubr.bf16.gmra.mrb[0].mxu0 %v3405
      %v3462 = vpop.f32.mrb[0].mxu0
      %v3463 = vadd.f32 %v3065, %v3462
      %v3464 = vpop.f32.mrb[0].mxu0
      %v3465 = vpop.f32.mrb[0].mxu0
      %v3466 = vadd.f32 %v3066, %v3465
      %v3467 = vpop.f32.mrb[0].mxu0
      %3468 = vmatprep.mubr.bf16.mxu0 0
      %3469 = vmatmul.mubr.bf16.gmra.mrb[0].mxu0 %v3408
      %v3470 = vpop.f32.mrb[0].mxu0
      %v3471 = vadd.f32 %v3067, %v3470
      %v3472 = vpop.f32.mrb[0].mxu0
      %v3473 = vpop.f32.mrb[0].mxu0
      %v3474 = vadd.f32 %v3068, %v3473
      %v3475 = vpop.f32.mrb[0].mxu0
      %3476 = vmatprep.mubr.bf16.mxu0 0
      %3477 = vmatmul.mubr.bf16.gmra.mrb[0].mxu0 %v3411
      %v3478 = vpop.f32.mrb[0].mxu0
      %v3479 = vadd.f32 %v3069, %v3478
      %v3480 = vpop.f32.mrb[0].mxu0
      %v3481 = vpop.f32.mrb[0].mxu0
      %v3482 = vadd.f32 %v3070, %v3481
      %v3483 = vpop.f32.mrb[0].mxu0
      %3484 = vmatprep.mubr.bf16.mxu0 0
      %3485 = vmatmul.mubr.bf16.gmra.mrb[0].mxu0 %v3414
      %v3486 = vpop.f32.mrb[0].mxu0
      %v3487 = vadd.f32 %v3071, %v3486
      %v3488 = vpop.f32.mrb[0].mxu0
      %v3489 = vpop.f32.mrb[0].mxu0
      %v3490 = vadd.f32 %v3072, %v3489
      %v3491 = vpop.f32.mrb[0].mxu0
      %3492 = vdwg.mxu0
      %3493 = vrot.lane.b32.xlu0 %v782, 120
      %v3494 = vpop.permute.xlu0 %3493
      %3495 = vrot.lane.b32.xlu0 %v783, 120
      %v3496 = vpop.permute.xlu0 %3495
      %3497 = vrot.lane.b32.xlu0 %v784, 120
      %v3498 = vpop.permute.xlu0 %3497
      %3499 = vrot.lane.b32.xlu0 %v785, 120
      %v3500 = vpop.permute.xlu0 %3499
      %3501 = vrot.lane.b32.xlu0 %v782, 88
      %v3502 = vpop.permute.xlu0 %3501
      %3503 = vrot.lane.b32.xlu0 %v783, 88
      %v3504 = vpop.permute.xlu0 %3503
      %3505 = vrot.lane.b32.xlu0 %v784, 88
      %v3506 = vpop.permute.xlu0 %3505
      %3507 = vrot.lane.b32.xlu0 %v785, 88
      %v3508 = vpop.permute.xlu0 %3507
      %v3510 = vsel %vm818, %v3494, 0
      %v3513 = vsel %vm818, %v3496, 0
      %v3516 = vsel %vm818, %v3498, 0
      %v3519 = vsel %vm818, %v3500, 0
      %v3522 = vsel %vm818, %v3502, 0
      %v3525 = vsel %vm818, %v3504, 0
      %v3528 = vsel %vm818, %v3506, 0
      %v3531 = vsel %vm818, %v3508, 0
      %3533 = vmatprep.subr.bf16.mxu0 0
      %3534 = vmatpush1.bf16.xpose.msra.mxu0 %v3522
      %3535 = vmatprep.subr.bf16.mxu0 0
      %3536 = vmatpush1.bf16.xpose.msra.mxu0 %v3525
      %3537 = vmatprep.subr.bf16.mxu0 0
      %3538 = vmatpush1.bf16.xpose.msra.mxu0 %v3528
      %3539 = vmatprep.subr.bf16.mxu0 0
      %3540 = vmatpush1.bf16.xpose.msra.mxu0 %v3531
      %3541 = vmatprep.subr.bf16.mxu0 0
      %3542 = vmatpush1.bf16.xpose.msra.mxu0 0
      %3543 = vmatprep.subr.bf16.mxu0 0
      %3544 = vmatpush1.bf16.xpose.msra.mxu0 0
      %3545 = vmatprep.subr.bf16.mxu0 0
      %3546 = vmatpush1.bf16.xpose.msra.mxu0 0
      %3547 = vmatprep.subr.bf16.mxu0 0
      %3548 = vmatpush1.bf16.xpose.msra.mxu0 0
      %3549 = vmatprep.subr.bf16.mxu0 0
      %3550 = vmatpush1.bf16.xpose.msra.mxu0 0
      %3551 = vmatprep.subr.bf16.mxu0 0
      %3552 = vmatpush1.bf16.xpose.msra.mxu0 0
      %3553 = vmatprep.subr.bf16.mxu0 0
      %3554 = vmatpush1.bf16.xpose.msra.mxu0 0
      %3555 = vmatprep.subr.bf16.mxu0 0
      %3556 = vmatpush1.bf16.xpose.msra.mxu0 0
      %3557 = vmatprep.subr.bf16.mxu0 0
      %3558 = vmatpush1.bf16.xpose.msra.mxu0 0
      %3559 = vmatprep.subr.bf16.mxu0 0
      %3560 = vmatpush1.bf16.xpose.msra.mxu0 0
      %3561 = vmatprep.subr.bf16.mxu0 0
      %3562 = vmatpush1.bf16.xpose.msra.mxu0 0
      %3563 = vmatprep.subr.bf16.mxu0 0
      %3564 = vmatpush1.bf16.xpose.msra.mxu0 0
      %3565 = vmatprep.mubr.bf16.mxu0 0
      %3566 = vmatmul.mubr.bf16.gmra.mrb[0].mxu0 %v3510
      %v3567 = vpop.f32.mrb[0].mxu0
      %v3568 = vadd.f32 %v3065, %v3567
      %v3569 = vpop.f32.mrb[0].mxu0
      %v3570 = vpop.f32.mrb[0].mxu0
      %v3571 = vadd.f32 %v3066, %v3570
      %v3572 = vpop.f32.mrb[0].mxu0
      %3573 = vmatprep.mubr.bf16.mxu0 0
      %3574 = vmatmul.mubr.bf16.gmra.mrb[0].mxu0 %v3513
      %v3575 = vpop.f32.mrb[0].mxu0
      %v3576 = vadd.f32 %v3067, %v3575
      %v3577 = vpop.f32.mrb[0].mxu0
      %v3578 = vpop.f32.mrb[0].mxu0
      %v3579 = vadd.f32 %v3068, %v3578
      %v3580 = vpop.f32.mrb[0].mxu0
      %3581 = vmatprep.mubr.bf16.mxu0 0
      %3582 = vmatmul.mubr.bf16.gmra.mrb[0].mxu0 %v3516
      %v3583 = vpop.f32.mrb[0].mxu0
      %v3584 = vadd.f32 %v3069, %v3583
      %v3585 = vpop.f32.mrb[0].mxu0
      %v3586 = vpop.f32.mrb[0].mxu0
      %v3587 = vadd.f32 %v3070, %v3586
      %v3588 = vpop.f32.mrb[0].mxu0
      %3589 = vmatprep.mubr.bf16.mxu0 0
      %3590 = vmatmul.mubr.bf16.gmra.mrb[0].mxu0 %v3519
      %v3591 = vpop.f32.mrb[0].mxu0
      %v3592 = vadd.f32 %v3071, %v3591
      %v3593 = vpop.f32.mrb[0].mxu0
      %v3594 = vpop.f32.mrb[0].mxu0
      %v3595 = vadd.f32 %v3072, %v3594
      %v3596 = vpop.f32.mrb[0].mxu0
      %3597 = vdwg.mxu0
      %3598 = vrot.lane.b32.xlu0 %v786, 120
      %v3599 = vpop.permute.xlu0 %3598
      %3600 = vrot.lane.b32.xlu0 %v787, 120
      %v3601 = vpop.permute.xlu0 %3600
      %3602 = vrot.lane.b32.xlu0 %v788, 120
      %v3603 = vpop.permute.xlu0 %3602
      %3604 = vrot.lane.b32.xlu0 %v789, 120
      %v3605 = vpop.permute.xlu0 %3604
      %3606 = vrot.lane.b32.xlu0 %v786, 88
      %v3607 = vpop.permute.xlu0 %3606
      %3608 = vrot.lane.b32.xlu0 %v787, 88
      %v3609 = vpop.permute.xlu0 %3608
      %3610 = vrot.lane.b32.xlu0 %v788, 88
      %v3611 = vpop.permute.xlu0 %3610
      %3612 = vrot.lane.b32.xlu0 %v789, 88
      %v3613 = vpop.permute.xlu0 %3612
      %v3615 = vsel %vm818, %v3599, 0
      %v3618 = vsel %vm818, %v3601, 0
      %v3621 = vsel %vm818, %v3603, 0
      %v3624 = vsel %vm818, %v3605, 0
      %v3627 = vsel %vm818, %v3607, 0
      %v3630 = vsel %vm818, %v3609, 0
      %v3633 = vsel %vm818, %v3611, 0
      %v3636 = vsel %vm818, %v3613, 0
      %3638 = vmatprep.subr.bf16.mxu0 0
      %3639 = vmatpush1.bf16.xpose.msra.mxu0 %v3627
      %3640 = vmatprep.subr.bf16.mxu0 0
      %3641 = vmatpush1.bf16.xpose.msra.mxu0 %v3630
      %3642 = vmatprep.subr.bf16.mxu0 0
      %3643 = vmatpush1.bf16.xpose.msra.mxu0 %v3633
      %3644 = vmatprep.subr.bf16.mxu0 0
      %3645 = vmatpush1.bf16.xpose.msra.mxu0 %v3636
      %3646 = vmatprep.subr.bf16.mxu0 0
      %3647 = vmatpush1.bf16.xpose.msra.mxu0 0
      %3648 = vmatprep.subr.bf16.mxu0 0
      %3649 = vmatpush1.bf16.xpose.msra.mxu0 0
      %3650 = vmatprep.subr.bf16.mxu0 0
      %3651 = vmatpush1.bf16.xpose.msra.mxu0 0
      %3652 = vmatprep.subr.bf16.mxu0 0
      %3653 = vmatpush1.bf16.xpose.msra.mxu0 0
      %3654 = vmatprep.subr.bf16.mxu0 0
      %3655 = vmatpush1.bf16.xpose.msra.mxu0 0
      %3656 = vmatprep.subr.bf16.mxu0 0
      %3657 = vmatpush1.bf16.xpose.msra.mxu0 0
      %3658 = vmatprep.subr.bf16.mxu0 0
      %3659 = vmatpush1.bf16.xpose.msra.mxu0 0
      %3660 = vmatprep.subr.bf16.mxu0 0
      %3661 = vmatpush1.bf16.xpose.msra.mxu0 0
      %3662 = vmatprep.subr.bf16.mxu0 0
      %3663 = vmatpush1.bf16.xpose.msra.mxu0 0
      %3664 = vmatprep.subr.bf16.mxu0 0
      %3665 = vmatpush1.bf16.xpose.msra.mxu0 0
      %3666 = vmatprep.subr.bf16.mxu0 0
      %3667 = vmatpush1.bf16.xpose.msra.mxu0 0
      %3668 = vmatprep.subr.bf16.mxu0 0
      %3669 = vmatpush1.bf16.xpose.msra.mxu0 0
      %3670 = vmatprep.mubr.bf16.mxu0 0
      %3671 = vmatmul.mubr.bf16.gmra.mrb[0].mxu0 %v3615
      %v3672 = vpop.f32.mrb[0].mxu0
      %v3673 = vadd.f32 %v3065, %v3672
      %v3674 = vpop.f32.mrb[0].mxu0
      %v3675 = vpop.f32.mrb[0].mxu0
      %v3676 = vadd.f32 %v3066, %v3675
      %v3677 = vpop.f32.mrb[0].mxu0
      %3678 = vmatprep.mubr.bf16.mxu0 0
      %3679 = vmatmul.mubr.bf16.gmra.mrb[0].mxu0 %v3618
      %v3680 = vpop.f32.mrb[0].mxu0
      %v3681 = vadd.f32 %v3067, %v3680
      %v3682 = vpop.f32.mrb[0].mxu0
      %v3683 = vpop.f32.mrb[0].mxu0
      %v3684 = vadd.f32 %v3068, %v3683
      %v3685 = vpop.f32.mrb[0].mxu0
      %3686 = vmatprep.mubr.bf16.mxu0 0
      %3687 = vmatmul.mubr.bf16.gmra.mrb[0].mxu0 %v3621
      %v3688 = vpop.f32.mrb[0].mxu0
      %v3689 = vadd.f32 %v3069, %v3688
      %v3690 = vpop.f32.mrb[0].mxu0
      %v3691 = vpop.f32.mrb[0].mxu0
      %v3692 = vadd.f32 %v3070, %v3691
      %v3693 = vpop.f32.mrb[0].mxu0
      %3694 = vmatprep.mubr.bf16.mxu0 0
      %3695 = vmatmul.mubr.bf16.gmra.mrb[0].mxu0 %v3624
      %v3696 = vpop.f32.mrb[0].mxu0
      %v3697 = vadd.f32 %v3071, %v3696
      %v3698 = vpop.f32.mrb[0].mxu0
      %v3699 = vpop.f32.mrb[0].mxu0
      %v3700 = vadd.f32 %v3072, %v3699
      %v3701 = vpop.f32.mrb[0].mxu0
      %3702 = vdwg.mxu0
      %3703 = vrot.lane.b32.xlu0 %v790, 120
      %v3704 = vpop.permute.xlu0 %3703
      %3705 = vrot.lane.b32.xlu0 %v791, 120
      %v3706 = vpop.permute.xlu0 %3705
      %3707 = vrot.lane.b32.xlu0 %v792, 120
      %v3708 = vpop.permute.xlu0 %3707
      %3709 = vrot.lane.b32.xlu0 %v793, 120
      %v3710 = vpop.permute.xlu0 %3709
      %3711 = vrot.lane.b32.xlu0 %v790, 88
      %v3712 = vpop.permute.xlu0 %3711
      %3713 = vrot.lane.b32.xlu0 %v791, 88
      %v3714 = vpop.permute.xlu0 %3713
      %3715 = vrot.lane.b32.xlu0 %v792, 88
      %v3716 = vpop.permute.xlu0 %3715
      %3717 = vrot.lane.b32.xlu0 %v793, 88
      %v3718 = vpop.permute.xlu0 %3717
      %v3720 = vsel %vm818, %v3704, 0
      %v3723 = vsel %vm818, %v3706, 0
      %v3726 = vsel %vm818, %v3708, 0
      %v3729 = vsel %vm818, %v3710, 0
      %v3732 = vsel %vm818, %v3712, 0
      %v3735 = vsel %vm818, %v3714, 0
      %v3738 = vsel %vm818, %v3716, 0
      %v3741 = vsel %vm818, %v3718, 0
      %3743 = vmatprep.subr.bf16.mxu0 0
      %3744 = vmatpush1.bf16.xpose.msra.mxu0 %v3732
      %3745 = vmatprep.subr.bf16.mxu0 0
      %3746 = vmatpush1.bf16.xpose.msra.mxu0 %v3735
      %3747 = vmatprep.subr.bf16.mxu0 0
      %3748 = vmatpush1.bf16.xpose.msra.mxu0 %v3738
      %3749 = vmatprep.subr.bf16.mxu0 0
      %3750 = vmatpush1.bf16.xpose.msra.mxu0 %v3741
      %3751 = vmatprep.subr.bf16.mxu0 0
      %3752 = vmatpush1.bf16.xpose.msra.mxu0 0
      %3753 = vmatprep.subr.bf16.mxu0 0
      %3754 = vmatpush1.bf16.xpose.msra.mxu0 0
      %3755 = vmatprep.subr.bf16.mxu0 0
      %3756 = vmatpush1.bf16.xpose.msra.mxu0 0
      %3757 = vmatprep.subr.bf16.mxu0 0
      %3758 = vmatpush1.bf16.xpose.msra.mxu0 0
      %3759 = vmatprep.subr.bf16.mxu0 0
      %3760 = vmatpush1.bf16.xpose.msra.mxu0 0
      %3761 = vmatprep.subr.bf16.mxu0 0
      %3762 = vmatpush1.bf16.xpose.msra.mxu0 0
      %3763 = vmatprep.subr.bf16.mxu0 0
      %3764 = vmatpush1.bf16.xpose.msra.mxu0 0
      %3765 = vmatprep.subr.bf16.mxu0 0
      %3766 = vmatpush1.bf16.xpose.msra.mxu0 0
      %3767 = vmatprep.subr.bf16.mxu0 0
      %3768 = vmatpush1.bf16.xpose.msra.mxu0 0
      %3769 = vmatprep.subr.bf16.mxu0 0
      %3770 = vmatpush1.bf16.xpose.msra.mxu0 0
      %3771 = vmatprep.subr.bf16.mxu0 0
      %3772 = vmatpush1.bf16.xpose.msra.mxu0 0
      %3773 = vmatprep.subr.bf16.mxu0 0
      %3774 = vmatpush1.bf16.xpose.msra.mxu0 0
      %3775 = vmatprep.mubr.bf16.mxu0 0
      %3776 = vmatmul.mubr.bf16.gmra.mrb[0].mxu0 %v3720
      %v3777 = vpop.f32.mrb[0].mxu0
      %v3778 = vadd.f32 %v3065, %v3777
      %v3779 = vpop.f32.mrb[0].mxu0
      %v3780 = vpop.f32.mrb[0].mxu0
      %v3781 = vadd.f32 %v3066, %v3780
      %v3782 = vpop.f32.mrb[0].mxu0
      %3783 = vmatprep.mubr.bf16.mxu0 0
      %3784 = vmatmul.mubr.bf16.gmra.mrb[0].mxu0 %v3723
      %v3785 = vpop.f32.mrb[0].mxu0
      %v3786 = vadd.f32 %v3067, %v3785
      %v3787 = vpop.f32.mrb[0].mxu0
      %v3788 = vpop.f32.mrb[0].mxu0
      %v3789 = vadd.f32 %v3068, %v3788
      %v3790 = vpop.f32.mrb[0].mxu0
      %3791 = vmatprep.mubr.bf16.mxu0 0
      %3792 = vmatmul.mubr.bf16.gmra.mrb[0].mxu0 %v3726
      %v3793 = vpop.f32.mrb[0].mxu0
      %v3794 = vadd.f32 %v3069, %v3793
      %v3795 = vpop.f32.mrb[0].mxu0
      %v3796 = vpop.f32.mrb[0].mxu0
      %v3797 = vadd.f32 %v3070, %v3796
      %v3798 = vpop.f32.mrb[0].mxu0
      %3799 = vmatprep.mubr.bf16.mxu0 0
      %3800 = vmatmul.mubr.bf16.gmra.mrb[0].mxu0 %v3729
      %v3801 = vpop.f32.mrb[0].mxu0
      %v3802 = vadd.f32 %v3071, %v3801
      %v3803 = vpop.f32.mrb[0].mxu0
      %v3804 = vpop.f32.mrb[0].mxu0
      %v3805 = vadd.f32 %v3072, %v3804
      %v3806 = vpop.f32.mrb[0].mxu0
      %3807 = vdwg.mxu0
      %3808 = vrot.lane.b32.xlu0 %v794, 120
      %v3809 = vpop.permute.xlu0 %3808
      %3810 = vrot.lane.b32.xlu0 %v795, 120
      %v3811 = vpop.permute.xlu0 %3810
      %3812 = vrot.lane.b32.xlu0 %v796, 120
      %v3813 = vpop.permute.xlu0 %3812
      %3814 = vrot.lane.b32.xlu0 %v797, 120
      %v3815 = vpop.permute.xlu0 %3814
      %3816 = vrot.lane.b32.xlu0 %v794, 88
      %v3817 = vpop.permute.xlu0 %3816
      %3818 = vrot.lane.b32.xlu0 %v795, 88
      %v3819 = vpop.permute.xlu0 %3818
      %3820 = vrot.lane.b32.xlu0 %v796, 88
      %v3821 = vpop.permute.xlu0 %3820
      %3822 = vrot.lane.b32.xlu0 %v797, 88
      %v3823 = vpop.permute.xlu0 %3822
      %v3825 = vsel %vm818, %v3809, 0
      %v3828 = vsel %vm818, %v3811, 0
      %v3831 = vsel %vm818, %v3813, 0
      %v3834 = vsel %vm818, %v3815, 0
      %v3837 = vsel %vm818, %v3817, 0
      %v3840 = vsel %vm818, %v3819, 0
      %v3843 = vsel %vm818, %v3821, 0
      %v3846 = vsel %vm818, %v3823, 0
      %3848 = vmatprep.subr.bf16.mxu0 0
      %3849 = vmatpush1.bf16.xpose.msra.mxu0 %v3837
      %3850 = vmatprep.subr.bf16.mxu0 0
      %3851 = vmatpush1.bf16.xpose.msra.mxu0 %v3840
      %3852 = vmatprep.subr.bf16.mxu0 0
      %3853 = vmatpush1.bf16.xpose.msra.mxu0 %v3843
      %3854 = vmatprep.subr.bf16.mxu0 0
      %3855 = vmatpush1.bf16.xpose.msra.mxu0 %v3846
      %3856 = vmatprep.subr.bf16.mxu0 0
      %3857 = vmatpush1.bf16.xpose.msra.mxu0 0
      %3858 = vmatprep.subr.bf16.mxu0 0
      %3859 = vmatpush1.bf16.xpose.msra.mxu0 0
      %3860 = vmatprep.subr.bf16.mxu0 0
      %3861 = vmatpush1.bf16.xpose.msra.mxu0 0
      %3862 = vmatprep.subr.bf16.mxu0 0
      %3863 = vmatpush1.bf16.xpose.msra.mxu0 0
      %3864 = vmatprep.subr.bf16.mxu0 0
      %3865 = vmatpush1.bf16.xpose.msra.mxu0 0
      %3866 = vmatprep.subr.bf16.mxu0 0
      %3867 = vmatpush1.bf16.xpose.msra.mxu0 0
      %3868 = vmatprep.subr.bf16.mxu0 0
      %3869 = vmatpush1.bf16.xpose.msra.mxu0 0
      %3870 = vmatprep.subr.bf16.mxu0 0
      %3871 = vmatpush1.bf16.xpose.msra.mxu0 0
      %3872 = vmatprep.subr.bf16.mxu0 0
      %3873 = vmatpush1.bf16.xpose.msra.mxu0 0
      %3874 = vmatprep.subr.bf16.mxu0 0
      %3875 = vmatpush1.bf16.xpose.msra.mxu0 0
      %3876 = vmatprep.subr.bf16.mxu0 0
      %3877 = vmatpush1.bf16.xpose.msra.mxu0 0
      %3878 = vmatprep.subr.bf16.mxu0 0
      %3879 = vmatpush1.bf16.xpose.msra.mxu0 0
      %3880 = vmatprep.mubr.bf16.mxu0 0
      %3881 = vmatmul.mubr.bf16.gmra.mrb[0].mxu0 %v3825
      %v3882 = vpop.f32.mrb[0].mxu0
      %v3883 = vadd.f32 %v3065, %v3882
      %v3884 = vpop.f32.mrb[0].mxu0
      %v3885 = vpop.f32.mrb[0].mxu0
      %v3886 = vadd.f32 %v3066, %v3885
      %v3887 = vpop.f32.mrb[0].mxu0
      %3888 = vmatprep.mubr.bf16.mxu0 0
      %3889 = vmatmul.mubr.bf16.gmra.mrb[0].mxu0 %v3828
      %v3890 = vpop.f32.mrb[0].mxu0
      %v3891 = vadd.f32 %v3067, %v3890
      %v3892 = vpop.f32.mrb[0].mxu0
      %v3893 = vpop.f32.mrb[0].mxu0
      %v3894 = vadd.f32 %v3068, %v3893
      %v3895 = vpop.f32.mrb[0].mxu0
      %3896 = vmatprep.mubr.bf16.mxu0 0
      %3897 = vmatmul.mubr.bf16.gmra.mrb[0].mxu0 %v3831
      %v3898 = vpop.f32.mrb[0].mxu0
      %v3899 = vadd.f32 %v3069, %v3898
      %v3900 = vpop.f32.mrb[0].mxu0
      %v3901 = vpop.f32.mrb[0].mxu0
      %v3902 = vadd.f32 %v3070, %v3901
      %v3903 = vpop.f32.mrb[0].mxu0
      %3904 = vmatprep.mubr.bf16.mxu0 0
      %3905 = vmatmul.mubr.bf16.gmra.mrb[0].mxu0 %v3834
      %v3906 = vpop.f32.mrb[0].mxu0
      %v3907 = vadd.f32 %v3071, %v3906
      %v3908 = vpop.f32.mrb[0].mxu0
      %v3909 = vpop.f32.mrb[0].mxu0
      %v3910 = vadd.f32 %v3072, %v3909
      %v3911 = vpop.f32.mrb[0].mxu0
      %3912 = vdwg.mxu0
      %v3913 = vsel %vm1615, %v3148, -inf
      %3914 = vmax.xlane.f32.xlu0 %v3913
      %v3915 = vpop.xlane.xlu0 %3914
      %v3916 = vsel %vm1615, %v3151, -inf
      %3917 = vmax.xlane.f32.xlu0 %v3916
      %v3918 = vpop.xlane.xlu0 %3917
      %v3919 = vsel %vm1615, %v3156, -inf
      %3920 = vmax.xlane.f32.xlu0 %v3919
      %v3921 = vpop.xlane.xlu0 %3920
      %v3922 = vsel %vm1615, %v3159, -inf
      %3923 = vmax.xlane.f32.xlu0 %v3922
      %v3924 = vpop.xlane.xlu0 %3923
      %v3925 = vsel %vm1615, %v3164, -inf
      %3926 = vmax.xlane.f32.xlu0 %v3925
      %v3927 = vpop.xlane.xlu0 %3926
      %v3928 = vsel %vm1615, %v3167, -inf
      %3929 = vmax.xlane.f32.xlu0 %v3928
      %v3930 = vpop.xlane.xlu0 %3929
      %v3931 = vsel %vm1615, %v3172, -inf
      %3932 = vmax.xlane.f32.xlu0 %v3931
      %v3933 = vpop.xlane.xlu0 %3932
      %v3934 = vsel %vm1615, %v3175, -inf
      %3935 = vmax.xlane.f32.xlu0 %v3934
      %v3936 = vpop.xlane.xlu0 %3935
      %v3937 = vsel %vm1615, %v3253, -inf
      %3938 = vmax.xlane.f32.xlu0 %v3937
      %v3939 = vpop.xlane.xlu0 %3938
      %v3940 = vsel %vm1615, %v3256, -inf
      %3941 = vmax.xlane.f32.xlu0 %v3940
      %v3942 = vpop.xlane.xlu0 %3941
      %v3943 = vsel %vm1615, %v3261, -inf
      %3944 = vmax.xlane.f32.xlu0 %v3943
      %v3945 = vpop.xlane.xlu0 %3944
      %v3946 = vsel %vm1615, %v3264, -inf
      %3947 = vmax.xlane.f32.xlu0 %v3946
      %v3948 = vpop.xlane.xlu0 %3947
      %v3949 = vsel %vm1615, %v3269, -inf
      %3950 = vmax.xlane.f32.xlu0 %v3949
      %v3951 = vpop.xlane.xlu0 %3950
      %v3952 = vsel %vm1615, %v3272, -inf
      %3953 = vmax.xlane.f32.xlu0 %v3952
      %v3954 = vpop.xlane.xlu0 %3953
      %v3955 = vsel %vm1615, %v3277, -inf
      %3956 = vmax.xlane.f32.xlu0 %v3955
      %v3957 = vpop.xlane.xlu0 %3956
      %v3958 = vsel %vm1615, %v3280, -inf
      %3959 = vmax.xlane.f32.xlu0 %v3958
      %v3960 = vpop.xlane.xlu0 %3959
      %v3961 = vsel %vm1615, %v3358, -inf
      %3962 = vmax.xlane.f32.xlu0 %v3961
      %v3963 = vpop.xlane.xlu0 %3962
      %v3964 = vsel %vm1615, %v3361, -inf
      %3965 = vmax.xlane.f32.xlu0 %v3964
      %v3966 = vpop.xlane.xlu0 %3965
      %v3967 = vsel %vm1615, %v3366, -inf
      %3968 = vmax.xlane.f32.xlu0 %v3967
      %v3969 = vpop.xlane.xlu0 %3968
      %v3970 = vsel %vm1615, %v3369, -inf
      %3971 = vmax.xlane.f32.xlu0 %v3970
      %v3972 = vpop.xlane.xlu0 %3971
      %v3973 = vsel %vm1615, %v3374, -inf
      %3974 = vmax.xlane.f32.xlu0 %v3973
      %v3975 = vpop.xlane.xlu0 %3974
      %v3976 = vsel %vm1615, %v3377, -inf
      %3977 = vmax.xlane.f32.xlu0 %v3976
      %v3978 = vpop.xlane.xlu0 %3977
      %v3979 = vsel %vm1615, %v3382, -inf
      %3980 = vmax.xlane.f32.xlu0 %v3979
      %v3981 = vpop.xlane.xlu0 %3980
      %v3982 = vsel %vm1615, %v3385, -inf
      %3983 = vmax.xlane.f32.xlu0 %v3982
      %v3984 = vpop.xlane.xlu0 %3983
      %v3985 = vsel %vm1615, %v3463, -inf
      %3986 = vmax.xlane.f32.xlu0 %v3985
      %v3987 = vpop.xlane.xlu0 %3986
      %v3988 = vsel %vm1615, %v3466, -inf
      %3989 = vmax.xlane.f32.xlu0 %v3988
      %v3990 = vpop.xlane.xlu0 %3989
      %v3991 = vsel %vm1615, %v3471, -inf
      %3992 = vmax.xlane.f32.xlu0 %v3991
      %v3993 = vpop.xlane.xlu0 %3992
      %v3994 = vsel %vm1615, %v3474, -inf
      %3995 = vmax.xlane.f32.xlu0 %v3994
      %v3996 = vpop.xlane.xlu0 %3995
      %v3997 = vsel %vm1615, %v3479, -inf
      %3998 = vmax.xlane.f32.xlu0 %v3997
      %v3999 = vpop.xlane.xlu0 %3998
      %v4000 = vsel %vm1615, %v3482, -inf
      %4001 = vmax.xlane.f32.xlu0 %v4000
      %v4002 = vpop.xlane.xlu0 %4001
      %v4003 = vsel %vm1615, %v3487, -inf
      %4004 = vmax.xlane.f32.xlu0 %v4003
      %v4005 = vpop.xlane.xlu0 %4004
      %v4006 = vsel %vm1615, %v3490, -inf
      %4007 = vmax.xlane.f32.xlu0 %v4006
      %v4008 = vpop.xlane.xlu0 %4007
      %v4009 = vsel %vm1615, %v3568, -inf
      %4010 = vmax.xlane.f32.xlu0 %v4009
      %v4011 = vpop.xlane.xlu0 %4010
      %v4012 = vsel %vm1615, %v3571, -inf
      %4013 = vmax.xlane.f32.xlu0 %v4012
      %v4014 = vpop.xlane.xlu0 %4013
      %v4015 = vsel %vm1615, %v3576, -inf
      %4016 = vmax.xlane.f32.xlu0 %v4015
      %v4017 = vpop.xlane.xlu0 %4016
      %v4018 = vsel %vm1615, %v3579, -inf
      %4019 = vmax.xlane.f32.xlu0 %v4018
      %v4020 = vpop.xlane.xlu0 %4019
      %v4021 = vsel %vm1615, %v3584, -inf
      %4022 = vmax.xlane.f32.xlu0 %v4021
      %v4023 = vpop.xlane.xlu0 %4022
      %v4024 = vsel %vm1615, %v3587, -inf
      %4025 = vmax.xlane.f32.xlu0 %v4024
      %v4026 = vpop.xlane.xlu0 %4025
      %v4027 = vsel %vm1615, %v3592, -inf
      %4028 = vmax.xlane.f32.xlu0 %v4027
      %v4029 = vpop.xlane.xlu0 %4028
      %v4030 = vsel %vm1615, %v3595, -inf
      %4031 = vmax.xlane.f32.xlu0 %v4030
      %v4032 = vpop.xlane.xlu0 %4031
      %v4033 = vsel %vm1615, %v3673, -inf
      %4034 = vmax.xlane.f32.xlu0 %v4033
      %v4035 = vpop.xlane.xlu0 %4034
      %v4036 = vsel %vm1615, %v3676, -inf
      %4037 = vmax.xlane.f32.xlu0 %v4036
      %v4038 = vpop.xlane.xlu0 %4037
      %v4039 = vsel %vm1615, %v3681, -inf
      %4040 = vmax.xlane.f32.xlu0 %v4039
      %v4041 = vpop.xlane.xlu0 %4040
      %v4042 = vsel %vm1615, %v3684, -inf
      %4043 = vmax.xlane.f32.xlu0 %v4042
      %v4044 = vpop.xlane.xlu0 %4043
      %v4045 = vsel %vm1615, %v3689, -inf
      %4046 = vmax.xlane.f32.xlu0 %v4045
      %v4047 = vpop.xlane.xlu0 %4046
      %v4048 = vsel %vm1615, %v3692, -inf
      %4049 = vmax.xlane.f32.xlu0 %v4048
      %v4050 = vpop.xlane.xlu0 %4049
      %v4051 = vsel %vm1615, %v3697, -inf
      %4052 = vmax.xlane.f32.xlu0 %v4051
      %v4053 = vpop.xlane.xlu0 %4052
      %v4054 = vsel %vm1615, %v3700, -inf
      %4055 = vmax.xlane.f32.xlu0 %v4054
      %v4056 = vpop.xlane.xlu0 %4055
      %v4057 = vsel %vm1615, %v3778, -inf
      %4058 = vmax.xlane.f32.xlu0 %v4057
      %v4059 = vpop.xlane.xlu0 %4058
      %v4060 = vsel %vm1615, %v3781, -inf
      %4061 = vmax.xlane.f32.xlu0 %v4060
      %v4062 = vpop.xlane.xlu0 %4061
      %v4063 = vsel %vm1615, %v3786, -inf
      %4064 = vmax.xlane.f32.xlu0 %v4063
      %v4065 = vpop.xlane.xlu0 %4064
      %v4066 = vsel %vm1615, %v3789, -inf
      %4067 = vmax.xlane.f32.xlu0 %v4066
      %v4068 = vpop.xlane.xlu0 %4067
      %v4069 = vsel %vm1615, %v3794, -inf
      %4070 = vmax.xlane.f32.xlu0 %v4069
      %v4071 = vpop.xlane.xlu0 %4070
      %v4072 = vsel %vm1615, %v3797, -inf
      %4073 = vmax.xlane.f32.xlu0 %v4072
      %v4074 = vpop.xlane.xlu0 %4073
      %v4075 = vsel %vm1615, %v3802, -inf
      %4076 = vmax.xlane.f32.xlu0 %v4075
      %v4077 = vpop.xlane.xlu0 %4076
      %v4078 = vsel %vm1615, %v3805, -inf
      %4079 = vmax.xlane.f32.xlu0 %v4078
      %v4080 = vpop.xlane.xlu0 %4079
      %v4081 = vsel %vm1615, %v3883, -inf
      %4082 = vmax.xlane.f32.xlu0 %v4081
      %v4083 = vpop.xlane.xlu0 %4082
      %v4084 = vsel %vm1615, %v3886, -inf
      %4085 = vmax.xlane.f32.xlu0 %v4084
      %v4086 = vpop.xlane.xlu0 %4085
      %v4087 = vsel %vm1615, %v3891, -inf
      %4088 = vmax.xlane.f32.xlu0 %v4087
      %v4089 = vpop.xlane.xlu0 %4088
      %v4090 = vsel %vm1615, %v3894, -inf
      %4091 = vmax.xlane.f32.xlu0 %v4090
      %v4092 = vpop.xlane.xlu0 %4091
      %v4093 = vsel %vm1615, %v3899, -inf
      %4094 = vmax.xlane.f32.xlu0 %v4093
      %v4095 = vpop.xlane.xlu0 %4094
      %v4096 = vsel %vm1615, %v3902, -inf
      %4097 = vmax.xlane.f32.xlu0 %v4096
      %v4098 = vpop.xlane.xlu0 %4097
      %v4099 = vsel %vm1615, %v3907, -inf
      %4100 = vmax.xlane.f32.xlu0 %v4099
      %v4101 = vpop.xlane.xlu0 %4100
      %v4102 = vsel %vm1615, %v3910, -inf
      %4103 = vmax.xlane.f32.xlu0 %v4102
      %v4104 = vpop.xlane.xlu0 %4103
      %v4105 = vsub.f32 %v3148, %v3915
      %v4106 = vsub.f32 %v3151, %v3918
      %v4107 = vsub.f32 %v3156, %v3921
      %v4108 = vsub.f32 %v3159, %v3924
      %v4109 = vsub.f32 %v3164, %v3927
      %v4110 = vsub.f32 %v3167, %v3930
      %v4111 = vsub.f32 %v3172, %v3933
      %v4112 = vsub.f32 %v3175, %v3936
      %v4113 = vsub.f32 %v3253, %v3939
      %v4114 = vsub.f32 %v3256, %v3942
      %v4115 = vsub.f32 %v3261, %v3945
      %v4116 = vsub.f32 %v3264, %v3948
      %v4117 = vsub.f32 %v3269, %v3951
      %v4118 = vsub.f32 %v3272, %v3954
      %v4119 = vsub.f32 %v3277, %v3957
      %v4120 = vsub.f32 %v3280, %v3960
      %v4121 = vsub.f32 %v3358, %v3963
      %v4122 = vsub.f32 %v3361, %v3966
      %v4123 = vsub.f32 %v3366, %v3969
      %v4124 = vsub.f32 %v3369, %v3972
      %v4125 = vsub.f32 %v3374, %v3975
      %v4126 = vsub.f32 %v3377, %v3978
      %v4127 = vsub.f32 %v3382, %v3981
      %v4128 = vsub.f32 %v3385, %v3984
      %v4129 = vsub.f32 %v3463, %v3987
      %v4130 = vsub.f32 %v3466, %v3990
      %v4131 = vsub.f32 %v3471, %v3993
      %v4132 = vsub.f32 %v3474, %v3996
      %v4133 = vsub.f32 %v3479, %v3999
      %v4134 = vsub.f32 %v3482, %v4002
      %v4135 = vsub.f32 %v3487, %v4005
      %v4136 = vsub.f32 %v3490, %v4008
      %v4137 = vsub.f32 %v3568, %v4011
      %v4138 = vsub.f32 %v3571, %v4014
      %v4139 = vsub.f32 %v3576, %v4017
      %v4140 = vsub.f32 %v3579, %v4020
      %v4141 = vsub.f32 %v3584, %v4023
      %v4142 = vsub.f32 %v3587, %v4026
      %v4143 = vsub.f32 %v3592, %v4029
      %v4144 = vsub.f32 %v3595, %v4032
      %v4145 = vsub.f32 %v3673, %v4035
      %v4146 = vsub.f32 %v3676, %v4038
      %v4147 = vsub.f32 %v3681, %v4041
      %v4148 = vsub.f32 %v3684, %v4044
      %v4149 = vsub.f32 %v3689, %v4047
      %v4150 = vsub.f32 %v3692, %v4050
      %v4151 = vsub.f32 %v3697, %v4053
      %v4152 = vsub.f32 %v3700, %v4056
      %v4153 = vsub.f32 %v3778, %v4059
      %v4154 = vsub.f32 %v3781, %v4062
      %v4155 = vsub.f32 %v3786, %v4065
      %v4156 = vsub.f32 %v3789, %v4068
      %v4157 = vsub.f32 %v3794, %v4071
      %v4158 = vsub.f32 %v3797, %v4074
      %v4159 = vsub.f32 %v3802, %v4077
      %v4160 = vsub.f32 %v3805, %v4080
      %v4161 = vsub.f32 %v3883, %v4083
      %v4162 = vsub.f32 %v3886, %v4086
      %v4163 = vsub.f32 %v3891, %v4089
      %v4164 = vsub.f32 %v3894, %v4092
      %v4165 = vsub.f32 %v3899, %v4095
      %v4166 = vsub.f32 %v3902, %v4098
      %v4167 = vsub.f32 %v3907, %v4101
      %v4168 = vsub.f32 %v3910, %v4104
      %v4169 = vmul.f32 %v4105, 1.442695
      %v4170 = vpow.pop %v4169
      %v4171 = vmul.f32 %v4106, 1.442695
      %v4172 = vpow.pop %v4171
      %v4173 = vmul.f32 %v4107, 1.442695
      %v4174 = vpow.pop %v4173
      %v4175 = vmul.f32 %v4108, 1.442695
      %v4176 = vpow.pop %v4175
      %v4177 = vmul.f32 %v4109, 1.442695
      %v4178 = vpow.pop %v4177
      %v4179 = vmul.f32 %v4110, 1.442695
      %v4180 = vpow.pop %v4179
      %v4181 = vmul.f32 %v4111, 1.442695
      %v4182 = vpow.pop %v4181
      %v4183 = vmul.f32 %v4112, 1.442695
      %v4184 = vpow.pop %v4183
      %v4185 = vmul.f32 %v4113, 1.442695
      %v4186 = vpow.pop %v4185
      %v4187 = vmul.f32 %v4114, 1.442695
      %v4188 = vpow.pop %v4187
      %v4189 = vmul.f32 %v4115, 1.442695
      %v4190 = vpow.pop %v4189
      %v4191 = vmul.f32 %v4116, 1.442695
      %v4192 = vpow.pop %v4191
      %v4193 = vmul.f32 %v4117, 1.442695
      %v4194 = vpow.pop %v4193
      %v4195 = vmul.f32 %v4118, 1.442695
      %v4196 = vpow.pop %v4195
      %v4197 = vmul.f32 %v4119, 1.442695
      %v4198 = vpow.pop %v4197
      %v4199 = vmul.f32 %v4120, 1.442695
      %v4200 = vpow.pop %v4199
      %v4201 = vmul.f32 %v4121, 1.442695
      %v4202 = vpow.pop %v4201
      %v4203 = vmul.f32 %v4122, 1.442695
      %v4204 = vpow.pop %v4203
      %v4205 = vmul.f32 %v4123, 1.442695
      %v4206 = vpow.pop %v4205
      %v4207 = vmul.f32 %v4124, 1.442695
      %v4208 = vpow.pop %v4207
      %v4209 = vmul.f32 %v4125, 1.442695
      %v4210 = vpow.pop %v4209
      %v4211 = vmul.f32 %v4126, 1.442695
      %v4212 = vpow.pop %v4211
      %v4213 = vmul.f32 %v4127, 1.442695
      %v4214 = vpow.pop %v4213
      %v4215 = vmul.f32 %v4128, 1.442695
      %v4216 = vpow.pop %v4215
      %v4217 = vmul.f32 %v4129, 1.442695
      %v4218 = vpow.pop %v4217
      %v4219 = vmul.f32 %v4130, 1.442695
      %v4220 = vpow.pop %v4219
      %v4221 = vmul.f32 %v4131, 1.442695
      %v4222 = vpow.pop %v4221
      %v4223 = vmul.f32 %v4132, 1.442695
      %v4224 = vpow.pop %v4223
      %v4225 = vmul.f32 %v4133, 1.442695
      %v4226 = vpow.pop %v4225
      %v4227 = vmul.f32 %v4134, 1.442695
      %v4228 = vpow.pop %v4227
      %v4229 = vmul.f32 %v4135, 1.442695
      %v4230 = vpow.pop %v4229
      %v4231 = vmul.f32 %v4136, 1.442695
      %v4232 = vpow.pop %v4231
      %v4233 = vmul.f32 %v4137, 1.442695
      %v4234 = vpow.pop %v4233
      %v4235 = vmul.f32 %v4138, 1.442695
      %v4236 = vpow.pop %v4235
      %v4237 = vmul.f32 %v4139, 1.442695
      %v4238 = vpow.pop %v4237
      %v4239 = vmul.f32 %v4140, 1.442695
      %v4240 = vpow.pop %v4239
      %v4241 = vmul.f32 %v4141, 1.442695
      %v4242 = vpow.pop %v4241
      %v4243 = vmul.f32 %v4142, 1.442695
      %v4244 = vpow.pop %v4243
      %v4245 = vmul.f32 %v4143, 1.442695
      %v4246 = vpow.pop %v4245
      %v4247 = vmul.f32 %v4144, 1.442695
      %v4248 = vpow.pop %v4247
      %v4249 = vmul.f32 %v4145, 1.442695
      %v4250 = vpow.pop %v4249
      %v4251 = vmul.f32 %v4146, 1.442695
      %v4252 = vpow.pop %v4251
      %v4253 = vmul.f32 %v4147, 1.442695
      %v4254 = vpow.pop %v4253
      %v4255 = vmul.f32 %v4148, 1.442695
      %v4256 = vpow.pop %v4255
      %v4257 = vmul.f32 %v4149, 1.442695
      %v4258 = vpow.pop %v4257
      %v4259 = vmul.f32 %v4150, 1.442695
      %v4260 = vpow.pop %v4259
      %v4261 = vmul.f32 %v4151, 1.442695
      %v4262 = vpow.pop %v4261
      %v4263 = vmul.f32 %v4152, 1.442695
      %v4264 = vpow.pop %v4263
      %v4265 = vmul.f32 %v4153, 1.442695
      %v4266 = vpow.pop %v4265
      %v4267 = vmul.f32 %v4154, 1.442695
      %v4268 = vpow.pop %v4267
      %v4269 = vmul.f32 %v4155, 1.442695
      %v4270 = vpow.pop %v4269
      %v4271 = vmul.f32 %v4156, 1.442695
      %v4272 = vpow.pop %v4271
      %v4273 = vmul.f32 %v4157, 1.442695
      %v4274 = vpow.pop %v4273
      %v4275 = vmul.f32 %v4158, 1.442695
      %v4276 = vpow.pop %v4275
      %v4277 = vmul.f32 %v4159, 1.442695
      %v4278 = vpow.pop %v4277
      %v4279 = vmul.f32 %v4160, 1.442695
      %v4280 = vpow.pop %v4279
      %v4281 = vmul.f32 %v4161, 1.442695
      %v4282 = vpow.pop %v4281
      %v4283 = vmul.f32 %v4162, 1.442695
      %v4284 = vpow.pop %v4283
      %v4285 = vmul.f32 %v4163, 1.442695
      %v4286 = vpow.pop %v4285
      %v4287 = vmul.f32 %v4164, 1.442695
      %v4288 = vpow.pop %v4287
      %v4289 = vmul.f32 %v4165, 1.442695
      %v4290 = vpow.pop %v4289
      %v4291 = vmul.f32 %v4166, 1.442695
      %v4292 = vpow.pop %v4291
      %v4293 = vmul.f32 %v4167, 1.442695
      %v4294 = vpow.pop %v4293
      %v4295 = vmul.f32 %v4168, 1.442695
      %v4296 = vpow.pop %v4295
      %v4297 = vsel %vm1615, %v4170, 0.0
      %4298 = vadd.xlane.f32.xlu0 %v4297
      %v4299 = vpop.xlane.xlu0 %4298
      %v4300 = vsel %vm1615, %v4172, 0.0
      %4301 = vadd.xlane.f32.xlu0 %v4300
      %v4302 = vpop.xlane.xlu0 %4301
      %v4303 = vsel %vm1615, %v4174, 0.0
      %4304 = vadd.xlane.f32.xlu0 %v4303
      %v4305 = vpop.xlane.xlu0 %4304
      %v4306 = vsel %vm1615, %v4176, 0.0
      %4307 = vadd.xlane.f32.xlu0 %v4306
      %v4308 = vpop.xlane.xlu0 %4307
      %v4309 = vsel %vm1615, %v4178, 0.0
      %4310 = vadd.xlane.f32.xlu0 %v4309
      %v4311 = vpop.xlane.xlu0 %4310
      %v4312 = vsel %vm1615, %v4180, 0.0
      %4313 = vadd.xlane.f32.xlu0 %v4312
      %v4314 = vpop.xlane.xlu0 %4313
      %v4315 = vsel %vm1615, %v4182, 0.0
      %4316 = vadd.xlane.f32.xlu0 %v4315
      %v4317 = vpop.xlane.xlu0 %4316
      %v4318 = vsel %vm1615, %v4184, 0.0
      %4319 = vadd.xlane.f32.xlu0 %v4318
      %v4320 = vpop.xlane.xlu0 %4319
      %v4321 = vsel %vm1615, %v4186, 0.0
      %4322 = vadd.xlane.f32.xlu0 %v4321
      %v4323 = vpop.xlane.xlu0 %4322
      %v4324 = vsel %vm1615, %v4188, 0.0
      %4325 = vadd.xlane.f32.xlu0 %v4324
      %v4326 = vpop.xlane.xlu0 %4325
      %v4327 = vsel %vm1615, %v4190, 0.0
      %4328 = vadd.xlane.f32.xlu0 %v4327
      %v4329 = vpop.xlane.xlu0 %4328
      %v4330 = vsel %vm1615, %v4192, 0.0
      %4331 = vadd.xlane.f32.xlu0 %v4330
      %v4332 = vpop.xlane.xlu0 %4331
      %v4333 = vsel %vm1615, %v4194, 0.0
      %4334 = vadd.xlane.f32.xlu0 %v4333
      %v4335 = vpop.xlane.xlu0 %4334
      %v4336 = vsel %vm1615, %v4196, 0.0
      %4337 = vadd.xlane.f32.xlu0 %v4336
      %v4338 = vpop.xlane.xlu0 %4337
      %v4339 = vsel %vm1615, %v4198, 0.0
      %4340 = vadd.xlane.f32.xlu0 %v4339
      %v4341 = vpop.xlane.xlu0 %4340
      %v4342 = vsel %vm1615, %v4200, 0.0
      %4343 = vadd.xlane.f32.xlu0 %v4342
      %v4344 = vpop.xlane.xlu0 %4343
      %v4345 = vsel %vm1615, %v4202, 0.0
      %4346 = vadd.xlane.f32.xlu0 %v4345
      %v4347 = vpop.xlane.xlu0 %4346
      %v4348 = vsel %vm1615, %v4204, 0.0
      %4349 = vadd.xlane.f32.xlu0 %v4348
      %v4350 = vpop.xlane.xlu0 %4349
      %v4351 = vsel %vm1615, %v4206, 0.0
      %4352 = vadd.xlane.f32.xlu0 %v4351
      %v4353 = vpop.xlane.xlu0 %4352
      %v4354 = vsel %vm1615, %v4208, 0.0
      %4355 = vadd.xlane.f32.xlu0 %v4354
      %v4356 = vpop.xlane.xlu0 %4355
      %v4357 = vsel %vm1615, %v4210, 0.0
      %4358 = vadd.xlane.f32.xlu0 %v4357
      %v4359 = vpop.xlane.xlu0 %4358
      %v4360 = vsel %vm1615, %v4212, 0.0
      %4361 = vadd.xlane.f32.xlu0 %v4360
      %v4362 = vpop.xlane.xlu0 %4361
      %v4363 = vsel %vm1615, %v4214, 0.0
      %4364 = vadd.xlane.f32.xlu0 %v4363
      %v4365 = vpop.xlane.xlu0 %4364
      %v4366 = vsel %vm1615, %v4216, 0.0
      %4367 = vadd.xlane.f32.xlu0 %v4366
      %v4368 = vpop.xlane.xlu0 %4367
      %v4369 = vsel %vm1615, %v4218, 0.0
      %4370 = vadd.xlane.f32.xlu0 %v4369
      %v4371 = vpop.xlane.xlu0 %4370
      %v4372 = vsel %vm1615, %v4220, 0.0
      %4373 = vadd.xlane.f32.xlu0 %v4372
      %v4374 = vpop.xlane.xlu0 %4373
      %v4375 = vsel %vm1615, %v4222, 0.0
      %4376 = vadd.xlane.f32.xlu0 %v4375
      %v4377 = vpop.xlane.xlu0 %4376
      %v4378 = vsel %vm1615, %v4224, 0.0
      %4379 = vadd.xlane.f32.xlu0 %v4378
      %v4380 = vpop.xlane.xlu0 %4379
      %v4381 = vsel %vm1615, %v4226, 0.0
      %4382 = vadd.xlane.f32.xlu0 %v4381
      %v4383 = vpop.xlane.xlu0 %4382
      %v4384 = vsel %vm1615, %v4228, 0.0
      %4385 = vadd.xlane.f32.xlu0 %v4384
      %v4386 = vpop.xlane.xlu0 %4385
      %v4387 = vsel %vm1615, %v4230, 0.0
      %4388 = vadd.xlane.f32.xlu0 %v4387
      %v4389 = vpop.xlane.xlu0 %4388
      %v4390 = vsel %vm1615, %v4232, 0.0
      %4391 = vadd.xlane.f32.xlu0 %v4390
      %v4392 = vpop.xlane.xlu0 %4391
      %v4393 = vsel %vm1615, %v4234, 0.0
      %4394 = vadd.xlane.f32.xlu0 %v4393
      %v4395 = vpop.xlane.xlu0 %4394
      %v4396 = vsel %vm1615, %v4236, 0.0
      %4397 = vadd.xlane.f32.xlu0 %v4396
      %v4398 = vpop.xlane.xlu0 %4397
      %v4399 = vsel %vm1615, %v4238, 0.0
      %4400 = vadd.xlane.f32.xlu0 %v4399
      %v4401 = vpop.xlane.xlu0 %4400
      %v4402 = vsel %vm1615, %v4240, 0.0
      %4403 = vadd.xlane.f32.xlu0 %v4402
      %v4404 = vpop.xlane.xlu0 %4403
      %v4405 = vsel %vm1615, %v4242, 0.0
      %4406 = vadd.xlane.f32.xlu0 %v4405
      %v4407 = vpop.xlane.xlu0 %4406
      %v4408 = vsel %vm1615, %v4244, 0.0
      %4409 = vadd.xlane.f32.xlu0 %v4408
      %v4410 = vpop.xlane.xlu0 %4409
      %v4411 = vsel %vm1615, %v4246, 0.0
      %4412 = vadd.xlane.f32.xlu0 %v4411
      %v4413 = vpop.xlane.xlu0 %4412
      %v4414 = vsel %vm1615, %v4248, 0.0
      %4415 = vadd.xlane.f32.xlu0 %v4414
      %v4416 = vpop.xlane.xlu0 %4415
      %v4417 = vsel %vm1615, %v4250, 0.0
      %4418 = vadd.xlane.f32.xlu0 %v4417
      %v4419 = vpop.xlane.xlu0 %4418
      %v4420 = vsel %vm1615, %v4252, 0.0
      %4421 = vadd.xlane.f32.xlu0 %v4420
      %v4422 = vpop.xlane.xlu0 %4421
      %v4423 = vsel %vm1615, %v4254, 0.0
      %4424 = vadd.xlane.f32.xlu0 %v4423
      %v4425 = vpop.xlane.xlu0 %4424
      %v4426 = vsel %vm1615, %v4256, 0.0
      %4427 = vadd.xlane.f32.xlu0 %v4426
      %v4428 = vpop.xlane.xlu0 %4427
      %v4429 = vsel %vm1615, %v4258, 0.0
      %4430 = vadd.xlane.f32.xlu0 %v4429
      %v4431 = vpop.xlane.xlu0 %4430
      %v4432 = vsel %vm1615, %v4260, 0.0
      %4433 = vadd.xlane.f32.xlu0 %v4432
      %v4434 = vpop.xlane.xlu0 %4433
      %v4435 = vsel %vm1615, %v4262, 0.0
      %4436 = vadd.xlane.f32.xlu0 %v4435
      %v4437 = vpop.xlane.xlu0 %4436
      %v4438 = vsel %vm1615, %v4264, 0.0
      %4439 = vadd.xlane.f32.xlu0 %v4438
      %v4440 = vpop.xlane.xlu0 %4439
      %v4441 = vsel %vm1615, %v4266, 0.0
      %4442 = vadd.xlane.f32.xlu0 %v4441
      %v4443 = vpop.xlane.xlu0 %4442
      %v4444 = vsel %vm1615, %v4268, 0.0
      %4445 = vadd.xlane.f32.xlu0 %v4444
      %v4446 = vpop.xlane.xlu0 %4445
      %v4447 = vsel %vm1615, %v4270, 0.0
      %4448 = vadd.xlane.f32.xlu0 %v4447
      %v4449 = vpop.xlane.xlu0 %4448
      %v4450 = vsel %vm1615, %v4272, 0.0
      %4451 = vadd.xlane.f32.xlu0 %v4450
      %v4452 = vpop.xlane.xlu0 %4451
      %v4453 = vsel %vm1615, %v4274, 0.0
      %4454 = vadd.xlane.f32.xlu0 %v4453
      %v4455 = vpop.xlane.xlu0 %4454
      %v4456 = vsel %vm1615, %v4276, 0.0
      %4457 = vadd.xlane.f32.xlu0 %v4456
      %v4458 = vpop.xlane.xlu0 %4457
      %v4459 = vsel %vm1615, %v4278, 0.0
      %4460 = vadd.xlane.f32.xlu0 %v4459
      %v4461 = vpop.xlane.xlu0 %4460
      %v4462 = vsel %vm1615, %v4280, 0.0
      %4463 = vadd.xlane.f32.xlu0 %v4462
      %v4464 = vpop.xlane.xlu0 %4463
      %v4465 = vsel %vm1615, %v4282, 0.0
      %4466 = vadd.xlane.f32.xlu0 %v4465
      %v4467 = vpop.xlane.xlu0 %4466
      %v4468 = vsel %vm1615, %v4284, 0.0
      %4469 = vadd.xlane.f32.xlu0 %v4468
      %v4470 = vpop.xlane.xlu0 %4469
      %v4471 = vsel %vm1615, %v4286, 0.0
      %4472 = vadd.xlane.f32.xlu0 %v4471
      %v4473 = vpop.xlane.xlu0 %4472
      %v4474 = vsel %vm1615, %v4288, 0.0
      %4475 = vadd.xlane.f32.xlu0 %v4474
      %v4476 = vpop.xlane.xlu0 %4475
      %v4477 = vsel %vm1615, %v4290, 0.0
      %4478 = vadd.xlane.f32.xlu0 %v4477
      %v4479 = vpop.xlane.xlu0 %4478
      %v4480 = vsel %vm1615, %v4292, 0.0
      %4481 = vadd.xlane.f32.xlu0 %v4480
      %v4482 = vpop.xlane.xlu0 %4481
      %v4483 = vsel %vm1615, %v4294, 0.0
      %4484 = vadd.xlane.f32.xlu0 %v4483
      %v4485 = vpop.xlane.xlu0 %4484
      %v4486 = vsel %vm1615, %v4296, 0.0
      %4487 = vadd.xlane.f32.xlu0 %v4486
      %v4488 = vpop.xlane.xlu0 %4487
      %v4489 = vrcp.pop %v4299
      %v4490 = vrcp.pop %v4302
      %v4491 = vrcp.pop %v4305
      %v4492 = vrcp.pop %v4308
      %v4493 = vrcp.pop %v4311
      %v4494 = vrcp.pop %v4314
      %v4495 = vrcp.pop %v4317
      %v4496 = vrcp.pop %v4320
      %v4497 = vrcp.pop %v4323
      %v4498 = vrcp.pop %v4326
      %v4499 = vrcp.pop %v4329
      %v4500 = vrcp.pop %v4332
      %v4501 = vrcp.pop %v4335
      %v4502 = vrcp.pop %v4338
      %v4503 = vrcp.pop %v4341
      %v4504 = vrcp.pop %v4344
      %v4505 = vrcp.pop %v4347
      %v4506 = vrcp.pop %v4350
      %v4507 = vrcp.pop %v4353
      %v4508 = vrcp.pop %v4356
      %v4509 = vrcp.pop %v4359
      %v4510 = vrcp.pop %v4362
      %v4511 = vrcp.pop %v4365
      %v4512 = vrcp.pop %v4368
      %v4513 = vrcp.pop %v4371
      %v4514 = vrcp.pop %v4374
      %v4515 = vrcp.pop %v4377
      %v4516 = vrcp.pop %v4380
      %v4517 = vrcp.pop %v4383
      %v4518 = vrcp.pop %v4386
      %v4519 = vrcp.pop %v4389
      %v4520 = vrcp.pop %v4392
      %v4521 = vrcp.pop %v4395
      %v4522 = vrcp.pop %v4398
      %v4523 = vrcp.pop %v4401
      %v4524 = vrcp.pop %v4404
      %v4525 = vrcp.pop %v4407
      %v4526 = vrcp.pop %v4410
      %v4527 = vrcp.pop %v4413
      %v4528 = vrcp.pop %v4416
      %v4529 = vrcp.pop %v4419
      %v4530 = vrcp.pop %v4422
      %v4531 = vrcp.pop %v4425
      %v4532 = vrcp.pop %v4428
      %v4533 = vrcp.pop %v4431
      %v4534 = vrcp.pop %v4434
      %v4535 = vrcp.pop %v4437
      %v4536 = vrcp.pop %v4440
      %v4537 = vrcp.pop %v4443
      %v4538 = vrcp.pop %v4446
      %v4539 = vrcp.pop %v4449
      %v4540 = vrcp.pop %v4452
      %v4541 = vrcp.pop %v4455
      %v4542 = vrcp.pop %v4458
      %v4543 = vrcp.pop %v4461
      %v4544 = vrcp.pop %v4464
      %v4545 = vrcp.pop %v4467
      %v4546 = vrcp.pop %v4470
      %v4547 = vrcp.pop %v4473
      %v4548 = vrcp.pop %v4476
      %v4549 = vrcp.pop %v4479
      %v4550 = vrcp.pop %v4482
      %v4551 = vrcp.pop %v4485
      %v4552 = vrcp.pop %v4488
      %v4553 = vmul.f32 %v4170, %v4489
      %v4554 = vmul.f32 %v4172, %v4490
      %v4555 = vmul.f32 %v4174, %v4491
      %v4556 = vmul.f32 %v4176, %v4492
      %v4557 = vmul.f32 %v4178, %v4493
      %v4558 = vmul.f32 %v4180, %v4494
      %v4559 = vmul.f32 %v4182, %v4495
      %v4560 = vmul.f32 %v4184, %v4496
      %v4561 = vmul.f32 %v4186, %v4497
      %v4562 = vmul.f32 %v4188, %v4498
      %v4563 = vmul.f32 %v4190, %v4499
      %v4564 = vmul.f32 %v4192, %v4500
      %v4565 = vmul.f32 %v4194, %v4501
      %v4566 = vmul.f32 %v4196, %v4502
      %v4567 = vmul.f32 %v4198, %v4503
      %v4568 = vmul.f32 %v4200, %v4504
      %v4569 = vmul.f32 %v4202, %v4505
      %v4570 = vmul.f32 %v4204, %v4506
      %v4571 = vmul.f32 %v4206, %v4507
      %v4572 = vmul.f32 %v4208, %v4508
      %v4573 = vmul.f32 %v4210, %v4509
      %v4574 = vmul.f32 %v4212, %v4510
      %v4575 = vmul.f32 %v4214, %v4511
      %v4576 = vmul.f32 %v4216, %v4512
      %v4577 = vmul.f32 %v4218, %v4513
      %v4578 = vmul.f32 %v4220, %v4514
      %v4579 = vmul.f32 %v4222, %v4515
      %v4580 = vmul.f32 %v4224, %v4516
      %v4581 = vmul.f32 %v4226, %v4517
      %v4582 = vmul.f32 %v4228, %v4518
      %v4583 = vmul.f32 %v4230, %v4519
      %v4584 = vmul.f32 %v4232, %v4520
      %v4585 = vmul.f32 %v4234, %v4521
      %v4586 = vmul.f32 %v4236, %v4522
      %v4587 = vmul.f32 %v4238, %v4523
      %v4588 = vmul.f32 %v4240, %v4524
      %v4589 = vmul.f32 %v4242, %v4525
      %v4590 = vmul.f32 %v4244, %v4526
      %v4591 = vmul.f32 %v4246, %v4527
      %v4592 = vmul.f32 %v4248, %v4528
      %v4593 = vmul.f32 %v4250, %v4529
      %v4594 = vmul.f32 %v4252, %v4530
      %v4595 = vmul.f32 %v4254, %v4531
      %v4596 = vmul.f32 %v4256, %v4532
      %v4597 = vmul.f32 %v4258, %v4533
      %v4598 = vmul.f32 %v4260, %v4534
      %v4599 = vmul.f32 %v4262, %v4535
      %v4600 = vmul.f32 %v4264, %v4536
      %v4601 = vmul.f32 %v4266, %v4537
      %v4602 = vmul.f32 %v4268, %v4538
      %v4603 = vmul.f32 %v4270, %v4539
      %v4604 = vmul.f32 %v4272, %v4540
      %v4605 = vmul.f32 %v4274, %v4541
      %v4606 = vmul.f32 %v4276, %v4542
      %v4607 = vmul.f32 %v4278, %v4543
      %v4608 = vmul.f32 %v4280, %v4544
      %v4609 = vmul.f32 %v4282, %v4545
      %v4610 = vmul.f32 %v4284, %v4546
      %v4611 = vmul.f32 %v4286, %v4547
      %v4612 = vmul.f32 %v4288, %v4548
      %v4613 = vmul.f32 %v4290, %v4549
      %v4614 = vmul.f32 %v4292, %v4550
      %v4615 = vmul.f32 %v4294, %v4551
      %v4616 = vmul.f32 %v4296, %v4552
      %v4617 = vpack.c.bf16 %v4554, %v4553
      %v4618 = vpack.c.bf16 %v4556, %v4555
      %v4619 = vpack.c.bf16 %v4558, %v4557
      %v4620 = vpack.c.bf16 %v4560, %v4559
      %v4621 = vpack.c.bf16 %v4562, %v4561
      %v4622 = vpack.c.bf16 %v4564, %v4563
      %v4623 = vpack.c.bf16 %v4566, %v4565
      %v4624 = vpack.c.bf16 %v4568, %v4567
      %v4625 = vpack.c.bf16 %v4570, %v4569
      %v4626 = vpack.c.bf16 %v4572, %v4571
      %v4627 = vpack.c.bf16 %v4574, %v4573
      %v4628 = vpack.c.bf16 %v4576, %v4575
      %v4629 = vpack.c.bf16 %v4578, %v4577
      %v4630 = vpack.c.bf16 %v4580, %v4579
      %v4631 = vpack.c.bf16 %v4582, %v4581
      %v4632 = vpack.c.bf16 %v4584, %v4583
      %v4633 = vpack.c.bf16 %v4586, %v4585
      %v4634 = vpack.c.bf16 %v4588, %v4587
      %v4635 = vpack.c.bf16 %v4590, %v4589
      %v4636 = vpack.c.bf16 %v4592, %v4591
      %v4637 = vpack.c.bf16 %v4594, %v4593
      %v4638 = vpack.c.bf16 %v4596, %v4595
      %v4639 = vpack.c.bf16 %v4598, %v4597
      %v4640 = vpack.c.bf16 %v4600, %v4599
      %v4641 = vpack.c.bf16 %v4602, %v4601
      %v4642 = vpack.c.bf16 %v4604, %v4603
      %v4643 = vpack.c.bf16 %v4606, %v4605
      %v4644 = vpack.c.bf16 %v4608, %v4607
      %v4645 = vpack.c.bf16 %v4610, %v4609
      %v4646 = vpack.c.bf16 %v4612, %v4611
      %v4647 = vpack.c.bf16 %v4614, %v4613
      %v4648 = vpack.c.bf16 %v4616, %v4615
      %4649 = vrot.lane.b32.xlu0 %v766, 56
      %v4650 = vpop.permute.xlu0 %4649
      %4651 = vrot.lane.b32.xlu0 %v767, 56
      %v4652 = vpop.permute.xlu0 %4651
      %4653 = vrot.lane.b32.xlu0 %v768, 56
      %v4654 = vpop.permute.xlu0 %4653
      %4655 = vrot.lane.b32.xlu0 %v769, 56
      %v4656 = vpop.permute.xlu0 %4655
      %v4662 = vsel %vm1615, %v4617, 0
      %v4665 = vsel %vm1615, %v4618, 0
      %v4668 = vsel %vm1615, %v4619, 0
      %v4671 = vsel %vm1615, %v4620, 0
      %4673 = vmatprep.subr.bf16.mxu0 0
      %4674 = vmatpush1.bf16.msra.mxu0 %v4650
      %4675 = vmatprep.subr.bf16.mxu0 0
      %4676 = vmatpush1.bf16.msra.mxu0 %v4652
      %4677 = vmatprep.subr.bf16.mxu0 0
      %4678 = vmatpush1.bf16.msra.mxu0 %v4654
      %4679 = vmatprep.subr.bf16.mxu0 0
      %4680 = vmatpush1.bf16.msra.mxu0 %v4656
      %4681 = vmatprep.subr.bf16.mxu0 0
      %4682 = vmatpush1.bf16.msra.mxu0 0
      %4683 = vmatprep.subr.bf16.mxu0 0
      %4684 = vmatpush1.bf16.msra.mxu0 0
      %4685 = vmatprep.subr.bf16.mxu0 0
      %4686 = vmatpush1.bf16.msra.mxu0 0
      %4687 = vmatprep.subr.bf16.mxu0 0
      %4688 = vmatpush1.bf16.msra.mxu0 0
      %4689 = vmatprep.subr.bf16.mxu0 0
      %4690 = vmatpush1.bf16.msra.mxu0 0
      %4691 = vmatprep.subr.bf16.mxu0 0
      %4692 = vmatpush1.bf16.msra.mxu0 0
      %4693 = vmatprep.subr.bf16.mxu0 0
      %4694 = vmatpush1.bf16.msra.mxu0 0
      %4695 = vmatprep.subr.bf16.mxu0 0
      %4696 = vmatpush1.bf16.msra.mxu0 0
      %4697 = vmatprep.subr.bf16.mxu0 0
      %4698 = vmatpush1.bf16.msra.mxu0 0
      %4699 = vmatprep.subr.bf16.mxu0 0
      %4700 = vmatpush1.bf16.msra.mxu0 0
      %4701 = vmatprep.subr.bf16.mxu0 0
      %4702 = vmatpush1.bf16.msra.mxu0 0
      %4703 = vmatprep.subr.bf16.mxu0 0
      %4704 = vmatpush1.bf16.msra.mxu0 0
      %4705 = vmatprep.mubr.bf16.mxu0 0
      %4706 = vmatmul.mubr.bf16.gmra.mrb[0].mxu0 %v4662
      %v4707 = vpop.f32.mrb[0].mxu0
      %v4708 = vadd.f32 0.0, %v4707
      %v4709 = vpop.f32.mrb[0].mxu0
      %v4710 = vpop.f32.mrb[0].mxu0
      %v4711 = vadd.f32 0.0, %v4710
      %v4712 = vpop.f32.mrb[0].mxu0
      %4713 = vmatprep.mubr.bf16.mxu0 0
      %4714 = vmatmul.mubr.bf16.gmra.mrb[0].mxu0 %v4665
      %v4715 = vpop.f32.mrb[0].mxu0
      %v4716 = vadd.f32 0.0, %v4715
      %v4717 = vpop.f32.mrb[0].mxu0
      %v4718 = vpop.f32.mrb[0].mxu0
      %v4719 = vadd.f32 0.0, %v4718
      %v4720 = vpop.f32.mrb[0].mxu0
      %4721 = vmatprep.mubr.bf16.mxu0 0
      %4722 = vmatmul.mubr.bf16.gmra.mrb[0].mxu0 %v4668
      %v4723 = vpop.f32.mrb[0].mxu0
      %v4724 = vadd.f32 0.0, %v4723
      %v4725 = vpop.f32.mrb[0].mxu0
      %v4726 = vpop.f32.mrb[0].mxu0
      %v4727 = vadd.f32 0.0, %v4726
      %v4728 = vpop.f32.mrb[0].mxu0
      %4729 = vmatprep.mubr.bf16.mxu0 0
      %4730 = vmatmul.mubr.bf16.gmra.mrb[0].mxu0 %v4671
      %v4731 = vpop.f32.mrb[0].mxu0
      %v4732 = vadd.f32 0.0, %v4731
      %v4733 = vpop.f32.mrb[0].mxu0
      %v4734 = vpop.f32.mrb[0].mxu0
      %v4735 = vadd.f32 0.0, %v4734
      %v4736 = vpop.f32.mrb[0].mxu0
      %4737 = vdwg.mxu0
      %4738 = vrot.lane.b32.xlu0 %v770, 56
      %v4739 = vpop.permute.xlu0 %4738
      %4740 = vrot.lane.b32.xlu0 %v771, 56
      %v4741 = vpop.permute.xlu0 %4740
      %4742 = vrot.lane.b32.xlu0 %v772, 56
      %v4743 = vpop.permute.xlu0 %4742
      %4744 = vrot.lane.b32.xlu0 %v773, 56
      %v4745 = vpop.permute.xlu0 %4744
      %v4751 = vsel %vm1615, %v4621, 0
      %v4754 = vsel %vm1615, %v4622, 0
      %v4757 = vsel %vm1615, %v4623, 0
      %v4760 = vsel %vm1615, %v4624, 0
      %4762 = vmatprep.subr.bf16.mxu0 0
      %4763 = vmatpush1.bf16.msra.mxu0 %v4739
      %4764 = vmatprep.subr.bf16.mxu0 0
      %4765 = vmatpush1.bf16.msra.mxu0 %v4741
      %4766 = vmatprep.subr.bf16.mxu0 0
      %4767 = vmatpush1.bf16.msra.mxu0 %v4743
      %4768 = vmatprep.subr.bf16.mxu0 0
      %4769 = vmatpush1.bf16.msra.mxu0 %v4745
      %4770 = vmatprep.subr.bf16.mxu0 0
      %4771 = vmatpush1.bf16.msra.mxu0 0
      %4772 = vmatprep.subr.bf16.mxu0 0
      %4773 = vmatpush1.bf16.msra.mxu0 0
      %4774 = vmatprep.subr.bf16.mxu0 0
      %4775 = vmatpush1.bf16.msra.mxu0 0
      %4776 = vmatprep.subr.bf16.mxu0 0
      %4777 = vmatpush1.bf16.msra.mxu0 0
      %4778 = vmatprep.subr.bf16.mxu0 0
      %4779 = vmatpush1.bf16.msra.mxu0 0
      %4780 = vmatprep.subr.bf16.mxu0 0
      %4781 = vmatpush1.bf16.msra.mxu0 0
      %4782 = vmatprep.subr.bf16.mxu0 0
      %4783 = vmatpush1.bf16.msra.mxu0 0
      %4784 = vmatprep.subr.bf16.mxu0 0
      %4785 = vmatpush1.bf16.msra.mxu0 0
      %4786 = vmatprep.subr.bf16.mxu0 0
      %4787 = vmatpush1.bf16.msra.mxu0 0
      %4788 = vmatprep.subr.bf16.mxu0 0
      %4789 = vmatpush1.bf16.msra.mxu0 0
      %4790 = vmatprep.subr.bf16.mxu0 0
      %4791 = vmatpush1.bf16.msra.mxu0 0
      %4792 = vmatprep.subr.bf16.mxu0 0
      %4793 = vmatpush1.bf16.msra.mxu0 0
      %4794 = vmatprep.mubr.bf16.mxu0 0
      %4795 = vmatmul.mubr.bf16.gmra.mrb[0].mxu0 %v4751
      %v4796 = vpop.f32.mrb[0].mxu0
      %v4797 = vadd.f32 0.0, %v4796
      %v4798 = vpop.f32.mrb[0].mxu0
      %v4799 = vpop.f32.mrb[0].mxu0
      %v4800 = vadd.f32 0.0, %v4799
      %v4801 = vpop.f32.mrb[0].mxu0
      %4802 = vmatprep.mubr.bf16.mxu0 0
      %4803 = vmatmul.mubr.bf16.gmra.mrb[0].mxu0 %v4754
      %v4804 = vpop.f32.mrb[0].mxu0
      %v4805 = vadd.f32 0.0, %v4804
      %v4806 = vpop.f32.mrb[0].mxu0
      %v4807 = vpop.f32.mrb[0].mxu0
      %v4808 = vadd.f32 0.0, %v4807
      %v4809 = vpop.f32.mrb[0].mxu0
      %4810 = vmatprep.mubr.bf16.mxu0 0
      %4811 = vmatmul.mubr.bf16.gmra.mrb[0].mxu0 %v4757
      %v4812 = vpop.f32.mrb[0].mxu0
      %v4813 = vadd.f32 0.0, %v4812
      %v4814 = vpop.f32.mrb[0].mxu0
      %v4815 = vpop.f32.mrb[0].mxu0
      %v4816 = vadd.f32 0.0, %v4815
      %v4817 = vpop.f32.mrb[0].mxu0
      %4818 = vmatprep.mubr.bf16.mxu0 0
      %4819 = vmatmul.mubr.bf16.gmra.mrb[0].mxu0 %v4760
      %v4820 = vpop.f32.mrb[0].mxu0
      %v4821 = vadd.f32 0.0, %v4820
      %v4822 = vpop.f32.mrb[0].mxu0
      %v4823 = vpop.f32.mrb[0].mxu0
      %v4824 = vadd.f32 0.0, %v4823
      %v4825 = vpop.f32.mrb[0].mxu0
      %4826 = vdwg.mxu0
      %4827 = vrot.lane.b32.xlu0 %v774, 56
      %v4828 = vpop.permute.xlu0 %4827
      %4829 = vrot.lane.b32.xlu0 %v775, 56
      %v4830 = vpop.permute.xlu0 %4829
      %4831 = vrot.lane.b32.xlu0 %v776, 56
      %v4832 = vpop.permute.xlu0 %4831
      %4833 = vrot.lane.b32.xlu0 %v777, 56
      %v4834 = vpop.permute.xlu0 %4833
      %v4840 = vsel %vm1615, %v4625, 0
      %v4843 = vsel %vm1615, %v4626, 0
      %v4846 = vsel %vm1615, %v4627, 0
      %v4849 = vsel %vm1615, %v4628, 0
      %4851 = vmatprep.subr.bf16.mxu0 0
      %4852 = vmatpush1.bf16.msra.mxu0 %v4828
      %4853 = vmatprep.subr.bf16.mxu0 0
      %4854 = vmatpush1.bf16.msra.mxu0 %v4830
      %4855 = vmatprep.subr.bf16.mxu0 0
      %4856 = vmatpush1.bf16.msra.mxu0 %v4832
      %4857 = vmatprep.subr.bf16.mxu0 0
      %4858 = vmatpush1.bf16.msra.mxu0 %v4834
      %4859 = vmatprep.subr.bf16.mxu0 0
      %4860 = vmatpush1.bf16.msra.mxu0 0
      %4861 = vmatprep.subr.bf16.mxu0 0
      %4862 = vmatpush1.bf16.msra.mxu0 0
      %4863 = vmatprep.subr.bf16.mxu0 0
      %4864 = vmatpush1.bf16.msra.mxu0 0
      %4865 = vmatprep.subr.bf16.mxu0 0
      %4866 = vmatpush1.bf16.msra.mxu0 0
      %4867 = vmatprep.subr.bf16.mxu0 0
      %4868 = vmatpush1.bf16.msra.mxu0 0
      %4869 = vmatprep.subr.bf16.mxu0 0
      %4870 = vmatpush1.bf16.msra.mxu0 0
      %4871 = vmatprep.subr.bf16.mxu0 0
      %4872 = vmatpush1.bf16.msra.mxu0 0
      %4873 = vmatprep.subr.bf16.mxu0 0
      %4874 = vmatpush1.bf16.msra.mxu0 0
      %4875 = vmatprep.subr.bf16.mxu0 0
      %4876 = vmatpush1.bf16.msra.mxu0 0
      %4877 = vmatprep.subr.bf16.mxu0 0
      %4878 = vmatpush1.bf16.msra.mxu0 0
      %4879 = vmatprep.subr.bf16.mxu0 0
      %4880 = vmatpush1.bf16.msra.mxu0 0
      %4881 = vmatprep.subr.bf16.mxu0 0
      %4882 = vmatpush1.bf16.msra.mxu0 0
      %4883 = vmatprep.mubr.bf16.mxu0 0
      %4884 = vmatmul.mubr.bf16.gmra.mrb[0].mxu0 %v4840
      %v4885 = vpop.f32.mrb[0].mxu0
      %v4886 = vadd.f32 0.0, %v4885
      %v4887 = vpop.f32.mrb[0].mxu0
      %v4888 = vpop.f32.mrb[0].mxu0
      %v4889 = vadd.f32 0.0, %v4888
      %v4890 = vpop.f32.mrb[0].mxu0
      %4891 = vmatprep.mubr.bf16.mxu0 0
      %4892 = vmatmul.mubr.bf16.gmra.mrb[0].mxu0 %v4843
      %v4893 = vpop.f32.mrb[0].mxu0
      %v4894 = vadd.f32 0.0, %v4893
      %v4895 = vpop.f32.mrb[0].mxu0
      %v4896 = vpop.f32.mrb[0].mxu0
      %v4897 = vadd.f32 0.0, %v4896
      %v4898 = vpop.f32.mrb[0].mxu0
      %4899 = vmatprep.mubr.bf16.mxu0 0
      %4900 = vmatmul.mubr.bf16.gmra.mrb[0].mxu0 %v4846
      %v4901 = vpop.f32.mrb[0].mxu0
      %v4902 = vadd.f32 0.0, %v4901
      %v4903 = vpop.f32.mrb[0].mxu0
      %v4904 = vpop.f32.mrb[0].mxu0
      %v4905 = vadd.f32 0.0, %v4904
      %v4906 = vpop.f32.mrb[0].mxu0
      %4907 = vmatprep.mubr.bf16.mxu0 0
      %4908 = vmatmul.mubr.bf16.gmra.mrb[0].mxu0 %v4849
      %v4909 = vpop.f32.mrb[0].mxu0
      %v4910 = vadd.f32 0.0, %v4909
      %v4911 = vpop.f32.mrb[0].mxu0
      %v4912 = vpop.f32.mrb[0].mxu0
      %v4913 = vadd.f32 0.0, %v4912
      %v4914 = vpop.f32.mrb[0].mxu0
      %4915 = vdwg.mxu0
      %4916 = vrot.lane.b32.xlu0 %v778, 56
      %v4917 = vpop.permute.xlu0 %4916
      %4918 = vrot.lane.b32.xlu0 %v779, 56
      %v4919 = vpop.permute.xlu0 %4918
      %4920 = vrot.lane.b32.xlu0 %v780, 56
      %v4921 = vpop.permute.xlu0 %4920
      %4922 = vrot.lane.b32.xlu0 %v781, 56
      %v4923 = vpop.permute.xlu0 %4922
      %v4929 = vsel %vm1615, %v4629, 0
      %v4932 = vsel %vm1615, %v4630, 0
      %v4935 = vsel %vm1615, %v4631, 0
      %v4938 = vsel %vm1615, %v4632, 0
      %4940 = vmatprep.subr.bf16.mxu0 0
      %4941 = vmatpush1.bf16.msra.mxu0 %v4917
      %4942 = vmatprep.subr.bf16.mxu0 0
      %4943 = vmatpush1.bf16.msra.mxu0 %v4919
      %4944 = vmatprep.subr.bf16.mxu0 0
      %4945 = vmatpush1.bf16.msra.mxu0 %v4921
      %4946 = vmatprep.subr.bf16.mxu0 0
      %4947 = vmatpush1.bf16.msra.mxu0 %v4923
      %4948 = vmatprep.subr.bf16.mxu0 0
      %4949 = vmatpush1.bf16.msra.mxu0 0
      %4950 = vmatprep.subr.bf16.mxu0 0
      %4951 = vmatpush1.bf16.msra.mxu0 0
      %4952 = vmatprep.subr.bf16.mxu0 0
      %4953 = vmatpush1.bf16.msra.mxu0 0
      %4954 = vmatprep.subr.bf16.mxu0 0
      %4955 = vmatpush1.bf16.msra.mxu0 0
      %4956 = vmatprep.subr.bf16.mxu0 0
      %4957 = vmatpush1.bf16.msra.mxu0 0
      %4958 = vmatprep.subr.bf16.mxu0 0
      %4959 = vmatpush1.bf16.msra.mxu0 0
      %4960 = vmatprep.subr.bf16.mxu0 0
      %4961 = vmatpush1.bf16.msra.mxu0 0
      %4962 = vmatprep.subr.bf16.mxu0 0
      %4963 = vmatpush1.bf16.msra.mxu0 0
      %4964 = vmatprep.subr.bf16.mxu0 0
      %4965 = vmatpush1.bf16.msra.mxu0 0
      %4966 = vmatprep.subr.bf16.mxu0 0
      %4967 = vmatpush1.bf16.msra.mxu0 0
      %4968 = vmatprep.subr.bf16.mxu0 0
      %4969 = vmatpush1.bf16.msra.mxu0 0
      %4970 = vmatprep.subr.bf16.mxu0 0
      %4971 = vmatpush1.bf16.msra.mxu0 0
      %4972 = vmatprep.mubr.bf16.mxu0 0
      %4973 = vmatmul.mubr.bf16.gmra.mrb[0].mxu0 %v4929
      %v4974 = vpop.f32.mrb[0].mxu0
      %v4975 = vadd.f32 0.0, %v4974
      %v4976 = vpop.f32.mrb[0].mxu0
      %v4977 = vpop.f32.mrb[0].mxu0
      %v4978 = vadd.f32 0.0, %v4977
      %v4979 = vpop.f32.mrb[0].mxu0
      %4980 = vmatprep.mubr.bf16.mxu0 0
      %4981 = vmatmul.mubr.bf16.gmra.mrb[0].mxu0 %v4932
      %v4982 = vpop.f32.mrb[0].mxu0
      %v4983 = vadd.f32 0.0, %v4982
      %v4984 = vpop.f32.mrb[0].mxu0
      %v4985 = vpop.f32.mrb[0].mxu0
      %v4986 = vadd.f32 0.0, %v4985
      %v4987 = vpop.f32.mrb[0].mxu0
      %4988 = vmatprep.mubr.bf16.mxu0 0
      %4989 = vmatmul.mubr.bf16.gmra.mrb[0].mxu0 %v4935
      %v4990 = vpop.f32.mrb[0].mxu0
      %v4991 = vadd.f32 0.0, %v4990
      %v4992 = vpop.f32.mrb[0].mxu0
      %v4993 = vpop.f32.mrb[0].mxu0
      %v4994 = vadd.f32 0.0, %v4993
      %v4995 = vpop.f32.mrb[0].mxu0
      %4996 = vmatprep.mubr.bf16.mxu0 0
      %4997 = vmatmul.mubr.bf16.gmra.mrb[0].mxu0 %v4938
      %v4998 = vpop.f32.mrb[0].mxu0
      %v4999 = vadd.f32 0.0, %v4998
      %v5000 = vpop.f32.mrb[0].mxu0
      %v5001 = vpop.f32.mrb[0].mxu0
      %v5002 = vadd.f32 0.0, %v5001
      %v5003 = vpop.f32.mrb[0].mxu0
      %5004 = vdwg.mxu0
      %5005 = vrot.lane.b32.xlu0 %v782, 56
      %v5006 = vpop.permute.xlu0 %5005
      %5007 = vrot.lane.b32.xlu0 %v783, 56
      %v5008 = vpop.permute.xlu0 %5007
      %5009 = vrot.lane.b32.xlu0 %v784, 56
      %v5010 = vpop.permute.xlu0 %5009
      %5011 = vrot.lane.b32.xlu0 %v785, 56
      %v5012 = vpop.permute.xlu0 %5011
      %v5018 = vsel %vm1615, %v4633, 0
      %v5021 = vsel %vm1615, %v4634, 0
      %v5024 = vsel %vm1615, %v4635, 0
      %v5027 = vsel %vm1615, %v4636, 0
      %5029 = vmatprep.subr.bf16.mxu0 0
      %5030 = vmatpush1.bf16.msra.mxu0 %v5006
      %5031 = vmatprep.subr.bf16.mxu0 0
      %5032 = vmatpush1.bf16.msra.mxu0 %v5008
      %5033 = vmatprep.subr.bf16.mxu0 0
      %5034 = vmatpush1.bf16.msra.mxu0 %v5010
      %5035 = vmatprep.subr.bf16.mxu0 0
      %5036 = vmatpush1.bf16.msra.mxu0 %v5012
      %5037 = vmatprep.subr.bf16.mxu0 0
      %5038 = vmatpush1.bf16.msra.mxu0 0
      %5039 = vmatprep.subr.bf16.mxu0 0
      %5040 = vmatpush1.bf16.msra.mxu0 0
      %5041 = vmatprep.subr.bf16.mxu0 0
      %5042 = vmatpush1.bf16.msra.mxu0 0
      %5043 = vmatprep.subr.bf16.mxu0 0
      %5044 = vmatpush1.bf16.msra.mxu0 0
      %5045 = vmatprep.subr.bf16.mxu0 0
      %5046 = vmatpush1.bf16.msra.mxu0 0
      %5047 = vmatprep.subr.bf16.mxu0 0
      %5048 = vmatpush1.bf16.msra.mxu0 0
      %5049 = vmatprep.subr.bf16.mxu0 0
      %5050 = vmatpush1.bf16.msra.mxu0 0
      %5051 = vmatprep.subr.bf16.mxu0 0
      %5052 = vmatpush1.bf16.msra.mxu0 0
      %5053 = vmatprep.subr.bf16.mxu0 0
      %5054 = vmatpush1.bf16.msra.mxu0 0
      %5055 = vmatprep.subr.bf16.mxu0 0
      %5056 = vmatpush1.bf16.msra.mxu0 0
      %5057 = vmatprep.subr.bf16.mxu0 0
      %5058 = vmatpush1.bf16.msra.mxu0 0
      %5059 = vmatprep.subr.bf16.mxu0 0
      %5060 = vmatpush1.bf16.msra.mxu0 0
      %5061 = vmatprep.mubr.bf16.mxu0 0
      %5062 = vmatmul.mubr.bf16.gmra.mrb[0].mxu0 %v5018
      %v5063 = vpop.f32.mrb[0].mxu0
      %v5064 = vadd.f32 0.0, %v5063
      %v5065 = vpop.f32.mrb[0].mxu0
      %v5066 = vpop.f32.mrb[0].mxu0
      %v5067 = vadd.f32 0.0, %v5066
      %v5068 = vpop.f32.mrb[0].mxu0
      %5069 = vmatprep.mubr.bf16.mxu0 0
      %5070 = vmatmul.mubr.bf16.gmra.mrb[0].mxu0 %v5021
      %v5071 = vpop.f32.mrb[0].mxu0
      %v5072 = vadd.f32 0.0, %v5071
      %v5073 = vpop.f32.mrb[0].mxu0
      %v5074 = vpop.f32.mrb[0].mxu0
      %v5075 = vadd.f32 0.0, %v5074
      %v5076 = vpop.f32.mrb[0].mxu0
      %5077 = vmatprep.mubr.bf16.mxu0 0
      %5078 = vmatmul.mubr.bf16.gmra.mrb[0].mxu0 %v5024
      %v5079 = vpop.f32.mrb[0].mxu0
      %v5080 = vadd.f32 0.0, %v5079
      %v5081 = vpop.f32.mrb[0].mxu0
      %v5082 = vpop.f32.mrb[0].mxu0
      %v5083 = vadd.f32 0.0, %v5082
      %v5084 = vpop.f32.mrb[0].mxu0
      %5085 = vmatprep.mubr.bf16.mxu0 0
      %5086 = vmatmul.mubr.bf16.gmra.mrb[0].mxu0 %v5027
      %v5087 = vpop.f32.mrb[0].mxu0
      %v5088 = vadd.f32 0.0, %v5087
      %v5089 = vpop.f32.mrb[0].mxu0
      %v5090 = vpop.f32.mrb[0].mxu0
      %v5091 = vadd.f32 0.0, %v5090
      %v5092 = vpop.f32.mrb[0].mxu0
      %5093 = vdwg.mxu0
      %5094 = vrot.lane.b32.xlu0 %v786, 56
      %v5095 = vpop.permute.xlu0 %5094
      %5096 = vrot.lane.b32.xlu0 %v787, 56
      %v5097 = vpop.permute.xlu0 %5096
      %5098 = vrot.lane.b32.xlu0 %v788, 56
      %v5099 = vpop.permute.xlu0 %5098
      %5100 = vrot.lane.b32.xlu0 %v789, 56
      %v5101 = vpop.permute.xlu0 %5100
      %v5107 = vsel %vm1615, %v4637, 0
      %v5110 = vsel %vm1615, %v4638, 0
      %v5113 = vsel %vm1615, %v4639, 0
      %v5116 = vsel %vm1615, %v4640, 0
      %5118 = vmatprep.subr.bf16.mxu0 0
      %5119 = vmatpush1.bf16.msra.mxu0 %v5095
      %5120 = vmatprep.subr.bf16.mxu0 0
      %5121 = vmatpush1.bf16.msra.mxu0 %v5097
      %5122 = vmatprep.subr.bf16.mxu0 0
      %5123 = vmatpush1.bf16.msra.mxu0 %v5099
      %5124 = vmatprep.subr.bf16.mxu0 0
      %5125 = vmatpush1.bf16.msra.mxu0 %v5101
      %5126 = vmatprep.subr.bf16.mxu0 0
      %5127 = vmatpush1.bf16.msra.mxu0 0
      %5128 = vmatprep.subr.bf16.mxu0 0
      %5129 = vmatpush1.bf16.msra.mxu0 0
      %5130 = vmatprep.subr.bf16.mxu0 0
      %5131 = vmatpush1.bf16.msra.mxu0 0
      %5132 = vmatprep.subr.bf16.mxu0 0
      %5133 = vmatpush1.bf16.msra.mxu0 0
      %5134 = vmatprep.subr.bf16.mxu0 0
      %5135 = vmatpush1.bf16.msra.mxu0 0
      %5136 = vmatprep.subr.bf16.mxu0 0
      %5137 = vmatpush1.bf16.msra.mxu0 0
      %5138 = vmatprep.subr.bf16.mxu0 0
      %5139 = vmatpush1.bf16.msra.mxu0 0
      %5140 = vmatprep.subr.bf16.mxu0 0
      %5141 = vmatpush1.bf16.msra.mxu0 0
      %5142 = vmatprep.subr.bf16.mxu0 0
      %5143 = vmatpush1.bf16.msra.mxu0 0
      %5144 = vmatprep.subr.bf16.mxu0 0
      %5145 = vmatpush1.bf16.msra.mxu0 0
      %5146 = vmatprep.subr.bf16.mxu0 0
      %5147 = vmatpush1.bf16.msra.mxu0 0
      %5148 = vmatprep.subr.bf16.mxu0 0
      %5149 = vmatpush1.bf16.msra.mxu0 0
      %5150 = vmatprep.mubr.bf16.mxu0 0
      %5151 = vmatmul.mubr.bf16.gmra.mrb[0].mxu0 %v5107
      %v5152 = vpop.f32.mrb[0].mxu0
      %v5153 = vadd.f32 0.0, %v5152
      %v5154 = vpop.f32.mrb[0].mxu0
      %v5155 = vpop.f32.mrb[0].mxu0
      %v5156 = vadd.f32 0.0, %v5155
      %v5157 = vpop.f32.mrb[0].mxu0
      %5158 = vmatprep.mubr.bf16.mxu0 0
      %5159 = vmatmul.mubr.bf16.gmra.mrb[0].mxu0 %v5110
      %v5160 = vpop.f32.mrb[0].mxu0
      %v5161 = vadd.f32 0.0, %v5160
      %v5162 = vpop.f32.mrb[0].mxu0
      %v5163 = vpop.f32.mrb[0].mxu0
      %v5164 = vadd.f32 0.0, %v5163
      %v5165 = vpop.f32.mrb[0].mxu0
      %5166 = vmatprep.mubr.bf16.mxu0 0
      %5167 = vmatmul.mubr.bf16.gmra.mrb[0].mxu0 %v5113
      %v5168 = vpop.f32.mrb[0].mxu0
      %v5169 = vadd.f32 0.0, %v5168
      %v5170 = vpop.f32.mrb[0].mxu0
      %v5171 = vpop.f32.mrb[0].mxu0
      %v5172 = vadd.f32 0.0, %v5171
      %v5173 = vpop.f32.mrb[0].mxu0
      %5174 = vmatprep.mubr.bf16.mxu0 0
      %5175 = vmatmul.mubr.bf16.gmra.mrb[0].mxu0 %v5116
      %v5176 = vpop.f32.mrb[0].mxu0
      %v5177 = vadd.f32 0.0, %v5176
      %v5178 = vpop.f32.mrb[0].mxu0
      %v5179 = vpop.f32.mrb[0].mxu0
      %v5180 = vadd.f32 0.0, %v5179
      %v5181 = vpop.f32.mrb[0].mxu0
      %5182 = vdwg.mxu0
      %5183 = vrot.lane.b32.xlu0 %v790, 56
      %v5184 = vpop.permute.xlu0 %5183
      %5185 = vrot.lane.b32.xlu0 %v791, 56
      %v5186 = vpop.permute.xlu0 %5185
      %5187 = vrot.lane.b32.xlu0 %v792, 56
      %v5188 = vpop.permute.xlu0 %5187
      %5189 = vrot.lane.b32.xlu0 %v793, 56
      %v5190 = vpop.permute.xlu0 %5189
      %v5196 = vsel %vm1615, %v4641, 0
      %v5199 = vsel %vm1615, %v4642, 0
      %v5202 = vsel %vm1615, %v4643, 0
      %v5205 = vsel %vm1615, %v4644, 0
      %5207 = vmatprep.subr.bf16.mxu0 0
      %5208 = vmatpush1.bf16.msra.mxu0 %v5184
      %5209 = vmatprep.subr.bf16.mxu0 0
      %5210 = vmatpush1.bf16.msra.mxu0 %v5186
      %5211 = vmatprep.subr.bf16.mxu0 0
      %5212 = vmatpush1.bf16.msra.mxu0 %v5188
      %5213 = vmatprep.subr.bf16.mxu0 0
      %5214 = vmatpush1.bf16.msra.mxu0 %v5190
      %5215 = vmatprep.subr.bf16.mxu0 0
      %5216 = vmatpush1.bf16.msra.mxu0 0
      %5217 = vmatprep.subr.bf16.mxu0 0
      %5218 = vmatpush1.bf16.msra.mxu0 0
      %5219 = vmatprep.subr.bf16.mxu0 0
      %5220 = vmatpush1.bf16.msra.mxu0 0
      %5221 = vmatprep.subr.bf16.mxu0 0
      %5222 = vmatpush1.bf16.msra.mxu0 0
      %5223 = vmatprep.subr.bf16.mxu0 0
      %5224 = vmatpush1.bf16.msra.mxu0 0
      %5225 = vmatprep.subr.bf16.mxu0 0
      %5226 = vmatpush1.bf16.msra.mxu0 0
      %5227 = vmatprep.subr.bf16.mxu0 0
      %5228 = vmatpush1.bf16.msra.mxu0 0
      %5229 = vmatprep.subr.bf16.mxu0 0
      %5230 = vmatpush1.bf16.msra.mxu0 0
      %5231 = vmatprep.subr.bf16.mxu0 0
      %5232 = vmatpush1.bf16.msra.mxu0 0
      %5233 = vmatprep.subr.bf16.mxu0 0
      %5234 = vmatpush1.bf16.msra.mxu0 0
      %5235 = vmatprep.subr.bf16.mxu0 0
      %5236 = vmatpush1.bf16.msra.mxu0 0
      %5237 = vmatprep.subr.bf16.mxu0 0
      %5238 = vmatpush1.bf16.msra.mxu0 0
      %5239 = vmatprep.mubr.bf16.mxu0 0
      %5240 = vmatmul.mubr.bf16.gmra.mrb[0].mxu0 %v5196
      %v5241 = vpop.f32.mrb[0].mxu0
      %v5242 = vadd.f32 0.0, %v5241
      %v5243 = vpop.f32.mrb[0].mxu0
      %v5244 = vpop.f32.mrb[0].mxu0
      %v5245 = vadd.f32 0.0, %v5244
      %v5246 = vpop.f32.mrb[0].mxu0
      %5247 = vmatprep.mubr.bf16.mxu0 0
      %5248 = vmatmul.mubr.bf16.gmra.mrb[0].mxu0 %v5199
      %v5249 = vpop.f32.mrb[0].mxu0
      %v5250 = vadd.f32 0.0, %v5249
      %v5251 = vpop.f32.mrb[0].mxu0
      %v5252 = vpop.f32.mrb[0].mxu0
      %v5253 = vadd.f32 0.0, %v5252
      %v5254 = vpop.f32.mrb[0].mxu0
      %5255 = vmatprep.mubr.bf16.mxu0 0
      %5256 = vmatmul.mubr.bf16.gmra.mrb[0].mxu0 %v5202
      %v5257 = vpop.f32.mrb[0].mxu0
      %v5258 = vadd.f32 0.0, %v5257
      %v5259 = vpop.f32.mrb[0].mxu0
      %v5260 = vpop.f32.mrb[0].mxu0
      %v5261 = vadd.f32 0.0, %v5260
      %v5262 = vpop.f32.mrb[0].mxu0
      %5263 = vmatprep.mubr.bf16.mxu0 0
      %5264 = vmatmul.mubr.bf16.gmra.mrb[0].mxu0 %v5205
      %v5265 = vpop.f32.mrb[0].mxu0
      %v5266 = vadd.f32 0.0, %v5265
      %v5267 = vpop.f32.mrb[0].mxu0
      %v5268 = vpop.f32.mrb[0].mxu0
      %v5269 = vadd.f32 0.0, %v5268
      %v5270 = vpop.f32.mrb[0].mxu0
      %5271 = vdwg.mxu0
      %5272 = vrot.lane.b32.xlu0 %v794, 56
      %v5273 = vpop.permute.xlu0 %5272
      %5274 = vrot.lane.b32.xlu0 %v795, 56
      %v5275 = vpop.permute.xlu0 %5274
      %5276 = vrot.lane.b32.xlu0 %v796, 56
      %v5277 = vpop.permute.xlu0 %5276
      %5278 = vrot.lane.b32.xlu0 %v797, 56
      %v5279 = vpop.permute.xlu0 %5278
      %v5285 = vsel %vm1615, %v4645, 0
      %v5288 = vsel %vm1615, %v4646, 0
      %v5291 = vsel %vm1615, %v4647, 0
      %v5294 = vsel %vm1615, %v4648, 0
      %5296 = vmatprep.subr.bf16.mxu0 0
      %5297 = vmatpush1.bf16.msra.mxu0 %v5273
      %5298 = vmatprep.subr.bf16.mxu0 0
      %5299 = vmatpush1.bf16.msra.mxu0 %v5275
      %5300 = vmatprep.subr.bf16.mxu0 0
      %5301 = vmatpush1.bf16.msra.mxu0 %v5277
      %5302 = vmatprep.subr.bf16.mxu0 0
      %5303 = vmatpush1.bf16.msra.mxu0 %v5279
      %5304 = vmatprep.subr.bf16.mxu0 0
      %5305 = vmatpush1.bf16.msra.mxu0 0
      %5306 = vmatprep.subr.bf16.mxu0 0
      %5307 = vmatpush1.bf16.msra.mxu0 0
      %5308 = vmatprep.subr.bf16.mxu0 0
      %5309 = vmatpush1.bf16.msra.mxu0 0
      %5310 = vmatprep.subr.bf16.mxu0 0
      %5311 = vmatpush1.bf16.msra.mxu0 0
      %5312 = vmatprep.subr.bf16.mxu0 0
      %5313 = vmatpush1.bf16.msra.mxu0 0
      %5314 = vmatprep.subr.bf16.mxu0 0
      %5315 = vmatpush1.bf16.msra.mxu0 0
      %5316 = vmatprep.subr.bf16.mxu0 0
      %5317 = vmatpush1.bf16.msra.mxu0 0
      %5318 = vmatprep.subr.bf16.mxu0 0
      %5319 = vmatpush1.bf16.msra.mxu0 0
      %5320 = vmatprep.subr.bf16.mxu0 0
      %5321 = vmatpush1.bf16.msra.mxu0 0
      %5322 = vmatprep.subr.bf16.mxu0 0
      %5323 = vmatpush1.bf16.msra.mxu0 0
      %5324 = vmatprep.subr.bf16.mxu0 0
      %5325 = vmatpush1.bf16.msra.mxu0 0
      %5326 = vmatprep.subr.bf16.mxu0 0
      %5327 = vmatpush1.bf16.msra.mxu0 0
      %5328 = vmatprep.mubr.bf16.mxu0 0
      %5329 = vmatmul.mubr.bf16.gmra.mrb[0].mxu0 %v5285
      %v5330 = vpop.f32.mrb[0].mxu0
      %v5331 = vadd.f32 0.0, %v5330
      %v5332 = vpop.f32.mrb[0].mxu0
      %v5333 = vpop.f32.mrb[0].mxu0
      %v5334 = vadd.f32 0.0, %v5333
      %v5335 = vpop.f32.mrb[0].mxu0
      %5336 = vmatprep.mubr.bf16.mxu0 0
      %5337 = vmatmul.mubr.bf16.gmra.mrb[0].mxu0 %v5288
      %v5338 = vpop.f32.mrb[0].mxu0
      %v5339 = vadd.f32 0.0, %v5338
      %v5340 = vpop.f32.mrb[0].mxu0
      %v5341 = vpop.f32.mrb[0].mxu0
      %v5342 = vadd.f32 0.0, %v5341
      %v5343 = vpop.f32.mrb[0].mxu0
      %5344 = vmatprep.mubr.bf16.mxu0 0
      %5345 = vmatmul.mubr.bf16.gmra.mrb[0].mxu0 %v5291
      %v5346 = vpop.f32.mrb[0].mxu0
      %v5347 = vadd.f32 0.0, %v5346
      %v5348 = vpop.f32.mrb[0].mxu0
      %v5349 = vpop.f32.mrb[0].mxu0
      %v5350 = vadd.f32 0.0, %v5349
      %v5351 = vpop.f32.mrb[0].mxu0
      %5352 = vmatprep.mubr.bf16.mxu0 0
      %5353 = vmatmul.mubr.bf16.gmra.mrb[0].mxu0 %v5294
      %v5354 = vpop.f32.mrb[0].mxu0
      %v5355 = vadd.f32 0.0, %v5354
      %v5356 = vpop.f32.mrb[0].mxu0
      %v5357 = vpop.f32.mrb[0].mxu0
      %v5358 = vadd.f32 0.0, %v5357
      %v5359 = vpop.f32.mrb[0].mxu0
      %5360 = vdwg.mxu0
      %s5361 = scalar_lea.vmem %s3, 128
      %v5362 = vld [vmem:[%s5361] sm:$0xff]
      %v5363 = vld [vmem:[%s5361 + $0x8] sm:$0xff]
      %v5364 = vld [vmem:[%s5361 + $0x10] sm:$0xff]
      %v5365 = vld [vmem:[%s5361 + $0x18] sm:$0xff]
      %v5366 = vld [vmem:[%s5361 + $0x20] sm:$0xff]
      %v5367 = vld [vmem:[%s5361 + $0x28] sm:$0xff]
      %v5368 = vld [vmem:[%s5361 + $0x30] sm:$0xff]
      %v5369 = vld [vmem:[%s5361 + $0x38] sm:$0xff]
      %5370 = vrot.lane.b32.xlu0 %v766, 112
      %v5371 = vpop.permute.xlu0 %5370
      %5372 = vrot.lane.b32.xlu0 %v767, 112
      %v5373 = vpop.permute.xlu0 %5372
      %5374 = vrot.lane.b32.xlu0 %v768, 112
      %v5375 = vpop.permute.xlu0 %5374
      %5376 = vrot.lane.b32.xlu0 %v769, 112
      %v5377 = vpop.permute.xlu0 %5376
      %5378 = vrot.lane.b32.xlu0 %v766, 80
      %v5379 = vpop.permute.xlu0 %5378
      %5380 = vrot.lane.b32.xlu0 %v767, 80
      %v5381 = vpop.permute.xlu0 %5380
      %5382 = vrot.lane.b32.xlu0 %v768, 80
      %v5383 = vpop.permute.xlu0 %5382
      %5384 = vrot.lane.b32.xlu0 %v769, 80
      %v5385 = vpop.permute.xlu0 %5384
      %v5387 = vsel %vm818, %v5371, 0
      %v5390 = vsel %vm818, %v5373, 0
      %v5393 = vsel %vm818, %v5375, 0
      %v5396 = vsel %vm818, %v5377, 0
      %v5399 = vsel %vm818, %v5379, 0
      %v5402 = vsel %vm818, %v5381, 0
      %v5405 = vsel %vm818, %v5383, 0
      %v5408 = vsel %vm818, %v5385, 0
      %5410 = vmatprep.subr.bf16.mxu0 0
      %5411 = vmatpush1.bf16.xpose.msra.mxu0 %v5399
      %5412 = vmatprep.subr.bf16.mxu0 0
      %5413 = vmatpush1.bf16.xpose.msra.mxu0 %v5402
      %5414 = vmatprep.subr.bf16.mxu0 0
      %5415 = vmatpush1.bf16.xpose.msra.mxu0 %v5405
      %5416 = vmatprep.subr.bf16.mxu0 0
      %5417 = vmatpush1.bf16.xpose.msra.mxu0 %v5408
      %5418 = vmatprep.subr.bf16.mxu0 0
      %5419 = vmatpush1.bf16.xpose.msra.mxu0 0
      %5420 = vmatprep.subr.bf16.mxu0 0
      %5421 = vmatpush1.bf16.xpose.msra.mxu0 0
      %5422 = vmatprep.subr.bf16.mxu0 0
      %5423 = vmatpush1.bf16.xpose.msra.mxu0 0
      %5424 = vmatprep.subr.bf16.mxu0 0
      %5425 = vmatpush1.bf16.xpose.msra.mxu0 0
      %5426 = vmatprep.subr.bf16.mxu0 0
      %5427 = vmatpush1.bf16.xpose.msra.mxu0 0
      %5428 = vmatprep.subr.bf16.mxu0 0
      %5429 = vmatpush1.bf16.xpose.msra.mxu0 0
      %5430 = vmatprep.subr.bf16.mxu0 0
      %5431 = vmatpush1.bf16.xpose.msra.mxu0 0
      %5432 = vmatprep.subr.bf16.mxu0 0
      %5433 = vmatpush1.bf16.xpose.msra.mxu0 0
      %5434 = vmatprep.subr.bf16.mxu0 0
      %5435 = vmatpush1.bf16.xpose.msra.mxu0 0
      %5436 = vmatprep.subr.bf16.mxu0 0
      %5437 = vmatpush1.bf16.xpose.msra.mxu0 0
      %5438 = vmatprep.subr.bf16.mxu0 0
      %5439 = vmatpush1.bf16.xpose.msra.mxu0 0
      %5440 = vmatprep.subr.bf16.mxu0 0
      %5441 = vmatpush1.bf16.xpose.msra.mxu0 0
      %5442 = vmatprep.mubr.bf16.mxu0 0
      %5443 = vmatmul.mubr.bf16.gmra.mrb[0].mxu0 %v5387
      %v5444 = vpop.f32.mrb[0].mxu0
      %v5445 = vadd.f32 %v5362, %v5444
      %v5446 = vpop.f32.mrb[0].mxu0
      %v5447 = vpop.f32.mrb[0].mxu0
      %v5448 = vadd.f32 %v5363, %v5447
      %v5449 = vpop.f32.mrb[0].mxu0
      %5450 = vmatprep.mubr.bf16.mxu0 0
      %5451 = vmatmul.mubr.bf16.gmra.mrb[0].mxu0 %v5390
      %v5452 = vpop.f32.mrb[0].mxu0
      %v5453 = vadd.f32 %v5364, %v5452
      %v5454 = vpop.f32.mrb[0].mxu0
      %v5455 = vpop.f32.mrb[0].mxu0
      %v5456 = vadd.f32 %v5365, %v5455
      %v5457 = vpop.f32.mrb[0].mxu0
      %5458 = vmatprep.mubr.bf16.mxu0 0
      %5459 = vmatmul.mubr.bf16.gmra.mrb[0].mxu0 %v5393
      %v5460 = vpop.f32.mrb[0].mxu0
      %v5461 = vadd.f32 %v5366, %v5460
      %v5462 = vpop.f32.mrb[0].mxu0
      %v5463 = vpop.f32.mrb[0].mxu0
      %v5464 = vadd.f32 %v5367, %v5463
      %v5465 = vpop.f32.mrb[0].mxu0
      %5466 = vmatprep.mubr.bf16.mxu0 0
      %5467 = vmatmul.mubr.bf16.gmra.mrb[0].mxu0 %v5396
      %v5468 = vpop.f32.mrb[0].mxu0
      %v5469 = vadd.f32 %v5368, %v5468
      %v5470 = vpop.f32.mrb[0].mxu0
      %v5471 = vpop.f32.mrb[0].mxu0
      %v5472 = vadd.f32 %v5369, %v5471
      %v5473 = vpop.f32.mrb[0].mxu0
      %5474 = vdwg.mxu0
      %5475 = vrot.lane.b32.xlu0 %v770, 112
      %v5476 = vpop.permute.xlu0 %5475
      %5477 = vrot.lane.b32.xlu0 %v771, 112
      %v5478 = vpop.permute.xlu0 %5477
      %5479 = vrot.lane.b32.xlu0 %v772, 112
      %v5480 = vpop.permute.xlu0 %5479
      %5481 = vrot.lane.b32.xlu0 %v773, 112
      %v5482 = vpop.permute.xlu0 %5481
      %5483 = vrot.lane.b32.xlu0 %v770, 80
      %v5484 = vpop.permute.xlu0 %5483
      %5485 = vrot.lane.b32.xlu0 %v771, 80
      %v5486 = vpop.permute.xlu0 %5485
      %5487 = vrot.lane.b32.xlu0 %v772, 80
      %v5488 = vpop.permute.xlu0 %5487
      %5489 = vrot.lane.b32.xlu0 %v773, 80
      %v5490 = vpop.permute.xlu0 %5489
      %v5492 = vsel %vm818, %v5476, 0
      %v5495 = vsel %vm818, %v5478, 0
      %v5498 = vsel %vm818, %v5480, 0
      %v5501 = vsel %vm818, %v5482, 0
      %v5504 = vsel %vm818, %v5484, 0
      %v5507 = vsel %vm818, %v5486, 0
      %v5510 = vsel %vm818, %v5488, 0
      %v5513 = vsel %vm818, %v5490, 0
      %5515 = vmatprep.subr.bf16.mxu0 0
      %5516 = vmatpush1.bf16.xpose.msra.mxu0 %v5504
      %5517 = vmatprep.subr.bf16.mxu0 0
      %5518 = vmatpush1.bf16.xpose.msra.mxu0 %v5507
      %5519 = vmatprep.subr.bf16.mxu0 0
      %5520 = vmatpush1.bf16.xpose.msra.mxu0 %v5510
      %5521 = vmatprep.subr.bf16.mxu0 0
      %5522 = vmatpush1.bf16.xpose.msra.mxu0 %v5513
      %5523 = vmatprep.subr.bf16.mxu0 0
      %5524 = vmatpush1.bf16.xpose.msra.mxu0 0
      %5525 = vmatprep.subr.bf16.mxu0 0
      %5526 = vmatpush1.bf16.xpose.msra.mxu0 0
      %5527 = vmatprep.subr.bf16.mxu0 0
      %5528 = vmatpush1.bf16.xpose.msra.mxu0 0
      %5529 = vmatprep.subr.bf16.mxu0 0
      %5530 = vmatpush1.bf16.xpose.msra.mxu0 0
      %5531 = vmatprep.subr.bf16.mxu0 0
      %5532 = vmatpush1.bf16.xpose.msra.mxu0 0
      %5533 = vmatprep.subr.bf16.mxu0 0
      %5534 = vmatpush1.bf16.xpose.msra.mxu0 0
      %5535 = vmatprep.subr.bf16.mxu0 0
      %5536 = vmatpush1.bf16.xpose.msra.mxu0 0
      %5537 = vmatprep.subr.bf16.mxu0 0
      %5538 = vmatpush1.bf16.xpose.msra.mxu0 0
      %5539 = vmatprep.subr.bf16.mxu0 0
      %5540 = vmatpush1.bf16.xpose.msra.mxu0 0
      %5541 = vmatprep.subr.bf16.mxu0 0
      %5542 = vmatpush1.bf16.xpose.msra.mxu0 0
      %5543 = vmatprep.subr.bf16.mxu0 0
      %5544 = vmatpush1.bf16.xpose.msra.mxu0 0
      %5545 = vmatprep.subr.bf16.mxu0 0
      %5546 = vmatpush1.bf16.xpose.msra.mxu0 0
      %5547 = vmatprep.mubr.bf16.mxu0 0
      %5548 = vmatmul.mubr.bf16.gmra.mrb[0].mxu0 %v5492
      %v5549 = vpop.f32.mrb[0].mxu0
      %v5550 = vadd.f32 %v5362, %v5549
      %v5551 = vpop.f32.mrb[0].mxu0
      %v5552 = vpop.f32.mrb[0].mxu0
      %v5553 = vadd.f32 %v5363, %v5552
      %v5554 = vpop.f32.mrb[0].mxu0
      %5555 = vmatprep.mubr.bf16.mxu0 0
      %5556 = vmatmul.mubr.bf16.gmra.mrb[0].mxu0 %v5495
      %v5557 = vpop.f32.mrb[0].mxu0
      %v5558 = vadd.f32 %v5364, %v5557
      %v5559 = vpop.f32.mrb[0].mxu0
      %v5560 = vpop.f32.mrb[0].mxu0
      %v5561 = vadd.f32 %v5365, %v5560
      %v5562 = vpop.f32.mrb[0].mxu0
      %5563 = vmatprep.mubr.bf16.mxu0 0
      %5564 = vmatmul.mubr.bf16.gmra.mrb[0].mxu0 %v5498
      %v5565 = vpop.f32.mrb[0].mxu0
      %v5566 = vadd.f32 %v5366, %v5565
      %v5567 = vpop.f32.mrb[0].mxu0
      %v5568 = vpop.f32.mrb[0].mxu0
      %v5569 = vadd.f32 %v5367, %v5568
      %v5570 = vpop.f32.mrb[0].mxu0
      %5571 = vmatprep.mubr.bf16.mxu0 0
      %5572 = vmatmul.mubr.bf16.gmra.mrb[0].mxu0 %v5501
      %v5573 = vpop.f32.mrb[0].mxu0
      %v5574 = vadd.f32 %v5368, %v5573
      %v5575 = vpop.f32.mrb[0].mxu0
      %v5576 = vpop.f32.mrb[0].mxu0
      %v5577 = vadd.f32 %v5369, %v5576
      %v5578 = vpop.f32.mrb[0].mxu0
      %5579 = vdwg.mxu0
      %5580 = vrot.lane.b32.xlu0 %v774, 112
      %v5581 = vpop.permute.xlu0 %5580
      %5582 = vrot.lane.b32.xlu0 %v775, 112
      %v5583 = vpop.permute.xlu0 %5582
      %5584 = vrot.lane.b32.xlu0 %v776, 112
      %v5585 = vpop.permute.xlu0 %5584
      %5586 = vrot.lane.b32.xlu0 %v777, 112
      %v5587 = vpop.permute.xlu0 %5586
      %5588 = vrot.lane.b32.xlu0 %v774, 80
      %v5589 = vpop.permute.xlu0 %5588
      %5590 = vrot.lane.b32.xlu0 %v775, 80
      %v5591 = vpop.permute.xlu0 %5590
      %5592 = vrot.lane.b32.xlu0 %v776, 80
      %v5593 = vpop.permute.xlu0 %5592
      %5594 = vrot.lane.b32.xlu0 %v777, 80
      %v5595 = vpop.permute.xlu0 %5594
      %v5597 = vsel %vm818, %v5581, 0
      %v5600 = vsel %vm818, %v5583, 0
      %v5603 = vsel %vm818, %v5585, 0
      %v5606 = vsel %vm818, %v5587, 0
      %v5609 = vsel %vm818, %v5589, 0
      %v5612 = vsel %vm818, %v5591, 0
      %v5615 = vsel %vm818, %v5593, 0
      %v5618 = vsel %vm818, %v5595, 0
      %5620 = vmatprep.subr.bf16.mxu0 0
      %5621 = vmatpush1.bf16.xpose.msra.mxu0 %v5609
      %5622 = vmatprep.subr.bf16.mxu0 0
      %5623 = vmatpush1.bf16.xpose.msra.mxu0 %v5612
      %5624 = vmatprep.subr.bf16.mxu0 0
      %5625 = vmatpush1.bf16.xpose.msra.mxu0 %v5615
      %5626 = vmatprep.subr.bf16.mxu0 0
      %5627 = vmatpush1.bf16.xpose.msra.mxu0 %v5618
      %5628 = vmatprep.subr.bf16.mxu0 0
      %5629 = vmatpush1.bf16.xpose.msra.mxu0 0
      %5630 = vmatprep.subr.bf16.mxu0 0
      %5631 = vmatpush1.bf16.xpose.msra.mxu0 0
      %5632 = vmatprep.subr.bf16.mxu0 0
      %5633 = vmatpush1.bf16.xpose.msra.mxu0 0
      %5634 = vmatprep.subr.bf16.mxu0 0
      %5635 = vmatpush1.bf16.xpose.msra.mxu0 0
      %5636 = vmatprep.subr.bf16.mxu0 0
      %5637 = vmatpush1.bf16.xpose.msra.mxu0 0
      %5638 = vmatprep.subr.bf16.mxu0 0
      %5639 = vmatpush1.bf16.xpose.msra.mxu0 0
      %5640 = vmatprep.subr.bf16.mxu0 0
      %5641 = vmatpush1.bf16.xpose.msra.mxu0 0
      %5642 = vmatprep.subr.bf16.mxu0 0
      %5643 = vmatpush1.bf16.xpose.msra.mxu0 0
      %5644 = vmatprep.subr.bf16.mxu0 0
      %5645 = vmatpush1.bf16.xpose.msra.mxu0 0
      %5646 = vmatprep.subr.bf16.mxu0 0
      %5647 = vmatpush1.bf16.xpose.msra.mxu0 0
      %5648 = vmatprep.subr.bf16.mxu0 0
      %5649 = vmatpush1.bf16.xpose.msra.mxu0 0
      %5650 = vmatprep.subr.bf16.mxu0 0
      %5651 = vmatpush1.bf16.xpose.msra.mxu0 0
      %5652 = vmatprep.mubr.bf16.mxu0 0
      %5653 = vmatmul.mubr.bf16.gmra.mrb[0].mxu0 %v5597
      %v5654 = vpop.f32.mrb[0].mxu0
      %v5655 = vadd.f32 %v5362, %v5654
      %v5656 = vpop.f32.mrb[0].mxu0
      %v5657 = vpop.f32.mrb[0].mxu0
      %v5658 = vadd.f32 %v5363, %v5657
      %v5659 = vpop.f32.mrb[0].mxu0
      %5660 = vmatprep.mubr.bf16.mxu0 0
      %5661 = vmatmul.mubr.bf16.gmra.mrb[0].mxu0 %v5600
      %v5662 = vpop.f32.mrb[0].mxu0
      %v5663 = vadd.f32 %v5364, %v5662
      %v5664 = vpop.f32.mrb[0].mxu0
      %v5665 = vpop.f32.mrb[0].mxu0
      %v5666 = vadd.f32 %v5365, %v5665
      %v5667 = vpop.f32.mrb[0].mxu0
      %5668 = vmatprep.mubr.bf16.mxu0 0
      %5669 = vmatmul.mubr.bf16.gmra.mrb[0].mxu0 %v5603
      %v5670 = vpop.f32.mrb[0].mxu0
      %v5671 = vadd.f32 %v5366, %v5670
      %v5672 = vpop.f32.mrb[0].mxu0
      %v5673 = vpop.f32.mrb[0].mxu0
      %v5674 = vadd.f32 %v5367, %v5673
      %v5675 = vpop.f32.mrb[0].mxu0
      %5676 = vmatprep.mubr.bf16.mxu0 0
      %5677 = vmatmul.mubr.bf16.gmra.mrb[0].mxu0 %v5606
      %v5678 = vpop.f32.mrb[0].mxu0
      %v5679 = vadd.f32 %v5368, %v5678
      %v5680 = vpop.f32.mrb[0].mxu0
      %v5681 = vpop.f32.mrb[0].mxu0
      %v5682 = vadd.f32 %v5369, %v5681
      %v5683 = vpop.f32.mrb[0].mxu0
      %5684 = vdwg.mxu0
      %5685 = vrot.lane.b32.xlu0 %v778, 112
      %v5686 = vpop.permute.xlu0 %5685
      %5687 = vrot.lane.b32.xlu0 %v779, 112
      %v5688 = vpop.permute.xlu0 %5687
      %5689 = vrot.lane.b32.xlu0 %v780, 112
      %v5690 = vpop.permute.xlu0 %5689
      %5691 = vrot.lane.b32.xlu0 %v781, 112
      %v5692 = vpop.permute.xlu0 %5691
      %5693 = vrot.lane.b32.xlu0 %v778, 80
      %v5694 = vpop.permute.xlu0 %5693
      %5695 = vrot.lane.b32.xlu0 %v779, 80
      %v5696 = vpop.permute.xlu0 %5695
      %5697 = vrot.lane.b32.xlu0 %v780, 80
      %v5698 = vpop.permute.xlu0 %5697
      %5699 = vrot.lane.b32.xlu0 %v781, 80
      %v5700 = vpop.permute.xlu0 %5699
      %v5702 = vsel %vm818, %v5686, 0
      %v5705 = vsel %vm818, %v5688, 0
      %v5708 = vsel %vm818, %v5690, 0
      %v5711 = vsel %vm818, %v5692, 0
      %v5714 = vsel %vm818, %v5694, 0
      %v5717 = vsel %vm818, %v5696, 0
      %v5720 = vsel %vm818, %v5698, 0
      %v5723 = vsel %vm818, %v5700, 0
      %5725 = vmatprep.subr.bf16.mxu0 0
      %5726 = vmatpush1.bf16.xpose.msra.mxu0 %v5714
      %5727 = vmatprep.subr.bf16.mxu0 0
      %5728 = vmatpush1.bf16.xpose.msra.mxu0 %v5717
      %5729 = vmatprep.subr.bf16.mxu0 0
      %5730 = vmatpush1.bf16.xpose.msra.mxu0 %v5720
      %5731 = vmatprep.subr.bf16.mxu0 0
      %5732 = vmatpush1.bf16.xpose.msra.mxu0 %v5723
      %5733 = vmatprep.subr.bf16.mxu0 0
      %5734 = vmatpush1.bf16.xpose.msra.mxu0 0
      %5735 = vmatprep.subr.bf16.mxu0 0
      %5736 = vmatpush1.bf16.xpose.msra.mxu0 0
      %5737 = vmatprep.subr.bf16.mxu0 0
      %5738 = vmatpush1.bf16.xpose.msra.mxu0 0
      %5739 = vmatprep.subr.bf16.mxu0 0
      %5740 = vmatpush1.bf16.xpose.msra.mxu0 0
      %5741 = vmatprep.subr.bf16.mxu0 0
      %5742 = vmatpush1.bf16.xpose.msra.mxu0 0
      %5743 = vmatprep.subr.bf16.mxu0 0
      %5744 = vmatpush1.bf16.xpose.msra.mxu0 0
      %5745 = vmatprep.subr.bf16.mxu0 0
      %5746 = vmatpush1.bf16.xpose.msra.mxu0 0
      %5747 = vmatprep.subr.bf16.mxu0 0
      %5748 = vmatpush1.bf16.xpose.msra.mxu0 0
      %5749 = vmatprep.subr.bf16.mxu0 0
      %5750 = vmatpush1.bf16.xpose.msra.mxu0 0
      %5751 = vmatprep.subr.bf16.mxu0 0
      %5752 = vmatpush1.bf16.xpose.msra.mxu0 0
      %5753 = vmatprep.subr.bf16.mxu0 0
      %5754 = vmatpush1.bf16.xpose.msra.mxu0 0
      %5755 = vmatprep.subr.bf16.mxu0 0
      %5756 = vmatpush1.bf16.xpose.msra.mxu0 0
      %5757 = vmatprep.mubr.bf16.mxu0 0
      %5758 = vmatmul.mubr.bf16.gmra.mrb[0].mxu0 %v5702
      %v5759 = vpop.f32.mrb[0].mxu0
      %v5760 = vadd.f32 %v5362, %v5759
      %v5761 = vpop.f32.mrb[0].mxu0
      %v5762 = vpop.f32.mrb[0].mxu0
      %v5763 = vadd.f32 %v5363, %v5762
      %v5764 = vpop.f32.mrb[0].mxu0
      %5765 = vmatprep.mubr.bf16.mxu0 0
      %5766 = vmatmul.mubr.bf16.gmra.mrb[0].mxu0 %v5705
      %v5767 = vpop.f32.mrb[0].mxu0
      %v5768 = vadd.f32 %v5364, %v5767
      %v5769 = vpop.f32.mrb[0].mxu0
      %v5770 = vpop.f32.mrb[0].mxu0
      %v5771 = vadd.f32 %v5365, %v5770
      %v5772 = vpop.f32.mrb[0].mxu0
      %5773 = vmatprep.mubr.bf16.mxu0 0
      %5774 = vmatmul.mubr.bf16.gmra.mrb[0].mxu0 %v5708
      %v5775 = vpop.f32.mrb[0].mxu0
      %v5776 = vadd.f32 %v5366, %v5775
      %v5777 = vpop.f32.mrb[0].mxu0
      %v5778 = vpop.f32.mrb[0].mxu0
      %v5779 = vadd.f32 %v5367, %v5778
      %v5780 = vpop.f32.mrb[0].mxu0
      %5781 = vmatprep.mubr.bf16.mxu0 0
      %5782 = vmatmul.mubr.bf16.gmra.mrb[0].mxu0 %v5711
      %v5783 = vpop.f32.mrb[0].mxu0
      %v5784 = vadd.f32 %v5368, %v5783
      %v5785 = vpop.f32.mrb[0].mxu0
      %v5786 = vpop.f32.mrb[0].mxu0
      %v5787 = vadd.f32 %v5369, %v5786
      %v5788 = vpop.f32.mrb[0].mxu0
      %5789 = vdwg.mxu0
      %5790 = vrot.lane.b32.xlu0 %v782, 112
      %v5791 = vpop.permute.xlu0 %5790
      %5792 = vrot.lane.b32.xlu0 %v783, 112
      %v5793 = vpop.permute.xlu0 %5792
      %5794 = vrot.lane.b32.xlu0 %v784, 112
      %v5795 = vpop.permute.xlu0 %5794
      %5796 = vrot.lane.b32.xlu0 %v785, 112
      %v5797 = vpop.permute.xlu0 %5796
      %5798 = vrot.lane.b32.xlu0 %v782, 80
      %v5799 = vpop.permute.xlu0 %5798
      %5800 = vrot.lane.b32.xlu0 %v783, 80
      %v5801 = vpop.permute.xlu0 %5800
      %5802 = vrot.lane.b32.xlu0 %v784, 80
      %v5803 = vpop.permute.xlu0 %5802
      %5804 = vrot.lane.b32.xlu0 %v785, 80
      %v5805 = vpop.permute.xlu0 %5804
      %v5807 = vsel %vm818, %v5791, 0
      %v5810 = vsel %vm818, %v5793, 0
      %v5813 = vsel %vm818, %v5795, 0
      %v5816 = vsel %vm818, %v5797, 0
      %v5819 = vsel %vm818, %v5799, 0
      %v5822 = vsel %vm818, %v5801, 0
      %v5825 = vsel %vm818, %v5803, 0
      %v5828 = vsel %vm818, %v5805, 0
      %5830 = vmatprep.subr.bf16.mxu0 0
      %5831 = vmatpush1.bf16.xpose.msra.mxu0 %v5819
      %5832 = vmatprep.subr.bf16.mxu0 0
      %5833 = vmatpush1.bf16.xpose.msra.mxu0 %v5822
      %5834 = vmatprep.subr.bf16.mxu0 0
      %5835 = vmatpush1.bf16.xpose.msra.mxu0 %v5825
      %5836 = vmatprep.subr.bf16.mxu0 0
      %5837 = vmatpush1.bf16.xpose.msra.mxu0 %v5828
      %5838 = vmatprep.subr.bf16.mxu0 0
      %5839 = vmatpush1.bf16.xpose.msra.mxu0 0
      %5840 = vmatprep.subr.bf16.mxu0 0
      %5841 = vmatpush1.bf16.xpose.msra.mxu0 0
      %5842 = vmatprep.subr.bf16.mxu0 0
      %5843 = vmatpush1.bf16.xpose.msra.mxu0 0
      %5844 = vmatprep.subr.bf16.mxu0 0
      %5845 = vmatpush1.bf16.xpose.msra.mxu0 0
      %5846 = vmatprep.subr.bf16.mxu0 0
      %5847 = vmatpush1.bf16.xpose.msra.mxu0 0
      %5848 = vmatprep.subr.bf16.mxu0 0
      %5849 = vmatpush1.bf16.xpose.msra.mxu0 0
      %5850 = vmatprep.subr.bf16.mxu0 0
      %5851 = vmatpush1.bf16.xpose.msra.mxu0 0
      %5852 = vmatprep.subr.bf16.mxu0 0
      %5853 = vmatpush1.bf16.xpose.msra.mxu0 0
      %5854 = vmatprep.subr.bf16.mxu0 0
      %5855 = vmatpush1.bf16.xpose.msra.mxu0 0
      %5856 = vmatprep.subr.bf16.mxu0 0
      %5857 = vmatpush1.bf16.xpose.msra.mxu0 0
      %5858 = vmatprep.subr.bf16.mxu0 0
      %5859 = vmatpush1.bf16.xpose.msra.mxu0 0
      %5860 = vmatprep.subr.bf16.mxu0 0
      %5861 = vmatpush1.bf16.xpose.msra.mxu0 0
      %5862 = vmatprep.mubr.bf16.mxu0 0
      %5863 = vmatmul.mubr.bf16.gmra.mrb[0].mxu0 %v5807
      %v5864 = vpop.f32.mrb[0].mxu0
      %v5865 = vadd.f32 %v5362, %v5864
      %v5866 = vpop.f32.mrb[0].mxu0
      %v5867 = vpop.f32.mrb[0].mxu0
      %v5868 = vadd.f32 %v5363, %v5867
      %v5869 = vpop.f32.mrb[0].mxu0
      %5870 = vmatprep.mubr.bf16.mxu0 0
      %5871 = vmatmul.mubr.bf16.gmra.mrb[0].mxu0 %v5810
      %v5872 = vpop.f32.mrb[0].mxu0
      %v5873 = vadd.f32 %v5364, %v5872
      %v5874 = vpop.f32.mrb[0].mxu0
      %v5875 = vpop.f32.mrb[0].mxu0
      %v5876 = vadd.f32 %v5365, %v5875
      %v5877 = vpop.f32.mrb[0].mxu0
      %5878 = vmatprep.mubr.bf16.mxu0 0
      %5879 = vmatmul.mubr.bf16.gmra.mrb[0].mxu0 %v5813
      %v5880 = vpop.f32.mrb[0].mxu0
      %v5881 = vadd.f32 %v5366, %v5880
      %v5882 = vpop.f32.mrb[0].mxu0
      %v5883 = vpop.f32.mrb[0].mxu0
      %v5884 = vadd.f32 %v5367, %v5883
      %v5885 = vpop.f32.mrb[0].mxu0
      %5886 = vmatprep.mubr.bf16.mxu0 0
      %5887 = vmatmul.mubr.bf16.gmra.mrb[0].mxu0 %v5816
      %v5888 = vpop.f32.mrb[0].mxu0
      %v5889 = vadd.f32 %v5368, %v5888
      %v5890 = vpop.f32.mrb[0].mxu0
      %v5891 = vpop.f32.mrb[0].mxu0
      %v5892 = vadd.f32 %v5369, %v5891
      %v5893 = vpop.f32.mrb[0].mxu0
      %5894 = vdwg.mxu0
      %5895 = vrot.lane.b32.xlu0 %v786, 112
      %v5896 = vpop.permute.xlu0 %5895
      %5897 = vrot.lane.b32.xlu0 %v787, 112
      %v5898 = vpop.permute.xlu0 %5897
      %5899 = vrot.lane.b32.xlu0 %v788, 112
      %v5900 = vpop.permute.xlu0 %5899
      %5901 = vrot.lane.b32.xlu0 %v789, 112
      %v5902 = vpop.permute.xlu0 %5901
      %5903 = vrot.lane.b32.xlu0 %v786, 80
      %v5904 = vpop.permute.xlu0 %5903
      %5905 = vrot.lane.b32.xlu0 %v787, 80
      %v5906 = vpop.permute.xlu0 %5905
      %5907 = vrot.lane.b32.xlu0 %v788, 80
      %v5908 = vpop.permute.xlu0 %5907
      %5909 = vrot.lane.b32.xlu0 %v789, 80
      %v5910 = vpop.permute.xlu0 %5909
      %v5912 = vsel %vm818, %v5896, 0
      %v5915 = vsel %vm818, %v5898, 0
      %v5918 = vsel %vm818, %v5900, 0
      %v5921 = vsel %vm818, %v5902, 0
      %v5924 = vsel %vm818, %v5904, 0
      %v5927 = vsel %vm818, %v5906, 0
      %v5930 = vsel %vm818, %v5908, 0
      %v5933 = vsel %vm818, %v5910, 0
      %5935 = vmatprep.subr.bf16.mxu0 0
      %5936 = vmatpush1.bf16.xpose.msra.mxu0 %v5924
      %5937 = vmatprep.subr.bf16.mxu0 0
      %5938 = vmatpush1.bf16.xpose.msra.mxu0 %v5927
      %5939 = vmatprep.subr.bf16.mxu0 0
      %5940 = vmatpush1.bf16.xpose.msra.mxu0 %v5930
      %5941 = vmatprep.subr.bf16.mxu0 0
      %5942 = vmatpush1.bf16.xpose.msra.mxu0 %v5933
      %5943 = vmatprep.subr.bf16.mxu0 0
      %5944 = vmatpush1.bf16.xpose.msra.mxu0 0
      %5945 = vmatprep.subr.bf16.mxu0 0
      %5946 = vmatpush1.bf16.xpose.msra.mxu0 0
      %5947 = vmatprep.subr.bf16.mxu0 0
      %5948 = vmatpush1.bf16.xpose.msra.mxu0 0
      %5949 = vmatprep.subr.bf16.mxu0 0
      %5950 = vmatpush1.bf16.xpose.msra.mxu0 0
      %5951 = vmatprep.subr.bf16.mxu0 0
      %5952 = vmatpush1.bf16.xpose.msra.mxu0 0
      %5953 = vmatprep.subr.bf16.mxu0 0
      %5954 = vmatpush1.bf16.xpose.msra.mxu0 0
      %5955 = vmatprep.subr.bf16.mxu0 0
      %5956 = vmatpush1.bf16.xpose.msra.mxu0 0
      %5957 = vmatprep.subr.bf16.mxu0 0
      %5958 = vmatpush1.bf16.xpose.msra.mxu0 0
      %5959 = vmatprep.subr.bf16.mxu0 0
      %5960 = vmatpush1.bf16.xpose.msra.mxu0 0
      %5961 = vmatprep.subr.bf16.mxu0 0
      %5962 = vmatpush1.bf16.xpose.msra.mxu0 0
      %5963 = vmatprep.subr.bf16.mxu0 0
      %5964 = vmatpush1.bf16.xpose.msra.mxu0 0
      %5965 = vmatprep.subr.bf16.mxu0 0
      %5966 = vmatpush1.bf16.xpose.msra.mxu0 0
      %5967 = vmatprep.mubr.bf16.mxu0 0
      %5968 = vmatmul.mubr.bf16.gmra.mrb[0].mxu0 %v5912
      %v5969 = vpop.f32.mrb[0].mxu0
      %v5970 = vadd.f32 %v5362, %v5969
      %v5971 = vpop.f32.mrb[0].mxu0
      %v5972 = vpop.f32.mrb[0].mxu0
      %v5973 = vadd.f32 %v5363, %v5972
      %v5974 = vpop.f32.mrb[0].mxu0
      %5975 = vmatprep.mubr.bf16.mxu0 0
      %5976 = vmatmul.mubr.bf16.gmra.mrb[0].mxu0 %v5915
      %v5977 = vpop.f32.mrb[0].mxu0
      %v5978 = vadd.f32 %v5364, %v5977
      %v5979 = vpop.f32.mrb[0].mxu0
      %v5980 = vpop.f32.mrb[0].mxu0
      %v5981 = vadd.f32 %v5365, %v5980
      %v5982 = vpop.f32.mrb[0].mxu0
      %5983 = vmatprep.mubr.bf16.mxu0 0
      %5984 = vmatmul.mubr.bf16.gmra.mrb[0].mxu0 %v5918
      %v5985 = vpop.f32.mrb[0].mxu0
      %v5986 = vadd.f32 %v5366, %v5985
      %v5987 = vpop.f32.mrb[0].mxu0
      %v5988 = vpop.f32.mrb[0].mxu0
      %v5989 = vadd.f32 %v5367, %v5988
      %v5990 = vpop.f32.mrb[0].mxu0
      %5991 = vmatprep.mubr.bf16.mxu0 0
      %5992 = vmatmul.mubr.bf16.gmra.mrb[0].mxu0 %v5921
      %v5993 = vpop.f32.mrb[0].mxu0
      %v5994 = vadd.f32 %v5368, %v5993
      %v5995 = vpop.f32.mrb[0].mxu0
      %v5996 = vpop.f32.mrb[0].mxu0
      %v5997 = vadd.f32 %v5369, %v5996
      %v5998 = vpop.f32.mrb[0].mxu0
      %5999 = vdwg.mxu0
      %6000 = vrot.lane.b32.xlu0 %v790, 112
      %v6001 = vpop.permute.xlu0 %6000
      %6002 = vrot.lane.b32.xlu0 %v791, 112
      %v6003 = vpop.permute.xlu0 %6002
      %6004 = vrot.lane.b32.xlu0 %v792, 112
      %v6005 = vpop.permute.xlu0 %6004
      %6006 = vrot.lane.b32.xlu0 %v793, 112
      %v6007 = vpop.permute.xlu0 %6006
      %6008 = vrot.lane.b32.xlu0 %v790, 80
      %v6009 = vpop.permute.xlu0 %6008
      %6010 = vrot.lane.b32.xlu0 %v791, 80
      %v6011 = vpop.permute.xlu0 %6010
      %6012 = vrot.lane.b32.xlu0 %v792, 80
      %v6013 = vpop.permute.xlu0 %6012
      %6014 = vrot.lane.b32.xlu0 %v793, 80
      %v6015 = vpop.permute.xlu0 %6014
      %v6017 = vsel %vm818, %v6001, 0
      %v6020 = vsel %vm818, %v6003, 0
      %v6023 = vsel %vm818, %v6005, 0
      %v6026 = vsel %vm818, %v6007, 0
      %v6029 = vsel %vm818, %v6009, 0
      %v6032 = vsel %vm818, %v6011, 0
      %v6035 = vsel %vm818, %v6013, 0
      %v6038 = vsel %vm818, %v6015, 0
      %6040 = vmatprep.subr.bf16.mxu0 0
      %6041 = vmatpush1.bf16.xpose.msra.mxu0 %v6029
      %6042 = vmatprep.subr.bf16.mxu0 0
      %6043 = vmatpush1.bf16.xpose.msra.mxu0 %v6032
      %6044 = vmatprep.subr.bf16.mxu0 0
      %6045 = vmatpush1.bf16.xpose.msra.mxu0 %v6035
      %6046 = vmatprep.subr.bf16.mxu0 0
      %6047 = vmatpush1.bf16.xpose.msra.mxu0 %v6038
      %6048 = vmatprep.subr.bf16.mxu0 0
      %6049 = vmatpush1.bf16.xpose.msra.mxu0 0
      %6050 = vmatprep.subr.bf16.mxu0 0
      %6051 = vmatpush1.bf16.xpose.msra.mxu0 0
      %6052 = vmatprep.subr.bf16.mxu0 0
      %6053 = vmatpush1.bf16.xpose.msra.mxu0 0
      %6054 = vmatprep.subr.bf16.mxu0 0
      %6055 = vmatpush1.bf16.xpose.msra.mxu0 0
      %6056 = vmatprep.subr.bf16.mxu0 0
      %6057 = vmatpush1.bf16.xpose.msra.mxu0 0
      %6058 = vmatprep.subr.bf16.mxu0 0
      %6059 = vmatpush1.bf16.xpose.msra.mxu0 0
      %6060 = vmatprep.subr.bf16.mxu0 0
      %6061 = vmatpush1.bf16.xpose.msra.mxu0 0
      %6062 = vmatprep.subr.bf16.mxu0 0
      %6063 = vmatpush1.bf16.xpose.msra.mxu0 0
      %6064 = vmatprep.subr.bf16.mxu0 0
      %6065 = vmatpush1.bf16.xpose.msra.mxu0 0
      %6066 = vmatprep.subr.bf16.mxu0 0
      %6067 = vmatpush1.bf16.xpose.msra.mxu0 0
      %6068 = vmatprep.subr.bf16.mxu0 0
      %6069 = vmatpush1.bf16.xpose.msra.mxu0 0
      %6070 = vmatprep.subr.bf16.mxu0 0
      %6071 = vmatpush1.bf16.xpose.msra.mxu0 0
      %6072 = vmatprep.mubr.bf16.mxu0 0
      %6073 = vmatmul.mubr.bf16.gmra.mrb[0].mxu0 %v6017
      %v6074 = vpop.f32.mrb[0].mxu0
      %v6075 = vadd.f32 %v5362, %v6074
      %v6076 = vpop.f32.mrb[0].mxu0
      %v6077 = vpop.f32.mrb[0].mxu0
      %v6078 = vadd.f32 %v5363, %v6077
      %v6079 = vpop.f32.mrb[0].mxu0
      %6080 = vmatprep.mubr.bf16.mxu0 0
      %6081 = vmatmul.mubr.bf16.gmra.mrb[0].mxu0 %v6020
      %v6082 = vpop.f32.mrb[0].mxu0
      %v6083 = vadd.f32 %v5364, %v6082
      %v6084 = vpop.f32.mrb[0].mxu0
      %v6085 = vpop.f32.mrb[0].mxu0
      %v6086 = vadd.f32 %v5365, %v6085
      %v6087 = vpop.f32.mrb[0].mxu0
      %6088 = vmatprep.mubr.bf16.mxu0 0
      %6089 = vmatmul.mubr.bf16.gmra.mrb[0].mxu0 %v6023
      %v6090 = vpop.f32.mrb[0].mxu0
      %v6091 = vadd.f32 %v5366, %v6090
      %v6092 = vpop.f32.mrb[0].mxu0
      %v6093 = vpop.f32.mrb[0].mxu0
      %v6094 = vadd.f32 %v5367, %v6093
      %v6095 = vpop.f32.mrb[0].mxu0
      %6096 = vmatprep.mubr.bf16.mxu0 0
      %6097 = vmatmul.mubr.bf16.gmra.mrb[0].mxu0 %v6026
      %v6098 = vpop.f32.mrb[0].mxu0
      %v6099 = vadd.f32 %v5368, %v6098
      %v6100 = vpop.f32.mrb[0].mxu0
      %v6101 = vpop.f32.mrb[0].mxu0
      %v6102 = vadd.f32 %v5369, %v6101
      %v6103 = vpop.f32.mrb[0].mxu0
      %6104 = vdwg.mxu0
      %6105 = vrot.lane.b32.xlu0 %v794, 112
      %v6106 = vpop.permute.xlu0 %6105
      %6107 = vrot.lane.b32.xlu0 %v795, 112
      %v6108 = vpop.permute.xlu0 %6107
      %6109 = vrot.lane.b32.xlu0 %v796, 112
      %v6110 = vpop.permute.xlu0 %6109
      %6111 = vrot.lane.b32.xlu0 %v797, 112
      %v6112 = vpop.permute.xlu0 %6111
      %6113 = vrot.lane.b32.xlu0 %v794, 80
      %v6114 = vpop.permute.xlu0 %6113
      %6115 = vrot.lane.b32.xlu0 %v795, 80
      %v6116 = vpop.permute.xlu0 %6115
      %6117 = vrot.lane.b32.xlu0 %v796, 80
      %v6118 = vpop.permute.xlu0 %6117
      %6119 = vrot.lane.b32.xlu0 %v797, 80
      %v6120 = vpop.permute.xlu0 %6119
      %v6122 = vsel %vm818, %v6106, 0
      %v6125 = vsel %vm818, %v6108, 0
      %v6128 = vsel %vm818, %v6110, 0
      %v6131 = vsel %vm818, %v6112, 0
      %v6134 = vsel %vm818, %v6114, 0
      %v6137 = vsel %vm818, %v6116, 0
      %v6140 = vsel %vm818, %v6118, 0
      %v6143 = vsel %vm818, %v6120, 0
      %6145 = vmatprep.subr.bf16.mxu0 0
      %6146 = vmatpush1.bf16.xpose.msra.mxu0 %v6134
      %6147 = vmatprep.subr.bf16.mxu0 0
      %6148 = vmatpush1.bf16.xpose.msra.mxu0 %v6137
      %6149 = vmatprep.subr.bf16.mxu0 0
      %6150 = vmatpush1.bf16.xpose.msra.mxu0 %v6140
      %6151 = vmatprep.subr.bf16.mxu0 0
      %6152 = vmatpush1.bf16.xpose.msra.mxu0 %v6143
      %6153 = vmatprep.subr.bf16.mxu0 0
      %6154 = vmatpush1.bf16.xpose.msra.mxu0 0
      %6155 = vmatprep.subr.bf16.mxu0 0
      %6156 = vmatpush1.bf16.xpose.msra.mxu0 0
      %6157 = vmatprep.subr.bf16.mxu0 0
      %6158 = vmatpush1.bf16.xpose.msra.mxu0 0
      %6159 = vmatprep.subr.bf16.mxu0 0
      %6160 = vmatpush1.bf16.xpose.msra.mxu0 0
      %6161 = vmatprep.subr.bf16.mxu0 0
      %6162 = vmatpush1.bf16.xpose.msra.mxu0 0
      %6163 = vmatprep.subr.bf16.mxu0 0
      %6164 = vmatpush1.bf16.xpose.msra.mxu0 0
      %6165 = vmatprep.subr.bf16.mxu0 0
      %6166 = vmatpush1.bf16.xpose.msra.mxu0 0
      %6167 = vmatprep.subr.bf16.mxu0 0
      %6168 = vmatpush1.bf16.xpose.msra.mxu0 0
      %6169 = vmatprep.subr.bf16.mxu0 0
      %6170 = vmatpush1.bf16.xpose.msra.mxu0 0
      %6171 = vmatprep.subr.bf16.mxu0 0
      %6172 = vmatpush1.bf16.xpose.msra.mxu0 0
      %6173 = vmatprep.subr.bf16.mxu0 0
      %6174 = vmatpush1.bf16.xpose.msra.mxu0 0
      %6175 = vmatprep.subr.bf16.mxu0 0
      %6176 = vmatpush1.bf16.xpose.msra.mxu0 0
      %6177 = vmatprep.mubr.bf16.mxu0 0
      %6178 = vmatmul.mubr.bf16.gmra.mrb[0].mxu0 %v6122
      %v6179 = vpop.f32.mrb[0].mxu0
      %v6180 = vadd.f32 %v5362, %v6179
      %v6181 = vpop.f32.mrb[0].mxu0
      %v6182 = vpop.f32.mrb[0].mxu0
      %v6183 = vadd.f32 %v5363, %v6182
      %v6184 = vpop.f32.mrb[0].mxu0
      %6185 = vmatprep.mubr.bf16.mxu0 0
      %6186 = vmatmul.mubr.bf16.gmra.mrb[0].mxu0 %v6125
      %v6187 = vpop.f32.mrb[0].mxu0
      %v6188 = vadd.f32 %v5364, %v6187
      %v6189 = vpop.f32.mrb[0].mxu0
      %v6190 = vpop.f32.mrb[0].mxu0
      %v6191 = vadd.f32 %v5365, %v6190
      %v6192 = vpop.f32.mrb[0].mxu0
      %6193 = vmatprep.mubr.bf16.mxu0 0
      %6194 = vmatmul.mubr.bf16.gmra.mrb[0].mxu0 %v6128
      %v6195 = vpop.f32.mrb[0].mxu0
      %v6196 = vadd.f32 %v5366, %v6195
      %v6197 = vpop.f32.mrb[0].mxu0
      %v6198 = vpop.f32.mrb[0].mxu0
      %v6199 = vadd.f32 %v5367, %v6198
      %v6200 = vpop.f32.mrb[0].mxu0
      %6201 = vmatprep.mubr.bf16.mxu0 0
      %6202 = vmatmul.mubr.bf16.gmra.mrb[0].mxu0 %v6131
      %v6203 = vpop.f32.mrb[0].mxu0
      %v6204 = vadd.f32 %v5368, %v6203
      %v6205 = vpop.f32.mrb[0].mxu0
      %v6206 = vpop.f32.mrb[0].mxu0
      %v6207 = vadd.f32 %v5369, %v6206
      %v6208 = vpop.f32.mrb[0].mxu0
      %6209 = vdwg.mxu0
      %v6210 = vsel %vm1615, %v5445, -inf
      %6211 = vmax.xlane.f32.xlu0 %v6210
      %v6212 = vpop.xlane.xlu0 %6211
      %v6213 = vsel %vm1615, %v5448, -inf
      %6214 = vmax.xlane.f32.xlu0 %v6213
      %v6215 = vpop.xlane.xlu0 %6214
      %v6216 = vsel %vm1615, %v5453, -inf
      %6217 = vmax.xlane.f32.xlu0 %v6216
      %v6218 = vpop.xlane.xlu0 %6217
      %v6219 = vsel %vm1615, %v5456, -inf
      %6220 = vmax.xlane.f32.xlu0 %v6219
      %v6221 = vpop.xlane.xlu0 %6220
      %v6222 = vsel %vm1615, %v5461, -inf
      %6223 = vmax.xlane.f32.xlu0 %v6222
      %v6224 = vpop.xlane.xlu0 %6223
      %v6225 = vsel %vm1615, %v5464, -inf
      %6226 = vmax.xlane.f32.xlu0 %v6225
      %v6227 = vpop.xlane.xlu0 %6226
      %v6228 = vsel %vm1615, %v5469, -inf
      %6229 = vmax.xlane.f32.xlu0 %v6228
      %v6230 = vpop.xlane.xlu0 %6229
      %v6231 = vsel %vm1615, %v5472, -inf
      %6232 = vmax.xlane.f32.xlu0 %v6231
      %v6233 = vpop.xlane.xlu0 %6232
      %v6234 = vsel %vm1615, %v5550, -inf
      %6235 = vmax.xlane.f32.xlu0 %v6234
      %v6236 = vpop.xlane.xlu0 %6235
      %v6237 = vsel %vm1615, %v5553, -inf
      %6238 = vmax.xlane.f32.xlu0 %v6237
      %v6239 = vpop.xlane.xlu0 %6238
      %v6240 = vsel %vm1615, %v5558, -inf
      %6241 = vmax.xlane.f32.xlu0 %v6240
      %v6242 = vpop.xlane.xlu0 %6241
      %v6243 = vsel %vm1615, %v5561, -inf
      %6244 = vmax.xlane.f32.xlu0 %v6243
      %v6245 = vpop.xlane.xlu0 %6244
      %v6246 = vsel %vm1615, %v5566, -inf
      %6247 = vmax.xlane.f32.xlu0 %v6246
      %v6248 = vpop.xlane.xlu0 %6247
      %v6249 = vsel %vm1615, %v5569, -inf
      %6250 = vmax.xlane.f32.xlu0 %v6249
      %v6251 = vpop.xlane.xlu0 %6250
      %v6252 = vsel %vm1615, %v5574, -inf
      %6253 = vmax.xlane.f32.xlu0 %v6252
      %v6254 = vpop.xlane.xlu0 %6253
      %v6255 = vsel %vm1615, %v5577, -inf
      %6256 = vmax.xlane.f32.xlu0 %v6255
      %v6257 = vpop.xlane.xlu0 %6256
      %v6258 = vsel %vm1615, %v5655, -inf
      %6259 = vmax.xlane.f32.xlu0 %v6258
      %v6260 = vpop.xlane.xlu0 %6259
      %v6261 = vsel %vm1615, %v5658, -inf
      %6262 = vmax.xlane.f32.xlu0 %v6261
      %v6263 = vpop.xlane.xlu0 %6262
      %v6264 = vsel %vm1615, %v5663, -inf
      %6265 = vmax.xlane.f32.xlu0 %v6264
      %v6266 = vpop.xlane.xlu0 %6265
      %v6267 = vsel %vm1615, %v5666, -inf
      %6268 = vmax.xlane.f32.xlu0 %v6267
      %v6269 = vpop.xlane.xlu0 %6268
      %v6270 = vsel %vm1615, %v5671, -inf
      %6271 = vmax.xlane.f32.xlu0 %v6270
      %v6272 = vpop.xlane.xlu0 %6271
      %v6273 = vsel %vm1615, %v5674, -inf
      %6274 = vmax.xlane.f32.xlu0 %v6273
      %v6275 = vpop.xlane.xlu0 %6274
      %v6276 = vsel %vm1615, %v5679, -inf
      %6277 = vmax.xlane.f32.xlu0 %v6276
      %v6278 = vpop.xlane.xlu0 %6277
      %v6279 = vsel %vm1615, %v5682, -inf
      %6280 = vmax.xlane.f32.xlu0 %v6279
      %v6281 = vpop.xlane.xlu0 %6280
      %v6282 = vsel %vm1615, %v5760, -inf
      %6283 = vmax.xlane.f32.xlu0 %v6282
      %v6284 = vpop.xlane.xlu0 %6283
      %v6285 = vsel %vm1615, %v5763, -inf
      %6286 = vmax.xlane.f32.xlu0 %v6285
      %v6287 = vpop.xlane.xlu0 %6286
      %v6288 = vsel %vm1615, %v5768, -inf
      %6289 = vmax.xlane.f32.xlu0 %v6288
      %v6290 = vpop.xlane.xlu0 %6289
      %v6291 = vsel %vm1615, %v5771, -inf
      %6292 = vmax.xlane.f32.xlu0 %v6291
      %v6293 = vpop.xlane.xlu0 %6292
      %v6294 = vsel %vm1615, %v5776, -inf
      %6295 = vmax.xlane.f32.xlu0 %v6294
      %v6296 = vpop.xlane.xlu0 %6295
      %v6297 = vsel %vm1615, %v5779, -inf
      %6298 = vmax.xlane.f32.xlu0 %v6297
      %v6299 = vpop.xlane.xlu0 %6298
      %v6300 = vsel %vm1615, %v5784, -inf
      %6301 = vmax.xlane.f32.xlu0 %v6300
      %v6302 = vpop.xlane.xlu0 %6301
      %v6303 = vsel %vm1615, %v5787, -inf
      %6304 = vmax.xlane.f32.xlu0 %v6303
      %v6305 = vpop.xlane.xlu0 %6304
      %v6306 = vsel %vm1615, %v5865, -inf
      %6307 = vmax.xlane.f32.xlu0 %v6306
      %v6308 = vpop.xlane.xlu0 %6307
      %v6309 = vsel %vm1615, %v5868, -inf
      %6310 = vmax.xlane.f32.xlu0 %v6309
      %v6311 = vpop.xlane.xlu0 %6310
      %v6312 = vsel %vm1615, %v5873, -inf
      %6313 = vmax.xlane.f32.xlu0 %v6312
      %v6314 = vpop.xlane.xlu0 %6313
      %v6315 = vsel %vm1615, %v5876, -inf
      %6316 = vmax.xlane.f32.xlu0 %v6315
      %v6317 = vpop.xlane.xlu0 %6316
      %v6318 = vsel %vm1615, %v5881, -inf
      %6319 = vmax.xlane.f32.xlu0 %v6318
      %v6320 = vpop.xlane.xlu0 %6319
      %v6321 = vsel %vm1615, %v5884, -inf
      %6322 = vmax.xlane.f32.xlu0 %v6321
      %v6323 = vpop.xlane.xlu0 %6322
      %v6324 = vsel %vm1615, %v5889, -inf
      %6325 = vmax.xlane.f32.xlu0 %v6324
      %v6326 = vpop.xlane.xlu0 %6325
      %v6327 = vsel %vm1615, %v5892, -inf
      %6328 = vmax.xlane.f32.xlu0 %v6327
      %v6329 = vpop.xlane.xlu0 %6328
      %v6330 = vsel %vm1615, %v5970, -inf
      %6331 = vmax.xlane.f32.xlu0 %v6330
      %v6332 = vpop.xlane.xlu0 %6331
      %v6333 = vsel %vm1615, %v5973, -inf
      %6334 = vmax.xlane.f32.xlu0 %v6333
      %v6335 = vpop.xlane.xlu0 %6334
      %v6336 = vsel %vm1615, %v5978, -inf
      %6337 = vmax.xlane.f32.xlu0 %v6336
      %v6338 = vpop.xlane.xlu0 %6337
      %v6339 = vsel %vm1615, %v5981, -inf
      %6340 = vmax.xlane.f32.xlu0 %v6339
      %v6341 = vpop.xlane.xlu0 %6340
      %v6342 = vsel %vm1615, %v5986, -inf
      %6343 = vmax.xlane.f32.xlu0 %v6342
      %v6344 = vpop.xlane.xlu0 %6343
      %v6345 = vsel %vm1615, %v5989, -inf
      %6346 = vmax.xlane.f32.xlu0 %v6345
      %v6347 = vpop.xlane.xlu0 %6346
      %v6348 = vsel %vm1615, %v5994, -inf
      %6349 = vmax.xlane.f32.xlu0 %v6348
      %v6350 = vpop.xlane.xlu0 %6349
      %v6351 = vsel %vm1615, %v5997, -inf
      %6352 = vmax.xlane.f32.xlu0 %v6351
      %v6353 = vpop.xlane.xlu0 %6352
      %v6354 = vsel %vm1615, %v6075, -inf
      %6355 = vmax.xlane.f32.xlu0 %v6354
      %v6356 = vpop.xlane.xlu0 %6355
      %v6357 = vsel %vm1615, %v6078, -inf
      %6358 = vmax.xlane.f32.xlu0 %v6357
      %v6359 = vpop.xlane.xlu0 %6358
      %v6360 = vsel %vm1615, %v6083, -inf
      %6361 = vmax.xlane.f32.xlu0 %v6360
      %v6362 = vpop.xlane.xlu0 %6361
      %v6363 = vsel %vm1615, %v6086, -inf
      %6364 = vmax.xlane.f32.xlu0 %v6363
      %v6365 = vpop.xlane.xlu0 %6364
      %v6366 = vsel %vm1615, %v6091, -inf
      %6367 = vmax.xlane.f32.xlu0 %v6366
      %v6368 = vpop.xlane.xlu0 %6367
      %v6369 = vsel %vm1615, %v6094, -inf
      %6370 = vmax.xlane.f32.xlu0 %v6369
      %v6371 = vpop.xlane.xlu0 %6370
      %v6372 = vsel %vm1615, %v6099, -inf
      %6373 = vmax.xlane.f32.xlu0 %v6372
      %v6374 = vpop.xlane.xlu0 %6373
      %v6375 = vsel %vm1615, %v6102, -inf
      %6376 = vmax.xlane.f32.xlu0 %v6375
      %v6377 = vpop.xlane.xlu0 %6376
      %v6378 = vsel %vm1615, %v6180, -inf
      %6379 = vmax.xlane.f32.xlu0 %v6378
      %v6380 = vpop.xlane.xlu0 %6379
      %v6381 = vsel %vm1615, %v6183, -inf
      %6382 = vmax.xlane.f32.xlu0 %v6381
      %v6383 = vpop.xlane.xlu0 %6382
      %v6384 = vsel %vm1615, %v6188, -inf
      %6385 = vmax.xlane.f32.xlu0 %v6384
      %v6386 = vpop.xlane.xlu0 %6385
      %v6387 = vsel %vm1615, %v6191, -inf
      %6388 = vmax.xlane.f32.xlu0 %v6387
      %v6389 = vpop.xlane.xlu0 %6388
      %v6390 = vsel %vm1615, %v6196, -inf
      %6391 = vmax.xlane.f32.xlu0 %v6390
      %v6392 = vpop.xlane.xlu0 %6391
      %v6393 = vsel %vm1615, %v6199, -inf
      %6394 = vmax.xlane.f32.xlu0 %v6393
      %v6395 = vpop.xlane.xlu0 %6394
      %v6396 = vsel %vm1615, %v6204, -inf
      %6397 = vmax.xlane.f32.xlu0 %v6396
      %v6398 = vpop.xlane.xlu0 %6397
      %v6399 = vsel %vm1615, %v6207, -inf
      %6400 = vmax.xlane.f32.xlu0 %v6399
      %v6401 = vpop.xlane.xlu0 %6400
      %v6402 = vsub.f32 %v5445, %v6212
      %v6403 = vsub.f32 %v5448, %v6215
      %v6404 = vsub.f32 %v5453, %v6218
      %v6405 = vsub.f32 %v5456, %v6221
      %v6406 = vsub.f32 %v5461, %v6224
      %v6407 = vsub.f32 %v5464, %v6227
      %v6408 = vsub.f32 %v5469, %v6230
      %v6409 = vsub.f32 %v5472, %v6233
      %v6410 = vsub.f32 %v5550, %v6236
      %v6411 = vsub.f32 %v5553, %v6239
      %v6412 = vsub.f32 %v5558, %v6242
      %v6413 = vsub.f32 %v5561, %v6245
      %v6414 = vsub.f32 %v5566, %v6248
      %v6415 = vsub.f32 %v5569, %v6251
      %v6416 = vsub.f32 %v5574, %v6254
      %v6417 = vsub.f32 %v5577, %v6257
      %v6418 = vsub.f32 %v5655, %v6260
      %v6419 = vsub.f32 %v5658, %v6263
      %v6420 = vsub.f32 %v5663, %v6266
      %v6421 = vsub.f32 %v5666, %v6269
      %v6422 = vsub.f32 %v5671, %v6272
      %v6423 = vsub.f32 %v5674, %v6275
      %v6424 = vsub.f32 %v5679, %v6278
      %v6425 = vsub.f32 %v5682, %v6281
      %v6426 = vsub.f32 %v5760, %v6284
      %v6427 = vsub.f32 %v5763, %v6287
      %v6428 = vsub.f32 %v5768, %v6290
      %v6429 = vsub.f32 %v5771, %v6293
      %v6430 = vsub.f32 %v5776, %v6296
      %v6431 = vsub.f32 %v5779, %v6299
      %v6432 = vsub.f32 %v5784, %v6302
      %v6433 = vsub.f32 %v5787, %v6305
      %v6434 = vsub.f32 %v5865, %v6308
      %v6435 = vsub.f32 %v5868, %v6311
      %v6436 = vsub.f32 %v5873, %v6314
      %v6437 = vsub.f32 %v5876, %v6317
      %v6438 = vsub.f32 %v5881, %v6320
      %v6439 = vsub.f32 %v5884, %v6323
      %v6440 = vsub.f32 %v5889, %v6326
      %v6441 = vsub.f32 %v5892, %v6329
      %v6442 = vsub.f32 %v5970, %v6332
      %v6443 = vsub.f32 %v5973, %v6335
      %v6444 = vsub.f32 %v5978, %v6338
      %v6445 = vsub.f32 %v5981, %v6341
      %v6446 = vsub.f32 %v5986, %v6344
      %v6447 = vsub.f32 %v5989, %v6347
      %v6448 = vsub.f32 %v5994, %v6350
      %v6449 = vsub.f32 %v5997, %v6353
      %v6450 = vsub.f32 %v6075, %v6356
      %v6451 = vsub.f32 %v6078, %v6359
      %v6452 = vsub.f32 %v6083, %v6362
      %v6453 = vsub.f32 %v6086, %v6365
      %v6454 = vsub.f32 %v6091, %v6368
      %v6455 = vsub.f32 %v6094, %v6371
      %v6456 = vsub.f32 %v6099, %v6374
      %v6457 = vsub.f32 %v6102, %v6377
      %v6458 = vsub.f32 %v6180, %v6380
      %v6459 = vsub.f32 %v6183, %v6383
      %v6460 = vsub.f32 %v6188, %v6386
      %v6461 = vsub.f32 %v6191, %v6389
      %v6462 = vsub.f32 %v6196, %v6392
      %v6463 = vsub.f32 %v6199, %v6395
      %v6464 = vsub.f32 %v6204, %v6398
      %v6465 = vsub.f32 %v6207, %v6401
      %v6466 = vmul.f32 %v6402, 1.442695
      %v6467 = vpow.pop %v6466
      %v6468 = vmul.f32 %v6403, 1.442695
      %v6469 = vpow.pop %v6468
      %v6470 = vmul.f32 %v6404, 1.442695
      %v6471 = vpow.pop %v6470
      %v6472 = vmul.f32 %v6405, 1.442695
      %v6473 = vpow.pop %v6472
      %v6474 = vmul.f32 %v6406, 1.442695
      %v6475 = vpow.pop %v6474
      %v6476 = vmul.f32 %v6407, 1.442695
      %v6477 = vpow.pop %v6476
      %v6478 = vmul.f32 %v6408, 1.442695
      %v6479 = vpow.pop %v6478
      %v6480 = vmul.f32 %v6409, 1.442695
      %v6481 = vpow.pop %v6480
      %v6482 = vmul.f32 %v6410, 1.442695
      %v6483 = vpow.pop %v6482
      %v6484 = vmul.f32 %v6411, 1.442695
      %v6485 = vpow.pop %v6484
      %v6486 = vmul.f32 %v6412, 1.442695
      %v6487 = vpow.pop %v6486
      %v6488 = vmul.f32 %v6413, 1.442695
      %v6489 = vpow.pop %v6488
      %v6490 = vmul.f32 %v6414, 1.442695
      %v6491 = vpow.pop %v6490
      %v6492 = vmul.f32 %v6415, 1.442695
      %v6493 = vpow.pop %v6492
      %v6494 = vmul.f32 %v6416, 1.442695
      %v6495 = vpow.pop %v6494
      %v6496 = vmul.f32 %v6417, 1.442695
      %v6497 = vpow.pop %v6496
      %v6498 = vmul.f32 %v6418, 1.442695
      %v6499 = vpow.pop %v6498
      %v6500 = vmul.f32 %v6419, 1.442695
      %v6501 = vpow.pop %v6500
      %v6502 = vmul.f32 %v6420, 1.442695
      %v6503 = vpow.pop %v6502
      %v6504 = vmul.f32 %v6421, 1.442695
      %v6505 = vpow.pop %v6504
      %v6506 = vmul.f32 %v6422, 1.442695
      %v6507 = vpow.pop %v6506
      %v6508 = vmul.f32 %v6423, 1.442695
      %v6509 = vpow.pop %v6508
      %v6510 = vmul.f32 %v6424, 1.442695
      %v6511 = vpow.pop %v6510
      %v6512 = vmul.f32 %v6425, 1.442695
      %v6513 = vpow.pop %v6512
      %v6514 = vmul.f32 %v6426, 1.442695
      %v6515 = vpow.pop %v6514
      %v6516 = vmul.f32 %v6427, 1.442695
      %v6517 = vpow.pop %v6516
      %v6518 = vmul.f32 %v6428, 1.442695
      %v6519 = vpow.pop %v6518
      %v6520 = vmul.f32 %v6429, 1.442695
      %v6521 = vpow.pop %v6520
      %v6522 = vmul.f32 %v6430, 1.442695
      %v6523 = vpow.pop %v6522
      %v6524 = vmul.f32 %v6431, 1.442695
      %v6525 = vpow.pop %v6524
      %v6526 = vmul.f32 %v6432, 1.442695
      %v6527 = vpow.pop %v6526
      %v6528 = vmul.f32 %v6433, 1.442695
      %v6529 = vpow.pop %v6528
      %v6530 = vmul.f32 %v6434, 1.442695
      %v6531 = vpow.pop %v6530
      %v6532 = vmul.f32 %v6435, 1.442695
      %v6533 = vpow.pop %v6532
      %v6534 = vmul.f32 %v6436, 1.442695
      %v6535 = vpow.pop %v6534
      %v6536 = vmul.f32 %v6437, 1.442695
      %v6537 = vpow.pop %v6536
      %v6538 = vmul.f32 %v6438, 1.442695
      %v6539 = vpow.pop %v6538
      %v6540 = vmul.f32 %v6439, 1.442695
      %v6541 = vpow.pop %v6540
      %v6542 = vmul.f32 %v6440, 1.442695
      %v6543 = vpow.pop %v6542
      %v6544 = vmul.f32 %v6441, 1.442695
      %v6545 = vpow.pop %v6544
      %v6546 = vmul.f32 %v6442, 1.442695
      %v6547 = vpow.pop %v6546
      %v6548 = vmul.f32 %v6443, 1.442695
      %v6549 = vpow.pop %v6548
      %v6550 = vmul.f32 %v6444, 1.442695
      %v6551 = vpow.pop %v6550
      %v6552 = vmul.f32 %v6445, 1.442695
      %v6553 = vpow.pop %v6552
      %v6554 = vmul.f32 %v6446, 1.442695
      %v6555 = vpow.pop %v6554
      %v6556 = vmul.f32 %v6447, 1.442695
      %v6557 = vpow.pop %v6556
      %v6558 = vmul.f32 %v6448, 1.442695
      %v6559 = vpow.pop %v6558
      %v6560 = vmul.f32 %v6449, 1.442695
      %v6561 = vpow.pop %v6560
      %v6562 = vmul.f32 %v6450, 1.442695
      %v6563 = vpow.pop %v6562
      %v6564 = vmul.f32 %v6451, 1.442695
      %v6565 = vpow.pop %v6564
      %v6566 = vmul.f32 %v6452, 1.442695
      %v6567 = vpow.pop %v6566
      %v6568 = vmul.f32 %v6453, 1.442695
      %v6569 = vpow.pop %v6568
      %v6570 = vmul.f32 %v6454, 1.442695
      %v6571 = vpow.pop %v6570
      %v6572 = vmul.f32 %v6455, 1.442695
      %v6573 = vpow.pop %v6572
      %v6574 = vmul.f32 %v6456, 1.442695
      %v6575 = vpow.pop %v6574
      %v6576 = vmul.f32 %v6457, 1.442695
      %v6577 = vpow.pop %v6576
      %v6578 = vmul.f32 %v6458, 1.442695
      %v6579 = vpow.pop %v6578
      %v6580 = vmul.f32 %v6459, 1.442695
      %v6581 = vpow.pop %v6580
      %v6582 = vmul.f32 %v6460, 1.442695
      %v6583 = vpow.pop %v6582
      %v6584 = vmul.f32 %v6461, 1.442695
      %v6585 = vpow.pop %v6584
      %v6586 = vmul.f32 %v6462, 1.442695
      %v6587 = vpow.pop %v6586
      %v6588 = vmul.f32 %v6463, 1.442695
      %v6589 = vpow.pop %v6588
      %v6590 = vmul.f32 %v6464, 1.442695
      %v6591 = vpow.pop %v6590
      %v6592 = vmul.f32 %v6465, 1.442695
      %v6593 = vpow.pop %v6592
      %v6594 = vsel %vm1615, %v6467, 0.0
      %6595 = vadd.xlane.f32.xlu0 %v6594
      %v6596 = vpop.xlane.xlu0 %6595
      %v6597 = vsel %vm1615, %v6469, 0.0
      %6598 = vadd.xlane.f32.xlu0 %v6597
      %v6599 = vpop.xlane.xlu0 %6598
      %v6600 = vsel %vm1615, %v6471, 0.0
      %6601 = vadd.xlane.f32.xlu0 %v6600
      %v6602 = vpop.xlane.xlu0 %6601
      %v6603 = vsel %vm1615, %v6473, 0.0
      %6604 = vadd.xlane.f32.xlu0 %v6603
      %v6605 = vpop.xlane.xlu0 %6604
      %v6606 = vsel %vm1615, %v6475, 0.0
      %6607 = vadd.xlane.f32.xlu0 %v6606
      %v6608 = vpop.xlane.xlu0 %6607
      %v6609 = vsel %vm1615, %v6477, 0.0
      %6610 = vadd.xlane.f32.xlu0 %v6609
      %v6611 = vpop.xlane.xlu0 %6610
      %v6612 = vsel %vm1615, %v6479, 0.0
      %6613 = vadd.xlane.f32.xlu0 %v6612
      %v6614 = vpop.xlane.xlu0 %6613
      %v6615 = vsel %vm1615, %v6481, 0.0
      %6616 = vadd.xlane.f32.xlu0 %v6615
      %v6617 = vpop.xlane.xlu0 %6616
      %v6618 = vsel %vm1615, %v6483, 0.0
      %6619 = vadd.xlane.f32.xlu0 %v6618
      %v6620 = vpop.xlane.xlu0 %6619
      %v6621 = vsel %vm1615, %v6485, 0.0
      %6622 = vadd.xlane.f32.xlu0 %v6621
      %v6623 = vpop.xlane.xlu0 %6622
      %v6624 = vsel %vm1615, %v6487, 0.0
      %6625 = vadd.xlane.f32.xlu0 %v6624
      %v6626 = vpop.xlane.xlu0 %6625
      %v6627 = vsel %vm1615, %v6489, 0.0
      %6628 = vadd.xlane.f32.xlu0 %v6627
      %v6629 = vpop.xlane.xlu0 %6628
      %v6630 = vsel %vm1615, %v6491, 0.0
      %6631 = vadd.xlane.f32.xlu0 %v6630
      %v6632 = vpop.xlane.xlu0 %6631
      %v6633 = vsel %vm1615, %v6493, 0.0
      %6634 = vadd.xlane.f32.xlu0 %v6633
      %v6635 = vpop.xlane.xlu0 %6634
      %v6636 = vsel %vm1615, %v6495, 0.0
      %6637 = vadd.xlane.f32.xlu0 %v6636
      %v6638 = vpop.xlane.xlu0 %6637
      %v6639 = vsel %vm1615, %v6497, 0.0
      %6640 = vadd.xlane.f32.xlu0 %v6639
      %v6641 = vpop.xlane.xlu0 %6640
      %v6642 = vsel %vm1615, %v6499, 0.0
      %6643 = vadd.xlane.f32.xlu0 %v6642
      %v6644 = vpop.xlane.xlu0 %6643
      %v6645 = vsel %vm1615, %v6501, 0.0
      %6646 = vadd.xlane.f32.xlu0 %v6645
      %v6647 = vpop.xlane.xlu0 %6646
      %v6648 = vsel %vm1615, %v6503, 0.0
      %6649 = vadd.xlane.f32.xlu0 %v6648
      %v6650 = vpop.xlane.xlu0 %6649
      %v6651 = vsel %vm1615, %v6505, 0.0
      %6652 = vadd.xlane.f32.xlu0 %v6651
      %v6653 = vpop.xlane.xlu0 %6652
      %v6654 = vsel %vm1615, %v6507, 0.0
      %6655 = vadd.xlane.f32.xlu0 %v6654
      %v6656 = vpop.xlane.xlu0 %6655
      %v6657 = vsel %vm1615, %v6509, 0.0
      %6658 = vadd.xlane.f32.xlu0 %v6657
      %v6659 = vpop.xlane.xlu0 %6658
      %v6660 = vsel %vm1615, %v6511, 0.0
      %6661 = vadd.xlane.f32.xlu0 %v6660
      %v6662 = vpop.xlane.xlu0 %6661
      %v6663 = vsel %vm1615, %v6513, 0.0
      %6664 = vadd.xlane.f32.xlu0 %v6663
      %v6665 = vpop.xlane.xlu0 %6664
      %v6666 = vsel %vm1615, %v6515, 0.0
      %6667 = vadd.xlane.f32.xlu0 %v6666
      %v6668 = vpop.xlane.xlu0 %6667
      %v6669 = vsel %vm1615, %v6517, 0.0
      %6670 = vadd.xlane.f32.xlu0 %v6669
      %v6671 = vpop.xlane.xlu0 %6670
      %v6672 = vsel %vm1615, %v6519, 0.0
      %6673 = vadd.xlane.f32.xlu0 %v6672
      %v6674 = vpop.xlane.xlu0 %6673
      %v6675 = vsel %vm1615, %v6521, 0.0
      %6676 = vadd.xlane.f32.xlu0 %v6675
      %v6677 = vpop.xlane.xlu0 %6676
      %v6678 = vsel %vm1615, %v6523, 0.0
      %6679 = vadd.xlane.f32.xlu0 %v6678
      %v6680 = vpop.xlane.xlu0 %6679
      %v6681 = vsel %vm1615, %v6525, 0.0
      %6682 = vadd.xlane.f32.xlu0 %v6681
      %v6683 = vpop.xlane.xlu0 %6682
      %v6684 = vsel %vm1615, %v6527, 0.0
      %6685 = vadd.xlane.f32.xlu0 %v6684
      %v6686 = vpop.xlane.xlu0 %6685
      %v6687 = vsel %vm1615, %v6529, 0.0
      %6688 = vadd.xlane.f32.xlu0 %v6687
      %v6689 = vpop.xlane.xlu0 %6688
      %v6690 = vsel %vm1615, %v6531, 0.0
      %6691 = vadd.xlane.f32.xlu0 %v6690
      %v6692 = vpop.xlane.xlu0 %6691
      %v6693 = vsel %vm1615, %v6533, 0.0
      %6694 = vadd.xlane.f32.xlu0 %v6693
      %v6695 = vpop.xlane.xlu0 %6694
      %v6696 = vsel %vm1615, %v6535, 0.0
      %6697 = vadd.xlane.f32.xlu0 %v6696
      %v6698 = vpop.xlane.xlu0 %6697
      %v6699 = vsel %vm1615, %v6537, 0.0
      %6700 = vadd.xlane.f32.xlu0 %v6699
      %v6701 = vpop.xlane.xlu0 %6700
      %v6702 = vsel %vm1615, %v6539, 0.0
      %6703 = vadd.xlane.f32.xlu0 %v6702
      %v6704 = vpop.xlane.xlu0 %6703
      %v6705 = vsel %vm1615, %v6541, 0.0
      %6706 = vadd.xlane.f32.xlu0 %v6705
      %v6707 = vpop.xlane.xlu0 %6706
      %v6708 = vsel %vm1615, %v6543, 0.0
      %6709 = vadd.xlane.f32.xlu0 %v6708
      %v6710 = vpop.xlane.xlu0 %6709
      %v6711 = vsel %vm1615, %v6545, 0.0
      %6712 = vadd.xlane.f32.xlu0 %v6711
      %v6713 = vpop.xlane.xlu0 %6712
      %v6714 = vsel %vm1615, %v6547, 0.0
      %6715 = vadd.xlane.f32.xlu0 %v6714
      %v6716 = vpop.xlane.xlu0 %6715
      %v6717 = vsel %vm1615, %v6549, 0.0
      %6718 = vadd.xlane.f32.xlu0 %v6717
      %v6719 = vpop.xlane.xlu0 %6718
      %v6720 = vsel %vm1615, %v6551, 0.0
      %6721 = vadd.xlane.f32.xlu0 %v6720
      %v6722 = vpop.xlane.xlu0 %6721
      %v6723 = vsel %vm1615, %v6553, 0.0
      %6724 = vadd.xlane.f32.xlu0 %v6723
      %v6725 = vpop.xlane.xlu0 %6724
      %v6726 = vsel %vm1615, %v6555, 0.0
      %6727 = vadd.xlane.f32.xlu0 %v6726
      %v6728 = vpop.xlane.xlu0 %6727
      %v6729 = vsel %vm1615, %v6557, 0.0
      %6730 = vadd.xlane.f32.xlu0 %v6729
      %v6731 = vpop.xlane.xlu0 %6730
      %v6732 = vsel %vm1615, %v6559, 0.0
      %6733 = vadd.xlane.f32.xlu0 %v6732
      %v6734 = vpop.xlane.xlu0 %6733
      %v6735 = vsel %vm1615, %v6561, 0.0
      %6736 = vadd.xlane.f32.xlu0 %v6735
      %v6737 = vpop.xlane.xlu0 %6736
      %v6738 = vsel %vm1615, %v6563, 0.0
      %6739 = vadd.xlane.f32.xlu0 %v6738
      %v6740 = vpop.xlane.xlu0 %6739
      %v6741 = vsel %vm1615, %v6565, 0.0
      %6742 = vadd.xlane.f32.xlu0 %v6741
      %v6743 = vpop.xlane.xlu0 %6742
      %v6744 = vsel %vm1615, %v6567, 0.0
      %6745 = vadd.xlane.f32.xlu0 %v6744
      %v6746 = vpop.xlane.xlu0 %6745
      %v6747 = vsel %vm1615, %v6569, 0.0
      %6748 = vadd.xlane.f32.xlu0 %v6747
      %v6749 = vpop.xlane.xlu0 %6748
      %v6750 = vsel %vm1615, %v6571, 0.0
      %6751 = vadd.xlane.f32.xlu0 %v6750
      %v6752 = vpop.xlane.xlu0 %6751
      %v6753 = vsel %vm1615, %v6573, 0.0
      %6754 = vadd.xlane.f32.xlu0 %v6753
      %v6755 = vpop.xlane.xlu0 %6754
      %v6756 = vsel %vm1615, %v6575, 0.0
      %6757 = vadd.xlane.f32.xlu0 %v6756
      %v6758 = vpop.xlane.xlu0 %6757
      %v6759 = vsel %vm1615, %v6577, 0.0
      %6760 = vadd.xlane.f32.xlu0 %v6759
      %v6761 = vpop.xlane.xlu0 %6760
      %v6762 = vsel %vm1615, %v6579, 0.0
      %6763 = vadd.xlane.f32.xlu0 %v6762
      %v6764 = vpop.xlane.xlu0 %6763
      %v6765 = vsel %vm1615, %v6581, 0.0
      %6766 = vadd.xlane.f32.xlu0 %v6765
      %v6767 = vpop.xlane.xlu0 %6766
      %v6768 = vsel %vm1615, %v6583, 0.0
      %6769 = vadd.xlane.f32.xlu0 %v6768
      %v6770 = vpop.xlane.xlu0 %6769
      %v6771 = vsel %vm1615, %v6585, 0.0
      %6772 = vadd.xlane.f32.xlu0 %v6771
      %v6773 = vpop.xlane.xlu0 %6772
      %v6774 = vsel %vm1615, %v6587, 0.0
      %6775 = vadd.xlane.f32.xlu0 %v6774
      %v6776 = vpop.xlane.xlu0 %6775
      %v6777 = vsel %vm1615, %v6589, 0.0
      %6778 = vadd.xlane.f32.xlu0 %v6777
      %v6779 = vpop.xlane.xlu0 %6778
      %v6780 = vsel %vm1615, %v6591, 0.0
      %6781 = vadd.xlane.f32.xlu0 %v6780
      %v6782 = vpop.xlane.xlu0 %6781
      %v6783 = vsel %vm1615, %v6593, 0.0
      %6784 = vadd.xlane.f32.xlu0 %v6783
      %v6785 = vpop.xlane.xlu0 %6784
      %v6786 = vrcp.pop %v6596
      %v6787 = vrcp.pop %v6599
      %v6788 = vrcp.pop %v6602
      %v6789 = vrcp.pop %v6605
      %v6790 = vrcp.pop %v6608
      %v6791 = vrcp.pop %v6611
      %v6792 = vrcp.pop %v6614
      %v6793 = vrcp.pop %v6617
      %v6794 = vrcp.pop %v6620
      %v6795 = vrcp.pop %v6623
      %v6796 = vrcp.pop %v6626
      %v6797 = vrcp.pop %v6629
      %v6798 = vrcp.pop %v6632
      %v6799 = vrcp.pop %v6635
      %v6800 = vrcp.pop %v6638
      %v6801 = vrcp.pop %v6641
      %v6802 = vrcp.pop %v6644
      %v6803 = vrcp.pop %v6647
      %v6804 = vrcp.pop %v6650
      %v6805 = vrcp.pop %v6653
      %v6806 = vrcp.pop %v6656
      %v6807 = vrcp.pop %v6659
      %v6808 = vrcp.pop %v6662
      %v6809 = vrcp.pop %v6665
      %v6810 = vrcp.pop %v6668
      %v6811 = vrcp.pop %v6671
      %v6812 = vrcp.pop %v6674
      %v6813 = vrcp.pop %v6677
      %v6814 = vrcp.pop %v6680
      %v6815 = vrcp.pop %v6683
      %v6816 = vrcp.pop %v6686
      %v6817 = vrcp.pop %v6689
      %v6818 = vrcp.pop %v6692
      %v6819 = vrcp.pop %v6695
      %v6820 = vrcp.pop %v6698
      %v6821 = vrcp.pop %v6701
      %v6822 = vrcp.pop %v6704
      %v6823 = vrcp.pop %v6707
      %v6824 = vrcp.pop %v6710
      %v6825 = vrcp.pop %v6713
      %v6826 = vrcp.pop %v6716
      %v6827 = vrcp.pop %v6719
      %v6828 = vrcp.pop %v6722
      %v6829 = vrcp.pop %v6725
      %v6830 = vrcp.pop %v6728
      %v6831 = vrcp.pop %v6731
      %v6832 = vrcp.pop %v6734
      %v6833 = vrcp.pop %v6737
      %v6834 = vrcp.pop %v6740
      %v6835 = vrcp.pop %v6743
      %v6836 = vrcp.pop %v6746
      %v6837 = vrcp.pop %v6749
      %v6838 = vrcp.pop %v6752
      %v6839 = vrcp.pop %v6755
      %v6840 = vrcp.pop %v6758
      %v6841 = vrcp.pop %v6761
      %v6842 = vrcp.pop %v6764
      %v6843 = vrcp.pop %v6767
      %v6844 = vrcp.pop %v6770
      %v6845 = vrcp.pop %v6773
      %v6846 = vrcp.pop %v6776
      %v6847 = vrcp.pop %v6779
      %v6848 = vrcp.pop %v6782
      %v6849 = vrcp.pop %v6785
      %v6850 = vmul.f32 %v6467, %v6786
      %v6851 = vmul.f32 %v6469, %v6787
      %v6852 = vmul.f32 %v6471, %v6788
      %v6853 = vmul.f32 %v6473, %v6789
      %v6854 = vmul.f32 %v6475, %v6790
      %v6855 = vmul.f32 %v6477, %v6791
      %v6856 = vmul.f32 %v6479, %v6792
      %v6857 = vmul.f32 %v6481, %v6793
      %v6858 = vmul.f32 %v6483, %v6794
      %v6859 = vmul.f32 %v6485, %v6795
      %v6860 = vmul.f32 %v6487, %v6796
      %v6861 = vmul.f32 %v6489, %v6797
      %v6862 = vmul.f32 %v6491, %v6798
      %v6863 = vmul.f32 %v6493, %v6799
      %v6864 = vmul.f32 %v6495, %v6800
      %v6865 = vmul.f32 %v6497, %v6801
      %v6866 = vmul.f32 %v6499, %v6802
      %v6867 = vmul.f32 %v6501, %v6803
      %v6868 = vmul.f32 %v6503, %v6804
      %v6869 = vmul.f32 %v6505, %v6805
      %v6870 = vmul.f32 %v6507, %v6806
      %v6871 = vmul.f32 %v6509, %v6807
      %v6872 = vmul.f32 %v6511, %v6808
      %v6873 = vmul.f32 %v6513, %v6809
      %v6874 = vmul.f32 %v6515, %v6810
      %v6875 = vmul.f32 %v6517, %v6811
      %v6876 = vmul.f32 %v6519, %v6812
      %v6877 = vmul.f32 %v6521, %v6813
      %v6878 = vmul.f32 %v6523, %v6814
      %v6879 = vmul.f32 %v6525, %v6815
      %v6880 = vmul.f32 %v6527, %v6816
      %v6881 = vmul.f32 %v6529, %v6817
      %v6882 = vmul.f32 %v6531, %v6818
      %v6883 = vmul.f32 %v6533, %v6819
      %v6884 = vmul.f32 %v6535, %v6820
      %v6885 = vmul.f32 %v6537, %v6821
      %v6886 = vmul.f32 %v6539, %v6822
      %v6887 = vmul.f32 %v6541, %v6823
      %v6888 = vmul.f32 %v6543, %v6824
      %v6889 = vmul.f32 %v6545, %v6825
      %v6890 = vmul.f32 %v6547, %v6826
      %v6891 = vmul.f32 %v6549, %v6827
      %v6892 = vmul.f32 %v6551, %v6828
      %v6893 = vmul.f32 %v6553, %v6829
      %v6894 = vmul.f32 %v6555, %v6830
      %v6895 = vmul.f32 %v6557, %v6831
      %v6896 = vmul.f32 %v6559, %v6832
      %v6897 = vmul.f32 %v6561, %v6833
      %v6898 = vmul.f32 %v6563, %v6834
      %v6899 = vmul.f32 %v6565, %v6835
      %v6900 = vmul.f32 %v6567, %v6836
      %v6901 = vmul.f32 %v6569, %v6837
      %v6902 = vmul.f32 %v6571, %v6838
      %v6903 = vmul.f32 %v6573, %v6839
      %v6904 = vmul.f32 %v6575, %v6840
      %v6905 = vmul.f32 %v6577, %v6841
      %v6906 = vmul.f32 %v6579, %v6842
      %v6907 = vmul.f32 %v6581, %v6843
      %v6908 = vmul.f32 %v6583, %v6844
      %v6909 = vmul.f32 %v6585, %v6845
      %v6910 = vmul.f32 %v6587, %v6846
      %v6911 = vmul.f32 %v6589, %v6847
      %v6912 = vmul.f32 %v6591, %v6848
      %v6913 = vmul.f32 %v6593, %v6849
      %v6914 = vpack.c.bf16 %v6851, %v6850
      %v6915 = vpack.c.bf16 %v6853, %v6852
      %v6916 = vpack.c.bf16 %v6855, %v6854
      %v6917 = vpack.c.bf16 %v6857, %v6856
      %v6918 = vpack.c.bf16 %v6859, %v6858
      %v6919 = vpack.c.bf16 %v6861, %v6860
      %v6920 = vpack.c.bf16 %v6863, %v6862
      %v6921 = vpack.c.bf16 %v6865, %v6864
      %v6922 = vpack.c.bf16 %v6867, %v6866
      %v6923 = vpack.c.bf16 %v6869, %v6868
      %v6924 = vpack.c.bf16 %v6871, %v6870
      %v6925 = vpack.c.bf16 %v6873, %v6872
      %v6926 = vpack.c.bf16 %v6875, %v6874
      %v6927 = vpack.c.bf16 %v6877, %v6876
      %v6928 = vpack.c.bf16 %v6879, %v6878
      %v6929 = vpack.c.bf16 %v6881, %v6880
      %v6930 = vpack.c.bf16 %v6883, %v6882
      %v6931 = vpack.c.bf16 %v6885, %v6884
      %v6932 = vpack.c.bf16 %v6887, %v6886
      %v6933 = vpack.c.bf16 %v6889, %v6888
      %v6934 = vpack.c.bf16 %v6891, %v6890
      %v6935 = vpack.c.bf16 %v6893, %v6892
      %v6936 = vpack.c.bf16 %v6895, %v6894
      %v6937 = vpack.c.bf16 %v6897, %v6896
      %v6938 = vpack.c.bf16 %v6899, %v6898
      %v6939 = vpack.c.bf16 %v6901, %v6900
      %v6940 = vpack.c.bf16 %v6903, %v6902
      %v6941 = vpack.c.bf16 %v6905, %v6904
      %v6942 = vpack.c.bf16 %v6907, %v6906
      %v6943 = vpack.c.bf16 %v6909, %v6908
      %v6944 = vpack.c.bf16 %v6911, %v6910
      %v6945 = vpack.c.bf16 %v6913, %v6912
      %6946 = vrot.lane.b32.xlu0 %v766, 48
      %v6947 = vpop.permute.xlu0 %6946
      %6948 = vrot.lane.b32.xlu0 %v767, 48
      %v6949 = vpop.permute.xlu0 %6948
      %6950 = vrot.lane.b32.xlu0 %v768, 48
      %v6951 = vpop.permute.xlu0 %6950
      %6952 = vrot.lane.b32.xlu0 %v769, 48
      %v6953 = vpop.permute.xlu0 %6952
      %v6959 = vsel %vm1615, %v6914, 0
      %v6962 = vsel %vm1615, %v6915, 0
      %v6965 = vsel %vm1615, %v6916, 0
      %v6968 = vsel %vm1615, %v6917, 0
      %6970 = vmatprep.subr.bf16.mxu0 0
      %6971 = vmatpush1.bf16.msra.mxu0 %v6947
      %6972 = vmatprep.subr.bf16.mxu0 0
      %6973 = vmatpush1.bf16.msra.mxu0 %v6949
      %6974 = vmatprep.subr.bf16.mxu0 0
      %6975 = vmatpush1.bf16.msra.mxu0 %v6951
      %6976 = vmatprep.subr.bf16.mxu0 0
      %6977 = vmatpush1.bf16.msra.mxu0 %v6953
      %6978 = vmatprep.subr.bf16.mxu0 0
      %6979 = vmatpush1.bf16.msra.mxu0 0
      %6980 = vmatprep.subr.bf16.mxu0 0
      %6981 = vmatpush1.bf16.msra.mxu0 0
      %6982 = vmatprep.subr.bf16.mxu0 0
      %6983 = vmatpush1.bf16.msra.mxu0 0
      %6984 = vmatprep.subr.bf16.mxu0 0
      %6985 = vmatpush1.bf16.msra.mxu0 0
      %6986 = vmatprep.subr.bf16.mxu0 0
      %6987 = vmatpush1.bf16.msra.mxu0 0
      %6988 = vmatprep.subr.bf16.mxu0 0
      %6989 = vmatpush1.bf16.msra.mxu0 0
      %6990 = vmatprep.subr.bf16.mxu0 0
      %6991 = vmatpush1.bf16.msra.mxu0 0
      %6992 = vmatprep.subr.bf16.mxu0 0
      %6993 = vmatpush1.bf16.msra.mxu0 0
      %6994 = vmatprep.subr.bf16.mxu0 0
      %6995 = vmatpush1.bf16.msra.mxu0 0
      %6996 = vmatprep.subr.bf16.mxu0 0
      %6997 = vmatpush1.bf16.msra.mxu0 0
      %6998 = vmatprep.subr.bf16.mxu0 0
      %6999 = vmatpush1.bf16.msra.mxu0 0
      %7000 = vmatprep.subr.bf16.mxu0 0
      %7001 = vmatpush1.bf16.msra.mxu0 0
      %7002 = vmatprep.mubr.bf16.mxu0 0
      %7003 = vmatmul.mubr.bf16.gmra.mrb[0].mxu0 %v6959
      %v7004 = vpop.f32.mrb[0].mxu0
      %v7005 = vadd.f32 0.0, %v7004
      %v7006 = vpop.f32.mrb[0].mxu0
      %v7007 = vpop.f32.mrb[0].mxu0
      %v7008 = vadd.f32 0.0, %v7007
      %v7009 = vpop.f32.mrb[0].mxu0
      %7010 = vmatprep.mubr.bf16.mxu0 0
      %7011 = vmatmul.mubr.bf16.gmra.mrb[0].mxu0 %v6962
      %v7012 = vpop.f32.mrb[0].mxu0
      %v7013 = vadd.f32 0.0, %v7012
      %v7014 = vpop.f32.mrb[0].mxu0
      %v7015 = vpop.f32.mrb[0].mxu0
      %v7016 = vadd.f32 0.0, %v7015
      %v7017 = vpop.f32.mrb[0].mxu0
      %7018 = vmatprep.mubr.bf16.mxu0 0
      %7019 = vmatmul.mubr.bf16.gmra.mrb[0].mxu0 %v6965
      %v7020 = vpop.f32.mrb[0].mxu0
      %v7021 = vadd.f32 0.0, %v7020
      %v7022 = vpop.f32.mrb[0].mxu0
      %v7023 = vpop.f32.mrb[0].mxu0
      %v7024 = vadd.f32 0.0, %v7023
      %v7025 = vpop.f32.mrb[0].mxu0
      %7026 = vmatprep.mubr.bf16.mxu0 0
      %7027 = vmatmul.mubr.bf16.gmra.mrb[0].mxu0 %v6968
      %v7028 = vpop.f32.mrb[0].mxu0
      %v7029 = vadd.f32 0.0, %v7028
      %v7030 = vpop.f32.mrb[0].mxu0
      %v7031 = vpop.f32.mrb[0].mxu0
      %v7032 = vadd.f32 0.0, %v7031
      %v7033 = vpop.f32.mrb[0].mxu0
      %7034 = vdwg.mxu0
      %7035 = vrot.lane.b32.xlu0 %v770, 48
      %v7036 = vpop.permute.xlu0 %7035
      %7037 = vrot.lane.b32.xlu0 %v771, 48
      %v7038 = vpop.permute.xlu0 %7037
      %7039 = vrot.lane.b32.xlu0 %v772, 48
      %v7040 = vpop.permute.xlu0 %7039
      %7041 = vrot.lane.b32.xlu0 %v773, 48
      %v7042 = vpop.permute.xlu0 %7041
      %v7048 = vsel %vm1615, %v6918, 0
      %v7051 = vsel %vm1615, %v6919, 0
      %v7054 = vsel %vm1615, %v6920, 0
      %v7057 = vsel %vm1615, %v6921, 0
      %7059 = vmatprep.subr.bf16.mxu0 0
      %7060 = vmatpush1.bf16.msra.mxu0 %v7036
      %7061 = vmatprep.subr.bf16.mxu0 0
      %7062 = vmatpush1.bf16.msra.mxu0 %v7038
      %7063 = vmatprep.subr.bf16.mxu0 0
      %7064 = vmatpush1.bf16.msra.mxu0 %v7040
      %7065 = vmatprep.subr.bf16.mxu0 0
      %7066 = vmatpush1.bf16.msra.mxu0 %v7042
      %7067 = vmatprep.subr.bf16.mxu0 0
      %7068 = vmatpush1.bf16.msra.mxu0 0
      %7069 = vmatprep.subr.bf16.mxu0 0
      %7070 = vmatpush1.bf16.msra.mxu0 0
      %7071 = vmatprep.subr.bf16.mxu0 0
      %7072 = vmatpush1.bf16.msra.mxu0 0
      %7073 = vmatprep.subr.bf16.mxu0 0
      %7074 = vmatpush1.bf16.msra.mxu0 0
      %7075 = vmatprep.subr.bf16.mxu0 0
      %7076 = vmatpush1.bf16.msra.mxu0 0
      %7077 = vmatprep.subr.bf16.mxu0 0
      %7078 = vmatpush1.bf16.msra.mxu0 0
      %7079 = vmatprep.subr.bf16.mxu0 0
      %7080 = vmatpush1.bf16.msra.mxu0 0
      %7081 = vmatprep.subr.bf16.mxu0 0
      %7082 = vmatpush1.bf16.msra.mxu0 0
      %7083 = vmatprep.subr.bf16.mxu0 0
      %7084 = vmatpush1.bf16.msra.mxu0 0
      %7085 = vmatprep.subr.bf16.mxu0 0
      %7086 = vmatpush1.bf16.msra.mxu0 0
      %7087 = vmatprep.subr.bf16.mxu0 0
      %7088 = vmatpush1.bf16.msra.mxu0 0
      %7089 = vmatprep.subr.bf16.mxu0 0
      %7090 = vmatpush1.bf16.msra.mxu0 0
      %7091 = vmatprep.mubr.bf16.mxu0 0
      %7092 = vmatmul.mubr.bf16.gmra.mrb[0].mxu0 %v7048
      %v7093 = vpop.f32.mrb[0].mxu0
      %v7094 = vadd.f32 0.0, %v7093
      %v7095 = vpop.f32.mrb[0].mxu0
      %v7096 = vpop.f32.mrb[0].mxu0
      %v7097 = vadd.f32 0.0, %v7096
      %v7098 = vpop.f32.mrb[0].mxu0
      %7099 = vmatprep.mubr.bf16.mxu0 0
      %7100 = vmatmul.mubr.bf16.gmra.mrb[0].mxu0 %v7051
      %v7101 = vpop.f32.mrb[0].mxu0
      %v7102 = vadd.f32 0.0, %v7101
      %v7103 = vpop.f32.mrb[0].mxu0
      %v7104 = vpop.f32.mrb[0].mxu0
      %v7105 = vadd.f32 0.0, %v7104
      %v7106 = vpop.f32.mrb[0].mxu0
      %7107 = vmatprep.mubr.bf16.mxu0 0
      %7108 = vmatmul.mubr.bf16.gmra.mrb[0].mxu0 %v7054
      %v7109 = vpop.f32.mrb[0].mxu0
      %v7110 = vadd.f32 0.0, %v7109
      %v7111 = vpop.f32.mrb[0].mxu0
      %v7112 = vpop.f32.mrb[0].mxu0
      %v7113 = vadd.f32 0.0, %v7112
      %v7114 = vpop.f32.mrb[0].mxu0
      %7115 = vmatprep.mubr.bf16.mxu0 0
      %7116 = vmatmul.mubr.bf16.gmra.mrb[0].mxu0 %v7057
      %v7117 = vpop.f32.mrb[0].mxu0
      %v7118 = vadd.f32 0.0, %v7117
      %v7119 = vpop.f32.mrb[0].mxu0
      %v7120 = vpop.f32.mrb[0].mxu0
      %v7121 = vadd.f32 0.0, %v7120
      %v7122 = vpop.f32.mrb[0].mxu0
      %7123 = vdwg.mxu0
      %7124 = vrot.lane.b32.xlu0 %v774, 48
      %v7125 = vpop.permute.xlu0 %7124
      %7126 = vrot.lane.b32.xlu0 %v775, 48
      %v7127 = vpop.permute.xlu0 %7126
      %7128 = vrot.lane.b32.xlu0 %v776, 48
      %v7129 = vpop.permute.xlu0 %7128
      %7130 = vrot.lane.b32.xlu0 %v777, 48
      %v7131 = vpop.permute.xlu0 %7130
      %v7137 = vsel %vm1615, %v6922, 0
      %v7140 = vsel %vm1615, %v6923, 0
      %v7143 = vsel %vm1615, %v6924, 0
      %v7146 = vsel %vm1615, %v6925, 0
      %7148 = vmatprep.subr.bf16.mxu0 0
      %7149 = vmatpush1.bf16.msra.mxu0 %v7125
      %7150 = vmatprep.subr.bf16.mxu0 0
      %7151 = vmatpush1.bf16.msra.mxu0 %v7127
      %7152 = vmatprep.subr.bf16.mxu0 0
      %7153 = vmatpush1.bf16.msra.mxu0 %v7129
      %7154 = vmatprep.subr.bf16.mxu0 0
      %7155 = vmatpush1.bf16.msra.mxu0 %v7131
      %7156 = vmatprep.subr.bf16.mxu0 0
      %7157 = vmatpush1.bf16.msra.mxu0 0
      %7158 = vmatprep.subr.bf16.mxu0 0
      %7159 = vmatpush1.bf16.msra.mxu0 0
      %7160 = vmatprep.subr.bf16.mxu0 0
      %7161 = vmatpush1.bf16.msra.mxu0 0
      %7162 = vmatprep.subr.bf16.mxu0 0
      %7163 = vmatpush1.bf16.msra.mxu0 0
      %7164 = vmatprep.subr.bf16.mxu0 0
      %7165 = vmatpush1.bf16.msra.mxu0 0
      %7166 = vmatprep.subr.bf16.mxu0 0
      %7167 = vmatpush1.bf16.msra.mxu0 0
      %7168 = vmatprep.subr.bf16.mxu0 0
      %7169 = vmatpush1.bf16.msra.mxu0 0
      %7170 = vmatprep.subr.bf16.mxu0 0
      %7171 = vmatpush1.bf16.msra.mxu0 0
      %7172 = vmatprep.subr.bf16.mxu0 0
      %7173 = vmatpush1.bf16.msra.mxu0 0
      %7174 = vmatprep.subr.bf16.mxu0 0
      %7175 = vmatpush1.bf16.msra.mxu0 0
      %7176 = vmatprep.subr.bf16.mxu0 0
      %7177 = vmatpush1.bf16.msra.mxu0 0
      %7178 = vmatprep.subr.bf16.mxu0 0
      %7179 = vmatpush1.bf16.msra.mxu0 0
      %7180 = vmatprep.mubr.bf16.mxu0 0
      %7181 = vmatmul.mubr.bf16.gmra.mrb[0].mxu0 %v7137
      %v7182 = vpop.f32.mrb[0].mxu0
      %v7183 = vadd.f32 0.0, %v7182
      %v7184 = vpop.f32.mrb[0].mxu0
      %v7185 = vpop.f32.mrb[0].mxu0
      %v7186 = vadd.f32 0.0, %v7185
      %v7187 = vpop.f32.mrb[0].mxu0
      %7188 = vmatprep.mubr.bf16.mxu0 0
      %7189 = vmatmul.mubr.bf16.gmra.mrb[0].mxu0 %v7140
      %v7190 = vpop.f32.mrb[0].mxu0
      %v7191 = vadd.f32 0.0, %v7190
      %v7192 = vpop.f32.mrb[0].mxu0
      %v7193 = vpop.f32.mrb[0].mxu0
      %v7194 = vadd.f32 0.0, %v7193
      %v7195 = vpop.f32.mrb[0].mxu0
      %7196 = vmatprep.mubr.bf16.mxu0 0
      %7197 = vmatmul.mubr.bf16.gmra.mrb[0].mxu0 %v7143
      %v7198 = vpop.f32.mrb[0].mxu0
      %v7199 = vadd.f32 0.0, %v7198
      %v7200 = vpop.f32.mrb[0].mxu0
      %v7201 = vpop.f32.mrb[0].mxu0
      %v7202 = vadd.f32 0.0, %v7201
      %v7203 = vpop.f32.mrb[0].mxu0
      %7204 = vmatprep.mubr.bf16.mxu0 0
      %7205 = vmatmul.mubr.bf16.gmra.mrb[0].mxu0 %v7146
      %v7206 = vpop.f32.mrb[0].mxu0
      %v7207 = vadd.f32 0.0, %v7206
      %v7208 = vpop.f32.mrb[0].mxu0
      %v7209 = vpop.f32.mrb[0].mxu0
      %v7210 = vadd.f32 0.0, %v7209
      %v7211 = vpop.f32.mrb[0].mxu0
      %7212 = vdwg.mxu0
      %7213 = vrot.lane.b32.xlu0 %v778, 48
      %v7214 = vpop.permute.xlu0 %7213
      %7215 = vrot.lane.b32.xlu0 %v779, 48
      %v7216 = vpop.permute.xlu0 %7215
      %7217 = vrot.lane.b32.xlu0 %v780, 48
      %v7218 = vpop.permute.xlu0 %7217
      %7219 = vrot.lane.b32.xlu0 %v781, 48
      %v7220 = vpop.permute.xlu0 %7219
      %v7226 = vsel %vm1615, %v6926, 0
      %v7229 = vsel %vm1615, %v6927, 0
      %v7232 = vsel %vm1615, %v6928, 0
      %v7235 = vsel %vm1615, %v6929, 0
      %7237 = vmatprep.subr.bf16.mxu0 0
      %7238 = vmatpush1.bf16.msra.mxu0 %v7214
      %7239 = vmatprep.subr.bf16.mxu0 0
      %7240 = vmatpush1.bf16.msra.mxu0 %v7216
      %7241 = vmatprep.subr.bf16.mxu0 0
      %7242 = vmatpush1.bf16.msra.mxu0 %v7218
      %7243 = vmatprep.subr.bf16.mxu0 0
      %7244 = vmatpush1.bf16.msra.mxu0 %v7220
      %7245 = vmatprep.subr.bf16.mxu0 0
      %7246 = vmatpush1.bf16.msra.mxu0 0
      %7247 = vmatprep.subr.bf16.mxu0 0
      %7248 = vmatpush1.bf16.msra.mxu0 0
      %7249 = vmatprep.subr.bf16.mxu0 0
      %7250 = vmatpush1.bf16.msra.mxu0 0
      %7251 = vmatprep.subr.bf16.mxu0 0
      %7252 = vmatpush1.bf16.msra.mxu0 0
      %7253 = vmatprep.subr.bf16.mxu0 0
      %7254 = vmatpush1.bf16.msra.mxu0 0
      %7255 = vmatprep.subr.bf16.mxu0 0
      %7256 = vmatpush1.bf16.msra.mxu0 0
      %7257 = vmatprep.subr.bf16.mxu0 0
      %7258 = vmatpush1.bf16.msra.mxu0 0
      %7259 = vmatprep.subr.bf16.mxu0 0
      %7260 = vmatpush1.bf16.msra.mxu0 0
      %7261 = vmatprep.subr.bf16.mxu0 0
      %7262 = vmatpush1.bf16.msra.mxu0 0
      %7263 = vmatprep.subr.bf16.mxu0 0
      %7264 = vmatpush1.bf16.msra.mxu0 0
      %7265 = vmatprep.subr.bf16.mxu0 0
      %7266 = vmatpush1.bf16.msra.mxu0 0
      %7267 = vmatprep.subr.bf16.mxu0 0
      %7268 = vmatpush1.bf16.msra.mxu0 0
      %7269 = vmatprep.mubr.bf16.mxu0 0
      %7270 = vmatmul.mubr.bf16.gmra.mrb[0].mxu0 %v7226
      %v7271 = vpop.f32.mrb[0].mxu0
      %v7272 = vadd.f32 0.0, %v7271
      %v7273 = vpop.f32.mrb[0].mxu0
      %v7274 = vpop.f32.mrb[0].mxu0
      %v7275 = vadd.f32 0.0, %v7274
      %v7276 = vpop.f32.mrb[0].mxu0
      %7277 = vmatprep.mubr.bf16.mxu0 0
      %7278 = vmatmul.mubr.bf16.gmra.mrb[0].mxu0 %v7229
      %v7279 = vpop.f32.mrb[0].mxu0
      %v7280 = vadd.f32 0.0, %v7279
      %v7281 = vpop.f32.mrb[0].mxu0
      %v7282 = vpop.f32.mrb[0].mxu0
      %v7283 = vadd.f32 0.0, %v7282
      %v7284 = vpop.f32.mrb[0].mxu0
      %7285 = vmatprep.mubr.bf16.mxu0 0
      %7286 = vmatmul.mubr.bf16.gmra.mrb[0].mxu0 %v7232
      %v7287 = vpop.f32.mrb[0].mxu0
      %v7288 = vadd.f32 0.0, %v7287
      %v7289 = vpop.f32.mrb[0].mxu0
      %v7290 = vpop.f32.mrb[0].mxu0
      %v7291 = vadd.f32 0.0, %v7290
      %v7292 = vpop.f32.mrb[0].mxu0
      %7293 = vmatprep.mubr.bf16.mxu0 0
      %7294 = vmatmul.mubr.bf16.gmra.mrb[0].mxu0 %v7235
      %v7295 = vpop.f32.mrb[0].mxu0
      %v7296 = vadd.f32 0.0, %v7295
      %v7297 = vpop.f32.mrb[0].mxu0
      %v7298 = vpop.f32.mrb[0].mxu0
      %v7299 = vadd.f32 0.0, %v7298
      %v7300 = vpop.f32.mrb[0].mxu0
      %7301 = vdwg.mxu0
      %7302 = vrot.lane.b32.xlu0 %v782, 48
      %v7303 = vpop.permute.xlu0 %7302
      %7304 = vrot.lane.b32.xlu0 %v783, 48
      %v7305 = vpop.permute.xlu0 %7304
      %7306 = vrot.lane.b32.xlu0 %v784, 48
      %v7307 = vpop.permute.xlu0 %7306
      %7308 = vrot.lane.b32.xlu0 %v785, 48
      %v7309 = vpop.permute.xlu0 %7308
      %v7315 = vsel %vm1615, %v6930, 0
      %v7318 = vsel %vm1615, %v6931, 0
      %v7321 = vsel %vm1615, %v6932, 0
      %v7324 = vsel %vm1615, %v6933, 0
      %7326 = vmatprep.subr.bf16.mxu0 0
      %7327 = vmatpush1.bf16.msra.mxu0 %v7303
      %7328 = vmatprep.subr.bf16.mxu0 0
      %7329 = vmatpush1.bf16.msra.mxu0 %v7305
      %7330 = vmatprep.subr.bf16.mxu0 0
      %7331 = vmatpush1.bf16.msra.mxu0 %v7307
      %7332 = vmatprep.subr.bf16.mxu0 0
      %7333 = vmatpush1.bf16.msra.mxu0 %v7309
      %7334 = vmatprep.subr.bf16.mxu0 0
      %7335 = vmatpush1.bf16.msra.mxu0 0
      %7336 = vmatprep.subr.bf16.mxu0 0
      %7337 = vmatpush1.bf16.msra.mxu0 0
      %7338 = vmatprep.subr.bf16.mxu0 0
      %7339 = vmatpush1.bf16.msra.mxu0 0
      %7340 = vmatprep.subr.bf16.mxu0 0
      %7341 = vmatpush1.bf16.msra.mxu0 0
      %7342 = vmatprep.subr.bf16.mxu0 0
      %7343 = vmatpush1.bf16.msra.mxu0 0
      %7344 = vmatprep.subr.bf16.mxu0 0
      %7345 = vmatpush1.bf16.msra.mxu0 0
      %7346 = vmatprep.subr.bf16.mxu0 0
      %7347 = vmatpush1.bf16.msra.mxu0 0
      %7348 = vmatprep.subr.bf16.mxu0 0
      %7349 = vmatpush1.bf16.msra.mxu0 0
      %7350 = vmatprep.subr.bf16.mxu0 0
      %7351 = vmatpush1.bf16.msra.mxu0 0
      %7352 = vmatprep.subr.bf16.mxu0 0
      %7353 = vmatpush1.bf16.msra.mxu0 0
      %7354 = vmatprep.subr.bf16.mxu0 0
      %7355 = vmatpush1.bf16.msra.mxu0 0
      %7356 = vmatprep.subr.bf16.mxu0 0
      %7357 = vmatpush1.bf16.msra.mxu0 0
      %7358 = vmatprep.mubr.bf16.mxu0 0
      %7359 = vmatmul.mubr.bf16.gmra.mrb[0].mxu0 %v7315
      %v7360 = vpop.f32.mrb[0].mxu0
      %v7361 = vadd.f32 0.0, %v7360
      %v7362 = vpop.f32.mrb[0].mxu0
      %v7363 = vpop.f32.mrb[0].mxu0
      %v7364 = vadd.f32 0.0, %v7363
      %v7365 = vpop.f32.mrb[0].mxu0
      %7366 = vmatprep.mubr.bf16.mxu0 0
      %7367 = vmatmul.mubr.bf16.gmra.mrb[0].mxu0 %v7318
      %v7368 = vpop.f32.mrb[0].mxu0
      %v7369 = vadd.f32 0.0, %v7368
      %v7370 = vpop.f32.mrb[0].mxu0
      %v7371 = vpop.f32.mrb[0].mxu0
      %v7372 = vadd.f32 0.0, %v7371
      %v7373 = vpop.f32.mrb[0].mxu0
      %7374 = vmatprep.mubr.bf16.mxu0 0
      %7375 = vmatmul.mubr.bf16.gmra.mrb[0].mxu0 %v7321
      %v7376 = vpop.f32.mrb[0].mxu0
      %v7377 = vadd.f32 0.0, %v7376
      %v7378 = vpop.f32.mrb[0].mxu0
      %v7379 = vpop.f32.mrb[0].mxu0
      %v7380 = vadd.f32 0.0, %v7379
      %v7381 = vpop.f32.mrb[0].mxu0
      %7382 = vmatprep.mubr.bf16.mxu0 0
      %7383 = vmatmul.mubr.bf16.gmra.mrb[0].mxu0 %v7324
      %v7384 = vpop.f32.mrb[0].mxu0
      %v7385 = vadd.f32 0.0, %v7384
      %v7386 = vpop.f32.mrb[0].mxu0
      %v7387 = vpop.f32.mrb[0].mxu0
      %v7388 = vadd.f32 0.0, %v7387
      %v7389 = vpop.f32.mrb[0].mxu0
      %7390 = vdwg.mxu0
      %7391 = vrot.lane.b32.xlu0 %v786, 48
      %v7392 = vpop.permute.xlu0 %7391
      %7393 = vrot.lane.b32.xlu0 %v787, 48
      %v7394 = vpop.permute.xlu0 %7393
      %7395 = vrot.lane.b32.xlu0 %v788, 48
      %v7396 = vpop.permute.xlu0 %7395
      %7397 = vrot.lane.b32.xlu0 %v789, 48
      %v7398 = vpop.permute.xlu0 %7397
      %v7404 = vsel %vm1615, %v6934, 0
      %v7407 = vsel %vm1615, %v6935, 0
      %v7410 = vsel %vm1615, %v6936, 0
      %v7413 = vsel %vm1615, %v6937, 0
      %7415 = vmatprep.subr.bf16.mxu0 0
      %7416 = vmatpush1.bf16.msra.mxu0 %v7392
      %7417 = vmatprep.subr.bf16.mxu0 0
      %7418 = vmatpush1.bf16.msra.mxu0 %v7394
      %7419 = vmatprep.subr.bf16.mxu0 0
      %7420 = vmatpush1.bf16.msra.mxu0 %v7396
      %7421 = vmatprep.subr.bf16.mxu0 0
      %7422 = vmatpush1.bf16.msra.mxu0 %v7398
      %7423 = vmatprep.subr.bf16.mxu0 0
      %7424 = vmatpush1.bf16.msra.mxu0 0
      %7425 = vmatprep.subr.bf16.mxu0 0
      %7426 = vmatpush1.bf16.msra.mxu0 0
      %7427 = vmatprep.subr.bf16.mxu0 0
      %7428 = vmatpush1.bf16.msra.mxu0 0
      %7429 = vmatprep.subr.bf16.mxu0 0
      %7430 = vmatpush1.bf16.msra.mxu0 0
      %7431 = vmatprep.subr.bf16.mxu0 0
      %7432 = vmatpush1.bf16.msra.mxu0 0
      %7433 = vmatprep.subr.bf16.mxu0 0
      %7434 = vmatpush1.bf16.msra.mxu0 0
      %7435 = vmatprep.subr.bf16.mxu0 0
      %7436 = vmatpush1.bf16.msra.mxu0 0
      %7437 = vmatprep.subr.bf16.mxu0 0
      %7438 = vmatpush1.bf16.msra.mxu0 0
      %7439 = vmatprep.subr.bf16.mxu0 0
      %7440 = vmatpush1.bf16.msra.mxu0 0
      %7441 = vmatprep.subr.bf16.mxu0 0
      %7442 = vmatpush1.bf16.msra.mxu0 0
      %7443 = vmatprep.subr.bf16.mxu0 0
      %7444 = vmatpush1.bf16.msra.mxu0 0
      %7445 = vmatprep.subr.bf16.mxu0 0
      %7446 = vmatpush1.bf16.msra.mxu0 0
      %7447 = vmatprep.mubr.bf16.mxu0 0
      %7448 = vmatmul.mubr.bf16.gmra.mrb[0].mxu0 %v7404
      %v7449 = vpop.f32.mrb[0].mxu0
      %v7450 = vadd.f32 0.0, %v7449
      %v7451 = vpop.f32.mrb[0].mxu0
      %v7452 = vpop.f32.mrb[0].mxu0
      %v7453 = vadd.f32 0.0, %v7452
      %v7454 = vpop.f32.mrb[0].mxu0
      %7455 = vmatprep.mubr.bf16.mxu0 0
      %7456 = vmatmul.mubr.bf16.gmra.mrb[0].mxu0 %v7407
      %v7457 = vpop.f32.mrb[0].mxu0
      %v7458 = vadd.f32 0.0, %v7457
      %v7459 = vpop.f32.mrb[0].mxu0
      %v7460 = vpop.f32.mrb[0].mxu0
      %v7461 = vadd.f32 0.0, %v7460
      %v7462 = vpop.f32.mrb[0].mxu0
      %7463 = vmatprep.mubr.bf16.mxu0 0
      %7464 = vmatmul.mubr.bf16.gmra.mrb[0].mxu0 %v7410
      %v7465 = vpop.f32.mrb[0].mxu0
      %v7466 = vadd.f32 0.0, %v7465
      %v7467 = vpop.f32.mrb[0].mxu0
      %v7468 = vpop.f32.mrb[0].mxu0
      %v7469 = vadd.f32 0.0, %v7468
      %v7470 = vpop.f32.mrb[0].mxu0
      %7471 = vmatprep.mubr.bf16.mxu0 0
      %7472 = vmatmul.mubr.bf16.gmra.mrb[0].mxu0 %v7413
      %v7473 = vpop.f32.mrb[0].mxu0
      %v7474 = vadd.f32 0.0, %v7473
      %v7475 = vpop.f32.mrb[0].mxu0
      %v7476 = vpop.f32.mrb[0].mxu0
      %v7477 = vadd.f32 0.0, %v7476
      %v7478 = vpop.f32.mrb[0].mxu0
      %7479 = vdwg.mxu0
      %7480 = vrot.lane.b32.xlu0 %v790, 48
      %v7481 = vpop.permute.xlu0 %7480
      %7482 = vrot.lane.b32.xlu0 %v791, 48
      %v7483 = vpop.permute.xlu0 %7482
      %7484 = vrot.lane.b32.xlu0 %v792, 48
      %v7485 = vpop.permute.xlu0 %7484
      %7486 = vrot.lane.b32.xlu0 %v793, 48
      %v7487 = vpop.permute.xlu0 %7486
      %v7493 = vsel %vm1615, %v6938, 0
      %v7496 = vsel %vm1615, %v6939, 0
      %v7499 = vsel %vm1615, %v6940, 0
      %v7502 = vsel %vm1615, %v6941, 0
      %7504 = vmatprep.subr.bf16.mxu0 0
      %7505 = vmatpush1.bf16.msra.mxu0 %v7481
      %7506 = vmatprep.subr.bf16.mxu0 0
      %7507 = vmatpush1.bf16.msra.mxu0 %v7483
      %7508 = vmatprep.subr.bf16.mxu0 0
      %7509 = vmatpush1.bf16.msra.mxu0 %v7485
      %7510 = vmatprep.subr.bf16.mxu0 0
      %7511 = vmatpush1.bf16.msra.mxu0 %v7487
      %7512 = vmatprep.subr.bf16.mxu0 0
      %7513 = vmatpush1.bf16.msra.mxu0 0
      %7514 = vmatprep.subr.bf16.mxu0 0
      %7515 = vmatpush1.bf16.msra.mxu0 0
      %7516 = vmatprep.subr.bf16.mxu0 0
      %7517 = vmatpush1.bf16.msra.mxu0 0
      %7518 = vmatprep.subr.bf16.mxu0 0
      %7519 = vmatpush1.bf16.msra.mxu0 0
      %7520 = vmatprep.subr.bf16.mxu0 0
      %7521 = vmatpush1.bf16.msra.mxu0 0
      %7522 = vmatprep.subr.bf16.mxu0 0
      %7523 = vmatpush1.bf16.msra.mxu0 0
      %7524 = vmatprep.subr.bf16.mxu0 0
      %7525 = vmatpush1.bf16.msra.mxu0 0
      %7526 = vmatprep.subr.bf16.mxu0 0
      %7527 = vmatpush1.bf16.msra.mxu0 0
      %7528 = vmatprep.subr.bf16.mxu0 0
      %7529 = vmatpush1.bf16.msra.mxu0 0
      %7530 = vmatprep.subr.bf16.mxu0 0
      %7531 = vmatpush1.bf16.msra.mxu0 0
      %7532 = vmatprep.subr.bf16.mxu0 0
      %7533 = vmatpush1.bf16.msra.mxu0 0
      %7534 = vmatprep.subr.bf16.mxu0 0
      %7535 = vmatpush1.bf16.msra.mxu0 0
      %7536 = vmatprep.mubr.bf16.mxu0 0
      %7537 = vmatmul.mubr.bf16.gmra.mrb[0].mxu0 %v7493
      %v7538 = vpop.f32.mrb[0].mxu0
      %v7539 = vadd.f32 0.0, %v7538
      %v7540 = vpop.f32.mrb[0].mxu0
      %v7541 = vpop.f32.mrb[0].mxu0
      %v7542 = vadd.f32 0.0, %v7541
      %v7543 = vpop.f32.mrb[0].mxu0
      %7544 = vmatprep.mubr.bf16.mxu0 0
      %7545 = vmatmul.mubr.bf16.gmra.mrb[0].mxu0 %v7496
      %v7546 = vpop.f32.mrb[0].mxu0
      %v7547 = vadd.f32 0.0, %v7546
      %v7548 = vpop.f32.mrb[0].mxu0
      %v7549 = vpop.f32.mrb[0].mxu0
      %v7550 = vadd.f32 0.0, %v7549
      %v7551 = vpop.f32.mrb[0].mxu0
      %7552 = vmatprep.mubr.bf16.mxu0 0
      %7553 = vmatmul.mubr.bf16.gmra.mrb[0].mxu0 %v7499
      %v7554 = vpop.f32.mrb[0].mxu0
      %v7555 = vadd.f32 0.0, %v7554
      %v7556 = vpop.f32.mrb[0].mxu0
      %v7557 = vpop.f32.mrb[0].mxu0
      %v7558 = vadd.f32 0.0, %v7557
      %v7559 = vpop.f32.mrb[0].mxu0
      %7560 = vmatprep.mubr.bf16.mxu0 0
      %7561 = vmatmul.mubr.bf16.gmra.mrb[0].mxu0 %v7502
      %v7562 = vpop.f32.mrb[0].mxu0
      %v7563 = vadd.f32 0.0, %v7562
      %v7564 = vpop.f32.mrb[0].mxu0
      %v7565 = vpop.f32.mrb[0].mxu0
      %v7566 = vadd.f32 0.0, %v7565
      %v7567 = vpop.f32.mrb[0].mxu0
      %7568 = vdwg.mxu0
      %7569 = vrot.lane.b32.xlu0 %v794, 48
      %v7570 = vpop.permute.xlu0 %7569
      %7571 = vrot.lane.b32.xlu0 %v795, 48
      %v7572 = vpop.permute.xlu0 %7571
      %7573 = vrot.lane.b32.xlu0 %v796, 48
      %v7574 = vpop.permute.xlu0 %7573
      %7575 = vrot.lane.b32.xlu0 %v797, 48
      %v7576 = vpop.permute.xlu0 %7575
      %v7582 = vsel %vm1615, %v6942, 0
      %v7585 = vsel %vm1615, %v6943, 0
      %v7588 = vsel %vm1615, %v6944, 0
      %v7591 = vsel %vm1615, %v6945, 0
      %7593 = vmatprep.subr.bf16.mxu0 0
      %7594 = vmatpush1.bf16.msra.mxu0 %v7570
      %7595 = vmatprep.subr.bf16.mxu0 0
      %7596 = vmatpush1.bf16.msra.mxu0 %v7572
      %7597 = vmatprep.subr.bf16.mxu0 0
      %7598 = vmatpush1.bf16.msra.mxu0 %v7574
      %7599 = vmatprep.subr.bf16.mxu0 0
      %7600 = vmatpush1.bf16.msra.mxu0 %v7576
      %7601 = vmatprep.subr.bf16.mxu0 0
      %7602 = vmatpush1.bf16.msra.mxu0 0
      %7603 = vmatprep.subr.bf16.mxu0 0
      %7604 = vmatpush1.bf16.msra.mxu0 0
      %7605 = vmatprep.subr.bf16.mxu0 0
      %7606 = vmatpush1.bf16.msra.mxu0 0
      %7607 = vmatprep.subr.bf16.mxu0 0
      %7608 = vmatpush1.bf16.msra.mxu0 0
      %7609 = vmatprep.subr.bf16.mxu0 0
      %7610 = vmatpush1.bf16.msra.mxu0 0
      %7611 = vmatprep.subr.bf16.mxu0 0
      %7612 = vmatpush1.bf16.msra.mxu0 0
      %7613 = vmatprep.subr.bf16.mxu0 0
      %7614 = vmatpush1.bf16.msra.mxu0 0
      %7615 = vmatprep.subr.bf16.mxu0 0
      %7616 = vmatpush1.bf16.msra.mxu0 0
      %7617 = vmatprep.subr.bf16.mxu0 0
      %7618 = vmatpush1.bf16.msra.mxu0 0
      %7619 = vmatprep.subr.bf16.mxu0 0
      %7620 = vmatpush1.bf16.msra.mxu0 0
      %7621 = vmatprep.subr.bf16.mxu0 0
      %7622 = vmatpush1.bf16.msra.mxu0 0
      %7623 = vmatprep.subr.bf16.mxu0 0
      %7624 = vmatpush1.bf16.msra.mxu0 0
      %7625 = vmatprep.mubr.bf16.mxu0 0
      %7626 = vmatmul.mubr.bf16.gmra.mrb[0].mxu0 %v7582
      %v7627 = vpop.f32.mrb[0].mxu0
      %v7628 = vadd.f32 0.0, %v7627
      %v7629 = vpop.f32.mrb[0].mxu0
      %v7630 = vpop.f32.mrb[0].mxu0
      %v7631 = vadd.f32 0.0, %v7630
      %v7632 = vpop.f32.mrb[0].mxu0
      %7633 = vmatprep.mubr.bf16.mxu0 0
      %7634 = vmatmul.mubr.bf16.gmra.mrb[0].mxu0 %v7585
      %v7635 = vpop.f32.mrb[0].mxu0
      %v7636 = vadd.f32 0.0, %v7635
      %v7637 = vpop.f32.mrb[0].mxu0
      %v7638 = vpop.f32.mrb[0].mxu0
      %v7639 = vadd.f32 0.0, %v7638
      %v7640 = vpop.f32.mrb[0].mxu0
      %7641 = vmatprep.mubr.bf16.mxu0 0
      %7642 = vmatmul.mubr.bf16.gmra.mrb[0].mxu0 %v7588
      %v7643 = vpop.f32.mrb[0].mxu0
      %v7644 = vadd.f32 0.0, %v7643
      %v7645 = vpop.f32.mrb[0].mxu0
      %v7646 = vpop.f32.mrb[0].mxu0
      %v7647 = vadd.f32 0.0, %v7646
      %v7648 = vpop.f32.mrb[0].mxu0
      %7649 = vmatprep.mubr.bf16.mxu0 0
      %7650 = vmatmul.mubr.bf16.gmra.mrb[0].mxu0 %v7591
      %v7651 = vpop.f32.mrb[0].mxu0
      %v7652 = vadd.f32 0.0, %v7651
      %v7653 = vpop.f32.mrb[0].mxu0
      %v7654 = vpop.f32.mrb[0].mxu0
      %v7655 = vadd.f32 0.0, %v7654
      %v7656 = vpop.f32.mrb[0].mxu0
      %7657 = vdwg.mxu0
      %s7658 = scalar_lea.vmem %s3, 192
      %v7659 = vld [vmem:[%s7658] sm:$0xff]
      %v7660 = vld [vmem:[%s7658 + $0x8] sm:$0xff]
      %v7661 = vld [vmem:[%s7658 + $0x10] sm:$0xff]
      %v7662 = vld [vmem:[%s7658 + $0x18] sm:$0xff]
      %v7663 = vld [vmem:[%s7658 + $0x20] sm:$0xff]
      %v7664 = vld [vmem:[%s7658 + $0x28] sm:$0xff]
      %v7665 = vld [vmem:[%s7658 + $0x30] sm:$0xff]
      %v7666 = vld [vmem:[%s7658 + $0x38] sm:$0xff]
      %7667 = vrot.lane.b32.xlu0 %v766, 104
      %v7668 = vpop.permute.xlu0 %7667
      %7669 = vrot.lane.b32.xlu0 %v767, 104
      %v7670 = vpop.permute.xlu0 %7669
      %7671 = vrot.lane.b32.xlu0 %v768, 104
      %v7672 = vpop.permute.xlu0 %7671
      %7673 = vrot.lane.b32.xlu0 %v769, 104
      %v7674 = vpop.permute.xlu0 %7673
      %7675 = vrot.lane.b32.xlu0 %v766, 72
      %v7676 = vpop.permute.xlu0 %7675
      %7677 = vrot.lane.b32.xlu0 %v767, 72
      %v7678 = vpop.permute.xlu0 %7677
      %7679 = vrot.lane.b32.xlu0 %v768, 72
      %v7680 = vpop.permute.xlu0 %7679
      %7681 = vrot.lane.b32.xlu0 %v769, 72
      %v7682 = vpop.permute.xlu0 %7681
      %v7684 = vsel %vm818, %v7668, 0
      %v7687 = vsel %vm818, %v7670, 0
      %v7690 = vsel %vm818, %v7672, 0
      %v7693 = vsel %vm818, %v7674, 0
      %v7696 = vsel %vm818, %v7676, 0
      %v7699 = vsel %vm818, %v7678, 0
      %v7702 = vsel %vm818, %v7680, 0
      %v7705 = vsel %vm818, %v7682, 0
      %7707 = vmatprep.subr.bf16.mxu0 0
      %7708 = vmatpush1.bf16.xpose.msra.mxu0 %v7696
      %7709 = vmatprep.subr.bf16.mxu0 0
      %7710 = vmatpush1.bf16.xpose.msra.mxu0 %v7699
      %7711 = vmatprep.subr.bf16.mxu0 0
      %7712 = vmatpush1.bf16.xpose.msra.mxu0 %v7702
      %7713 = vmatprep.subr.bf16.mxu0 0
      %7714 = vmatpush1.bf16.xpose.msra.mxu0 %v7705
      %7715 = vmatprep.subr.bf16.mxu0 0
      %7716 = vmatpush1.bf16.xpose.msra.mxu0 0
      %7717 = vmatprep.subr.bf16.mxu0 0
      %7718 = vmatpush1.bf16.xpose.msra.mxu0 0
      %7719 = vmatprep.subr.bf16.mxu0 0
      %7720 = vmatpush1.bf16.xpose.msra.mxu0 0
      %7721 = vmatprep.subr.bf16.mxu0 0
      %7722 = vmatpush1.bf16.xpose.msra.mxu0 0
      %7723 = vmatprep.subr.bf16.mxu0 0
      %7724 = vmatpush1.bf16.xpose.msra.mxu0 0
      %7725 = vmatprep.subr.bf16.mxu0 0
      %7726 = vmatpush1.bf16.xpose.msra.mxu0 0
      %7727 = vmatprep.subr.bf16.mxu0 0
      %7728 = vmatpush1.bf16.xpose.msra.mxu0 0
      %7729 = vmatprep.subr.bf16.mxu0 0
      %7730 = vmatpush1.bf16.xpose.msra.mxu0 0
      %7731 = vmatprep.subr.bf16.mxu0 0
      %7732 = vmatpush1.bf16.xpose.msra.mxu0 0
      %7733 = vmatprep.subr.bf16.mxu0 0
      %7734 = vmatpush1.bf16.xpose.msra.mxu0 0
      %7735 = vmatprep.subr.bf16.mxu0 0
      %7736 = vmatpush1.bf16.xpose.msra.mxu0 0
      %7737 = vmatprep.subr.bf16.mxu0 0
      %7738 = vmatpush1.bf16.xpose.msra.mxu0 0
      %7739 = vmatprep.mubr.bf16.mxu0 0
      %7740 = vmatmul.mubr.bf16.gmra.mrb[0].mxu0 %v7684
      %v7741 = vpop.f32.mrb[0].mxu0
      %v7742 = vadd.f32 %v7659, %v7741
      %v7743 = vpop.f32.mrb[0].mxu0
      %v7744 = vpop.f32.mrb[0].mxu0
      %v7745 = vadd.f32 %v7660, %v7744
      %v7746 = vpop.f32.mrb[0].mxu0
      %7747 = vmatprep.mubr.bf16.mxu0 0
      %7748 = vmatmul.mubr.bf16.gmra.mrb[0].mxu0 %v7687
      %v7749 = vpop.f32.mrb[0].mxu0
      %v7750 = vadd.f32 %v7661, %v7749
      %v7751 = vpop.f32.mrb[0].mxu0
      %v7752 = vpop.f32.mrb[0].mxu0
      %v7753 = vadd.f32 %v7662, %v7752
      %v7754 = vpop.f32.mrb[0].mxu0
      %7755 = vmatprep.mubr.bf16.mxu0 0
      %7756 = vmatmul.mubr.bf16.gmra.mrb[0].mxu0 %v7690
      %v7757 = vpop.f32.mrb[0].mxu0
      %v7758 = vadd.f32 %v7663, %v7757
      %v7759 = vpop.f32.mrb[0].mxu0
      %v7760 = vpop.f32.mrb[0].mxu0
      %v7761 = vadd.f32 %v7664, %v7760
      %v7762 = vpop.f32.mrb[0].mxu0
      %7763 = vmatprep.mubr.bf16.mxu0 0
      %7764 = vmatmul.mubr.bf16.gmra.mrb[0].mxu0 %v7693
      %v7765 = vpop.f32.mrb[0].mxu0
      %v7766 = vadd.f32 %v7665, %v7765
      %v7767 = vpop.f32.mrb[0].mxu0
      %v7768 = vpop.f32.mrb[0].mxu0
      %v7769 = vadd.f32 %v7666, %v7768
      %v7770 = vpop.f32.mrb[0].mxu0
      %7771 = vdwg.mxu0
      %7772 = vrot.lane.b32.xlu0 %v770, 104
      %v7773 = vpop.permute.xlu0 %7772
      %7774 = vrot.lane.b32.xlu0 %v771, 104
      %v7775 = vpop.permute.xlu0 %7774
      %7776 = vrot.lane.b32.xlu0 %v772, 104
      %v7777 = vpop.permute.xlu0 %7776
      %7778 = vrot.lane.b32.xlu0 %v773, 104
      %v7779 = vpop.permute.xlu0 %7778
      %7780 = vrot.lane.b32.xlu0 %v770, 72
      %v7781 = vpop.permute.xlu0 %7780
      %7782 = vrot.lane.b32.xlu0 %v771, 72
      %v7783 = vpop.permute.xlu0 %7782
      %7784 = vrot.lane.b32.xlu0 %v772, 72
      %v7785 = vpop.permute.xlu0 %7784
      %7786 = vrot.lane.b32.xlu0 %v773, 72
      %v7787 = vpop.permute.xlu0 %7786
      %v7789 = vsel %vm818, %v7773, 0
      %v7792 = vsel %vm818, %v7775, 0
      %v7795 = vsel %vm818, %v7777, 0
      %v7798 = vsel %vm818, %v7779, 0
      %v7801 = vsel %vm818, %v7781, 0
      %v7804 = vsel %vm818, %v7783, 0
      %v7807 = vsel %vm818, %v7785, 0
      %v7810 = vsel %vm818, %v7787, 0
      %7812 = vmatprep.subr.bf16.mxu0 0
      %7813 = vmatpush1.bf16.xpose.msra.mxu0 %v7801
      %7814 = vmatprep.subr.bf16.mxu0 0
      %7815 = vmatpush1.bf16.xpose.msra.mxu0 %v7804
      %7816 = vmatprep.subr.bf16.mxu0 0
      %7817 = vmatpush1.bf16.xpose.msra.mxu0 %v7807
      %7818 = vmatprep.subr.bf16.mxu0 0
      %7819 = vmatpush1.bf16.xpose.msra.mxu0 %v7810
      %7820 = vmatprep.subr.bf16.mxu0 0
      %7821 = vmatpush1.bf16.xpose.msra.mxu0 0
      %7822 = vmatprep.subr.bf16.mxu0 0
      %7823 = vmatpush1.bf16.xpose.msra.mxu0 0
      %7824 = vmatprep.subr.bf16.mxu0 0
      %7825 = vmatpush1.bf16.xpose.msra.mxu0 0
      %7826 = vmatprep.subr.bf16.mxu0 0
      %7827 = vmatpush1.bf16.xpose.msra.mxu0 0
      %7828 = vmatprep.subr.bf16.mxu0 0
      %7829 = vmatpush1.bf16.xpose.msra.mxu0 0
      %7830 = vmatprep.subr.bf16.mxu0 0
      %7831 = vmatpush1.bf16.xpose.msra.mxu0 0
      %7832 = vmatprep.subr.bf16.mxu0 0
      %7833 = vmatpush1.bf16.xpose.msra.mxu0 0
      %7834 = vmatprep.subr.bf16.mxu0 0
      %7835 = vmatpush1.bf16.xpose.msra.mxu0 0
      %7836 = vmatprep.subr.bf16.mxu0 0
      %7837 = vmatpush1.bf16.xpose.msra.mxu0 0
      %7838 = vmatprep.subr.bf16.mxu0 0
      %7839 = vmatpush1.bf16.xpose.msra.mxu0 0
      %7840 = vmatprep.subr.bf16.mxu0 0
      %7841 = vmatpush1.bf16.xpose.msra.mxu0 0
      %7842 = vmatprep.subr.bf16.mxu0 0
      %7843 = vmatpush1.bf16.xpose.msra.mxu0 0
      %7844 = vmatprep.mubr.bf16.mxu0 0
      %7845 = vmatmul.mubr.bf16.gmra.mrb[0].mxu0 %v7789
      %v7846 = vpop.f32.mrb[0].mxu0
      %v7847 = vadd.f32 %v7659, %v7846
      %v7848 = vpop.f32.mrb[0].mxu0
      %v7849 = vpop.f32.mrb[0].mxu0
      %v7850 = vadd.f32 %v7660, %v7849
      %v7851 = vpop.f32.mrb[0].mxu0
      %7852 = vmatprep.mubr.bf16.mxu0 0
      %7853 = vmatmul.mubr.bf16.gmra.mrb[0].mxu0 %v7792
      %v7854 = vpop.f32.mrb[0].mxu0
      %v7855 = vadd.f32 %v7661, %v7854
      %v7856 = vpop.f32.mrb[0].mxu0
      %v7857 = vpop.f32.mrb[0].mxu0
      %v7858 = vadd.f32 %v7662, %v7857
      %v7859 = vpop.f32.mrb[0].mxu0
      %7860 = vmatprep.mubr.bf16.mxu0 0
      %7861 = vmatmul.mubr.bf16.gmra.mrb[0].mxu0 %v7795
      %v7862 = vpop.f32.mrb[0].mxu0
      %v7863 = vadd.f32 %v7663, %v7862
      %v7864 = vpop.f32.mrb[0].mxu0
      %v7865 = vpop.f32.mrb[0].mxu0
      %v7866 = vadd.f32 %v7664, %v7865
      %v7867 = vpop.f32.mrb[0].mxu0
      %7868 = vmatprep.mubr.bf16.mxu0 0
      %7869 = vmatmul.mubr.bf16.gmra.mrb[0].mxu0 %v7798
      %v7870 = vpop.f32.mrb[0].mxu0
      %v7871 = vadd.f32 %v7665, %v7870
      %v7872 = vpop.f32.mrb[0].mxu0
      %v7873 = vpop.f32.mrb[0].mxu0
      %v7874 = vadd.f32 %v7666, %v7873
      %v7875 = vpop.f32.mrb[0].mxu0
      %7876 = vdwg.mxu0
      %7877 = vrot.lane.b32.xlu0 %v774, 104
      %v7878 = vpop.permute.xlu0 %7877
      %7879 = vrot.lane.b32.xlu0 %v775, 104
      %v7880 = vpop.permute.xlu0 %7879
      %7881 = vrot.lane.b32.xlu0 %v776, 104
      %v7882 = vpop.permute.xlu0 %7881
      %7883 = vrot.lane.b32.xlu0 %v777, 104
      %v7884 = vpop.permute.xlu0 %7883
      %7885 = vrot.lane.b32.xlu0 %v774, 72
      %v7886 = vpop.permute.xlu0 %7885
      %7887 = vrot.lane.b32.xlu0 %v775, 72
      %v7888 = vpop.permute.xlu0 %7887
      %7889 = vrot.lane.b32.xlu0 %v776, 72
      %v7890 = vpop.permute.xlu0 %7889
      %7891 = vrot.lane.b32.xlu0 %v777, 72
      %v7892 = vpop.permute.xlu0 %7891
      %v7894 = vsel %vm818, %v7878, 0
      %v7897 = vsel %vm818, %v7880, 0
      %v7900 = vsel %vm818, %v7882, 0
      %v7903 = vsel %vm818, %v7884, 0
      %v7906 = vsel %vm818, %v7886, 0
      %v7909 = vsel %vm818, %v7888, 0
      %v7912 = vsel %vm818, %v7890, 0
      %v7915 = vsel %vm818, %v7892, 0
      %7917 = vmatprep.subr.bf16.mxu0 0
      %7918 = vmatpush1.bf16.xpose.msra.mxu0 %v7906
      %7919 = vmatprep.subr.bf16.mxu0 0
      %7920 = vmatpush1.bf16.xpose.msra.mxu0 %v7909
      %7921 = vmatprep.subr.bf16.mxu0 0
      %7922 = vmatpush1.bf16.xpose.msra.mxu0 %v7912
      %7923 = vmatprep.subr.bf16.mxu0 0
      %7924 = vmatpush1.bf16.xpose.msra.mxu0 %v7915
      %7925 = vmatprep.subr.bf16.mxu0 0
      %7926 = vmatpush1.bf16.xpose.msra.mxu0 0
      %7927 = vmatprep.subr.bf16.mxu0 0
      %7928 = vmatpush1.bf16.xpose.msra.mxu0 0
      %7929 = vmatprep.subr.bf16.mxu0 0
      %7930 = vmatpush1.bf16.xpose.msra.mxu0 0
      %7931 = vmatprep.subr.bf16.mxu0 0
      %7932 = vmatpush1.bf16.xpose.msra.mxu0 0
      %7933 = vmatprep.subr.bf16.mxu0 0
      %7934 = vmatpush1.bf16.xpose.msra.mxu0 0
      %7935 = vmatprep.subr.bf16.mxu0 0
      %7936 = vmatpush1.bf16.xpose.msra.mxu0 0
      %7937 = vmatprep.subr.bf16.mxu0 0
      %7938 = vmatpush1.bf16.xpose.msra.mxu0 0
      %7939 = vmatprep.subr.bf16.mxu0 0
      %7940 = vmatpush1.bf16.xpose.msra.mxu0 0
      %7941 = vmatprep.subr.bf16.mxu0 0
      %7942 = vmatpush1.bf16.xpose.msra.mxu0 0
      %7943 = vmatprep.subr.bf16.mxu0 0
      %7944 = vmatpush1.bf16.xpose.msra.mxu0 0
      %7945 = vmatprep.subr.bf16.mxu0 0
      %7946 = vmatpush1.bf16.xpose.msra.mxu0 0
      %7947 = vmatprep.subr.bf16.mxu0 0
      %7948 = vmatpush1.bf16.xpose.msra.mxu0 0
      %7949 = vmatprep.mubr.bf16.mxu0 0
      %7950 = vmatmul.mubr.bf16.gmra.mrb[0].mxu0 %v7894
      %v7951 = vpop.f32.mrb[0].mxu0
      %v7952 = vadd.f32 %v7659, %v7951
      %v7953 = vpop.f32.mrb[0].mxu0
      %v7954 = vpop.f32.mrb[0].mxu0
      %v7955 = vadd.f32 %v7660, %v7954
      %v7956 = vpop.f32.mrb[0].mxu0
      %7957 = vmatprep.mubr.bf16.mxu0 0
      %7958 = vmatmul.mubr.bf16.gmra.mrb[0].mxu0 %v7897
      %v7959 = vpop.f32.mrb[0].mxu0
      %v7960 = vadd.f32 %v7661, %v7959
      %v7961 = vpop.f32.mrb[0].mxu0
      %v7962 = vpop.f32.mrb[0].mxu0
      %v7963 = vadd.f32 %v7662, %v7962
      %v7964 = vpop.f32.mrb[0].mxu0
      %7965 = vmatprep.mubr.bf16.mxu0 0
      %7966 = vmatmul.mubr.bf16.gmra.mrb[0].mxu0 %v7900
      %v7967 = vpop.f32.mrb[0].mxu0
      %v7968 = vadd.f32 %v7663, %v7967
      %v7969 = vpop.f32.mrb[0].mxu0
      %v7970 = vpop.f32.mrb[0].mxu0
      %v7971 = vadd.f32 %v7664, %v7970
      %v7972 = vpop.f32.mrb[0].mxu0
      %7973 = vmatprep.mubr.bf16.mxu0 0
      %7974 = vmatmul.mubr.bf16.gmra.mrb[0].mxu0 %v7903
      %v7975 = vpop.f32.mrb[0].mxu0
      %v7976 = vadd.f32 %v7665, %v7975
      %v7977 = vpop.f32.mrb[0].mxu0
      %v7978 = vpop.f32.mrb[0].mxu0
      %v7979 = vadd.f32 %v7666, %v7978
      %v7980 = vpop.f32.mrb[0].mxu0
      %7981 = vdwg.mxu0
      %7982 = vrot.lane.b32.xlu0 %v778, 104
      %v7983 = vpop.permute.xlu0 %7982
      %7984 = vrot.lane.b32.xlu0 %v779, 104
      %v7985 = vpop.permute.xlu0 %7984
      %7986 = vrot.lane.b32.xlu0 %v780, 104
      %v7987 = vpop.permute.xlu0 %7986
      %7988 = vrot.lane.b32.xlu0 %v781, 104
      %v7989 = vpop.permute.xlu0 %7988
      %7990 = vrot.lane.b32.xlu0 %v778, 72
      %v7991 = vpop.permute.xlu0 %7990
      %7992 = vrot.lane.b32.xlu0 %v779, 72
      %v7993 = vpop.permute.xlu0 %7992
      %7994 = vrot.lane.b32.xlu0 %v780, 72
      %v7995 = vpop.permute.xlu0 %7994
      %7996 = vrot.lane.b32.xlu0 %v781, 72
      %v7997 = vpop.permute.xlu0 %7996
      %v7999 = vsel %vm818, %v7983, 0
      %v8002 = vsel %vm818, %v7985, 0
      %v8005 = vsel %vm818, %v7987, 0
      %v8008 = vsel %vm818, %v7989, 0
      %v8011 = vsel %vm818, %v7991, 0
      %v8014 = vsel %vm818, %v7993, 0
      %v8017 = vsel %vm818, %v7995, 0
      %v8020 = vsel %vm818, %v7997, 0
      %8022 = vmatprep.subr.bf16.mxu0 0
      %8023 = vmatpush1.bf16.xpose.msra.mxu0 %v8011
      %8024 = vmatprep.subr.bf16.mxu0 0
      %8025 = vmatpush1.bf16.xpose.msra.mxu0 %v8014
      %8026 = vmatprep.subr.bf16.mxu0 0
      %8027 = vmatpush1.bf16.xpose.msra.mxu0 %v8017
      %8028 = vmatprep.subr.bf16.mxu0 0
      %8029 = vmatpush1.bf16.xpose.msra.mxu0 %v8020
      %8030 = vmatprep.subr.bf16.mxu0 0
      %8031 = vmatpush1.bf16.xpose.msra.mxu0 0
      %8032 = vmatprep.subr.bf16.mxu0 0
      %8033 = vmatpush1.bf16.xpose.msra.mxu0 0
      %8034 = vmatprep.subr.bf16.mxu0 0
      %8035 = vmatpush1.bf16.xpose.msra.mxu0 0
      %8036 = vmatprep.subr.bf16.mxu0 0
      %8037 = vmatpush1.bf16.xpose.msra.mxu0 0
      %8038 = vmatprep.subr.bf16.mxu0 0
      %8039 = vmatpush1.bf16.xpose.msra.mxu0 0
      %8040 = vmatprep.subr.bf16.mxu0 0
      %8041 = vmatpush1.bf16.xpose.msra.mxu0 0
      %8042 = vmatprep.subr.bf16.mxu0 0
      %8043 = vmatpush1.bf16.xpose.msra.mxu0 0
      %8044 = vmatprep.subr.bf16.mxu0 0
      %8045 = vmatpush1.bf16.xpose.msra.mxu0 0
      %8046 = vmatprep.subr.bf16.mxu0 0
      %8047 = vmatpush1.bf16.xpose.msra.mxu0 0
      %8048 = vmatprep.subr.bf16.mxu0 0
      %8049 = vmatpush1.bf16.xpose.msra.mxu0 0
      %8050 = vmatprep.subr.bf16.mxu0 0
      %8051 = vmatpush1.bf16.xpose.msra.mxu0 0
      %8052 = vmatprep.subr.bf16.mxu0 0
      %8053 = vmatpush1.bf16.xpose.msra.mxu0 0
      %8054 = vmatprep.mubr.bf16.mxu0 0
      %8055 = vmatmul.mubr.bf16.gmra.mrb[0].mxu0 %v7999
      %v8056 = vpop.f32.mrb[0].mxu0
      %v8057 = vadd.f32 %v7659, %v8056
      %v8058 = vpop.f32.mrb[0].mxu0
      %v8059 = vpop.f32.mrb[0].mxu0
      %v8060 = vadd.f32 %v7660, %v8059
      %v8061 = vpop.f32.mrb[0].mxu0
      %8062 = vmatprep.mubr.bf16.mxu0 0
      %8063 = vmatmul.mubr.bf16.gmra.mrb[0].mxu0 %v8002
      %v8064 = vpop.f32.mrb[0].mxu0
      %v8065 = vadd.f32 %v7661, %v8064
      %v8066 = vpop.f32.mrb[0].mxu0
      %v8067 = vpop.f32.mrb[0].mxu0
      %v8068 = vadd.f32 %v7662, %v8067
      %v8069 = vpop.f32.mrb[0].mxu0
      %8070 = vmatprep.mubr.bf16.mxu0 0
      %8071 = vmatmul.mubr.bf16.gmra.mrb[0].mxu0 %v8005
      %v8072 = vpop.f32.mrb[0].mxu0
      %v8073 = vadd.f32 %v7663, %v8072
      %v8074 = vpop.f32.mrb[0].mxu0
      %v8075 = vpop.f32.mrb[0].mxu0
      %v8076 = vadd.f32 %v7664, %v8075
      %v8077 = vpop.f32.mrb[0].mxu0
      %8078 = vmatprep.mubr.bf16.mxu0 0
      %8079 = vmatmul.mubr.bf16.gmra.mrb[0].mxu0 %v8008
      %v8080 = vpop.f32.mrb[0].mxu0
      %v8081 = vadd.f32 %v7665, %v8080
      %v8082 = vpop.f32.mrb[0].mxu0
      %v8083 = vpop.f32.mrb[0].mxu0
      %v8084 = vadd.f32 %v7666, %v8083
      %v8085 = vpop.f32.mrb[0].mxu0
      %8086 = vdwg.mxu0
      %8087 = vrot.lane.b32.xlu0 %v782, 104
      %v8088 = vpop.permute.xlu0 %8087
      %8089 = vrot.lane.b32.xlu0 %v783, 104
      %v8090 = vpop.permute.xlu0 %8089
      %8091 = vrot.lane.b32.xlu0 %v784, 104
      %v8092 = vpop.permute.xlu0 %8091
      %8093 = vrot.lane.b32.xlu0 %v785, 104
      %v8094 = vpop.permute.xlu0 %8093
      %8095 = vrot.lane.b32.xlu0 %v782, 72
      %v8096 = vpop.permute.xlu0 %8095
      %8097 = vrot.lane.b32.xlu0 %v783, 72
      %v8098 = vpop.permute.xlu0 %8097
      %8099 = vrot.lane.b32.xlu0 %v784, 72
      %v8100 = vpop.permute.xlu0 %8099
      %8101 = vrot.lane.b32.xlu0 %v785, 72
      %v8102 = vpop.permute.xlu0 %8101
      %v8104 = vsel %vm818, %v8088, 0
      %v8107 = vsel %vm818, %v8090, 0
      %v8110 = vsel %vm818, %v8092, 0
      %v8113 = vsel %vm818, %v8094, 0
      %v8116 = vsel %vm818, %v8096, 0
      %v8119 = vsel %vm818, %v8098, 0
      %v8122 = vsel %vm818, %v8100, 0
      %v8125 = vsel %vm818, %v8102, 0
      %8127 = vmatprep.subr.bf16.mxu0 0
      %8128 = vmatpush1.bf16.xpose.msra.mxu0 %v8116
      %8129 = vmatprep.subr.bf16.mxu0 0
      %8130 = vmatpush1.bf16.xpose.msra.mxu0 %v8119
      %8131 = vmatprep.subr.bf16.mxu0 0
      %8132 = vmatpush1.bf16.xpose.msra.mxu0 %v8122
      %8133 = vmatprep.subr.bf16.mxu0 0
      %8134 = vmatpush1.bf16.xpose.msra.mxu0 %v8125
      %8135 = vmatprep.subr.bf16.mxu0 0
      %8136 = vmatpush1.bf16.xpose.msra.mxu0 0
      %8137 = vmatprep.subr.bf16.mxu0 0
      %8138 = vmatpush1.bf16.xpose.msra.mxu0 0
      %8139 = vmatprep.subr.bf16.mxu0 0
      %8140 = vmatpush1.bf16.xpose.msra.mxu0 0
      %8141 = vmatprep.subr.bf16.mxu0 0
      %8142 = vmatpush1.bf16.xpose.msra.mxu0 0
      %8143 = vmatprep.subr.bf16.mxu0 0
      %8144 = vmatpush1.bf16.xpose.msra.mxu0 0
      %8145 = vmatprep.subr.bf16.mxu0 0
      %8146 = vmatpush1.bf16.xpose.msra.mxu0 0
      %8147 = vmatprep.subr.bf16.mxu0 0
      %8148 = vmatpush1.bf16.xpose.msra.mxu0 0
      %8149 = vmatprep.subr.bf16.mxu0 0
      %8150 = vmatpush1.bf16.xpose.msra.mxu0 0
      %8151 = vmatprep.subr.bf16.mxu0 0
      %8152 = vmatpush1.bf16.xpose.msra.mxu0 0
      %8153 = vmatprep.subr.bf16.mxu0 0
      %8154 = vmatpush1.bf16.xpose.msra.mxu0 0
      %8155 = vmatprep.subr.bf16.mxu0 0
      %8156 = vmatpush1.bf16.xpose.msra.mxu0 0
      %8157 = vmatprep.subr.bf16.mxu0 0
      %8158 = vmatpush1.bf16.xpose.msra.mxu0 0
      %8159 = vmatprep.mubr.bf16.mxu0 0
      %8160 = vmatmul.mubr.bf16.gmra.mrb[0].mxu0 %v8104
      %v8161 = vpop.f32.mrb[0].mxu0
      %v8162 = vadd.f32 %v7659, %v8161
      %v8163 = vpop.f32.mrb[0].mxu0
      %v8164 = vpop.f32.mrb[0].mxu0
      %v8165 = vadd.f32 %v7660, %v8164
      %v8166 = vpop.f32.mrb[0].mxu0
      %8167 = vmatprep.mubr.bf16.mxu0 0
      %8168 = vmatmul.mubr.bf16.gmra.mrb[0].mxu0 %v8107
      %v8169 = vpop.f32.mrb[0].mxu0
      %v8170 = vadd.f32 %v7661, %v8169
      %v8171 = vpop.f32.mrb[0].mxu0
      %v8172 = vpop.f32.mrb[0].mxu0
      %v8173 = vadd.f32 %v7662, %v8172
      %v8174 = vpop.f32.mrb[0].mxu0
      %8175 = vmatprep.mubr.bf16.mxu0 0
      %8176 = vmatmul.mubr.bf16.gmra.mrb[0].mxu0 %v8110
      %v8177 = vpop.f32.mrb[0].mxu0
      %v8178 = vadd.f32 %v7663, %v8177
      %v8179 = vpop.f32.mrb[0].mxu0
      %v8180 = vpop.f32.mrb[0].mxu0
      %v8181 = vadd.f32 %v7664, %v8180
      %v8182 = vpop.f32.mrb[0].mxu0
      %8183 = vmatprep.mubr.bf16.mxu0 0
      %8184 = vmatmul.mubr.bf16.gmra.mrb[0].mxu0 %v8113
      %v8185 = vpop.f32.mrb[0].mxu0
      %v8186 = vadd.f32 %v7665, %v8185
      %v8187 = vpop.f32.mrb[0].mxu0
      %v8188 = vpop.f32.mrb[0].mxu0
      %v8189 = vadd.f32 %v7666, %v8188
      %v8190 = vpop.f32.mrb[0].mxu0
      %8191 = vdwg.mxu0
      %8192 = vrot.lane.b32.xlu0 %v786, 104
      %v8193 = vpop.permute.xlu0 %8192
      %8194 = vrot.lane.b32.xlu0 %v787, 104
      %v8195 = vpop.permute.xlu0 %8194
      %8196 = vrot.lane.b32.xlu0 %v788, 104
      %v8197 = vpop.permute.xlu0 %8196
      %8198 = vrot.lane.b32.xlu0 %v789, 104
      %v8199 = vpop.permute.xlu0 %8198
      %8200 = vrot.lane.b32.xlu0 %v786, 72
      %v8201 = vpop.permute.xlu0 %8200
      %8202 = vrot.lane.b32.xlu0 %v787, 72
      %v8203 = vpop.permute.xlu0 %8202
      %8204 = vrot.lane.b32.xlu0 %v788, 72
      %v8205 = vpop.permute.xlu0 %8204
      %8206 = vrot.lane.b32.xlu0 %v789, 72
      %v8207 = vpop.permute.xlu0 %8206
      %v8209 = vsel %vm818, %v8193, 0
      %v8212 = vsel %vm818, %v8195, 0
      %v8215 = vsel %vm818, %v8197, 0
      %v8218 = vsel %vm818, %v8199, 0
      %v8221 = vsel %vm818, %v8201, 0
      %v8224 = vsel %vm818, %v8203, 0
      %v8227 = vsel %vm818, %v8205, 0
      %v8230 = vsel %vm818, %v8207, 0
      %8232 = vmatprep.subr.bf16.mxu0 0
      %8233 = vmatpush1.bf16.xpose.msra.mxu0 %v8221
      %8234 = vmatprep.subr.bf16.mxu0 0
      %8235 = vmatpush1.bf16.xpose.msra.mxu0 %v8224
      %8236 = vmatprep.subr.bf16.mxu0 0
      %8237 = vmatpush1.bf16.xpose.msra.mxu0 %v8227
      %8238 = vmatprep.subr.bf16.mxu0 0
      %8239 = vmatpush1.bf16.xpose.msra.mxu0 %v8230
      %8240 = vmatprep.subr.bf16.mxu0 0
      %8241 = vmatpush1.bf16.xpose.msra.mxu0 0
      %8242 = vmatprep.subr.bf16.mxu0 0
      %8243 = vmatpush1.bf16.xpose.msra.mxu0 0
      %8244 = vmatprep.subr.bf16.mxu0 0
      %8245 = vmatpush1.bf16.xpose.msra.mxu0 0
      %8246 = vmatprep.subr.bf16.mxu0 0
      %8247 = vmatpush1.bf16.xpose.msra.mxu0 0
      %8248 = vmatprep.subr.bf16.mxu0 0
      %8249 = vmatpush1.bf16.xpose.msra.mxu0 0
      %8250 = vmatprep.subr.bf16.mxu0 0
      %8251 = vmatpush1.bf16.xpose.msra.mxu0 0
      %8252 = vmatprep.subr.bf16.mxu0 0
      %8253 = vmatpush1.bf16.xpose.msra.mxu0 0
      %8254 = vmatprep.subr.bf16.mxu0 0
      %8255 = vmatpush1.bf16.xpose.msra.mxu0 0
      %8256 = vmatprep.subr.bf16.mxu0 0
      %8257 = vmatpush1.bf16.xpose.msra.mxu0 0
      %8258 = vmatprep.subr.bf16.mxu0 0
      %8259 = vmatpush1.bf16.xpose.msra.mxu0 0
      %8260 = vmatprep.subr.bf16.mxu0 0
      %8261 = vmatpush1.bf16.xpose.msra.mxu0 0
      %8262 = vmatprep.subr.bf16.mxu0 0
      %8263 = vmatpush1.bf16.xpose.msra.mxu0 0
      %8264 = vmatprep.mubr.bf16.mxu0 0
      %8265 = vmatmul.mubr.bf16.gmra.mrb[0].mxu0 %v8209
      %v8266 = vpop.f32.mrb[0].mxu0
      %v8267 = vadd.f32 %v7659, %v8266
      %v8268 = vpop.f32.mrb[0].mxu0
      %v8269 = vpop.f32.mrb[0].mxu0
      %v8270 = vadd.f32 %v7660, %v8269
      %v8271 = vpop.f32.mrb[0].mxu0
      %8272 = vmatprep.mubr.bf16.mxu0 0
      %8273 = vmatmul.mubr.bf16.gmra.mrb[0].mxu0 %v8212
      %v8274 = vpop.f32.mrb[0].mxu0
      %v8275 = vadd.f32 %v7661, %v8274
      %v8276 = vpop.f32.mrb[0].mxu0
      %v8277 = vpop.f32.mrb[0].mxu0
      %v8278 = vadd.f32 %v7662, %v8277
      %v8279 = vpop.f32.mrb[0].mxu0
      %8280 = vmatprep.mubr.bf16.mxu0 0
      %8281 = vmatmul.mubr.bf16.gmra.mrb[0].mxu0 %v8215
      %v8282 = vpop.f32.mrb[0].mxu0
      %v8283 = vadd.f32 %v7663, %v8282
      %v8284 = vpop.f32.mrb[0].mxu0
      %v8285 = vpop.f32.mrb[0].mxu0
      %v8286 = vadd.f32 %v7664, %v8285
      %v8287 = vpop.f32.mrb[0].mxu0
      %8288 = vmatprep.mubr.bf16.mxu0 0
      %8289 = vmatmul.mubr.bf16.gmra.mrb[0].mxu0 %v8218
      %v8290 = vpop.f32.mrb[0].mxu0
      %v8291 = vadd.f32 %v7665, %v8290
      %v8292 = vpop.f32.mrb[0].mxu0
      %v8293 = vpop.f32.mrb[0].mxu0
      %v8294 = vadd.f32 %v7666, %v8293
      %v8295 = vpop.f32.mrb[0].mxu0
      %8296 = vdwg.mxu0
      %8297 = vrot.lane.b32.xlu0 %v790, 104
      %v8298 = vpop.permute.xlu0 %8297
      %8299 = vrot.lane.b32.xlu0 %v791, 104
      %v8300 = vpop.permute.xlu0 %8299
      %8301 = vrot.lane.b32.xlu0 %v792, 104
      %v8302 = vpop.permute.xlu0 %8301
      %8303 = vrot.lane.b32.xlu0 %v793, 104
      %v8304 = vpop.permute.xlu0 %8303
      %8305 = vrot.lane.b32.xlu0 %v790, 72
      %v8306 = vpop.permute.xlu0 %8305
      %8307 = vrot.lane.b32.xlu0 %v791, 72
      %v8308 = vpop.permute.xlu0 %8307
      %8309 = vrot.lane.b32.xlu0 %v792, 72
      %v8310 = vpop.permute.xlu0 %8309
      %8311 = vrot.lane.b32.xlu0 %v793, 72
      %v8312 = vpop.permute.xlu0 %8311
      %v8314 = vsel %vm818, %v8298, 0
      %v8317 = vsel %vm818, %v8300, 0
      %v8320 = vsel %vm818, %v8302, 0
      %v8323 = vsel %vm818, %v8304, 0
      %v8326 = vsel %vm818, %v8306, 0
      %v8329 = vsel %vm818, %v8308, 0
      %v8332 = vsel %vm818, %v8310, 0
      %v8335 = vsel %vm818, %v8312, 0
      %8337 = vmatprep.subr.bf16.mxu0 0
      %8338 = vmatpush1.bf16.xpose.msra.mxu0 %v8326
      %8339 = vmatprep.subr.bf16.mxu0 0
      %8340 = vmatpush1.bf16.xpose.msra.mxu0 %v8329
      %8341 = vmatprep.subr.bf16.mxu0 0
      %8342 = vmatpush1.bf16.xpose.msra.mxu0 %v8332
      %8343 = vmatprep.subr.bf16.mxu0 0
      %8344 = vmatpush1.bf16.xpose.msra.mxu0 %v8335
      %8345 = vmatprep.subr.bf16.mxu0 0
      %8346 = vmatpush1.bf16.xpose.msra.mxu0 0
      %8347 = vmatprep.subr.bf16.mxu0 0
      %8348 = vmatpush1.bf16.xpose.msra.mxu0 0
      %8349 = vmatprep.subr.bf16.mxu0 0
      %8350 = vmatpush1.bf16.xpose.msra.mxu0 0
      %8351 = vmatprep.subr.bf16.mxu0 0
      %8352 = vmatpush1.bf16.xpose.msra.mxu0 0
      %8353 = vmatprep.subr.bf16.mxu0 0
      %8354 = vmatpush1.bf16.xpose.msra.mxu0 0
      %8355 = vmatprep.subr.bf16.mxu0 0
      %8356 = vmatpush1.bf16.xpose.msra.mxu0 0
      %8357 = vmatprep.subr.bf16.mxu0 0
      %8358 = vmatpush1.bf16.xpose.msra.mxu0 0
      %8359 = vmatprep.subr.bf16.mxu0 0
      %8360 = vmatpush1.bf16.xpose.msra.mxu0 0
      %8361 = vmatprep.subr.bf16.mxu0 0
      %8362 = vmatpush1.bf16.xpose.msra.mxu0 0
      %8363 = vmatprep.subr.bf16.mxu0 0
      %8364 = vmatpush1.bf16.xpose.msra.mxu0 0
      %8365 = vmatprep.subr.bf16.mxu0 0
      %8366 = vmatpush1.bf16.xpose.msra.mxu0 0
      %8367 = vmatprep.subr.bf16.mxu0 0
      %8368 = vmatpush1.bf16.xpose.msra.mxu0 0
      %8369 = vmatprep.mubr.bf16.mxu0 0
      %8370 = vmatmul.mubr.bf16.gmra.mrb[0].mxu0 %v8314
      %v8371 = vpop.f32.mrb[0].mxu0
      %v8372 = vadd.f32 %v7659, %v8371
      %v8373 = vpop.f32.mrb[0].mxu0
      %v8374 = vpop.f32.mrb[0].mxu0
      %v8375 = vadd.f32 %v7660, %v8374
      %v8376 = vpop.f32.mrb[0].mxu0
      %8377 = vmatprep.mubr.bf16.mxu0 0
      %8378 = vmatmul.mubr.bf16.gmra.mrb[0].mxu0 %v8317
      %v8379 = vpop.f32.mrb[0].mxu0
      %v8380 = vadd.f32 %v7661, %v8379
      %v8381 = vpop.f32.mrb[0].mxu0
      %v8382 = vpop.f32.mrb[0].mxu0
      %v8383 = vadd.f32 %v7662, %v8382
      %v8384 = vpop.f32.mrb[0].mxu0
      %8385 = vmatprep.mubr.bf16.mxu0 0
      %8386 = vmatmul.mubr.bf16.gmra.mrb[0].mxu0 %v8320
      %v8387 = vpop.f32.mrb[0].mxu0
      %v8388 = vadd.f32 %v7663, %v8387
      %v8389 = vpop.f32.mrb[0].mxu0
      %v8390 = vpop.f32.mrb[0].mxu0
      %v8391 = vadd.f32 %v7664, %v8390
      %v8392 = vpop.f32.mrb[0].mxu0
      %8393 = vmatprep.mubr.bf16.mxu0 0
      %8394 = vmatmul.mubr.bf16.gmra.mrb[0].mxu0 %v8323
      %v8395 = vpop.f32.mrb[0].mxu0
      %v8396 = vadd.f32 %v7665, %v8395
      %v8397 = vpop.f32.mrb[0].mxu0
      %v8398 = vpop.f32.mrb[0].mxu0
      %v8399 = vadd.f32 %v7666, %v8398
      %v8400 = vpop.f32.mrb[0].mxu0
      %8401 = vdwg.mxu0
      %8402 = vrot.lane.b32.xlu0 %v794, 104
      %v8403 = vpop.permute.xlu0 %8402
      %8404 = vrot.lane.b32.xlu0 %v795, 104
      %v8405 = vpop.permute.xlu0 %8404
      %8406 = vrot.lane.b32.xlu0 %v796, 104
      %v8407 = vpop.permute.xlu0 %8406
      %8408 = vrot.lane.b32.xlu0 %v797, 104
      %v8409 = vpop.permute.xlu0 %8408
      %8410 = vrot.lane.b32.xlu0 %v794, 72
      %v8411 = vpop.permute.xlu0 %8410
      %8412 = vrot.lane.b32.xlu0 %v795, 72
      %v8413 = vpop.permute.xlu0 %8412
      %8414 = vrot.lane.b32.xlu0 %v796, 72
      %v8415 = vpop.permute.xlu0 %8414
      %8416 = vrot.lane.b32.xlu0 %v797, 72
      %v8417 = vpop.permute.xlu0 %8416
      %v8419 = vsel %vm818, %v8403, 0
      %v8422 = vsel %vm818, %v8405, 0
      %v8425 = vsel %vm818, %v8407, 0
      %v8428 = vsel %vm818, %v8409, 0
      %v8431 = vsel %vm818, %v8411, 0
      %v8434 = vsel %vm818, %v8413, 0
      %v8437 = vsel %vm818, %v8415, 0
      %v8440 = vsel %vm818, %v8417, 0
      %8442 = vmatprep.subr.bf16.mxu0 0
      %8443 = vmatpush1.bf16.xpose.msra.mxu0 %v8431
      %8444 = vmatprep.subr.bf16.mxu0 0
      %8445 = vmatpush1.bf16.xpose.msra.mxu0 %v8434
      %8446 = vmatprep.subr.bf16.mxu0 0
      %8447 = vmatpush1.bf16.xpose.msra.mxu0 %v8437
      %8448 = vmatprep.subr.bf16.mxu0 0
      %8449 = vmatpush1.bf16.xpose.msra.mxu0 %v8440
      %8450 = vmatprep.subr.bf16.mxu0 0
      %8451 = vmatpush1.bf16.xpose.msra.mxu0 0
      %8452 = vmatprep.subr.bf16.mxu0 0
      %8453 = vmatpush1.bf16.xpose.msra.mxu0 0
      %8454 = vmatprep.subr.bf16.mxu0 0
      %8455 = vmatpush1.bf16.xpose.msra.mxu0 0
      %8456 = vmatprep.subr.bf16.mxu0 0
      %8457 = vmatpush1.bf16.xpose.msra.mxu0 0
      %8458 = vmatprep.subr.bf16.mxu0 0
      %8459 = vmatpush1.bf16.xpose.msra.mxu0 0
      %8460 = vmatprep.subr.bf16.mxu0 0
      %8461 = vmatpush1.bf16.xpose.msra.mxu0 0
      %8462 = vmatprep.subr.bf16.mxu0 0
      %8463 = vmatpush1.bf16.xpose.msra.mxu0 0
      %8464 = vmatprep.subr.bf16.mxu0 0
      %8465 = vmatpush1.bf16.xpose.msra.mxu0 0
      %8466 = vmatprep.subr.bf16.mxu0 0
      %8467 = vmatpush1.bf16.xpose.msra.mxu0 0
      %8468 = vmatprep.subr.bf16.mxu0 0
      %8469 = vmatpush1.bf16.xpose.msra.mxu0 0
      %8470 = vmatprep.subr.bf16.mxu0 0
      %8471 = vmatpush1.bf16.xpose.msra.mxu0 0
      %8472 = vmatprep.subr.bf16.mxu0 0
      %8473 = vmatpush1.bf16.xpose.msra.mxu0 0
      %8474 = vmatprep.mubr.bf16.mxu0 0
      %8475 = vmatmul.mubr.bf16.gmra.mrb[0].mxu0 %v8419
      %v8476 = vpop.f32.mrb[0].mxu0
      %v8477 = vadd.f32 %v7659, %v8476
      %v8478 = vpop.f32.mrb[0].mxu0
      %v8479 = vpop.f32.mrb[0].mxu0
      %v8480 = vadd.f32 %v7660, %v8479
      %v8481 = vpop.f32.mrb[0].mxu0
      %8482 = vmatprep.mubr.bf16.mxu0 0
      %8483 = vmatmul.mubr.bf16.gmra.mrb[0].mxu0 %v8422
      %v8484 = vpop.f32.mrb[0].mxu0
      %v8485 = vadd.f32 %v7661, %v8484
      %v8486 = vpop.f32.mrb[0].mxu0
      %v8487 = vpop.f32.mrb[0].mxu0
      %v8488 = vadd.f32 %v7662, %v8487
      %v8489 = vpop.f32.mrb[0].mxu0
      %8490 = vmatprep.mubr.bf16.mxu0 0
      %8491 = vmatmul.mubr.bf16.gmra.mrb[0].mxu0 %v8425
      %v8492 = vpop.f32.mrb[0].mxu0
      %v8493 = vadd.f32 %v7663, %v8492
      %v8494 = vpop.f32.mrb[0].mxu0
      %v8495 = vpop.f32.mrb[0].mxu0
      %v8496 = vadd.f32 %v7664, %v8495
      %v8497 = vpop.f32.mrb[0].mxu0
      %8498 = vmatprep.mubr.bf16.mxu0 0
      %8499 = vmatmul.mubr.bf16.gmra.mrb[0].mxu0 %v8428
      %v8500 = vpop.f32.mrb[0].mxu0
      %v8501 = vadd.f32 %v7665, %v8500
      %v8502 = vpop.f32.mrb[0].mxu0
      %v8503 = vpop.f32.mrb[0].mxu0
      %v8504 = vadd.f32 %v7666, %v8503
      %v8505 = vpop.f32.mrb[0].mxu0
      %8506 = vdwg.mxu0
      %v8507 = vsel %vm1615, %v7742, -inf
      %8508 = vmax.xlane.f32.xlu0 %v8507
      %v8509 = vpop.xlane.xlu0 %8508
      %v8510 = vsel %vm1615, %v7745, -inf
      %8511 = vmax.xlane.f32.xlu0 %v8510
      %v8512 = vpop.xlane.xlu0 %8511
      %v8513 = vsel %vm1615, %v7750, -inf
      %8514 = vmax.xlane.f32.xlu0 %v8513
      %v8515 = vpop.xlane.xlu0 %8514
      %v8516 = vsel %vm1615, %v7753, -inf
      %8517 = vmax.xlane.f32.xlu0 %v8516
      %v8518 = vpop.xlane.xlu0 %8517
      %v8519 = vsel %vm1615, %v7758, -inf
      %8520 = vmax.xlane.f32.xlu0 %v8519
      %v8521 = vpop.xlane.xlu0 %8520
      %v8522 = vsel %vm1615, %v7761, -inf
      %8523 = vmax.xlane.f32.xlu0 %v8522
      %v8524 = vpop.xlane.xlu0 %8523
      %v8525 = vsel %vm1615, %v7766, -inf
      %8526 = vmax.xlane.f32.xlu0 %v8525
      %v8527 = vpop.xlane.xlu0 %8526
      %v8528 = vsel %vm1615, %v7769, -inf
      %8529 = vmax.xlane.f32.xlu0 %v8528
      %v8530 = vpop.xlane.xlu0 %8529
      %v8531 = vsel %vm1615, %v7847, -inf
      %8532 = vmax.xlane.f32.xlu0 %v8531
      %v8533 = vpop.xlane.xlu0 %8532
      %v8534 = vsel %vm1615, %v7850, -inf
      %8535 = vmax.xlane.f32.xlu0 %v8534
      %v8536 = vpop.xlane.xlu0 %8535
      %v8537 = vsel %vm1615, %v7855, -inf
      %8538 = vmax.xlane.f32.xlu0 %v8537
      %v8539 = vpop.xlane.xlu0 %8538
      %v8540 = vsel %vm1615, %v7858, -inf
      %8541 = vmax.xlane.f32.xlu0 %v8540
      %v8542 = vpop.xlane.xlu0 %8541
      %v8543 = vsel %vm1615, %v7863, -inf
      %8544 = vmax.xlane.f32.xlu0 %v8543
      %v8545 = vpop.xlane.xlu0 %8544
      %v8546 = vsel %vm1615, %v7866, -inf
      %8547 = vmax.xlane.f32.xlu0 %v8546
      %v8548 = vpop.xlane.xlu0 %8547
      %v8549 = vsel %vm1615, %v7871, -inf
      %8550 = vmax.xlane.f32.xlu0 %v8549
      %v8551 = vpop.xlane.xlu0 %8550
      %v8552 = vsel %vm1615, %v7874, -inf
      %8553 = vmax.xlane.f32.xlu0 %v8552
      %v8554 = vpop.xlane.xlu0 %8553
      %v8555 = vsel %vm1615, %v7952, -inf
      %8556 = vmax.xlane.f32.xlu0 %v8555
      %v8557 = vpop.xlane.xlu0 %8556
      %v8558 = vsel %vm1615, %v7955, -inf
      %8559 = vmax.xlane.f32.xlu0 %v8558
      %v8560 = vpop.xlane.xlu0 %8559
      %v8561 = vsel %vm1615, %v7960, -inf
      %8562 = vmax.xlane.f32.xlu0 %v8561
      %v8563 = vpop.xlane.xlu0 %8562
      %v8564 = vsel %vm1615, %v7963, -inf
      %8565 = vmax.xlane.f32.xlu0 %v8564
      %v8566 = vpop.xlane.xlu0 %8565
      %v8567 = vsel %vm1615, %v7968, -inf
      %8568 = vmax.xlane.f32.xlu0 %v8567
      %v8569 = vpop.xlane.xlu0 %8568
      %v8570 = vsel %vm1615, %v7971, -inf
      %8571 = vmax.xlane.f32.xlu0 %v8570
      %v8572 = vpop.xlane.xlu0 %8571
      %v8573 = vsel %vm1615, %v7976, -inf
      %8574 = vmax.xlane.f32.xlu0 %v8573
      %v8575 = vpop.xlane.xlu0 %8574
      %v8576 = vsel %vm1615, %v7979, -inf
      %8577 = vmax.xlane.f32.xlu0 %v8576
      %v8578 = vpop.xlane.xlu0 %8577
      %v8579 = vsel %vm1615, %v8057, -inf
      %8580 = vmax.xlane.f32.xlu0 %v8579
      %v8581 = vpop.xlane.xlu0 %8580
      %v8582 = vsel %vm1615, %v8060, -inf
      %8583 = vmax.xlane.f32.xlu0 %v8582
      %v8584 = vpop.xlane.xlu0 %8583
      %v8585 = vsel %vm1615, %v8065, -inf
      %8586 = vmax.xlane.f32.xlu0 %v8585
      %v8587 = vpop.xlane.xlu0 %8586
      %v8588 = vsel %vm1615, %v8068, -inf
      %8589 = vmax.xlane.f32.xlu0 %v8588
      %v8590 = vpop.xlane.xlu0 %8589
      %v8591 = vsel %vm1615, %v8073, -inf
      %8592 = vmax.xlane.f32.xlu0 %v8591
      %v8593 = vpop.xlane.xlu0 %8592
      %v8594 = vsel %vm1615, %v8076, -inf
      %8595 = vmax.xlane.f32.xlu0 %v8594
      %v8596 = vpop.xlane.xlu0 %8595
      %v8597 = vsel %vm1615, %v8081, -inf
      %8598 = vmax.xlane.f32.xlu0 %v8597
      %v8599 = vpop.xlane.xlu0 %8598
      %v8600 = vsel %vm1615, %v8084, -inf
      %8601 = vmax.xlane.f32.xlu0 %v8600
      %v8602 = vpop.xlane.xlu0 %8601
      %v8603 = vsel %vm1615, %v8162, -inf
      %8604 = vmax.xlane.f32.xlu0 %v8603
      %v8605 = vpop.xlane.xlu0 %8604
      %v8606 = vsel %vm1615, %v8165, -inf
      %8607 = vmax.xlane.f32.xlu0 %v8606
      %v8608 = vpop.xlane.xlu0 %8607
      %v8609 = vsel %vm1615, %v8170, -inf
      %8610 = vmax.xlane.f32.xlu0 %v8609
      %v8611 = vpop.xlane.xlu0 %8610
      %v8612 = vsel %vm1615, %v8173, -inf
      %8613 = vmax.xlane.f32.xlu0 %v8612
      %v8614 = vpop.xlane.xlu0 %8613
      %v8615 = vsel %vm1615, %v8178, -inf
      %8616 = vmax.xlane.f32.xlu0 %v8615
      %v8617 = vpop.xlane.xlu0 %8616
      %v8618 = vsel %vm1615, %v8181, -inf
      %8619 = vmax.xlane.f32.xlu0 %v8618
      %v8620 = vpop.xlane.xlu0 %8619
      %v8621 = vsel %vm1615, %v8186, -inf
      %8622 = vmax.xlane.f32.xlu0 %v8621
      %v8623 = vpop.xlane.xlu0 %8622
      %v8624 = vsel %vm1615, %v8189, -inf
      %8625 = vmax.xlane.f32.xlu0 %v8624
      %v8626 = vpop.xlane.xlu0 %8625
      %v8627 = vsel %vm1615, %v8267, -inf
      %8628 = vmax.xlane.f32.xlu0 %v8627
      %v8629 = vpop.xlane.xlu0 %8628
      %v8630 = vsel %vm1615, %v8270, -inf
      %8631 = vmax.xlane.f32.xlu0 %v8630
      %v8632 = vpop.xlane.xlu0 %8631
      %v8633 = vsel %vm1615, %v8275, -inf
      %8634 = vmax.xlane.f32.xlu0 %v8633
      %v8635 = vpop.xlane.xlu0 %8634
      %v8636 = vsel %vm1615, %v8278, -inf
      %8637 = vmax.xlane.f32.xlu0 %v8636
      %v8638 = vpop.xlane.xlu0 %8637
      %v8639 = vsel %vm1615, %v8283, -inf
      %8640 = vmax.xlane.f32.xlu0 %v8639
      %v8641 = vpop.xlane.xlu0 %8640
      %v8642 = vsel %vm1615, %v8286, -inf
      %8643 = vmax.xlane.f32.xlu0 %v8642
      %v8644 = vpop.xlane.xlu0 %8643
      %v8645 = vsel %vm1615, %v8291, -inf
      %8646 = vmax.xlane.f32.xlu0 %v8645
      %v8647 = vpop.xlane.xlu0 %8646
      %v8648 = vsel %vm1615, %v8294, -inf
      %8649 = vmax.xlane.f32.xlu0 %v8648
      %v8650 = vpop.xlane.xlu0 %8649
      %v8651 = vsel %vm1615, %v8372, -inf
      %8652 = vmax.xlane.f32.xlu0 %v8651
      %v8653 = vpop.xlane.xlu0 %8652
      %v8654 = vsel %vm1615, %v8375, -inf
      %8655 = vmax.xlane.f32.xlu0 %v8654
      %v8656 = vpop.xlane.xlu0 %8655
      %v8657 = vsel %vm1615, %v8380, -inf
      %8658 = vmax.xlane.f32.xlu0 %v8657
      %v8659 = vpop.xlane.xlu0 %8658
      %v8660 = vsel %vm1615, %v8383, -inf
      %8661 = vmax.xlane.f32.xlu0 %v8660
      %v8662 = vpop.xlane.xlu0 %8661
      %v8663 = vsel %vm1615, %v8388, -inf
      %8664 = vmax.xlane.f32.xlu0 %v8663
      %v8665 = vpop.xlane.xlu0 %8664
      %v8666 = vsel %vm1615, %v8391, -inf
      %8667 = vmax.xlane.f32.xlu0 %v8666
      %v8668 = vpop.xlane.xlu0 %8667
      %v8669 = vsel %vm1615, %v8396, -inf
      %8670 = vmax.xlane.f32.xlu0 %v8669
      %v8671 = vpop.xlane.xlu0 %8670
      %v8672 = vsel %vm1615, %v8399, -inf
      %8673 = vmax.xlane.f32.xlu0 %v8672
      %v8674 = vpop.xlane.xlu0 %8673
      %v8675 = vsel %vm1615, %v8477, -inf
      %8676 = vmax.xlane.f32.xlu0 %v8675
      %v8677 = vpop.xlane.xlu0 %8676
      %v8678 = vsel %vm1615, %v8480, -inf
      %8679 = vmax.xlane.f32.xlu0 %v8678
      %v8680 = vpop.xlane.xlu0 %8679
      %v8681 = vsel %vm1615, %v8485, -inf
      %8682 = vmax.xlane.f32.xlu0 %v8681
      %v8683 = vpop.xlane.xlu0 %8682
      %v8684 = vsel %vm1615, %v8488, -inf
      %8685 = vmax.xlane.f32.xlu0 %v8684
      %v8686 = vpop.xlane.xlu0 %8685
      %v8687 = vsel %vm1615, %v8493, -inf
      %8688 = vmax.xlane.f32.xlu0 %v8687
      %v8689 = vpop.xlane.xlu0 %8688
      %v8690 = vsel %vm1615, %v8496, -inf
      %8691 = vmax.xlane.f32.xlu0 %v8690
      %v8692 = vpop.xlane.xlu0 %8691
      %v8693 = vsel %vm1615, %v8501, -inf
      %8694 = vmax.xlane.f32.xlu0 %v8693
      %v8695 = vpop.xlane.xlu0 %8694
      %v8696 = vsel %vm1615, %v8504, -inf
      %8697 = vmax.xlane.f32.xlu0 %v8696
      %v8698 = vpop.xlane.xlu0 %8697
      %v8699 = vsub.f32 %v7742, %v8509
      %v8700 = vsub.f32 %v7745, %v8512
      %v8701 = vsub.f32 %v7750, %v8515
      %v8702 = vsub.f32 %v7753, %v8518
      %v8703 = vsub.f32 %v7758, %v8521
      %v8704 = vsub.f32 %v7761, %v8524
      %v8705 = vsub.f32 %v7766, %v8527
      %v8706 = vsub.f32 %v7769, %v8530
      %v8707 = vsub.f32 %v7847, %v8533
      %v8708 = vsub.f32 %v7850, %v8536
      %v8709 = vsub.f32 %v7855, %v8539
      %v8710 = vsub.f32 %v7858, %v8542
      %v8711 = vsub.f32 %v7863, %v8545
      %v8712 = vsub.f32 %v7866, %v8548
      %v8713 = vsub.f32 %v7871, %v8551
      %v8714 = vsub.f32 %v7874, %v8554
      %v8715 = vsub.f32 %v7952, %v8557
      %v8716 = vsub.f32 %v7955, %v8560
      %v8717 = vsub.f32 %v7960, %v8563
      %v8718 = vsub.f32 %v7963, %v8566
      %v8719 = vsub.f32 %v7968, %v8569
      %v8720 = vsub.f32 %v7971, %v8572
      %v8721 = vsub.f32 %v7976, %v8575
      %v8722 = vsub.f32 %v7979, %v8578
      %v8723 = vsub.f32 %v8057, %v8581
      %v8724 = vsub.f32 %v8060, %v8584
      %v8725 = vsub.f32 %v8065, %v8587
      %v8726 = vsub.f32 %v8068, %v8590
      %v8727 = vsub.f32 %v8073, %v8593
      %v8728 = vsub.f32 %v8076, %v8596
      %v8729 = vsub.f32 %v8081, %v8599
      %v8730 = vsub.f32 %v8084, %v8602
      %v8731 = vsub.f32 %v8162, %v8605
      %v8732 = vsub.f32 %v8165, %v8608
      %v8733 = vsub.f32 %v8170, %v8611
      %v8734 = vsub.f32 %v8173, %v8614
      %v8735 = vsub.f32 %v8178, %v8617
      %v8736 = vsub.f32 %v8181, %v8620
      %v8737 = vsub.f32 %v8186, %v8623
      %v8738 = vsub.f32 %v8189, %v8626
      %v8739 = vsub.f32 %v8267, %v8629
      %v8740 = vsub.f32 %v8270, %v8632
      %v8741 = vsub.f32 %v8275, %v8635
      %v8742 = vsub.f32 %v8278, %v8638
      %v8743 = vsub.f32 %v8283, %v8641
      %v8744 = vsub.f32 %v8286, %v8644
      %v8745 = vsub.f32 %v8291, %v8647
      %v8746 = vsub.f32 %v8294, %v8650
      %v8747 = vsub.f32 %v8372, %v8653
      %v8748 = vsub.f32 %v8375, %v8656
      %v8749 = vsub.f32 %v8380, %v8659
      %v8750 = vsub.f32 %v8383, %v8662
      %v8751 = vsub.f32 %v8388, %v8665
      %v8752 = vsub.f32 %v8391, %v8668
      %v8753 = vsub.f32 %v8396, %v8671
      %v8754 = vsub.f32 %v8399, %v8674
      %v8755 = vsub.f32 %v8477, %v8677
      %v8756 = vsub.f32 %v8480, %v8680
      %v8757 = vsub.f32 %v8485, %v8683
      %v8758 = vsub.f32 %v8488, %v8686
      %v8759 = vsub.f32 %v8493, %v8689
      %v8760 = vsub.f32 %v8496, %v8692
      %v8761 = vsub.f32 %v8501, %v8695
      %v8762 = vsub.f32 %v8504, %v8698
      %v8763 = vmul.f32 %v8699, 1.442695
      %v8764 = vpow.pop %v8763
      %v8765 = vmul.f32 %v8700, 1.442695
      %v8766 = vpow.pop %v8765
      %v8767 = vmul.f32 %v8701, 1.442695
      %v8768 = vpow.pop %v8767
      %v8769 = vmul.f32 %v8702, 1.442695
      %v8770 = vpow.pop %v8769
      %v8771 = vmul.f32 %v8703, 1.442695
      %v8772 = vpow.pop %v8771
      %v8773 = vmul.f32 %v8704, 1.442695
      %v8774 = vpow.pop %v8773
      %v8775 = vmul.f32 %v8705, 1.442695
      %v8776 = vpow.pop %v8775
      %v8777 = vmul.f32 %v8706, 1.442695
      %v8778 = vpow.pop %v8777
      %v8779 = vmul.f32 %v8707, 1.442695
      %v8780 = vpow.pop %v8779
      %v8781 = vmul.f32 %v8708, 1.442695
      %v8782 = vpow.pop %v8781
      %v8783 = vmul.f32 %v8709, 1.442695
      %v8784 = vpow.pop %v8783
      %v8785 = vmul.f32 %v8710, 1.442695
      %v8786 = vpow.pop %v8785
      %v8787 = vmul.f32 %v8711, 1.442695
      %v8788 = vpow.pop %v8787
      %v8789 = vmul.f32 %v8712, 1.442695
      %v8790 = vpow.pop %v8789
      %v8791 = vmul.f32 %v8713, 1.442695
      %v8792 = vpow.pop %v8791
      %v8793 = vmul.f32 %v8714, 1.442695
      %v8794 = vpow.pop %v8793
      %v8795 = vmul.f32 %v8715, 1.442695
      %v8796 = vpow.pop %v8795
      %v8797 = vmul.f32 %v8716, 1.442695
      %v8798 = vpow.pop %v8797
      %v8799 = vmul.f32 %v8717, 1.442695
      %v8800 = vpow.pop %v8799
      %v8801 = vmul.f32 %v8718, 1.442695
      %v8802 = vpow.pop %v8801
      %v8803 = vmul.f32 %v8719, 1.442695
      %v8804 = vpow.pop %v8803
      %v8805 = vmul.f32 %v8720, 1.442695
      %v8806 = vpow.pop %v8805
      %v8807 = vmul.f32 %v8721, 1.442695
      %v8808 = vpow.pop %v8807
      %v8809 = vmul.f32 %v8722, 1.442695
      %v8810 = vpow.pop %v8809
      %v8811 = vmul.f32 %v8723, 1.442695
      %v8812 = vpow.pop %v8811
      %v8813 = vmul.f32 %v8724, 1.442695
      %v8814 = vpow.pop %v8813
      %v8815 = vmul.f32 %v8725, 1.442695
      %v8816 = vpow.pop %v8815
      %v8817 = vmul.f32 %v8726, 1.442695
      %v8818 = vpow.pop %v8817
      %v8819 = vmul.f32 %v8727, 1.442695
      %v8820 = vpow.pop %v8819
      %v8821 = vmul.f32 %v8728, 1.442695
      %v8822 = vpow.pop %v8821
      %v8823 = vmul.f32 %v8729, 1.442695
      %v8824 = vpow.pop %v8823
      %v8825 = vmul.f32 %v8730, 1.442695
      %v8826 = vpow.pop %v8825
      %v8827 = vmul.f32 %v8731, 1.442695
      %v8828 = vpow.pop %v8827
      %v8829 = vmul.f32 %v8732, 1.442695
      %v8830 = vpow.pop %v8829
      %v8831 = vmul.f32 %v8733, 1.442695
      %v8832 = vpow.pop %v8831
      %v8833 = vmul.f32 %v8734, 1.442695
      %v8834 = vpow.pop %v8833
      %v8835 = vmul.f32 %v8735, 1.442695
      %v8836 = vpow.pop %v8835
      %v8837 = vmul.f32 %v8736, 1.442695
      %v8838 = vpow.pop %v8837
      %v8839 = vmul.f32 %v8737, 1.442695
      %v8840 = vpow.pop %v8839
      %v8841 = vmul.f32 %v8738, 1.442695
      %v8842 = vpow.pop %v8841
      %v8843 = vmul.f32 %v8739, 1.442695
      %v8844 = vpow.pop %v8843
      %v8845 = vmul.f32 %v8740, 1.442695
      %v8846 = vpow.pop %v8845
      %v8847 = vmul.f32 %v8741, 1.442695
      %v8848 = vpow.pop %v8847
      %v8849 = vmul.f32 %v8742, 1.442695
      %v8850 = vpow.pop %v8849
      %v8851 = vmul.f32 %v8743, 1.442695
      %v8852 = vpow.pop %v8851
      %v8853 = vmul.f32 %v8744, 1.442695
      %v8854 = vpow.pop %v8853
      %v8855 = vmul.f32 %v8745, 1.442695
      %v8856 = vpow.pop %v8855
      %v8857 = vmul.f32 %v8746, 1.442695
      %v8858 = vpow.pop %v8857
      %v8859 = vmul.f32 %v8747, 1.442695
      %v8860 = vpow.pop %v8859
      %v8861 = vmul.f32 %v8748, 1.442695
      %v8862 = vpow.pop %v8861
      %v8863 = vmul.f32 %v8749, 1.442695
      %v8864 = vpow.pop %v8863
      %v8865 = vmul.f32 %v8750, 1.442695
      %v8866 = vpow.pop %v8865
      %v8867 = vmul.f32 %v8751, 1.442695
      %v8868 = vpow.pop %v8867
      %v8869 = vmul.f32 %v8752, 1.442695
      %v8870 = vpow.pop %v8869
      %v8871 = vmul.f32 %v8753, 1.442695
      %v8872 = vpow.pop %v8871
      %v8873 = vmul.f32 %v8754, 1.442695
      %v8874 = vpow.pop %v8873
      %v8875 = vmul.f32 %v8755, 1.442695
      %v8876 = vpow.pop %v8875
      %v8877 = vmul.f32 %v8756, 1.442695
      %v8878 = vpow.pop %v8877
      %v8879 = vmul.f32 %v8757, 1.442695
      %v8880 = vpow.pop %v8879
      %v8881 = vmul.f32 %v8758, 1.442695
      %v8882 = vpow.pop %v8881
      %v8883 = vmul.f32 %v8759, 1.442695
      %v8884 = vpow.pop %v8883
      %v8885 = vmul.f32 %v8760, 1.442695
      %v8886 = vpow.pop %v8885
      %v8887 = vmul.f32 %v8761, 1.442695
      %v8888 = vpow.pop %v8887
      %v8889 = vmul.f32 %v8762, 1.442695
      %v8890 = vpow.pop %v8889
      %v8891 = vsel %vm1615, %v8764, 0.0
      %8892 = vadd.xlane.f32.xlu0 %v8891
      %v8893 = vpop.xlane.xlu0 %8892
      %v8894 = vsel %vm1615, %v8766, 0.0
      %8895 = vadd.xlane.f32.xlu0 %v8894
      %v8896 = vpop.xlane.xlu0 %8895
      %v8897 = vsel %vm1615, %v8768, 0.0
      %8898 = vadd.xlane.f32.xlu0 %v8897
      %v8899 = vpop.xlane.xlu0 %8898
      %v8900 = vsel %vm1615, %v8770, 0.0
      %8901 = vadd.xlane.f32.xlu0 %v8900
      %v8902 = vpop.xlane.xlu0 %8901
      %v8903 = vsel %vm1615, %v8772, 0.0
      %8904 = vadd.xlane.f32.xlu0 %v8903
      %v8905 = vpop.xlane.xlu0 %8904
      %v8906 = vsel %vm1615, %v8774, 0.0
      %8907 = vadd.xlane.f32.xlu0 %v8906
      %v8908 = vpop.xlane.xlu0 %8907
      %v8909 = vsel %vm1615, %v8776, 0.0
      %8910 = vadd.xlane.f32.xlu0 %v8909
      %v8911 = vpop.xlane.xlu0 %8910
      %v8912 = vsel %vm1615, %v8778, 0.0
      %8913 = vadd.xlane.f32.xlu0 %v8912
      %v8914 = vpop.xlane.xlu0 %8913
      %v8915 = vsel %vm1615, %v8780, 0.0
      %8916 = vadd.xlane.f32.xlu0 %v8915
      %v8917 = vpop.xlane.xlu0 %8916
      %v8918 = vsel %vm1615, %v8782, 0.0
      %8919 = vadd.xlane.f32.xlu0 %v8918
      %v8920 = vpop.xlane.xlu0 %8919
      %v8921 = vsel %vm1615, %v8784, 0.0
      %8922 = vadd.xlane.f32.xlu0 %v8921
      %v8923 = vpop.xlane.xlu0 %8922
      %v8924 = vsel %vm1615, %v8786, 0.0
      %8925 = vadd.xlane.f32.xlu0 %v8924
      %v8926 = vpop.xlane.xlu0 %8925
      %v8927 = vsel %vm1615, %v8788, 0.0
      %8928 = vadd.xlane.f32.xlu0 %v8927
      %v8929 = vpop.xlane.xlu0 %8928
      %v8930 = vsel %vm1615, %v8790, 0.0
      %8931 = vadd.xlane.f32.xlu0 %v8930
      %v8932 = vpop.xlane.xlu0 %8931
      %v8933 = vsel %vm1615, %v8792, 0.0
      %8934 = vadd.xlane.f32.xlu0 %v8933
      %v8935 = vpop.xlane.xlu0 %8934
      %v8936 = vsel %vm1615, %v8794, 0.0
      %8937 = vadd.xlane.f32.xlu0 %v8936
      %v8938 = vpop.xlane.xlu0 %8937
      %v8939 = vsel %vm1615, %v8796, 0.0
      %8940 = vadd.xlane.f32.xlu0 %v8939
      %v8941 = vpop.xlane.xlu0 %8940
      %v8942 = vsel %vm1615, %v8798, 0.0
      %8943 = vadd.xlane.f32.xlu0 %v8942
      %v8944 = vpop.xlane.xlu0 %8943
      %v8945 = vsel %vm1615, %v8800, 0.0
      %8946 = vadd.xlane.f32.xlu0 %v8945
      %v8947 = vpop.xlane.xlu0 %8946
      %v8948 = vsel %vm1615, %v8802, 0.0
      %8949 = vadd.xlane.f32.xlu0 %v8948
      %v8950 = vpop.xlane.xlu0 %8949
      %v8951 = vsel %vm1615, %v8804, 0.0
      %8952 = vadd.xlane.f32.xlu0 %v8951
      %v8953 = vpop.xlane.xlu0 %8952
      %v8954 = vsel %vm1615, %v8806, 0.0
      %8955 = vadd.xlane.f32.xlu0 %v8954
      %v8956 = vpop.xlane.xlu0 %8955
      %v8957 = vsel %vm1615, %v8808, 0.0
      %8958 = vadd.xlane.f32.xlu0 %v8957
      %v8959 = vpop.xlane.xlu0 %8958
      %v8960 = vsel %vm1615, %v8810, 0.0
      %8961 = vadd.xlane.f32.xlu0 %v8960
      %v8962 = vpop.xlane.xlu0 %8961
      %v8963 = vsel %vm1615, %v8812, 0.0
      %8964 = vadd.xlane.f32.xlu0 %v8963
      %v8965 = vpop.xlane.xlu0 %8964
      %v8966 = vsel %vm1615, %v8814, 0.0
      %8967 = vadd.xlane.f32.xlu0 %v8966
      %v8968 = vpop.xlane.xlu0 %8967
      %v8969 = vsel %vm1615, %v8816, 0.0
      %8970 = vadd.xlane.f32.xlu0 %v8969
      %v8971 = vpop.xlane.xlu0 %8970
      %v8972 = vsel %vm1615, %v8818, 0.0
      %8973 = vadd.xlane.f32.xlu0 %v8972
      %v8974 = vpop.xlane.xlu0 %8973
      %v8975 = vsel %vm1615, %v8820, 0.0
      %8976 = vadd.xlane.f32.xlu0 %v8975
      %v8977 = vpop.xlane.xlu0 %8976
      %v8978 = vsel %vm1615, %v8822, 0.0
      %8979 = vadd.xlane.f32.xlu0 %v8978
      %v8980 = vpop.xlane.xlu0 %8979
      %v8981 = vsel %vm1615, %v8824, 0.0
      %8982 = vadd.xlane.f32.xlu0 %v8981
      %v8983 = vpop.xlane.xlu0 %8982
      %v8984 = vsel %vm1615, %v8826, 0.0
      %8985 = vadd.xlane.f32.xlu0 %v8984
      %v8986 = vpop.xlane.xlu0 %8985
      %v8987 = vsel %vm1615, %v8828, 0.0
      %8988 = vadd.xlane.f32.xlu0 %v8987
      %v8989 = vpop.xlane.xlu0 %8988
      %v8990 = vsel %vm1615, %v8830, 0.0
      %8991 = vadd.xlane.f32.xlu0 %v8990
      %v8992 = vpop.xlane.xlu0 %8991
      %v8993 = vsel %vm1615, %v8832, 0.0
      %8994 = vadd.xlane.f32.xlu0 %v8993
      %v8995 = vpop.xlane.xlu0 %8994
      %v8996 = vsel %vm1615, %v8834, 0.0
      %8997 = vadd.xlane.f32.xlu0 %v8996
      %v8998 = vpop.xlane.xlu0 %8997
      %v8999 = vsel %vm1615, %v8836, 0.0
      %9000 = vadd.xlane.f32.xlu0 %v8999
      %v9001 = vpop.xlane.xlu0 %9000
      %v9002 = vsel %vm1615, %v8838, 0.0
      %9003 = vadd.xlane.f32.xlu0 %v9002
      %v9004 = vpop.xlane.xlu0 %9003
      %v9005 = vsel %vm1615, %v8840, 0.0
      %9006 = vadd.xlane.f32.xlu0 %v9005
      %v9007 = vpop.xlane.xlu0 %9006
      %v9008 = vsel %vm1615, %v8842, 0.0
      %9009 = vadd.xlane.f32.xlu0 %v9008
      %v9010 = vpop.xlane.xlu0 %9009
      %v9011 = vsel %vm1615, %v8844, 0.0
      %9012 = vadd.xlane.f32.xlu0 %v9011
      %v9013 = vpop.xlane.xlu0 %9012
      %v9014 = vsel %vm1615, %v8846, 0.0
      %9015 = vadd.xlane.f32.xlu0 %v9014
      %v9016 = vpop.xlane.xlu0 %9015
      %v9017 = vsel %vm1615, %v8848, 0.0
      %9018 = vadd.xlane.f32.xlu0 %v9017
      %v9019 = vpop.xlane.xlu0 %9018
      %v9020 = vsel %vm1615, %v8850, 0.0
      %9021 = vadd.xlane.f32.xlu0 %v9020
      %v9022 = vpop.xlane.xlu0 %9021
      %v9023 = vsel %vm1615, %v8852, 0.0
      %9024 = vadd.xlane.f32.xlu0 %v9023
      %v9025 = vpop.xlane.xlu0 %9024
      %v9026 = vsel %vm1615, %v8854, 0.0
      %9027 = vadd.xlane.f32.xlu0 %v9026
      %v9028 = vpop.xlane.xlu0 %9027
      %v9029 = vsel %vm1615, %v8856, 0.0
      %9030 = vadd.xlane.f32.xlu0 %v9029
      %v9031 = vpop.xlane.xlu0 %9030
      %v9032 = vsel %vm1615, %v8858, 0.0
      %9033 = vadd.xlane.f32.xlu0 %v9032
      %v9034 = vpop.xlane.xlu0 %9033
      %v9035 = vsel %vm1615, %v8860, 0.0
      %9036 = vadd.xlane.f32.xlu0 %v9035
      %v9037 = vpop.xlane.xlu0 %9036
      %v9038 = vsel %vm1615, %v8862, 0.0
      %9039 = vadd.xlane.f32.xlu0 %v9038
      %v9040 = vpop.xlane.xlu0 %9039
      %v9041 = vsel %vm1615, %v8864, 0.0
      %9042 = vadd.xlane.f32.xlu0 %v9041
      %v9043 = vpop.xlane.xlu0 %9042
      %v9044 = vsel %vm1615, %v8866, 0.0
      %9045 = vadd.xlane.f32.xlu0 %v9044
      %v9046 = vpop.xlane.xlu0 %9045
      %v9047 = vsel %vm1615, %v8868, 0.0
      %9048 = vadd.xlane.f32.xlu0 %v9047
      %v9049 = vpop.xlane.xlu0 %9048
      %v9050 = vsel %vm1615, %v8870, 0.0
      %9051 = vadd.xlane.f32.xlu0 %v9050
      %v9052 = vpop.xlane.xlu0 %9051
      %v9053 = vsel %vm1615, %v8872, 0.0
      %9054 = vadd.xlane.f32.xlu0 %v9053
      %v9055 = vpop.xlane.xlu0 %9054
      %v9056 = vsel %vm1615, %v8874, 0.0
      %9057 = vadd.xlane.f32.xlu0 %v9056
      %v9058 = vpop.xlane.xlu0 %9057
      %v9059 = vsel %vm1615, %v8876, 0.0
      %9060 = vadd.xlane.f32.xlu0 %v9059
      %v9061 = vpop.xlane.xlu0 %9060
      %v9062 = vsel %vm1615, %v8878, 0.0
      %9063 = vadd.xlane.f32.xlu0 %v9062
      %v9064 = vpop.xlane.xlu0 %9063
      %v9065 = vsel %vm1615, %v8880, 0.0
      %9066 = vadd.xlane.f32.xlu0 %v9065
      %v9067 = vpop.xlane.xlu0 %9066
      %v9068 = vsel %vm1615, %v8882, 0.0
      %9069 = vadd.xlane.f32.xlu0 %v9068
      %v9070 = vpop.xlane.xlu0 %9069
      %v9071 = vsel %vm1615, %v8884, 0.0
      %9072 = vadd.xlane.f32.xlu0 %v9071
      %v9073 = vpop.xlane.xlu0 %9072
      %v9074 = vsel %vm1615, %v8886, 0.0
      %9075 = vadd.xlane.f32.xlu0 %v9074
      %v9076 = vpop.xlane.xlu0 %9075
      %v9077 = vsel %vm1615, %v8888, 0.0
      %9078 = vadd.xlane.f32.xlu0 %v9077
      %v9079 = vpop.xlane.xlu0 %9078
      %v9080 = vsel %vm1615, %v8890, 0.0
      %9081 = vadd.xlane.f32.xlu0 %v9080
      %v9082 = vpop.xlane.xlu0 %9081
      %v9083 = vrcp.pop %v8893
      %v9084 = vrcp.pop %v8896
      %v9085 = vrcp.pop %v8899
      %v9086 = vrcp.pop %v8902
      %v9087 = vrcp.pop %v8905
      %v9088 = vrcp.pop %v8908
      %v9089 = vrcp.pop %v8911
      %v9090 = vrcp.pop %v8914
      %v9091 = vrcp.pop %v8917
      %v9092 = vrcp.pop %v8920
      %v9093 = vrcp.pop %v8923
      %v9094 = vrcp.pop %v8926
      %v9095 = vrcp.pop %v8929
      %v9096 = vrcp.pop %v8932
      %v9097 = vrcp.pop %v8935
      %v9098 = vrcp.pop %v8938
      %v9099 = vrcp.pop %v8941
      %v9100 = vrcp.pop %v8944
      %v9101 = vrcp.pop %v8947
      %v9102 = vrcp.pop %v8950
      %v9103 = vrcp.pop %v8953
      %v9104 = vrcp.pop %v8956
      %v9105 = vrcp.pop %v8959
      %v9106 = vrcp.pop %v8962
      %v9107 = vrcp.pop %v8965
      %v9108 = vrcp.pop %v8968
      %v9109 = vrcp.pop %v8971
      %v9110 = vrcp.pop %v8974
      %v9111 = vrcp.pop %v8977
      %v9112 = vrcp.pop %v8980
      %v9113 = vrcp.pop %v8983
      %v9114 = vrcp.pop %v8986
      %v9115 = vrcp.pop %v8989
      %v9116 = vrcp.pop %v8992
      %v9117 = vrcp.pop %v8995
      %v9118 = vrcp.pop %v8998
      %v9119 = vrcp.pop %v9001
      %v9120 = vrcp.pop %v9004
      %v9121 = vrcp.pop %v9007
      %v9122 = vrcp.pop %v9010
      %v9123 = vrcp.pop %v9013
      %v9124 = vrcp.pop %v9016
      %v9125 = vrcp.pop %v9019
      %v9126 = vrcp.pop %v9022
      %v9127 = vrcp.pop %v9025
      %v9128 = vrcp.pop %v9028
      %v9129 = vrcp.pop %v9031
      %v9130 = vrcp.pop %v9034
      %v9131 = vrcp.pop %v9037
      %v9132 = vrcp.pop %v9040
      %v9133 = vrcp.pop %v9043
      %v9134 = vrcp.pop %v9046
      %v9135 = vrcp.pop %v9049
      %v9136 = vrcp.pop %v9052
      %v9137 = vrcp.pop %v9055
      %v9138 = vrcp.pop %v9058
      %v9139 = vrcp.pop %v9061
      %v9140 = vrcp.pop %v9064
      %v9141 = vrcp.pop %v9067
      %v9142 = vrcp.pop %v9070
      %v9143 = vrcp.pop %v9073
      %v9144 = vrcp.pop %v9076
      %v9145 = vrcp.pop %v9079
      %v9146 = vrcp.pop %v9082
      %v9147 = vmul.f32 %v8764, %v9083
      %v9148 = vmul.f32 %v8766, %v9084
      %v9149 = vmul.f32 %v8768, %v9085
      %v9150 = vmul.f32 %v8770, %v9086
      %v9151 = vmul.f32 %v8772, %v9087
      %v9152 = vmul.f32 %v8774, %v9088
      %v9153 = vmul.f32 %v8776, %v9089
      %v9154 = vmul.f32 %v8778, %v9090
      %v9155 = vmul.f32 %v8780, %v9091
      %v9156 = vmul.f32 %v8782, %v9092
      %v9157 = vmul.f32 %v8784, %v9093
      %v9158 = vmul.f32 %v8786, %v9094
      %v9159 = vmul.f32 %v8788, %v9095
      %v9160 = vmul.f32 %v8790, %v9096
      %v9161 = vmul.f32 %v8792, %v9097
      %v9162 = vmul.f32 %v8794, %v9098
      %v9163 = vmul.f32 %v8796, %v9099
      %v9164 = vmul.f32 %v8798, %v9100
      %v9165 = vmul.f32 %v8800, %v9101
      %v9166 = vmul.f32 %v8802, %v9102
      %v9167 = vmul.f32 %v8804, %v9103
      %v9168 = vmul.f32 %v8806, %v9104
      %v9169 = vmul.f32 %v8808, %v9105
      %v9170 = vmul.f32 %v8810, %v9106
      %v9171 = vmul.f32 %v8812, %v9107
      %v9172 = vmul.f32 %v8814, %v9108
      %v9173 = vmul.f32 %v8816, %v9109
      %v9174 = vmul.f32 %v8818, %v9110
      %v9175 = vmul.f32 %v8820, %v9111
      %v9176 = vmul.f32 %v8822, %v9112
      %v9177 = vmul.f32 %v8824, %v9113
      %v9178 = vmul.f32 %v8826, %v9114
      %v9179 = vmul.f32 %v8828, %v9115
      %v9180 = vmul.f32 %v8830, %v9116
      %v9181 = vmul.f32 %v8832, %v9117
      %v9182 = vmul.f32 %v8834, %v9118
      %v9183 = vmul.f32 %v8836, %v9119
      %v9184 = vmul.f32 %v8838, %v9120
      %v9185 = vmul.f32 %v8840, %v9121
      %v9186 = vmul.f32 %v8842, %v9122
      %v9187 = vmul.f32 %v8844, %v9123
      %v9188 = vmul.f32 %v8846, %v9124
      %v9189 = vmul.f32 %v8848, %v9125
      %v9190 = vmul.f32 %v8850, %v9126
      %v9191 = vmul.f32 %v8852, %v9127
      %v9192 = vmul.f32 %v8854, %v9128
      %v9193 = vmul.f32 %v8856, %v9129
      %v9194 = vmul.f32 %v8858, %v9130
      %v9195 = vmul.f32 %v8860, %v9131
      %v9196 = vmul.f32 %v8862, %v9132
      %v9197 = vmul.f32 %v8864, %v9133
      %v9198 = vmul.f32 %v8866, %v9134
      %v9199 = vmul.f32 %v8868, %v9135
      %v9200 = vmul.f32 %v8870, %v9136
      %v9201 = vmul.f32 %v8872, %v9137
      %v9202 = vmul.f32 %v8874, %v9138
      %v9203 = vmul.f32 %v8876, %v9139
      %v9204 = vmul.f32 %v8878, %v9140
      %v9205 = vmul.f32 %v8880, %v9141
      %v9206 = vmul.f32 %v8882, %v9142
      %v9207 = vmul.f32 %v8884, %v9143
      %v9208 = vmul.f32 %v8886, %v9144
      %v9209 = vmul.f32 %v8888, %v9145
      %v9210 = vmul.f32 %v8890, %v9146
      %v9211 = vpack.c.bf16 %v9148, %v9147
      %v9212 = vpack.c.bf16 %v9150, %v9149
      %v9213 = vpack.c.bf16 %v9152, %v9151
      %v9214 = vpack.c.bf16 %v9154, %v9153
      %v9215 = vpack.c.bf16 %v9156, %v9155
      %v9216 = vpack.c.bf16 %v9158, %v9157
      %v9217 = vpack.c.bf16 %v9160, %v9159
      %v9218 = vpack.c.bf16 %v9162, %v9161
      %v9219 = vpack.c.bf16 %v9164, %v9163
      %v9220 = vpack.c.bf16 %v9166, %v9165
      %v9221 = vpack.c.bf16 %v9168, %v9167
      %v9222 = vpack.c.bf16 %v9170, %v9169
      %v9223 = vpack.c.bf16 %v9172, %v9171
      %v9224 = vpack.c.bf16 %v9174, %v9173
      %v9225 = vpack.c.bf16 %v9176, %v9175
      %v9226 = vpack.c.bf16 %v9178, %v9177
      %v9227 = vpack.c.bf16 %v9180, %v9179
      %v9228 = vpack.c.bf16 %v9182, %v9181
      %v9229 = vpack.c.bf16 %v9184, %v9183
      %v9230 = vpack.c.bf16 %v9186, %v9185
      %v9231 = vpack.c.bf16 %v9188, %v9187
      %v9232 = vpack.c.bf16 %v9190, %v9189
      %v9233 = vpack.c.bf16 %v9192, %v9191
      %v9234 = vpack.c.bf16 %v9194, %v9193
      %v9235 = vpack.c.bf16 %v9196, %v9195
      %v9236 = vpack.c.bf16 %v9198, %v9197
      %v9237 = vpack.c.bf16 %v9200, %v9199
      %v9238 = vpack.c.bf16 %v9202, %v9201
      %v9239 = vpack.c.bf16 %v9204, %v9203
      %v9240 = vpack.c.bf16 %v9206, %v9205
      %v9241 = vpack.c.bf16 %v9208, %v9207
      %v9242 = vpack.c.bf16 %v9210, %v9209
      %9243 = vrot.lane.b32.xlu0 %v766, 40
      %v9244 = vpop.permute.xlu0 %9243
      %9245 = vrot.lane.b32.xlu0 %v767, 40
      %v9246 = vpop.permute.xlu0 %9245
      %9247 = vrot.lane.b32.xlu0 %v768, 40
      %v9248 = vpop.permute.xlu0 %9247
      %9249 = vrot.lane.b32.xlu0 %v769, 40
      %v9250 = vpop.permute.xlu0 %9249
      %v9256 = vsel %vm1615, %v9211, 0
      %v9259 = vsel %vm1615, %v9212, 0
      %v9262 = vsel %vm1615, %v9213, 0
      %v9265 = vsel %vm1615, %v9214, 0
      %9267 = vmatprep.subr.bf16.mxu0 0
      %9268 = vmatpush1.bf16.msra.mxu0 %v9244
      %9269 = vmatprep.subr.bf16.mxu0 0
      %9270 = vmatpush1.bf16.msra.mxu0 %v9246
      %9271 = vmatprep.subr.bf16.mxu0 0
      %9272 = vmatpush1.bf16.msra.mxu0 %v9248
      %9273 = vmatprep.subr.bf16.mxu0 0
      %9274 = vmatpush1.bf16.msra.mxu0 %v9250
      %9275 = vmatprep.subr.bf16.mxu0 0
      %9276 = vmatpush1.bf16.msra.mxu0 0
      %9277 = vmatprep.subr.bf16.mxu0 0
      %9278 = vmatpush1.bf16.msra.mxu0 0
      %9279 = vmatprep.subr.bf16.mxu0 0
      %9280 = vmatpush1.bf16.msra.mxu0 0
      %9281 = vmatprep.subr.bf16.mxu0 0
      %9282 = vmatpush1.bf16.msra.mxu0 0
      %9283 = vmatprep.subr.bf16.mxu0 0
      %9284 = vmatpush1.bf16.msra.mxu0 0
      %9285 = vmatprep.subr.bf16.mxu0 0
      %9286 = vmatpush1.bf16.msra.mxu0 0
      %9287 = vmatprep.subr.bf16.mxu0 0
      %9288 = vmatpush1.bf16.msra.mxu0 0
      %9289 = vmatprep.subr.bf16.mxu0 0
      %9290 = vmatpush1.bf16.msra.mxu0 0
      %9291 = vmatprep.subr.bf16.mxu0 0
      %9292 = vmatpush1.bf16.msra.mxu0 0
      %9293 = vmatprep.subr.bf16.mxu0 0
      %9294 = vmatpush1.bf16.msra.mxu0 0
      %9295 = vmatprep.subr.bf16.mxu0 0
      %9296 = vmatpush1.bf16.msra.mxu0 0
      %9297 = vmatprep.subr.bf16.mxu0 0
      %9298 = vmatpush1.bf16.msra.mxu0 0
      %9299 = vmatprep.mubr.bf16.mxu0 0
      %9300 = vmatmul.mubr.bf16.gmra.mrb[0].mxu0 %v9256
      %v9301 = vpop.f32.mrb[0].mxu0
      %v9302 = vadd.f32 0.0, %v9301
      %v9303 = vpop.f32.mrb[0].mxu0
      %v9304 = vpop.f32.mrb[0].mxu0
      %v9305 = vadd.f32 0.0, %v9304
      %v9306 = vpop.f32.mrb[0].mxu0
      %9307 = vmatprep.mubr.bf16.mxu0 0
      %9308 = vmatmul.mubr.bf16.gmra.mrb[0].mxu0 %v9259
      %v9309 = vpop.f32.mrb[0].mxu0
      %v9310 = vadd.f32 0.0, %v9309
      %v9311 = vpop.f32.mrb[0].mxu0
      %v9312 = vpop.f32.mrb[0].mxu0
      %v9313 = vadd.f32 0.0, %v9312
      %v9314 = vpop.f32.mrb[0].mxu0
      %9315 = vmatprep.mubr.bf16.mxu0 0
      %9316 = vmatmul.mubr.bf16.gmra.mrb[0].mxu0 %v9262
      %v9317 = vpop.f32.mrb[0].mxu0
      %v9318 = vadd.f32 0.0, %v9317
      %v9319 = vpop.f32.mrb[0].mxu0
      %v9320 = vpop.f32.mrb[0].mxu0
      %v9321 = vadd.f32 0.0, %v9320
      %v9322 = vpop.f32.mrb[0].mxu0
      %9323 = vmatprep.mubr.bf16.mxu0 0
      %9324 = vmatmul.mubr.bf16.gmra.mrb[0].mxu0 %v9265
      %v9325 = vpop.f32.mrb[0].mxu0
      %v9326 = vadd.f32 0.0, %v9325
      %v9327 = vpop.f32.mrb[0].mxu0
      %v9328 = vpop.f32.mrb[0].mxu0
      %v9329 = vadd.f32 0.0, %v9328
      %v9330 = vpop.f32.mrb[0].mxu0
      %9331 = vdwg.mxu0
      %9332 = vrot.lane.b32.xlu0 %v770, 40
      %v9333 = vpop.permute.xlu0 %9332
      %9334 = vrot.lane.b32.xlu0 %v771, 40
      %v9335 = vpop.permute.xlu0 %9334
      %9336 = vrot.lane.b32.xlu0 %v772, 40
      %v9337 = vpop.permute.xlu0 %9336
      %9338 = vrot.lane.b32.xlu0 %v773, 40
      %v9339 = vpop.permute.xlu0 %9338
      %v9345 = vsel %vm1615, %v9215, 0
      %v9348 = vsel %vm1615, %v9216, 0
      %v9351 = vsel %vm1615, %v9217, 0
      %v9354 = vsel %vm1615, %v9218, 0
      %9356 = vmatprep.subr.bf16.mxu0 0
      %9357 = vmatpush1.bf16.msra.mxu0 %v9333
      %9358 = vmatprep.subr.bf16.mxu0 0
      %9359 = vmatpush1.bf16.msra.mxu0 %v9335
      %9360 = vmatprep.subr.bf16.mxu0 0
      %9361 = vmatpush1.bf16.msra.mxu0 %v9337
      %9362 = vmatprep.subr.bf16.mxu0 0
      %9363 = vmatpush1.bf16.msra.mxu0 %v9339
      %9364 = vmatprep.subr.bf16.mxu0 0
      %9365 = vmatpush1.bf16.msra.mxu0 0
      %9366 = vmatprep.subr.bf16.mxu0 0
      %9367 = vmatpush1.bf16.msra.mxu0 0
      %9368 = vmatprep.subr.bf16.mxu0 0
      %9369 = vmatpush1.bf16.msra.mxu0 0
      %9370 = vmatprep.subr.bf16.mxu0 0
      %9371 = vmatpush1.bf16.msra.mxu0 0
      %9372 = vmatprep.subr.bf16.mxu0 0
      %9373 = vmatpush1.bf16.msra.mxu0 0
      %9374 = vmatprep.subr.bf16.mxu0 0
      %9375 = vmatpush1.bf16.msra.mxu0 0
      %9376 = vmatprep.subr.bf16.mxu0 0
      %9377 = vmatpush1.bf16.msra.mxu0 0
      %9378 = vmatprep.subr.bf16.mxu0 0
      %9379 = vmatpush1.bf16.msra.mxu0 0
      %9380 = vmatprep.subr.bf16.mxu0 0
      %9381 = vmatpush1.bf16.msra.mxu0 0
      %9382 = vmatprep.subr.bf16.mxu0 0
      %9383 = vmatpush1.bf16.msra.mxu0 0
      %9384 = vmatprep.subr.bf16.mxu0 0
      %9385 = vmatpush1.bf16.msra.mxu0 0
      %9386 = vmatprep.subr.bf16.mxu0 0
      %9387 = vmatpush1.bf16.msra.mxu0 0
      %9388 = vmatprep.mubr.bf16.mxu0 0
      %9389 = vmatmul.mubr.bf16.gmra.mrb[0].mxu0 %v9345
      %v9390 = vpop.f32.mrb[0].mxu0
      %v9391 = vadd.f32 0.0, %v9390
      %v9392 = vpop.f32.mrb[0].mxu0
      %v9393 = vpop.f32.mrb[0].mxu0
      %v9394 = vadd.f32 0.0, %v9393
      %v9395 = vpop.f32.mrb[0].mxu0
      %9396 = vmatprep.mubr.bf16.mxu0 0
      %9397 = vmatmul.mubr.bf16.gmra.mrb[0].mxu0 %v9348
      %v9398 = vpop.f32.mrb[0].mxu0
      %v9399 = vadd.f32 0.0, %v9398
      %v9400 = vpop.f32.mrb[0].mxu0
      %v9401 = vpop.f32.mrb[0].mxu0
      %v9402 = vadd.f32 0.0, %v9401
      %v9403 = vpop.f32.mrb[0].mxu0
      %9404 = vmatprep.mubr.bf16.mxu0 0
      %9405 = vmatmul.mubr.bf16.gmra.mrb[0].mxu0 %v9351
      %v9406 = vpop.f32.mrb[0].mxu0
      %v9407 = vadd.f32 0.0, %v9406
      %v9408 = vpop.f32.mrb[0].mxu0
      %v9409 = vpop.f32.mrb[0].mxu0
      %v9410 = vadd.f32 0.0, %v9409
      %v9411 = vpop.f32.mrb[0].mxu0
      %9412 = vmatprep.mubr.bf16.mxu0 0
      %9413 = vmatmul.mubr.bf16.gmra.mrb[0].mxu0 %v9354
      %v9414 = vpop.f32.mrb[0].mxu0
      %v9415 = vadd.f32 0.0, %v9414
      %v9416 = vpop.f32.mrb[0].mxu0
      %v9417 = vpop.f32.mrb[0].mxu0
      %v9418 = vadd.f32 0.0, %v9417
      %v9419 = vpop.f32.mrb[0].mxu0
      %9420 = vdwg.mxu0
      %9421 = vrot.lane.b32.xlu0 %v774, 40
      %v9422 = vpop.permute.xlu0 %9421
      %9423 = vrot.lane.b32.xlu0 %v775, 40
      %v9424 = vpop.permute.xlu0 %9423
      %9425 = vrot.lane.b32.xlu0 %v776, 40
      %v9426 = vpop.permute.xlu0 %9425
      %9427 = vrot.lane.b32.xlu0 %v777, 40
      %v9428 = vpop.permute.xlu0 %9427
      %v9434 = vsel %vm1615, %v9219, 0
      %v9437 = vsel %vm1615, %v9220, 0
      %v9440 = vsel %vm1615, %v9221, 0
      %v9443 = vsel %vm1615, %v9222, 0
      %9445 = vmatprep.subr.bf16.mxu0 0
      %9446 = vmatpush1.bf16.msra.mxu0 %v9422
      %9447 = vmatprep.subr.bf16.mxu0 0
      %9448 = vmatpush1.bf16.msra.mxu0 %v9424
      %9449 = vmatprep.subr.bf16.mxu0 0
      %9450 = vmatpush1.bf16.msra.mxu0 %v9426
      %9451 = vmatprep.subr.bf16.mxu0 0
      %9452 = vmatpush1.bf16.msra.mxu0 %v9428
      %9453 = vmatprep.subr.bf16.mxu0 0
      %9454 = vmatpush1.bf16.msra.mxu0 0
      %9455 = vmatprep.subr.bf16.mxu0 0
      %9456 = vmatpush1.bf16.msra.mxu0 0
      %9457 = vmatprep.subr.bf16.mxu0 0
      %9458 = vmatpush1.bf16.msra.mxu0 0
      %9459 = vmatprep.subr.bf16.mxu0 0
      %9460 = vmatpush1.bf16.msra.mxu0 0
      %9461 = vmatprep.subr.bf16.mxu0 0
      %9462 = vmatpush1.bf16.msra.mxu0 0
      %9463 = vmatprep.subr.bf16.mxu0 0
      %9464 = vmatpush1.bf16.msra.mxu0 0
      %9465 = vmatprep.subr.bf16.mxu0 0
      %9466 = vmatpush1.bf16.msra.mxu0 0
      %9467 = vmatprep.subr.bf16.mxu0 0
      %9468 = vmatpush1.bf16.msra.mxu0 0
      %9469 = vmatprep.subr.bf16.mxu0 0
      %9470 = vmatpush1.bf16.msra.mxu0 0
      %9471 = vmatprep.subr.bf16.mxu0 0
      %9472 = vmatpush1.bf16.msra.mxu0 0
      %9473 = vmatprep.subr.bf16.mxu0 0
      %9474 = vmatpush1.bf16.msra.mxu0 0
      %9475 = vmatprep.subr.bf16.mxu0 0
      %9476 = vmatpush1.bf16.msra.mxu0 0
      %9477 = vmatprep.mubr.bf16.mxu0 0
      %9478 = vmatmul.mubr.bf16.gmra.mrb[0].mxu0 %v9434
      %v9479 = vpop.f32.mrb[0].mxu0
      %v9480 = vadd.f32 0.0, %v9479
      %v9481 = vpop.f32.mrb[0].mxu0
      %v9482 = vpop.f32.mrb[0].mxu0
      %v9483 = vadd.f32 0.0, %v9482
      %v9484 = vpop.f32.mrb[0].mxu0
      %9485 = vmatprep.mubr.bf16.mxu0 0
      %9486 = vmatmul.mubr.bf16.gmra.mrb[0].mxu0 %v9437
      %v9487 = vpop.f32.mrb[0].mxu0
      %v9488 = vadd.f32 0.0, %v9487
      %v9489 = vpop.f32.mrb[0].mxu0
      %v9490 = vpop.f32.mrb[0].mxu0
      %v9491 = vadd.f32 0.0, %v9490
      %v9492 = vpop.f32.mrb[0].mxu0
      %9493 = vmatprep.mubr.bf16.mxu0 0
      %9494 = vmatmul.mubr.bf16.gmra.mrb[0].mxu0 %v9440
      %v9495 = vpop.f32.mrb[0].mxu0
      %v9496 = vadd.f32 0.0, %v9495
      %v9497 = vpop.f32.mrb[0].mxu0
      %v9498 = vpop.f32.mrb[0].mxu0
      %v9499 = vadd.f32 0.0, %v9498
      %v9500 = vpop.f32.mrb[0].mxu0
      %9501 = vmatprep.mubr.bf16.mxu0 0
      %9502 = vmatmul.mubr.bf16.gmra.mrb[0].mxu0 %v9443
      %v9503 = vpop.f32.mrb[0].mxu0
      %v9504 = vadd.f32 0.0, %v9503
      %v9505 = vpop.f32.mrb[0].mxu0
      %v9506 = vpop.f32.mrb[0].mxu0
      %v9507 = vadd.f32 0.0, %v9506
      %v9508 = vpop.f32.mrb[0].mxu0
      %9509 = vdwg.mxu0
      %9510 = vrot.lane.b32.xlu0 %v778, 40
      %v9511 = vpop.permute.xlu0 %9510
      %9512 = vrot.lane.b32.xlu0 %v779, 40
      %v9513 = vpop.permute.xlu0 %9512
      %9514 = vrot.lane.b32.xlu0 %v780, 40
      %v9515 = vpop.permute.xlu0 %9514
      %9516 = vrot.lane.b32.xlu0 %v781, 40
      %v9517 = vpop.permute.xlu0 %9516
      %v9523 = vsel %vm1615, %v9223, 0
      %v9526 = vsel %vm1615, %v9224, 0
      %v9529 = vsel %vm1615, %v9225, 0
      %v9532 = vsel %vm1615, %v9226, 0
      %9534 = vmatprep.subr.bf16.mxu0 0
      %9535 = vmatpush1.bf16.msra.mxu0 %v9511
      %9536 = vmatprep.subr.bf16.mxu0 0
      %9537 = vmatpush1.bf16.msra.mxu0 %v9513
      %9538 = vmatprep.subr.bf16.mxu0 0
      %9539 = vmatpush1.bf16.msra.mxu0 %v9515
      %9540 = vmatprep.subr.bf16.mxu0 0
      %9541 = vmatpush1.bf16.msra.mxu0 %v9517
      %9542 = vmatprep.subr.bf16.mxu0 0
      %9543 = vmatpush1.bf16.msra.mxu0 0
      %9544 = vmatprep.subr.bf16.mxu0 0
      %9545 = vmatpush1.bf16.msra.mxu0 0
      %9546 = vmatprep.subr.bf16.mxu0 0
      %9547 = vmatpush1.bf16.msra.mxu0 0
      %9548 = vmatprep.subr.bf16.mxu0 0
      %9549 = vmatpush1.bf16.msra.mxu0 0
      %9550 = vmatprep.subr.bf16.mxu0 0
      %9551 = vmatpush1.bf16.msra.mxu0 0
      %9552 = vmatprep.subr.bf16.mxu0 0
      %9553 = vmatpush1.bf16.msra.mxu0 0
      %9554 = vmatprep.subr.bf16.mxu0 0
      %9555 = vmatpush1.bf16.msra.mxu0 0
      %9556 = vmatprep.subr.bf16.mxu0 0
      %9557 = vmatpush1.bf16.msra.mxu0 0
      %9558 = vmatprep.subr.bf16.mxu0 0
      %9559 = vmatpush1.bf16.msra.mxu0 0
      %9560 = vmatprep.subr.bf16.mxu0 0
      %9561 = vmatpush1.bf16.msra.mxu0 0
      %9562 = vmatprep.subr.bf16.mxu0 0
      %9563 = vmatpush1.bf16.msra.mxu0 0
      %9564 = vmatprep.subr.bf16.mxu0 0
      %9565 = vmatpush1.bf16.msra.mxu0 0
      %9566 = vmatprep.mubr.bf16.mxu0 0
      %9567 = vmatmul.mubr.bf16.gmra.mrb[0].mxu0 %v9523
      %v9568 = vpop.f32.mrb[0].mxu0
      %v9569 = vadd.f32 0.0, %v9568
      %v9570 = vpop.f32.mrb[0].mxu0
      %v9571 = vpop.f32.mrb[0].mxu0
      %v9572 = vadd.f32 0.0, %v9571
      %v9573 = vpop.f32.mrb[0].mxu0
      %9574 = vmatprep.mubr.bf16.mxu0 0
      %9575 = vmatmul.mubr.bf16.gmra.mrb[0].mxu0 %v9526
      %v9576 = vpop.f32.mrb[0].mxu0
      %v9577 = vadd.f32 0.0, %v9576
      %v9578 = vpop.f32.mrb[0].mxu0
      %v9579 = vpop.f32.mrb[0].mxu0
      %v9580 = vadd.f32 0.0, %v9579
      %v9581 = vpop.f32.mrb[0].mxu0
      %9582 = vmatprep.mubr.bf16.mxu0 0
      %9583 = vmatmul.mubr.bf16.gmra.mrb[0].mxu0 %v9529
      %v9584 = vpop.f32.mrb[0].mxu0
      %v9585 = vadd.f32 0.0, %v9584
      %v9586 = vpop.f32.mrb[0].mxu0
      %v9587 = vpop.f32.mrb[0].mxu0
      %v9588 = vadd.f32 0.0, %v9587
      %v9589 = vpop.f32.mrb[0].mxu0
      %9590 = vmatprep.mubr.bf16.mxu0 0
      %9591 = vmatmul.mubr.bf16.gmra.mrb[0].mxu0 %v9532
      %v9592 = vpop.f32.mrb[0].mxu0
      %v9593 = vadd.f32 0.0, %v9592
      %v9594 = vpop.f32.mrb[0].mxu0
      %v9595 = vpop.f32.mrb[0].mxu0
      %v9596 = vadd.f32 0.0, %v9595
      %v9597 = vpop.f32.mrb[0].mxu0
      %9598 = vdwg.mxu0
      %9599 = vrot.lane.b32.xlu0 %v782, 40
      %v9600 = vpop.permute.xlu0 %9599
      %9601 = vrot.lane.b32.xlu0 %v783, 40
      %v9602 = vpop.permute.xlu0 %9601
      %9603 = vrot.lane.b32.xlu0 %v784, 40
      %v9604 = vpop.permute.xlu0 %9603
      %9605 = vrot.lane.b32.xlu0 %v785, 40
      %v9606 = vpop.permute.xlu0 %9605
      %v9612 = vsel %vm1615, %v9227, 0
      %v9615 = vsel %vm1615, %v9228, 0
      %v9618 = vsel %vm1615, %v9229, 0
      %v9621 = vsel %vm1615, %v9230, 0
      %9623 = vmatprep.subr.bf16.mxu0 0
      %9624 = vmatpush1.bf16.msra.mxu0 %v9600
      %9625 = vmatprep.subr.bf16.mxu0 0
      %9626 = vmatpush1.bf16.msra.mxu0 %v9602
      %9627 = vmatprep.subr.bf16.mxu0 0
      %9628 = vmatpush1.bf16.msra.mxu0 %v9604
      %9629 = vmatprep.subr.bf16.mxu0 0
      %9630 = vmatpush1.bf16.msra.mxu0 %v9606
      %9631 = vmatprep.subr.bf16.mxu0 0
      %9632 = vmatpush1.bf16.msra.mxu0 0
      %9633 = vmatprep.subr.bf16.mxu0 0
      %9634 = vmatpush1.bf16.msra.mxu0 0
      %9635 = vmatprep.subr.bf16.mxu0 0
      %9636 = vmatpush1.bf16.msra.mxu0 0
      %9637 = vmatprep.subr.bf16.mxu0 0
      %9638 = vmatpush1.bf16.msra.mxu0 0
      %9639 = vmatprep.subr.bf16.mxu0 0
      %9640 = vmatpush1.bf16.msra.mxu0 0
      %9641 = vmatprep.subr.bf16.mxu0 0
      %9642 = vmatpush1.bf16.msra.mxu0 0
      %9643 = vmatprep.subr.bf16.mxu0 0
      %9644 = vmatpush1.bf16.msra.mxu0 0
      %9645 = vmatprep.subr.bf16.mxu0 0
      %9646 = vmatpush1.bf16.msra.mxu0 0
      %9647 = vmatprep.subr.bf16.mxu0 0
      %9648 = vmatpush1.bf16.msra.mxu0 0
      %9649 = vmatprep.subr.bf16.mxu0 0
      %9650 = vmatpush1.bf16.msra.mxu0 0
      %9651 = vmatprep.subr.bf16.mxu0 0
      %9652 = vmatpush1.bf16.msra.mxu0 0
      %9653 = vmatprep.subr.bf16.mxu0 0
      %9654 = vmatpush1.bf16.msra.mxu0 0
      %9655 = vmatprep.mubr.bf16.mxu0 0
      %9656 = vmatmul.mubr.bf16.gmra.mrb[0].mxu0 %v9612
      %v9657 = vpop.f32.mrb[0].mxu0
      %v9658 = vadd.f32 0.0, %v9657
      %v9659 = vpop.f32.mrb[0].mxu0
      %v9660 = vpop.f32.mrb[0].mxu0
      %v9661 = vadd.f32 0.0, %v9660
      %v9662 = vpop.f32.mrb[0].mxu0
      %9663 = vmatprep.mubr.bf16.mxu0 0
      %9664 = vmatmul.mubr.bf16.gmra.mrb[0].mxu0 %v9615
      %v9665 = vpop.f32.mrb[0].mxu0
      %v9666 = vadd.f32 0.0, %v9665
      %v9667 = vpop.f32.mrb[0].mxu0
      %v9668 = vpop.f32.mrb[0].mxu0
      %v9669 = vadd.f32 0.0, %v9668
      %v9670 = vpop.f32.mrb[0].mxu0
      %9671 = vmatprep.mubr.bf16.mxu0 0
      %9672 = vmatmul.mubr.bf16.gmra.mrb[0].mxu0 %v9618
      %v9673 = vpop.f32.mrb[0].mxu0
      %v9674 = vadd.f32 0.0, %v9673
      %v9675 = vpop.f32.mrb[0].mxu0
      %v9676 = vpop.f32.mrb[0].mxu0
      %v9677 = vadd.f32 0.0, %v9676
      %v9678 = vpop.f32.mrb[0].mxu0
      %9679 = vmatprep.mubr.bf16.mxu0 0
      %9680 = vmatmul.mubr.bf16.gmra.mrb[0].mxu0 %v9621
      %v9681 = vpop.f32.mrb[0].mxu0
      %v9682 = vadd.f32 0.0, %v9681
      %v9683 = vpop.f32.mrb[0].mxu0
      %v9684 = vpop.f32.mrb[0].mxu0
      %v9685 = vadd.f32 0.0, %v9684
      %v9686 = vpop.f32.mrb[0].mxu0
      %9687 = vdwg.mxu0
      %9688 = vrot.lane.b32.xlu0 %v786, 40
      %v9689 = vpop.permute.xlu0 %9688
      %9690 = vrot.lane.b32.xlu0 %v787, 40
      %v9691 = vpop.permute.xlu0 %9690
      %9692 = vrot.lane.b32.xlu0 %v788, 40
      %v9693 = vpop.permute.xlu0 %9692
      %9694 = vrot.lane.b32.xlu0 %v789, 40
      %v9695 = vpop.permute.xlu0 %9694
      %v9701 = vsel %vm1615, %v9231, 0
      %v9704 = vsel %vm1615, %v9232, 0
      %v9707 = vsel %vm1615, %v9233, 0
      %v9710 = vsel %vm1615, %v9234, 0
      %9712 = vmatprep.subr.bf16.mxu0 0
      %9713 = vmatpush1.bf16.msra.mxu0 %v9689
      %9714 = vmatprep.subr.bf16.mxu0 0
      %9715 = vmatpush1.bf16.msra.mxu0 %v9691
      %9716 = vmatprep.subr.bf16.mxu0 0
      %9717 = vmatpush1.bf16.msra.mxu0 %v9693
      %9718 = vmatprep.subr.bf16.mxu0 0
      %9719 = vmatpush1.bf16.msra.mxu0 %v9695
      %9720 = vmatprep.subr.bf16.mxu0 0
      %9721 = vmatpush1.bf16.msra.mxu0 0
      %9722 = vmatprep.subr.bf16.mxu0 0
      %9723 = vmatpush1.bf16.msra.mxu0 0
      %9724 = vmatprep.subr.bf16.mxu0 0
      %9725 = vmatpush1.bf16.msra.mxu0 0
      %9726 = vmatprep.subr.bf16.mxu0 0
      %9727 = vmatpush1.bf16.msra.mxu0 0
      %9728 = vmatprep.subr.bf16.mxu0 0
      %9729 = vmatpush1.bf16.msra.mxu0 0
      %9730 = vmatprep.subr.bf16.mxu0 0
      %9731 = vmatpush1.bf16.msra.mxu0 0
      %9732 = vmatprep.subr.bf16.mxu0 0
      %9733 = vmatpush1.bf16.msra.mxu0 0
      %9734 = vmatprep.subr.bf16.mxu0 0
      %9735 = vmatpush1.bf16.msra.mxu0 0
      %9736 = vmatprep.subr.bf16.mxu0 0
      %9737 = vmatpush1.bf16.msra.mxu0 0
      %9738 = vmatprep.subr.bf16.mxu0 0
      %9739 = vmatpush1.bf16.msra.mxu0 0
      %9740 = vmatprep.subr.bf16.mxu0 0
      %9741 = vmatpush1.bf16.msra.mxu0 0
      %9742 = vmatprep.subr.bf16.mxu0 0
      %9743 = vmatpush1.bf16.msra.mxu0 0
      %9744 = vmatprep.mubr.bf16.mxu0 0
      %9745 = vmatmul.mubr.bf16.gmra.mrb[0].mxu0 %v9701
      %v9746 = vpop.f32.mrb[0].mxu0
      %v9747 = vadd.f32 0.0, %v9746
      %v9748 = vpop.f32.mrb[0].mxu0
      %v9749 = vpop.f32.mrb[0].mxu0
      %v9750 = vadd.f32 0.0, %v9749
      %v9751 = vpop.f32.mrb[0].mxu0
      %9752 = vmatprep.mubr.bf16.mxu0 0
      %9753 = vmatmul.mubr.bf16.gmra.mrb[0].mxu0 %v9704
      %v9754 = vpop.f32.mrb[0].mxu0
      %v9755 = vadd.f32 0.0, %v9754
      %v9756 = vpop.f32.mrb[0].mxu0
      %v9757 = vpop.f32.mrb[0].mxu0
      %v9758 = vadd.f32 0.0, %v9757
      %v9759 = vpop.f32.mrb[0].mxu0
      %9760 = vmatprep.mubr.bf16.mxu0 0
      %9761 = vmatmul.mubr.bf16.gmra.mrb[0].mxu0 %v9707
      %v9762 = vpop.f32.mrb[0].mxu0
      %v9763 = vadd.f32 0.0, %v9762
      %v9764 = vpop.f32.mrb[0].mxu0
      %v9765 = vpop.f32.mrb[0].mxu0
      %v9766 = vadd.f32 0.0, %v9765
      %v9767 = vpop.f32.mrb[0].mxu0
      %9768 = vmatprep.mubr.bf16.mxu0 0
      %9769 = vmatmul.mubr.bf16.gmra.mrb[0].mxu0 %v9710
      %v9770 = vpop.f32.mrb[0].mxu0
      %v9771 = vadd.f32 0.0, %v9770
      %v9772 = vpop.f32.mrb[0].mxu0
      %v9773 = vpop.f32.mrb[0].mxu0
      %v9774 = vadd.f32 0.0, %v9773
      %v9775 = vpop.f32.mrb[0].mxu0
      %9776 = vdwg.mxu0
      %9777 = vrot.lane.b32.xlu0 %v790, 40
      %v9778 = vpop.permute.xlu0 %9777
      %9779 = vrot.lane.b32.xlu0 %v791, 40
      %v9780 = vpop.permute.xlu0 %9779
      %9781 = vrot.lane.b32.xlu0 %v792, 40
      %v9782 = vpop.permute.xlu0 %9781
      %9783 = vrot.lane.b32.xlu0 %v793, 40
      %v9784 = vpop.permute.xlu0 %9783
      %v9790 = vsel %vm1615, %v9235, 0
      %v9793 = vsel %vm1615, %v9236, 0
      %v9796 = vsel %vm1615, %v9237, 0
      %v9799 = vsel %vm1615, %v9238, 0
      %9801 = vmatprep.subr.bf16.mxu0 0
      %9802 = vmatpush1.bf16.msra.mxu0 %v9778
      %9803 = vmatprep.subr.bf16.mxu0 0
      %9804 = vmatpush1.bf16.msra.mxu0 %v9780
      %9805 = vmatprep.subr.bf16.mxu0 0
      %9806 = vmatpush1.bf16.msra.mxu0 %v9782
      %9807 = vmatprep.subr.bf16.mxu0 0
      %9808 = vmatpush1.bf16.msra.mxu0 %v9784
      %9809 = vmatprep.subr.bf16.mxu0 0
      %9810 = vmatpush1.bf16.msra.mxu0 0
      %9811 = vmatprep.subr.bf16.mxu0 0
      %9812 = vmatpush1.bf16.msra.mxu0 0
      %9813 = vmatprep.subr.bf16.mxu0 0
      %9814 = vmatpush1.bf16.msra.mxu0 0
      %9815 = vmatprep.subr.bf16.mxu0 0
      %9816 = vmatpush1.bf16.msra.mxu0 0
      %9817 = vmatprep.subr.bf16.mxu0 0
      %9818 = vmatpush1.bf16.msra.mxu0 0
      %9819 = vmatprep.subr.bf16.mxu0 0
      %9820 = vmatpush1.bf16.msra.mxu0 0
      %9821 = vmatprep.subr.bf16.mxu0 0
      %9822 = vmatpush1.bf16.msra.mxu0 0
      %9823 = vmatprep.subr.bf16.mxu0 0
      %9824 = vmatpush1.bf16.msra.mxu0 0
      %9825 = vmatprep.subr.bf16.mxu0 0
      %9826 = vmatpush1.bf16.msra.mxu0 0
      %9827 = vmatprep.subr.bf16.mxu0 0
      %9828 = vmatpush1.bf16.msra.mxu0 0
      %9829 = vmatprep.subr.bf16.mxu0 0
      %9830 = vmatpush1.bf16.msra.mxu0 0
      %9831 = vmatprep.subr.bf16.mxu0 0
      %9832 = vmatpush1.bf16.msra.mxu0 0
      %9833 = vmatprep.mubr.bf16.mxu0 0
      %9834 = vmatmul.mubr.bf16.gmra.mrb[0].mxu0 %v9790
      %v9835 = vpop.f32.mrb[0].mxu0
      %v9836 = vadd.f32 0.0, %v9835
      %v9837 = vpop.f32.mrb[0].mxu0
      %v9838 = vpop.f32.mrb[0].mxu0
      %v9839 = vadd.f32 0.0, %v9838
      %v9840 = vpop.f32.mrb[0].mxu0
      %9841 = vmatprep.mubr.bf16.mxu0 0
      %9842 = vmatmul.mubr.bf16.gmra.mrb[0].mxu0 %v9793
      %v9843 = vpop.f32.mrb[0].mxu0
      %v9844 = vadd.f32 0.0, %v9843
      %v9845 = vpop.f32.mrb[0].mxu0
      %v9846 = vpop.f32.mrb[0].mxu0
      %v9847 = vadd.f32 0.0, %v9846
      %v9848 = vpop.f32.mrb[0].mxu0
      %9849 = vmatprep.mubr.bf16.mxu0 0
      %9850 = vmatmul.mubr.bf16.gmra.mrb[0].mxu0 %v9796
      %v9851 = vpop.f32.mrb[0].mxu0
      %v9852 = vadd.f32 0.0, %v9851
      %v9853 = vpop.f32.mrb[0].mxu0
      %v9854 = vpop.f32.mrb[0].mxu0
      %v9855 = vadd.f32 0.0, %v9854
      %v9856 = vpop.f32.mrb[0].mxu0
      %9857 = vmatprep.mubr.bf16.mxu0 0
      %9858 = vmatmul.mubr.bf16.gmra.mrb[0].mxu0 %v9799
      %v9859 = vpop.f32.mrb[0].mxu0
      %v9860 = vadd.f32 0.0, %v9859
      %v9861 = vpop.f32.mrb[0].mxu0
      %v9862 = vpop.f32.mrb[0].mxu0
      %v9863 = vadd.f32 0.0, %v9862
      %v9864 = vpop.f32.mrb[0].mxu0
      %9865 = vdwg.mxu0
      %9866 = vrot.lane.b32.xlu0 %v794, 40
      %v9867 = vpop.permute.xlu0 %9866
      %9868 = vrot.lane.b32.xlu0 %v795, 40
      %v9869 = vpop.permute.xlu0 %9868
      %9870 = vrot.lane.b32.xlu0 %v796, 40
      %v9871 = vpop.permute.xlu0 %9870
      %9872 = vrot.lane.b32.xlu0 %v797, 40
      %v9873 = vpop.permute.xlu0 %9872
      %v9879 = vsel %vm1615, %v9239, 0
      %v9882 = vsel %vm1615, %v9240, 0
      %v9885 = vsel %vm1615, %v9241, 0
      %v9888 = vsel %vm1615, %v9242, 0
      %9890 = vmatprep.subr.bf16.mxu0 0
      %9891 = vmatpush1.bf16.msra.mxu0 %v9867
      %9892 = vmatprep.subr.bf16.mxu0 0
      %9893 = vmatpush1.bf16.msra.mxu0 %v9869
      %9894 = vmatprep.subr.bf16.mxu0 0
      %9895 = vmatpush1.bf16.msra.mxu0 %v9871
      %9896 = vmatprep.subr.bf16.mxu0 0
      %9897 = vmatpush1.bf16.msra.mxu0 %v9873
      %9898 = vmatprep.subr.bf16.mxu0 0
      %9899 = vmatpush1.bf16.msra.mxu0 0
      %9900 = vmatprep.subr.bf16.mxu0 0
      %9901 = vmatpush1.bf16.msra.mxu0 0
      %9902 = vmatprep.subr.bf16.mxu0 0
      %9903 = vmatpush1.bf16.msra.mxu0 0
      %9904 = vmatprep.subr.bf16.mxu0 0
      %9905 = vmatpush1.bf16.msra.mxu0 0
      %9906 = vmatprep.subr.bf16.mxu0 0
      %9907 = vmatpush1.bf16.msra.mxu0 0
      %9908 = vmatprep.subr.bf16.mxu0 0
      %9909 = vmatpush1.bf16.msra.mxu0 0
      %9910 = vmatprep.subr.bf16.mxu0 0
      %9911 = vmatpush1.bf16.msra.mxu0 0
      %9912 = vmatprep.subr.bf16.mxu0 0
      %9913 = vmatpush1.bf16.msra.mxu0 0
      %9914 = vmatprep.subr.bf16.mxu0 0
      %9915 = vmatpush1.bf16.msra.mxu0 0
      %9916 = vmatprep.subr.bf16.mxu0 0
      %9917 = vmatpush1.bf16.msra.mxu0 0
      %9918 = vmatprep.subr.bf16.mxu0 0
      %9919 = vmatpush1.bf16.msra.mxu0 0
      %9920 = vmatprep.subr.bf16.mxu0 0
      %9921 = vmatpush1.bf16.msra.mxu0 0
      %9922 = vmatprep.mubr.bf16.mxu0 0
      %9923 = vmatmul.mubr.bf16.gmra.mrb[0].mxu0 %v9879
      %v9924 = vpop.f32.mrb[0].mxu0
      %v9925 = vadd.f32 0.0, %v9924
      %v9926 = vpop.f32.mrb[0].mxu0
      %v9927 = vpop.f32.mrb[0].mxu0
      %v9928 = vadd.f32 0.0, %v9927
      %v9929 = vpop.f32.mrb[0].mxu0
      %9930 = vmatprep.mubr.bf16.mxu0 0
      %9931 = vmatmul.mubr.bf16.gmra.mrb[0].mxu0 %v9882
      %v9932 = vpop.f32.mrb[0].mxu0
      %v9933 = vadd.f32 0.0, %v9932
      %v9934 = vpop.f32.mrb[0].mxu0
      %v9935 = vpop.f32.mrb[0].mxu0
      %v9936 = vadd.f32 0.0, %v9935
      %v9937 = vpop.f32.mrb[0].mxu0
      %9938 = vmatprep.mubr.bf16.mxu0 0
      %9939 = vmatmul.mubr.bf16.gmra.mrb[0].mxu0 %v9885
      %v9940 = vpop.f32.mrb[0].mxu0
      %v9941 = vadd.f32 0.0, %v9940
      %v9942 = vpop.f32.mrb[0].mxu0
      %v9943 = vpop.f32.mrb[0].mxu0
      %v9944 = vadd.f32 0.0, %v9943
      %v9945 = vpop.f32.mrb[0].mxu0
      %9946 = vmatprep.mubr.bf16.mxu0 0
      %9947 = vmatmul.mubr.bf16.gmra.mrb[0].mxu0 %v9888
      %v9948 = vpop.f32.mrb[0].mxu0
      %v9949 = vadd.f32 0.0, %v9948
      %v9950 = vpop.f32.mrb[0].mxu0
      %v9951 = vpop.f32.mrb[0].mxu0
      %v9952 = vadd.f32 0.0, %v9951
      %v9953 = vpop.f32.mrb[0].mxu0
      %9954 = vdwg.mxu0
      %10019 = vrot.lane.b32.xlu0 %v4708, 8
      %v10020 = vpop.permute.xlu0 %10019
      %10021 = vrot.lane.b32.xlu0 %v4711, 8
      %v10022 = vpop.permute.xlu0 %10021
      %10023 = vrot.lane.b32.xlu0 %v4716, 8
      %v10024 = vpop.permute.xlu0 %10023
      %10025 = vrot.lane.b32.xlu0 %v4719, 8
      %v10026 = vpop.permute.xlu0 %10025
      %10027 = vrot.lane.b32.xlu0 %v4724, 8
      %v10028 = vpop.permute.xlu0 %10027
      %10029 = vrot.lane.b32.xlu0 %v4727, 8
      %v10030 = vpop.permute.xlu0 %10029
      %10031 = vrot.lane.b32.xlu0 %v4732, 8
      %v10032 = vpop.permute.xlu0 %10031
      %10033 = vrot.lane.b32.xlu0 %v4735, 8
      %v10034 = vpop.permute.xlu0 %10033
      %10035 = vrot.lane.b32.xlu0 %v4797, 8
      %v10036 = vpop.permute.xlu0 %10035
      %10037 = vrot.lane.b32.xlu0 %v4800, 8
      %v10038 = vpop.permute.xlu0 %10037
      %10039 = vrot.lane.b32.xlu0 %v4805, 8
      %v10040 = vpop.permute.xlu0 %10039
      %10041 = vrot.lane.b32.xlu0 %v4808, 8
      %v10042 = vpop.permute.xlu0 %10041
      %10043 = vrot.lane.b32.xlu0 %v4813, 8
      %v10044 = vpop.permute.xlu0 %10043
      %10045 = vrot.lane.b32.xlu0 %v4816, 8
      %v10046 = vpop.permute.xlu0 %10045
      %10047 = vrot.lane.b32.xlu0 %v4821, 8
      %v10048 = vpop.permute.xlu0 %10047
      %10049 = vrot.lane.b32.xlu0 %v4824, 8
      %v10050 = vpop.permute.xlu0 %10049
      %10051 = vrot.lane.b32.xlu0 %v4886, 8
      %v10052 = vpop.permute.xlu0 %10051
      %10053 = vrot.lane.b32.xlu0 %v4889, 8
      %v10054 = vpop.permute.xlu0 %10053
      %10055 = vrot.lane.b32.xlu0 %v4894, 8
      %v10056 = vpop.permute.xlu0 %10055
      %10057 = vrot.lane.b32.xlu0 %v4897, 8
      %v10058 = vpop.permute.xlu0 %10057
      %10059 = vrot.lane.b32.xlu0 %v4902, 8
      %v10060 = vpop.permute.xlu0 %10059
      %10061 = vrot.lane.b32.xlu0 %v4905, 8
      %v10062 = vpop.permute.xlu0 %10061
      %10063 = vrot.lane.b32.xlu0 %v4910, 8
      %v10064 = vpop.permute.xlu0 %10063
      %10065 = vrot.lane.b32.xlu0 %v4913, 8
      %v10066 = vpop.permute.xlu0 %10065
      %10067 = vrot.lane.b32.xlu0 %v4975, 8
      %v10068 = vpop.permute.xlu0 %10067
      %10069 = vrot.lane.b32.xlu0 %v4978, 8
      %v10070 = vpop.permute.xlu0 %10069
      %10071 = vrot.lane.b32.xlu0 %v4983, 8
      %v10072 = vpop.permute.xlu0 %10071
      %10073 = vrot.lane.b32.xlu0 %v4986, 8
      %v10074 = vpop.permute.xlu0 %10073
      %10075 = vrot.lane.b32.xlu0 %v4991, 8
      %v10076 = vpop.permute.xlu0 %10075
      %10077 = vrot.lane.b32.xlu0 %v4994, 8
      %v10078 = vpop.permute.xlu0 %10077
      %10079 = vrot.lane.b32.xlu0 %v4999, 8
      %v10080 = vpop.permute.xlu0 %10079
      %10081 = vrot.lane.b32.xlu0 %v5002, 8
      %v10082 = vpop.permute.xlu0 %10081
      %10083 = vrot.lane.b32.xlu0 %v5064, 8
      %v10084 = vpop.permute.xlu0 %10083
      %10085 = vrot.lane.b32.xlu0 %v5067, 8
      %v10086 = vpop.permute.xlu0 %10085
      %10087 = vrot.lane.b32.xlu0 %v5072, 8
      %v10088 = vpop.permute.xlu0 %10087
      %10089 = vrot.lane.b32.xlu0 %v5075, 8
      %v10090 = vpop.permute.xlu0 %10089
      %10091 = vrot.lane.b32.xlu0 %v5080, 8
      %v10092 = vpop.permute.xlu0 %10091
      %10093 = vrot.lane.b32.xlu0 %v5083, 8
      %v10094 = vpop.permute.xlu0 %10093
      %10095 = vrot.lane.b32.xlu0 %v5088, 8
      %v10096 = vpop.permute.xlu0 %10095
      %10097 = vrot.lane.b32.xlu0 %v5091, 8
      %v10098 = vpop.permute.xlu0 %10097
      %10099 = vrot.lane.b32.xlu0 %v5153, 8
      %v10100 = vpop.permute.xlu0 %10099
      %10101 = vrot.lane.b32.xlu0 %v5156, 8
      %v10102 = vpop.permute.xlu0 %10101
      %10103 = vrot.lane.b32.xlu0 %v5161, 8
      %v10104 = vpop.permute.xlu0 %10103
      %10105 = vrot.lane.b32.xlu0 %v5164, 8
      %v10106 = vpop.permute.xlu0 %10105
      %10107 = vrot.lane.b32.xlu0 %v5169, 8
      %v10108 = vpop.permute.xlu0 %10107
      %10109 = vrot.lane.b32.xlu0 %v5172, 8
      %v10110 = vpop.permute.xlu0 %10109
      %10111 = vrot.lane.b32.xlu0 %v5177, 8
      %v10112 = vpop.permute.xlu0 %10111
      %10113 = vrot.lane.b32.xlu0 %v5180, 8
      %v10114 = vpop.permute.xlu0 %10113
      %10115 = vrot.lane.b32.xlu0 %v5242, 8
      %v10116 = vpop.permute.xlu0 %10115
      %10117 = vrot.lane.b32.xlu0 %v5245, 8
      %v10118 = vpop.permute.xlu0 %10117
      %10119 = vrot.lane.b32.xlu0 %v5250, 8
      %v10120 = vpop.permute.xlu0 %10119
      %10121 = vrot.lane.b32.xlu0 %v5253, 8
      %v10122 = vpop.permute.xlu0 %10121
      %10123 = vrot.lane.b32.xlu0 %v5258, 8
      %v10124 = vpop.permute.xlu0 %10123
      %10125 = vrot.lane.b32.xlu0 %v5261, 8
      %v10126 = vpop.permute.xlu0 %10125
      %10127 = vrot.lane.b32.xlu0 %v5266, 8
      %v10128 = vpop.permute.xlu0 %10127
      %10129 = vrot.lane.b32.xlu0 %v5269, 8
      %v10130 = vpop.permute.xlu0 %10129
      %10131 = vrot.lane.b32.xlu0 %v5331, 8
      %v10132 = vpop.permute.xlu0 %10131
      %10133 = vrot.lane.b32.xlu0 %v5334, 8
      %v10134 = vpop.permute.xlu0 %10133
      %10135 = vrot.lane.b32.xlu0 %v5339, 8
      %v10136 = vpop.permute.xlu0 %10135
      %10137 = vrot.lane.b32.xlu0 %v5342, 8
      %v10138 = vpop.permute.xlu0 %10137
      %10139 = vrot.lane.b32.xlu0 %v5347, 8
      %v10140 = vpop.permute.xlu0 %10139
      %10141 = vrot.lane.b32.xlu0 %v5350, 8
      %v10142 = vpop.permute.xlu0 %10141
      %10143 = vrot.lane.b32.xlu0 %v5355, 8
      %v10144 = vpop.permute.xlu0 %10143
      %10145 = vrot.lane.b32.xlu0 %v5358, 8
      %v10146 = vpop.permute.xlu0 %10145
      %10275 = vrot.lane.b32.xlu0 %v7005, 16
      %v10276 = vpop.permute.xlu0 %10275
      %10277 = vrot.lane.b32.xlu0 %v7008, 16
      %v10278 = vpop.permute.xlu0 %10277
      %10279 = vrot.lane.b32.xlu0 %v7013, 16
      %v10280 = vpop.permute.xlu0 %10279
      %10281 = vrot.lane.b32.xlu0 %v7016, 16
      %v10282 = vpop.permute.xlu0 %10281
      %10283 = vrot.lane.b32.xlu0 %v7021, 16
      %v10284 = vpop.permute.xlu0 %10283
      %10285 = vrot.lane.b32.xlu0 %v7024, 16
      %v10286 = vpop.permute.xlu0 %10285
      %10287 = vrot.lane.b32.xlu0 %v7029, 16
      %v10288 = vpop.permute.xlu0 %10287
      %10289 = vrot.lane.b32.xlu0 %v7032, 16
      %v10290 = vpop.permute.xlu0 %10289
      %10291 = vrot.lane.b32.xlu0 %v7094, 16
      %v10292 = vpop.permute.xlu0 %10291
      %10293 = vrot.lane.b32.xlu0 %v7097, 16
      %v10294 = vpop.permute.xlu0 %10293
      %10295 = vrot.lane.b32.xlu0 %v7102, 16
      %v10296 = vpop.permute.xlu0 %10295
      %10297 = vrot.lane.b32.xlu0 %v7105, 16
      %v10298 = vpop.permute.xlu0 %10297
      %10299 = vrot.lane.b32.xlu0 %v7110, 16
      %v10300 = vpop.permute.xlu0 %10299
      %10301 = vrot.lane.b32.xlu0 %v7113, 16
      %v10302 = vpop.permute.xlu0 %10301
      %10303 = vrot.lane.b32.xlu0 %v7118, 16
      %v10304 = vpop.permute.xlu0 %10303
      %10305 = vrot.lane.b32.xlu0 %v7121, 16
      %v10306 = vpop.permute.xlu0 %10305
      %10307 = vrot.lane.b32.xlu0 %v7183, 16
      %v10308 = vpop.permute.xlu0 %10307
      %10309 = vrot.lane.b32.xlu0 %v7186, 16
      %v10310 = vpop.permute.xlu0 %10309
      %10311 = vrot.lane.b32.xlu0 %v7191, 16
      %v10312 = vpop.permute.xlu0 %10311
      %10313 = vrot.lane.b32.xlu0 %v7194, 16
      %v10314 = vpop.permute.xlu0 %10313
      %10315 = vrot.lane.b32.xlu0 %v7199, 16
      %v10316 = vpop.permute.xlu0 %10315
      %10317 = vrot.lane.b32.xlu0 %v7202, 16
      %v10318 = vpop.permute.xlu0 %10317
      %10319 = vrot.lane.b32.xlu0 %v7207, 16
      %v10320 = vpop.permute.xlu0 %10319
      %10321 = vrot.lane.b32.xlu0 %v7210, 16
      %v10322 = vpop.permute.xlu0 %10321
      %10323 = vrot.lane.b32.xlu0 %v7272, 16
      %v10324 = vpop.permute.xlu0 %10323
      %10325 = vrot.lane.b32.xlu0 %v7275, 16
      %v10326 = vpop.permute.xlu0 %10325
      %10327 = vrot.lane.b32.xlu0 %v7280, 16
      %v10328 = vpop.permute.xlu0 %10327
      %10329 = vrot.lane.b32.xlu0 %v7283, 16
      %v10330 = vpop.permute.xlu0 %10329
      %10331 = vrot.lane.b32.xlu0 %v7288, 16
      %v10332 = vpop.permute.xlu0 %10331
      %10333 = vrot.lane.b32.xlu0 %v7291, 16
      %v10334 = vpop.permute.xlu0 %10333
      %10335 = vrot.lane.b32.xlu0 %v7296, 16
      %v10336 = vpop.permute.xlu0 %10335
      %10337 = vrot.lane.b32.xlu0 %v7299, 16
      %v10338 = vpop.permute.xlu0 %10337
      %10339 = vrot.lane.b32.xlu0 %v7361, 16
      %v10340 = vpop.permute.xlu0 %10339
      %10341 = vrot.lane.b32.xlu0 %v7364, 16
      %v10342 = vpop.permute.xlu0 %10341
      %10343 = vrot.lane.b32.xlu0 %v7369, 16
      %v10344 = vpop.permute.xlu0 %10343
      %10345 = vrot.lane.b32.xlu0 %v7372, 16
      %v10346 = vpop.permute.xlu0 %10345
      %10347 = vrot.lane.b32.xlu0 %v7377, 16
      %v10348 = vpop.permute.xlu0 %10347
      %10349 = vrot.lane.b32.xlu0 %v7380, 16
      %v10350 = vpop.permute.xlu0 %10349
      %10351 = vrot.lane.b32.xlu0 %v7385, 16
      %v10352 = vpop.permute.xlu0 %10351
      %10353 = vrot.lane.b32.xlu0 %v7388, 16
      %v10354 = vpop.permute.xlu0 %10353
      %10355 = vrot.lane.b32.xlu0 %v7450, 16
      %v10356 = vpop.permute.xlu0 %10355
      %10357 = vrot.lane.b32.xlu0 %v7453, 16
      %v10358 = vpop.permute.xlu0 %10357
      %10359 = vrot.lane.b32.xlu0 %v7458, 16
      %v10360 = vpop.permute.xlu0 %10359
      %10361 = vrot.lane.b32.xlu0 %v7461, 16
      %v10362 = vpop.permute.xlu0 %10361
      %10363 = vrot.lane.b32.xlu0 %v7466, 16
      %v10364 = vpop.permute.xlu0 %10363
      %10365 = vrot.lane.b32.xlu0 %v7469, 16
      %v10366 = vpop.permute.xlu0 %10365
      %10367 = vrot.lane.b32.xlu0 %v7474, 16
      %v10368 = vpop.permute.xlu0 %10367
      %10369 = vrot.lane.b32.xlu0 %v7477, 16
      %v10370 = vpop.permute.xlu0 %10369
      %10371 = vrot.lane.b32.xlu0 %v7539, 16
      %v10372 = vpop.permute.xlu0 %10371
      %10373 = vrot.lane.b32.xlu0 %v7542, 16
      %v10374 = vpop.permute.xlu0 %10373
      %10375 = vrot.lane.b32.xlu0 %v7547, 16
      %v10376 = vpop.permute.xlu0 %10375
      %10377 = vrot.lane.b32.xlu0 %v7550, 16
      %v10378 = vpop.permute.xlu0 %10377
      %10379 = vrot.lane.b32.xlu0 %v7555, 16
      %v10380 = vpop.permute.xlu0 %10379
      %10381 = vrot.lane.b32.xlu0 %v7558, 16
      %v10382 = vpop.permute.xlu0 %10381
      %10383 = vrot.lane.b32.xlu0 %v7563, 16
      %v10384 = vpop.permute.xlu0 %10383
      %10385 = vrot.lane.b32.xlu0 %v7566, 16
      %v10386 = vpop.permute.xlu0 %10385
      %10387 = vrot.lane.b32.xlu0 %v7628, 16
      %v10388 = vpop.permute.xlu0 %10387
      %10389 = vrot.lane.b32.xlu0 %v7631, 16
      %v10390 = vpop.permute.xlu0 %10389
      %10391 = vrot.lane.b32.xlu0 %v7636, 16
      %v10392 = vpop.permute.xlu0 %10391
      %10393 = vrot.lane.b32.xlu0 %v7639, 16
      %v10394 = vpop.permute.xlu0 %10393
      %10395 = vrot.lane.b32.xlu0 %v7644, 16
      %v10396 = vpop.permute.xlu0 %10395
      %10397 = vrot.lane.b32.xlu0 %v7647, 16
      %v10398 = vpop.permute.xlu0 %10397
      %10399 = vrot.lane.b32.xlu0 %v7652, 16
      %v10400 = vpop.permute.xlu0 %10399
      %10401 = vrot.lane.b32.xlu0 %v7655, 16
      %v10402 = vpop.permute.xlu0 %10401
      %10531 = vrot.lane.b32.xlu0 %v9302, 24
      %v10532 = vpop.permute.xlu0 %10531
      %10533 = vrot.lane.b32.xlu0 %v9305, 24
      %v10534 = vpop.permute.xlu0 %10533
      %10535 = vrot.lane.b32.xlu0 %v9310, 24
      %v10536 = vpop.permute.xlu0 %10535
      %10537 = vrot.lane.b32.xlu0 %v9313, 24
      %v10538 = vpop.permute.xlu0 %10537
      %10539 = vrot.lane.b32.xlu0 %v9318, 24
      %v10540 = vpop.permute.xlu0 %10539
      %10541 = vrot.lane.b32.xlu0 %v9321, 24
      %v10542 = vpop.permute.xlu0 %10541
      %10543 = vrot.lane.b32.xlu0 %v9326, 24
      %v10544 = vpop.permute.xlu0 %10543
      %10545 = vrot.lane.b32.xlu0 %v9329, 24
      %v10546 = vpop.permute.xlu0 %10545
      %10547 = vrot.lane.b32.xlu0 %v9391, 24
      %v10548 = vpop.permute.xlu0 %10547
      %10549 = vrot.lane.b32.xlu0 %v9394, 24
      %v10550 = vpop.permute.xlu0 %10549
      %10551 = vrot.lane.b32.xlu0 %v9399, 24
      %v10552 = vpop.permute.xlu0 %10551
      %10553 = vrot.lane.b32.xlu0 %v9402, 24
      %v10554 = vpop.permute.xlu0 %10553
      %10555 = vrot.lane.b32.xlu0 %v9407, 24
      %v10556 = vpop.permute.xlu0 %10555
      %10557 = vrot.lane.b32.xlu0 %v9410, 24
      %v10558 = vpop.permute.xlu0 %10557
      %10559 = vrot.lane.b32.xlu0 %v9415, 24
      %v10560 = vpop.permute.xlu0 %10559
      %10561 = vrot.lane.b32.xlu0 %v9418, 24
      %v10562 = vpop.permute.xlu0 %10561
      %10563 = vrot.lane.b32.xlu0 %v9480, 24
      %v10564 = vpop.permute.xlu0 %10563
      %10565 = vrot.lane.b32.xlu0 %v9483, 24
      %v10566 = vpop.permute.xlu0 %10565
      %10567 = vrot.lane.b32.xlu0 %v9488, 24
      %v10568 = vpop.permute.xlu0 %10567
      %10569 = vrot.lane.b32.xlu0 %v9491, 24
      %v10570 = vpop.permute.xlu0 %10569
      %10571 = vrot.lane.b32.xlu0 %v9496, 24
      %v10572 = vpop.permute.xlu0 %10571
      %10573 = vrot.lane.b32.xlu0 %v9499, 24
      %v10574 = vpop.permute.xlu0 %10573
      %10575 = vrot.lane.b32.xlu0 %v9504, 24
      %v10576 = vpop.permute.xlu0 %10575
      %10577 = vrot.lane.b32.xlu0 %v9507, 24
      %v10578 = vpop.permute.xlu0 %10577
      %10579 = vrot.lane.b32.xlu0 %v9569, 24
      %v10580 = vpop.permute.xlu0 %10579
      %10581 = vrot.lane.b32.xlu0 %v9572, 24
      %v10582 = vpop.permute.xlu0 %10581
      %10583 = vrot.lane.b32.xlu0 %v9577, 24
      %v10584 = vpop.permute.xlu0 %10583
      %10585 = vrot.lane.b32.xlu0 %v9580, 24
      %v10586 = vpop.permute.xlu0 %10585
      %10587 = vrot.lane.b32.xlu0 %v9585, 24
      %v10588 = vpop.permute.xlu0 %10587
      %10589 = vrot.lane.b32.xlu0 %v9588, 24
      %v10590 = vpop.permute.xlu0 %10589
      %10591 = vrot.lane.b32.xlu0 %v9593, 24
      %v10592 = vpop.permute.xlu0 %10591
      %10593 = vrot.lane.b32.xlu0 %v9596, 24
      %v10594 = vpop.permute.xlu0 %10593
      %10595 = vrot.lane.b32.xlu0 %v9658, 24
      %v10596 = vpop.permute.xlu0 %10595
      %10597 = vrot.lane.b32.xlu0 %v9661, 24
      %v10598 = vpop.permute.xlu0 %10597
      %10599 = vrot.lane.b32.xlu0 %v9666, 24
      %v10600 = vpop.permute.xlu0 %10599
      %10601 = vrot.lane.b32.xlu0 %v9669, 24
      %v10602 = vpop.permute.xlu0 %10601
      %10603 = vrot.lane.b32.xlu0 %v9674, 24
      %v10604 = vpop.permute.xlu0 %10603
      %10605 = vrot.lane.b32.xlu0 %v9677, 24
      %v10606 = vpop.permute.xlu0 %10605
      %10607 = vrot.lane.b32.xlu0 %v9682, 24
      %v10608 = vpop.permute.xlu0 %10607
      %10609 = vrot.lane.b32.xlu0 %v9685, 24
      %v10610 = vpop.permute.xlu0 %10609
      %10611 = vrot.lane.b32.xlu0 %v9747, 24
      %v10612 = vpop.permute.xlu0 %10611
      %10613 = vrot.lane.b32.xlu0 %v9750, 24
      %v10614 = vpop.permute.xlu0 %10613
      %10615 = vrot.lane.b32.xlu0 %v9755, 24
      %v10616 = vpop.permute.xlu0 %10615
      %10617 = vrot.lane.b32.xlu0 %v9758, 24
      %v10618 = vpop.permute.xlu0 %10617
      %10619 = vrot.lane.b32.xlu0 %v9763, 24
      %v10620 = vpop.permute.xlu0 %10619
      %10621 = vrot.lane.b32.xlu0 %v9766, 24
      %v10622 = vpop.permute.xlu0 %10621
      %10623 = vrot.lane.b32.xlu0 %v9771, 24
      %v10624 = vpop.permute.xlu0 %10623
      %10625 = vrot.lane.b32.xlu0 %v9774, 24
      %v10626 = vpop.permute.xlu0 %10625
      %10627 = vrot.lane.b32.xlu0 %v9836, 24
      %v10628 = vpop.permute.xlu0 %10627
      %10629 = vrot.lane.b32.xlu0 %v9839, 24
      %v10630 = vpop.permute.xlu0 %10629
      %10631 = vrot.lane.b32.xlu0 %v9844, 24
      %v10632 = vpop.permute.xlu0 %10631
      %10633 = vrot.lane.b32.xlu0 %v9847, 24
      %v10634 = vpop.permute.xlu0 %10633
      %10635 = vrot.lane.b32.xlu0 %v9852, 24
      %v10636 = vpop.permute.xlu0 %10635
      %10637 = vrot.lane.b32.xlu0 %v9855, 24
      %v10638 = vpop.permute.xlu0 %10637
      %10639 = vrot.lane.b32.xlu0 %v9860, 24
      %v10640 = vpop.permute.xlu0 %10639
      %10641 = vrot.lane.b32.xlu0 %v9863, 24
      %v10642 = vpop.permute.xlu0 %10641
      %10643 = vrot.lane.b32.xlu0 %v9925, 24
      %v10644 = vpop.permute.xlu0 %10643
      %10645 = vrot.lane.b32.xlu0 %v9928, 24
      %v10646 = vpop.permute.xlu0 %10645
      %10647 = vrot.lane.b32.xlu0 %v9933, 24
      %v10648 = vpop.permute.xlu0 %10647
      %10649 = vrot.lane.b32.xlu0 %v9936, 24
      %v10650 = vpop.permute.xlu0 %10649
      %10651 = vrot.lane.b32.xlu0 %v9941, 24
      %v10652 = vpop.permute.xlu0 %10651
      %10653 = vrot.lane.b32.xlu0 %v9944, 24
      %v10654 = vpop.permute.xlu0 %10653
      %10655 = vrot.lane.b32.xlu0 %v9949, 24
      %v10656 = vpop.permute.xlu0 %10655
      %10657 = vrot.lane.b32.xlu0 %v9952, 24
      %v10658 = vpop.permute.xlu0 %10657
      %v10723 = vsel %vm818, %v2411, %v10020
      %v10724 = vsel %vm818, %v2414, %v10022
      %v10725 = vsel %vm818, %v2419, %v10024
      %v10726 = vsel %vm818, %v2422, %v10026
      %v10727 = vsel %vm818, %v2427, %v10028
      %v10728 = vsel %vm818, %v2430, %v10030
      %v10729 = vsel %vm818, %v2435, %v10032
      %v10730 = vsel %vm818, %v2438, %v10034
      %v10731 = vsel %vm818, %v2500, %v10036
      %v10732 = vsel %vm818, %v2503, %v10038
      %v10733 = vsel %vm818, %v2508, %v10040
      %v10734 = vsel %vm818, %v2511, %v10042
      %v10735 = vsel %vm818, %v2516, %v10044
      %v10736 = vsel %vm818, %v2519, %v10046
      %v10737 = vsel %vm818, %v2524, %v10048
      %v10738 = vsel %vm818, %v2527, %v10050
      %v10739 = vsel %vm818, %v2589, %v10052
      %v10740 = vsel %vm818, %v2592, %v10054
      %v10741 = vsel %vm818, %v2597, %v10056
      %v10742 = vsel %vm818, %v2600, %v10058
      %v10743 = vsel %vm818, %v2605, %v10060
      %v10744 = vsel %vm818, %v2608, %v10062
      %v10745 = vsel %vm818, %v2613, %v10064
      %v10746 = vsel %vm818, %v2616, %v10066
      %v10747 = vsel %vm818, %v2678, %v10068
      %v10748 = vsel %vm818, %v2681, %v10070
      %v10749 = vsel %vm818, %v2686, %v10072
      %v10750 = vsel %vm818, %v2689, %v10074
      %v10751 = vsel %vm818, %v2694, %v10076
      %v10752 = vsel %vm818, %v2697, %v10078
      %v10753 = vsel %vm818, %v2702, %v10080
      %v10754 = vsel %vm818, %v2705, %v10082
      %v10755 = vsel %vm818, %v2767, %v10084
      %v10756 = vsel %vm818, %v2770, %v10086
      %v10757 = vsel %vm818, %v2775, %v10088
      %v10758 = vsel %vm818, %v2778, %v10090
      %v10759 = vsel %vm818, %v2783, %v10092
      %v10760 = vsel %vm818, %v2786, %v10094
      %v10761 = vsel %vm818, %v2791, %v10096
      %v10762 = vsel %vm818, %v2794, %v10098
      %v10763 = vsel %vm818, %v2856, %v10100
      %v10764 = vsel %vm818, %v2859, %v10102
      %v10765 = vsel %vm818, %v2864, %v10104
      %v10766 = vsel %vm818, %v2867, %v10106
      %v10767 = vsel %vm818, %v2872, %v10108
      %v10768 = vsel %vm818, %v2875, %v10110
      %v10769 = vsel %vm818, %v2880, %v10112
      %v10770 = vsel %vm818, %v2883, %v10114
      %v10771 = vsel %vm818, %v2945, %v10116
      %v10772 = vsel %vm818, %v2948, %v10118
      %v10773 = vsel %vm818, %v2953, %v10120
      %v10774 = vsel %vm818, %v2956, %v10122
      %v10775 = vsel %vm818, %v2961, %v10124
      %v10776 = vsel %vm818, %v2964, %v10126
      %v10777 = vsel %vm818, %v2969, %v10128
      %v10778 = vsel %vm818, %v2972, %v10130
      %v10779 = vsel %vm818, %v3034, %v10132
      %v10780 = vsel %vm818, %v3037, %v10134
      %v10781 = vsel %vm818, %v3042, %v10136
      %v10782 = vsel %vm818, %v3045, %v10138
      %v10783 = vsel %vm818, %v3050, %v10140
      %v10784 = vsel %vm818, %v3053, %v10142
      %v10785 = vsel %vm818, %v3058, %v10144
      %v10786 = vsel %vm818, %v3061, %v10146
      %vm10787 = vcmask 130048
      %v10788 = vsel %vm10787, %v10723, %v10276
      %v10789 = vsel %vm10787, %v10724, %v10278
      %v10790 = vsel %vm10787, %v10725, %v10280
      %v10791 = vsel %vm10787, %v10726, %v10282
      %v10792 = vsel %vm10787, %v10727, %v10284
      %v10793 = vsel %vm10787, %v10728, %v10286
      %v10794 = vsel %vm10787, %v10729, %v10288
      %v10795 = vsel %vm10787, %v10730, %v10290
      %v10796 = vsel %vm10787, %v10731, %v10292
      %v10797 = vsel %vm10787, %v10732, %v10294
      %v10798 = vsel %vm10787, %v10733, %v10296
      %v10799 = vsel %vm10787, %v10734, %v10298
      %v10800 = vsel %vm10787, %v10735, %v10300
      %v10801 = vsel %vm10787, %v10736, %v10302
      %v10802 = vsel %vm10787, %v10737, %v10304
      %v10803 = vsel %vm10787, %v10738, %v10306
      %v10804 = vsel %vm10787, %v10739, %v10308
      %v10805 = vsel %vm10787, %v10740, %v10310
      %v10806 = vsel %vm10787, %v10741, %v10312
      %v10807 = vsel %vm10787, %v10742, %v10314
      %v10808 = vsel %vm10787, %v10743, %v10316
      %v10809 = vsel %vm10787, %v10744, %v10318
      %v10810 = vsel %vm10787, %v10745, %v10320
      %v10811 = vsel %vm10787, %v10746, %v10322
      %v10812 = vsel %vm10787, %v10747, %v10324
      %v10813 = vsel %vm10787, %v10748, %v10326
      %v10814 = vsel %vm10787, %v10749, %v10328
      %v10815 = vsel %vm10787, %v10750, %v10330
      %v10816 = vsel %vm10787, %v10751, %v10332
      %v10817 = vsel %vm10787, %v10752, %v10334
      %v10818 = vsel %vm10787, %v10753, %v10336
      %v10819 = vsel %vm10787, %v10754, %v10338
      %v10820 = vsel %vm10787, %v10755, %v10340
      %v10821 = vsel %vm10787, %v10756, %v10342
      %v10822 = vsel %vm10787, %v10757, %v10344
      %v10823 = vsel %vm10787, %v10758, %v10346
      %v10824 = vsel %vm10787, %v10759, %v10348
      %v10825 = vsel %vm10787, %v10760, %v10350
      %v10826 = vsel %vm10787, %v10761, %v10352
      %v10827 = vsel %vm10787, %v10762, %v10354
      %v10828 = vsel %vm10787, %v10763, %v10356
      %v10829 = vsel %vm10787, %v10764, %v10358
      %v10830 = vsel %vm10787, %v10765, %v10360
      %v10831 = vsel %vm10787, %v10766, %v10362
      %v10832 = vsel %vm10787, %v10767, %v10364
      %v10833 = vsel %vm10787, %v10768, %v10366
      %v10834 = vsel %vm10787, %v10769, %v10368
      %v10835 = vsel %vm10787, %v10770, %v10370
      %v10836 = vsel %vm10787, %v10771, %v10372
      %v10837 = vsel %vm10787, %v10772, %v10374
      %v10838 = vsel %vm10787, %v10773, %v10376
      %v10839 = vsel %vm10787, %v10774, %v10378
      %v10840 = vsel %vm10787, %v10775, %v10380
      %v10841 = vsel %vm10787, %v10776, %v10382
      %v10842 = vsel %vm10787, %v10777, %v10384
      %v10843 = vsel %vm10787, %v10778, %v10386
      %v10844 = vsel %vm10787, %v10779, %v10388
      %v10845 = vsel %vm10787, %v10780, %v10390
      %v10846 = vsel %vm10787, %v10781, %v10392
      %v10847 = vsel %vm10787, %v10782, %v10394
      %v10848 = vsel %vm10787, %v10783, %v10396
      %v10849 = vsel %vm10787, %v10784, %v10398
      %v10850 = vsel %vm10787, %v10785, %v10400
      %v10851 = vsel %vm10787, %v10786, %v10402
      %vm10852 = vcmask 195584
      %v10853 = vsel %vm10852, %v10788, %v10532
      %v10854 = vsel %vm10852, %v10789, %v10534
      %v10855 = vsel %vm10852, %v10790, %v10536
      %v10856 = vsel %vm10852, %v10791, %v10538
      %v10857 = vsel %vm10852, %v10792, %v10540
      %v10858 = vsel %vm10852, %v10793, %v10542
      %v10859 = vsel %vm10852, %v10794, %v10544
      %v10860 = vsel %vm10852, %v10795, %v10546
      %v10861 = vsel %vm10852, %v10796, %v10548
      %v10862 = vsel %vm10852, %v10797, %v10550
      %v10863 = vsel %vm10852, %v10798, %v10552
      %v10864 = vsel %vm10852, %v10799, %v10554
      %v10865 = vsel %vm10852, %v10800, %v10556
      %v10866 = vsel %vm10852, %v10801, %v10558
      %v10867 = vsel %vm10852, %v10802, %v10560
      %v10868 = vsel %vm10852, %v10803, %v10562
      %v10869 = vsel %vm10852, %v10804, %v10564
      %v10870 = vsel %vm10852, %v10805, %v10566
      %v10871 = vsel %vm10852, %v10806, %v10568
      %v10872 = vsel %vm10852, %v10807, %v10570
      %v10873 = vsel %vm10852, %v10808, %v10572
      %v10874 = vsel %vm10852, %v10809, %v10574
      %v10875 = vsel %vm10852, %v10810, %v10576
      %v10876 = vsel %vm10852, %v10811, %v10578
      %v10877 = vsel %vm10852, %v10812, %v10580
      %v10878 = vsel %vm10852, %v10813, %v10582
      %v10879 = vsel %vm10852, %v10814, %v10584
      %v10880 = vsel %vm10852, %v10815, %v10586
      %v10881 = vsel %vm10852, %v10816, %v10588
      %v10882 = vsel %vm10852, %v10817, %v10590
      %v10883 = vsel %vm10852, %v10818, %v10592
      %v10884 = vsel %vm10852, %v10819, %v10594
      %v10885 = vsel %vm10852, %v10820, %v10596
      %v10886 = vsel %vm10852, %v10821, %v10598
      %v10887 = vsel %vm10852, %v10822, %v10600
      %v10888 = vsel %vm10852, %v10823, %v10602
      %v10889 = vsel %vm10852, %v10824, %v10604
      %v10890 = vsel %vm10852, %v10825, %v10606
      %v10891 = vsel %vm10852, %v10826, %v10608
      %v10892 = vsel %vm10852, %v10827, %v10610
      %v10893 = vsel %vm10852, %v10828, %v10612
      %v10894 = vsel %vm10852, %v10829, %v10614
      %v10895 = vsel %vm10852, %v10830, %v10616
      %v10896 = vsel %vm10852, %v10831, %v10618
      %v10897 = vsel %vm10852, %v10832, %v10620
      %v10898 = vsel %vm10852, %v10833, %v10622
      %v10899 = vsel %vm10852, %v10834, %v10624
      %v10900 = vsel %vm10852, %v10835, %v10626
      %v10901 = vsel %vm10852, %v10836, %v10628
      %v10902 = vsel %vm10852, %v10837, %v10630
      %v10903 = vsel %vm10852, %v10838, %v10632
      %v10904 = vsel %vm10852, %v10839, %v10634
      %v10905 = vsel %vm10852, %v10840, %v10636
      %v10906 = vsel %vm10852, %v10841, %v10638
      %v10907 = vsel %vm10852, %v10842, %v10640
      %v10908 = vsel %vm10852, %v10843, %v10642
      %v10909 = vsel %vm10852, %v10844, %v10644
      %v10910 = vsel %vm10852, %v10845, %v10646
      %v10911 = vsel %vm10852, %v10846, %v10648
      %v10912 = vsel %vm10852, %v10847, %v10650
      %v10913 = vsel %vm10852, %v10848, %v10652
      %v10914 = vsel %vm10852, %v10849, %v10654
      %v10915 = vsel %vm10852, %v10850, %v10656
      %v10916 = vsel %vm10852, %v10851, %v10658
      %v10917 = vpack.c.bf16 %v10854, %v10853
      %v10918 = vpack.c.bf16 %v10856, %v10855
      %v10919 = vpack.c.bf16 %v10858, %v10857
      %v10920 = vpack.c.bf16 %v10860, %v10859
      %v10921 = vpack.c.bf16 %v10862, %v10861
      %v10922 = vpack.c.bf16 %v10864, %v10863
      %v10923 = vpack.c.bf16 %v10866, %v10865
      %v10924 = vpack.c.bf16 %v10868, %v10867
      %v10925 = vpack.c.bf16 %v10870, %v10869
      %v10926 = vpack.c.bf16 %v10872, %v10871
      %v10927 = vpack.c.bf16 %v10874, %v10873
      %v10928 = vpack.c.bf16 %v10876, %v10875
      %v10929 = vpack.c.bf16 %v10878, %v10877
      %v10930 = vpack.c.bf16 %v10880, %v10879
      %v10931 = vpack.c.bf16 %v10882, %v10881
      %v10932 = vpack.c.bf16 %v10884, %v10883
      %v10933 = vpack.c.bf16 %v10886, %v10885
      %v10934 = vpack.c.bf16 %v10888, %v10887
      %v10935 = vpack.c.bf16 %v10890, %v10889
      %v10936 = vpack.c.bf16 %v10892, %v10891
      %v10937 = vpack.c.bf16 %v10894, %v10893
      %v10938 = vpack.c.bf16 %v10896, %v10895
      %v10939 = vpack.c.bf16 %v10898, %v10897
      %v10940 = vpack.c.bf16 %v10900, %v10899
      %v10941 = vpack.c.bf16 %v10902, %v10901
      %v10942 = vpack.c.bf16 %v10904, %v10903
      %v10943 = vpack.c.bf16 %v10906, %v10905
      %v10944 = vpack.c.bf16 %v10908, %v10907
      %v10945 = vpack.c.bf16 %v10910, %v10909
      %v10946 = vpack.c.bf16 %v10912, %v10911
      %v10947 = vpack.c.bf16 %v10914, %v10913
      %v10948 = vpack.c.bf16 %v10916, %v10915
      %v10949 = vld [vmem:[%s4] sm:$0xf]
      %v10950 = vld [vmem:[%s4 + $0x4] sm:$0xf]
      %v10951 = vld [vmem:[%s4 + $0x8] sm:$0xf]
      %v10952 = vld [vmem:[%s4 + $0xc] sm:$0xf]
      %v10953 = vld [vmem:[%s5] sm:$0x1]
      %v10955 = vlaneseq
      %v10956 = vshrl.u32 %v10955, 7
      %v10957 = vsub.s32 0, %v10956
      %v10958 = vrot.slane %v10953, %v10957
      %v10964 = vunpack.c.l.b16 %v10949
      %v10965 = vunpack.c.l.b16 %v10950
      %v10966 = vunpack.c.l.b16 %v10951
      %v10967 = vunpack.c.l.b16 %v10952
      %v10968 = vpack.c.b16 %v10965, %v10964
      %v10969 = vpack.c.b16 %v10967, %v10966
      %v10973 = vsel %vm380, %v10917, 0
      %v10976 = vsel %vm380, %v10918, 0
      %v10979 = vsel %vm380, %v10919, 0
      %v10982 = vsel %vm380, %v10920, 0
      %v10985 = vsel %vm380, %v10921, 0
      %v10988 = vsel %vm380, %v10922, 0
      %v10991 = vsel %vm380, %v10923, 0
      %v10994 = vsel %vm380, %v10924, 0
      %v10997 = vsel %vm380, %v10925, 0
      %v11000 = vsel %vm380, %v10926, 0
      %v11003 = vsel %vm380, %v10927, 0
      %v11006 = vsel %vm380, %v10928, 0
      %v11009 = vsel %vm380, %v10929, 0
      %v11012 = vsel %vm380, %v10930, 0
      %v11015 = vsel %vm380, %v10931, 0
      %v11018 = vsel %vm380, %v10932, 0
      %v11021 = vsel %vm380, %v10933, 0
      %v11024 = vsel %vm380, %v10934, 0
      %v11027 = vsel %vm380, %v10935, 0
      %v11030 = vsel %vm380, %v10936, 0
      %v11033 = vsel %vm380, %v10937, 0
      %v11036 = vsel %vm380, %v10938, 0
      %v11039 = vsel %vm380, %v10939, 0
      %v11042 = vsel %vm380, %v10940, 0
      %v11045 = vsel %vm380, %v10941, 0
      %v11048 = vsel %vm380, %v10942, 0
      %v11051 = vsel %vm380, %v10943, 0
      %v11054 = vsel %vm380, %v10944, 0
      %v11057 = vsel %vm380, %v10945, 0
      %v11060 = vsel %vm380, %v10946, 0
      %v11063 = vsel %vm380, %v10947, 0
      %v11066 = vsel %vm380, %v10948, 0
      %11068 = vmatprep.subr.bf16.mxu0 0
      %11069 = vmatpush1.bf16.msra.mxu0 %v10968
      %11070 = vmatprep.subr.bf16.mxu0 0
      %11071 = vmatpush1.bf16.msra.mxu0 %v10969
      %11072 = vmatprep.subr.bf16.mxu0 0
      %11073 = vmatpush1.bf16.msra.mxu0 0
      %11074 = vmatprep.subr.bf16.mxu0 0
      %11075 = vmatpush1.bf16.msra.mxu0 0
      %11076 = vmatprep.subr.bf16.mxu0 0
      %11077 = vmatpush1.bf16.msra.mxu0 0
      %11078 = vmatprep.subr.bf16.mxu0 0
      %11079 = vmatpush1.bf16.msra.mxu0 0
      %11080 = vmatprep.subr.bf16.mxu0 0
      %11081 = vmatpush1.bf16.msra.mxu0 0
      %11082 = vmatprep.subr.bf16.mxu0 0
      %11083 = vmatpush1.bf16.msra.mxu0 0
      %11084 = vmatprep.subr.bf16.mxu0 0
      %11085 = vmatpush1.bf16.msra.mxu0 0
      %11086 = vmatprep.subr.bf16.mxu0 0
      %11087 = vmatpush1.bf16.msra.mxu0 0
      %11088 = vmatprep.subr.bf16.mxu0 0
      %11089 = vmatpush1.bf16.msra.mxu0 0
      %11090 = vmatprep.subr.bf16.mxu0 0
      %11091 = vmatpush1.bf16.msra.mxu0 0
      %11092 = vmatprep.subr.bf16.mxu0 0
      %11093 = vmatpush1.bf16.msra.mxu0 0
      %11094 = vmatprep.subr.bf16.mxu0 0
      %11095 = vmatpush1.bf16.msra.mxu0 0
      %11096 = vmatprep.subr.bf16.mxu0 0
      %11097 = vmatpush1.bf16.msra.mxu0 0
      %11098 = vmatprep.subr.bf16.mxu0 0
      %11099 = vmatpush1.bf16.msra.mxu0 0
      %11100 = vmatprep.mubr.bf16.mxu0 0
      %11101 = vmatmul.mubr.bf16.gmra.mrb[0].mxu0 %v10973
      %v11102 = vpop.f32.mrb[0].mxu0
      %v11103 = vadd.f32 %v10958, %v11102
      %v11104 = vpop.f32.mrb[0].mxu0
      %v11105 = vpop.f32.mrb[0].mxu0
      %v11106 = vadd.f32 %v10958, %v11105
      %v11107 = vpop.f32.mrb[0].mxu0
      %11108 = vmatprep.mubr.bf16.mxu0 0
      %11109 = vmatmul.mubr.bf16.gmra.mrb[0].mxu0 %v10976
      %v11110 = vpop.f32.mrb[0].mxu0
      %v11111 = vadd.f32 %v10958, %v11110
      %v11112 = vpop.f32.mrb[0].mxu0
      %v11113 = vpop.f32.mrb[0].mxu0
      %v11114 = vadd.f32 %v10958, %v11113
      %v11115 = vpop.f32.mrb[0].mxu0
      %11116 = vmatprep.mubr.bf16.mxu0 0
      %11117 = vmatmul.mubr.bf16.gmra.mrb[0].mxu0 %v10979
      %v11118 = vpop.f32.mrb[0].mxu0
      %v11119 = vadd.f32 %v10958, %v11118
      %v11120 = vpop.f32.mrb[0].mxu0
      %v11121 = vpop.f32.mrb[0].mxu0
      %v11122 = vadd.f32 %v10958, %v11121
      %v11123 = vpop.f32.mrb[0].mxu0
      %11124 = vmatprep.mubr.bf16.mxu0 0
      %11125 = vmatmul.mubr.bf16.gmra.mrb[0].mxu0 %v10982
      %v11126 = vpop.f32.mrb[0].mxu0
      %v11127 = vadd.f32 %v10958, %v11126
      %v11128 = vpop.f32.mrb[0].mxu0
      %v11129 = vpop.f32.mrb[0].mxu0
      %v11130 = vadd.f32 %v10958, %v11129
      %v11131 = vpop.f32.mrb[0].mxu0
      %11132 = vmatprep.mubr.bf16.mxu0 0
      %11133 = vmatmul.mubr.bf16.gmra.mrb[0].mxu0 %v10985
      %v11134 = vpop.f32.mrb[0].mxu0
      %v11135 = vadd.f32 %v10958, %v11134
      %v11136 = vpop.f32.mrb[0].mxu0
      %v11137 = vpop.f32.mrb[0].mxu0
      %v11138 = vadd.f32 %v10958, %v11137
      %v11139 = vpop.f32.mrb[0].mxu0
      %11140 = vmatprep.mubr.bf16.mxu0 0
      %11141 = vmatmul.mubr.bf16.gmra.mrb[0].mxu0 %v10988
      %v11142 = vpop.f32.mrb[0].mxu0
      %v11143 = vadd.f32 %v10958, %v11142
      %v11144 = vpop.f32.mrb[0].mxu0
      %v11145 = vpop.f32.mrb[0].mxu0
      %v11146 = vadd.f32 %v10958, %v11145
      %v11147 = vpop.f32.mrb[0].mxu0
      %11148 = vmatprep.mubr.bf16.mxu0 0
      %11149 = vmatmul.mubr.bf16.gmra.mrb[0].mxu0 %v10991
      %v11150 = vpop.f32.mrb[0].mxu0
      %v11151 = vadd.f32 %v10958, %v11150
      %v11152 = vpop.f32.mrb[0].mxu0
      %v11153 = vpop.f32.mrb[0].mxu0
      %v11154 = vadd.f32 %v10958, %v11153
      %v11155 = vpop.f32.mrb[0].mxu0
      %11156 = vmatprep.mubr.bf16.mxu0 0
      %11157 = vmatmul.mubr.bf16.gmra.mrb[0].mxu0 %v10994
      %v11158 = vpop.f32.mrb[0].mxu0
      %v11159 = vadd.f32 %v10958, %v11158
      %v11160 = vpop.f32.mrb[0].mxu0
      %v11161 = vpop.f32.mrb[0].mxu0
      %v11162 = vadd.f32 %v10958, %v11161
      %v11163 = vpop.f32.mrb[0].mxu0
      %11164 = vmatprep.mubr.bf16.mxu0 0
      %11165 = vmatmul.mubr.bf16.gmra.mrb[0].mxu0 %v10997
      %v11166 = vpop.f32.mrb[0].mxu0
      %v11167 = vadd.f32 %v10958, %v11166
      %v11168 = vpop.f32.mrb[0].mxu0
      %v11169 = vpop.f32.mrb[0].mxu0
      %v11170 = vadd.f32 %v10958, %v11169
      %v11171 = vpop.f32.mrb[0].mxu0
      %11172 = vmatprep.mubr.bf16.mxu0 0
      %11173 = vmatmul.mubr.bf16.gmra.mrb[0].mxu0 %v11000
      %v11174 = vpop.f32.mrb[0].mxu0
      %v11175 = vadd.f32 %v10958, %v11174
      %v11176 = vpop.f32.mrb[0].mxu0
      %v11177 = vpop.f32.mrb[0].mxu0
      %v11178 = vadd.f32 %v10958, %v11177
      %v11179 = vpop.f32.mrb[0].mxu0
      %11180 = vmatprep.mubr.bf16.mxu0 0
      %11181 = vmatmul.mubr.bf16.gmra.mrb[0].mxu0 %v11003
      %v11182 = vpop.f32.mrb[0].mxu0
      %v11183 = vadd.f32 %v10958, %v11182
      %v11184 = vpop.f32.mrb[0].mxu0
      %v11185 = vpop.f32.mrb[0].mxu0
      %v11186 = vadd.f32 %v10958, %v11185
      %v11187 = vpop.f32.mrb[0].mxu0
      %11188 = vmatprep.mubr.bf16.mxu0 0
      %11189 = vmatmul.mubr.bf16.gmra.mrb[0].mxu0 %v11006
      %v11190 = vpop.f32.mrb[0].mxu0
      %v11191 = vadd.f32 %v10958, %v11190
      %v11192 = vpop.f32.mrb[0].mxu0
      %v11193 = vpop.f32.mrb[0].mxu0
      %v11194 = vadd.f32 %v10958, %v11193
      %v11195 = vpop.f32.mrb[0].mxu0
      %11196 = vmatprep.mubr.bf16.mxu0 0
      %11197 = vmatmul.mubr.bf16.gmra.mrb[0].mxu0 %v11009
      %v11198 = vpop.f32.mrb[0].mxu0
      %v11199 = vadd.f32 %v10958, %v11198
      %v11200 = vpop.f32.mrb[0].mxu0
      %v11201 = vpop.f32.mrb[0].mxu0
      %v11202 = vadd.f32 %v10958, %v11201
      %v11203 = vpop.f32.mrb[0].mxu0
      %11204 = vmatprep.mubr.bf16.mxu0 0
      %11205 = vmatmul.mubr.bf16.gmra.mrb[0].mxu0 %v11012
      %v11206 = vpop.f32.mrb[0].mxu0
      %v11207 = vadd.f32 %v10958, %v11206
      %v11208 = vpop.f32.mrb[0].mxu0
      %v11209 = vpop.f32.mrb[0].mxu0
      %v11210 = vadd.f32 %v10958, %v11209
      %v11211 = vpop.f32.mrb[0].mxu0
      %11212 = vmatprep.mubr.bf16.mxu0 0
      %11213 = vmatmul.mubr.bf16.gmra.mrb[0].mxu0 %v11015
      %v11214 = vpop.f32.mrb[0].mxu0
      %v11215 = vadd.f32 %v10958, %v11214
      %v11216 = vpop.f32.mrb[0].mxu0
      %v11217 = vpop.f32.mrb[0].mxu0
      %v11218 = vadd.f32 %v10958, %v11217
      %v11219 = vpop.f32.mrb[0].mxu0
      %11220 = vmatprep.mubr.bf16.mxu0 0
      %11221 = vmatmul.mubr.bf16.gmra.mrb[0].mxu0 %v11018
      %v11222 = vpop.f32.mrb[0].mxu0
      %v11223 = vadd.f32 %v10958, %v11222
      %v11224 = vpop.f32.mrb[0].mxu0
      %v11225 = vpop.f32.mrb[0].mxu0
      %v11226 = vadd.f32 %v10958, %v11225
      %v11227 = vpop.f32.mrb[0].mxu0
      %11228 = vmatprep.mubr.bf16.mxu0 0
      %11229 = vmatmul.mubr.bf16.gmra.mrb[0].mxu0 %v11021
      %v11230 = vpop.f32.mrb[0].mxu0
      %v11231 = vadd.f32 %v10958, %v11230
      %v11232 = vpop.f32.mrb[0].mxu0
      %v11233 = vpop.f32.mrb[0].mxu0
      %v11234 = vadd.f32 %v10958, %v11233
      %v11235 = vpop.f32.mrb[0].mxu0
      %11236 = vmatprep.mubr.bf16.mxu0 0
      %11237 = vmatmul.mubr.bf16.gmra.mrb[0].mxu0 %v11024
      %v11238 = vpop.f32.mrb[0].mxu0
      %v11239 = vadd.f32 %v10958, %v11238
      %v11240 = vpop.f32.mrb[0].mxu0
      %v11241 = vpop.f32.mrb[0].mxu0
      %v11242 = vadd.f32 %v10958, %v11241
      %v11243 = vpop.f32.mrb[0].mxu0
      %11244 = vmatprep.mubr.bf16.mxu0 0
      %11245 = vmatmul.mubr.bf16.gmra.mrb[0].mxu0 %v11027
      %v11246 = vpop.f32.mrb[0].mxu0
      %v11247 = vadd.f32 %v10958, %v11246
      %v11248 = vpop.f32.mrb[0].mxu0
      %v11249 = vpop.f32.mrb[0].mxu0
      %v11250 = vadd.f32 %v10958, %v11249
      %v11251 = vpop.f32.mrb[0].mxu0
      %11252 = vmatprep.mubr.bf16.mxu0 0
      %11253 = vmatmul.mubr.bf16.gmra.mrb[0].mxu0 %v11030
      %v11254 = vpop.f32.mrb[0].mxu0
      %v11255 = vadd.f32 %v10958, %v11254
      %v11256 = vpop.f32.mrb[0].mxu0
      %v11257 = vpop.f32.mrb[0].mxu0
      %v11258 = vadd.f32 %v10958, %v11257
      %v11259 = vpop.f32.mrb[0].mxu0
      %11260 = vmatprep.mubr.bf16.mxu0 0
      %11261 = vmatmul.mubr.bf16.gmra.mrb[0].mxu0 %v11033
      %v11262 = vpop.f32.mrb[0].mxu0
      %v11263 = vadd.f32 %v10958, %v11262
      %v11264 = vpop.f32.mrb[0].mxu0
      %v11265 = vpop.f32.mrb[0].mxu0
      %v11266 = vadd.f32 %v10958, %v11265
      %v11267 = vpop.f32.mrb[0].mxu0
      %11268 = vmatprep.mubr.bf16.mxu0 0
      %11269 = vmatmul.mubr.bf16.gmra.mrb[0].mxu0 %v11036
      %v11270 = vpop.f32.mrb[0].mxu0
      %v11271 = vadd.f32 %v10958, %v11270
      %v11272 = vpop.f32.mrb[0].mxu0
      %v11273 = vpop.f32.mrb[0].mxu0
      %v11274 = vadd.f32 %v10958, %v11273
      %v11275 = vpop.f32.mrb[0].mxu0
      %11276 = vmatprep.mubr.bf16.mxu0 0
      %11277 = vmatmul.mubr.bf16.gmra.mrb[0].mxu0 %v11039
      %v11278 = vpop.f32.mrb[0].mxu0
      %v11279 = vadd.f32 %v10958, %v11278
      %v11280 = vpop.f32.mrb[0].mxu0
      %v11281 = vpop.f32.mrb[0].mxu0
      %v11282 = vadd.f32 %v10958, %v11281
      %v11283 = vpop.f32.mrb[0].mxu0
      %11284 = vmatprep.mubr.bf16.mxu0 0
      %11285 = vmatmul.mubr.bf16.gmra.mrb[0].mxu0 %v11042
      %v11286 = vpop.f32.mrb[0].mxu0
      %v11287 = vadd.f32 %v10958, %v11286
      %v11288 = vpop.f32.mrb[0].mxu0
      %v11289 = vpop.f32.mrb[0].mxu0
      %v11290 = vadd.f32 %v10958, %v11289
      %v11291 = vpop.f32.mrb[0].mxu0
      %11292 = vmatprep.mubr.bf16.mxu0 0
      %11293 = vmatmul.mubr.bf16.gmra.mrb[0].mxu0 %v11045
      %v11294 = vpop.f32.mrb[0].mxu0
      %v11295 = vadd.f32 %v10958, %v11294
      %v11296 = vpop.f32.mrb[0].mxu0
      %v11297 = vpop.f32.mrb[0].mxu0
      %v11298 = vadd.f32 %v10958, %v11297
      %v11299 = vpop.f32.mrb[0].mxu0
      %11300 = vmatprep.mubr.bf16.mxu0 0
      %11301 = vmatmul.mubr.bf16.gmra.mrb[0].mxu0 %v11048
      %v11302 = vpop.f32.mrb[0].mxu0
      %v11303 = vadd.f32 %v10958, %v11302
      %v11304 = vpop.f32.mrb[0].mxu0
      %v11305 = vpop.f32.mrb[0].mxu0
      %v11306 = vadd.f32 %v10958, %v11305
      %v11307 = vpop.f32.mrb[0].mxu0
      %11308 = vmatprep.mubr.bf16.mxu0 0
      %11309 = vmatmul.mubr.bf16.gmra.mrb[0].mxu0 %v11051
      %v11310 = vpop.f32.mrb[0].mxu0
      %v11311 = vadd.f32 %v10958, %v11310
      %v11312 = vpop.f32.mrb[0].mxu0
      %v11313 = vpop.f32.mrb[0].mxu0
      %v11314 = vadd.f32 %v10958, %v11313
      %v11315 = vpop.f32.mrb[0].mxu0
      %11316 = vmatprep.mubr.bf16.mxu0 0
      %11317 = vmatmul.mubr.bf16.gmra.mrb[0].mxu0 %v11054
      %v11318 = vpop.f32.mrb[0].mxu0
      %v11319 = vadd.f32 %v10958, %v11318
      %v11320 = vpop.f32.mrb[0].mxu0
      %v11321 = vpop.f32.mrb[0].mxu0
      %v11322 = vadd.f32 %v10958, %v11321
      %v11323 = vpop.f32.mrb[0].mxu0
      %11324 = vmatprep.mubr.bf16.mxu0 0
      %11325 = vmatmul.mubr.bf16.gmra.mrb[0].mxu0 %v11057
      %v11326 = vpop.f32.mrb[0].mxu0
      %v11327 = vadd.f32 %v10958, %v11326
      %v11328 = vpop.f32.mrb[0].mxu0
      %v11329 = vpop.f32.mrb[0].mxu0
      %v11330 = vadd.f32 %v10958, %v11329
      %v11331 = vpop.f32.mrb[0].mxu0
      %11332 = vmatprep.mubr.bf16.mxu0 0
      %11333 = vmatmul.mubr.bf16.gmra.mrb[0].mxu0 %v11060
      %v11334 = vpop.f32.mrb[0].mxu0
      %v11335 = vadd.f32 %v10958, %v11334
      %v11336 = vpop.f32.mrb[0].mxu0
      %v11337 = vpop.f32.mrb[0].mxu0
      %v11338 = vadd.f32 %v10958, %v11337
      %v11339 = vpop.f32.mrb[0].mxu0
      %11340 = vmatprep.mubr.bf16.mxu0 0
      %11341 = vmatmul.mubr.bf16.gmra.mrb[0].mxu0 %v11063
      %v11342 = vpop.f32.mrb[0].mxu0
      %v11343 = vadd.f32 %v10958, %v11342
      %v11344 = vpop.f32.mrb[0].mxu0
      %v11345 = vpop.f32.mrb[0].mxu0
      %v11346 = vadd.f32 %v10958, %v11345
      %v11347 = vpop.f32.mrb[0].mxu0
      %11348 = vmatprep.mubr.bf16.mxu0 0
      %11349 = vmatmul.mubr.bf16.gmra.mrb[0].mxu0 %v11066
      %v11350 = vpop.f32.mrb[0].mxu0
      %v11351 = vadd.f32 %v10958, %v11350
      %v11352 = vpop.f32.mrb[0].mxu0
      %v11353 = vpop.f32.mrb[0].mxu0
      %v11354 = vadd.f32 %v10958, %v11353
      %v11355 = vpop.f32.mrb[0].mxu0
      %11356 = vdwg.mxu0
      %11357 = vst.msk [vmem:[%s258] sm:$0xff] %vm380, %v11103
      %11358 = vst.msk [vmem:[%s258 + $0x8] sm:$0xff] %vm380, %v11106
      %11359 = vst.msk [vmem:[%s258 + $0x10] sm:$0xff] %vm380, %v11111
      %11360 = vst.msk [vmem:[%s258 + $0x18] sm:$0xff] %vm380, %v11114
      %11361 = vst.msk [vmem:[%s258 + $0x20] sm:$0xff] %vm380, %v11119
      %11362 = vst.msk [vmem:[%s258 + $0x28] sm:$0xff] %vm380, %v11122
      %11363 = vst.msk [vmem:[%s258 + $0x30] sm:$0xff] %vm380, %v11127
      %11364 = vst.msk [vmem:[%s258 + $0x38] sm:$0xff] %vm380, %v11130
      %11365 = vst.msk [vmem:[%s258 + $0x40] sm:$0xff] %vm380, %v11135
      %11366 = vst.msk [vmem:[%s258 + $0x48] sm:$0xff] %vm380, %v11138
      %11367 = vst.msk [vmem:[%s258 + $0x50] sm:$0xff] %vm380, %v11143
      %11368 = vst.msk [vmem:[%s258 + $0x58] sm:$0xff] %vm380, %v11146
      %11369 = vst.msk [vmem:[%s258 + $0x60] sm:$0xff] %vm380, %v11151
      %11370 = vst.msk [vmem:[%s258 + $0x68] sm:$0xff] %vm380, %v11154
      %11371 = vst.msk [vmem:[%s258 + $0x70] sm:$0xff] %vm380, %v11159
      %11372 = vst.msk [vmem:[%s258 + $0x78] sm:$0xff] %vm380, %v11162
      %11373 = vst.msk [vmem:[%s258 + $0x80] sm:$0xff] %vm380, %v11167
      %11374 = vst.msk [vmem:[%s258 + $0x88] sm:$0xff] %vm380, %v11170
      %11375 = vst.msk [vmem:[%s258 + $0x90] sm:$0xff] %vm380, %v11175
      %11376 = vst.msk [vmem:[%s258 + $0x98] sm:$0xff] %vm380, %v11178
      %11377 = vst.msk [vmem:[%s258 + $0xa0] sm:$0xff] %vm380, %v11183
      %11378 = vst.msk [vmem:[%s258 + $0xa8] sm:$0xff] %vm380, %v11186
      %11379 = vst.msk [vmem:[%s258 + $0xb0] sm:$0xff] %vm380, %v11191
      %11380 = vst.msk [vmem:[%s258 + $0xb8] sm:$0xff] %vm380, %v11194
      %11381 = vst.msk [vmem:[%s258 + $0xc0] sm:$0xff] %vm380, %v11199
      %11382 = vst.msk [vmem:[%s258 + $0xc8] sm:$0xff] %vm380, %v11202
      %11383 = vst.msk [vmem:[%s258 + $0xd0] sm:$0xff] %vm380, %v11207
      %11384 = vst.msk [vmem:[%s258 + $0xd8] sm:$0xff] %vm380, %v11210
      %11385 = vst.msk [vmem:[%s258 + $0xe0] sm:$0xff] %vm380, %v11215
      %11386 = vst.msk [vmem:[%s258 + $0xe8] sm:$0xff] %vm380, %v11218
      %11387 = vst.msk [vmem:[%s258 + $0xf0] sm:$0xff] %vm380, %v11223
      %11388 = vst.msk [vmem:[%s258 + $0xf8] sm:$0xff] %vm380, %v11226
      %11389 = vst.msk [vmem:[%s258 + $0x100] sm:$0xff] %vm380, %v11231
      %11390 = vst.msk [vmem:[%s258 + $0x108] sm:$0xff] %vm380, %v11234
      %11391 = vst.msk [vmem:[%s258 + $0x110] sm:$0xff] %vm380, %v11239
      %11392 = vst.msk [vmem:[%s258 + $0x118] sm:$0xff] %vm380, %v11242
      %11393 = vst.msk [vmem:[%s258 + $0x120] sm:$0xff] %vm380, %v11247
      %11394 = vst.msk [vmem:[%s258 + $0x128] sm:$0xff] %vm380, %v11250
      %11395 = vst.msk [vmem:[%s258 + $0x130] sm:$0xff] %vm380, %v11255
      %11396 = vst.msk [vmem:[%s258 + $0x138] sm:$0xff] %vm380, %v11258
      %11397 = vst.msk [vmem:[%s258 + $0x140] sm:$0xff] %vm380, %v11263
      %11398 = vst.msk [vmem:[%s258 + $0x148] sm:$0xff] %vm380, %v11266
      %11399 = vst.msk [vmem:[%s258 + $0x150] sm:$0xff] %vm380, %v11271
      %11400 = vst.msk [vmem:[%s258 + $0x158] sm:$0xff] %vm380, %v11274
      %11401 = vst.msk [vmem:[%s258 + $0x160] sm:$0xff] %vm380, %v11279
      %11402 = vst.msk [vmem:[%s258 + $0x168] sm:$0xff] %vm380, %v11282
      %11403 = vst.msk [vmem:[%s258 + $0x170] sm:$0xff] %vm380, %v11287
      %11404 = vst.msk [vmem:[%s258 + $0x178] sm:$0xff] %vm380, %v11290
      %11405 = vst.msk [vmem:[%s258 + $0x180] sm:$0xff] %vm380, %v11295
      %11406 = vst.msk [vmem:[%s258 + $0x188] sm:$0xff] %vm380, %v11298
      %11407 = vst.msk [vmem:[%s258 + $0x190] sm:$0xff] %vm380, %v11303
      %11408 = vst.msk [vmem:[%s258 + $0x198] sm:$0xff] %vm380, %v11306
      %11409 = vst.msk [vmem:[%s258 + $0x1a0] sm:$0xff] %vm380, %v11311
      %11410 = vst.msk [vmem:[%s258 + $0x1a8] sm:$0xff] %vm380, %v11314
      %11411 = vst.msk [vmem:[%s258 + $0x1b0] sm:$0xff] %vm380, %v11319
      %11412 = vst.msk [vmem:[%s258 + $0x1b8] sm:$0xff] %vm380, %v11322
      %11413 = vst.msk [vmem:[%s258 + $0x1c0] sm:$0xff] %vm380, %v11327
      %11414 = vst.msk [vmem:[%s258 + $0x1c8] sm:$0xff] %vm380, %v11330
      %11415 = vst.msk [vmem:[%s258 + $0x1d0] sm:$0xff] %vm380, %v11335
      %11416 = vst.msk [vmem:[%s258 + $0x1d8] sm:$0xff] %vm380, %v11338
      %11417 = vst.msk [vmem:[%s258 + $0x1e0] sm:$0xff] %vm380, %v11343
      %11418 = vst.msk [vmem:[%s258 + $0x1e8] sm:$0xff] %vm380, %v11346
      %11419 = vst.msk [vmem:[%s258 + $0x1f0] sm:$0xff] %vm380, %v11351
      %11420 = vst.msk [vmem:[%s258 + $0x1f8] sm:$0xff] %vm380, %v11354
      %s11421 = smul.u32 8, %s17
      %p11422 = scmp.lt.s32.totalorder %s11421, 15
      %s11423 = scalar_select %p11422, %s11421, 15
      %s11424 = smul.addr %s11423, 8
      %s11425 = smul.addr %s11424, 8
      %s11426 = scalar_lea.vmem %s6, %s11425
      // Predicated region
      $region45: #{tpu_custom_call.1} parent=43 // pred_check
        %p11427 = pneg %p166
      $region46: #{tpu_custom_call.1} parent=43 // pred_check_branch
        %11429 = sbr.rel (%p11427) target = $region48
      $region47: #{tpu_custom_call.1} parent=43 // pred_region
        %s11430 = smul.u32 8, %s17
      $region48: #{tpu_custom_call.1} parent=43 // pred_fallthru
        _
    $region44: #{tpu_custom_call.1} parent=5 // pred_fallthru
      _
    %p11431 = scmp.le.s32.totalorder 2, %s12
    // Predicated region
    $region49: #{tpu_custom_call.1} parent=5 // pred_check
      %p11432 = pneg %p11431
    $region50: #{tpu_custom_call.1} parent=5 // pred_check_branch
      %11434 = sbr.rel (%p11432) target = $region52
    $region51: #{tpu_custom_call.1} parent=5 // pred_region
      %s11435 = ssub.s32 %s12, 2
      // Predicated region
      $region53: #{tpu_custom_call.1} parent=51 // pred_check
        %p11436 = pneg %p172
      $region54: #{tpu_custom_call.1} parent=51 // pred_check_branch
        %11438 = sbr.rel (%p11436) target = $region56
      $region55: #{tpu_custom_call.1} parent=51 // pred_region
        %s11439 = smul.u32 8, %s18
        %p11440 = scmp.lt.s32.totalorder %s11439, 15
        %s11441 = scalar_select %p11440, %s11439, 15
        %s11442 = smul.addr %s11441, 8
        %s11443 = smul.addr %s11442, 8
        %s11444 = scalar_lea.vmem %s6, %s11443
      $region56: #{tpu_custom_call.1} parent=51 // pred_fallthru
        _
    $region52: #{tpu_custom_call.1} parent=5 // pred_fallthru
      _
  $region6: #{tpu_custom_call.1} parent=0 // loop_footer
    %s16 = sadd.s32 1, %s12
  $region7: #{tpu_custom_call.1} parent=0 // loop_footer_branch
    %11 = sbr.rel target = $region3
  $region8: #{tpu_custom_call.1} parent=0 // loop_exit
    _

</llo_original>
